<compile_context>
chip_gen: v7x
topology: tpu7x:2x2x1
jax: 0.10.0
libtpu: 0.0.40
codegen_flags: <defaults>
</compile_context>

<pallas_src>
import functools
import math

import jax
import jax.numpy as jnp
import numpy as np
from jax.experimental import pallas as pl
from jax.experimental.pallas import tpu as pltpu

POSITION_EMBED_DIM = 60     # matches self.position_embed_dim
IDX_PAD = 16                # neighbor-index slab width (>= knn_num, mult of 8)
INF = float("inf")


# ----------------------------------------------------------------------------
# tiling helpers: pick a tile (multiple of `align`, <= ~target) and pad the
# axis to a multiple of it.  Replaces the old whole-axis fallback (which could
# blow up the per-step VMEM footprint on awkward sizes, esp. v7x 64 MiB VMEM).
# ----------------------------------------------------------------------------
def _round_up(n, m):
    return ((n + m - 1) // m) * m


def _tile_and_pad(n, target, align):
    target = max(align, _round_up(target, align))
    full = _round_up(n, align)
    if full <= target:
        return full, full
    return target, _round_up(n, target)


def _pad_axis(x, axis, new_len):
    pad = new_len - x.shape[axis]
    if pad == 0:
        return x
    widths = [(0, 0)] * x.ndim
    widths[axis] = (0, pad)
    return jnp.pad(x, widths)


# ----------------------------------------------------------------------------
# Kernel 1: row-tiled linear layer  o = x @ w + b
# ----------------------------------------------------------------------------
def _linear_kernel(x_ref, w_ref, b_ref, o_ref):
    o_ref[...] = (
        jnp.dot(x_ref[...], w_ref[...], preferred_element_type=jnp.float32)
        + b_ref[...]
    ).astype(o_ref.dtype)


def linear_pallas(x, w, b, row_tile=1024):
    R, Din = x.shape
    Dout = w.shape[1]
    TR, Rp = _tile_and_pad(R, row_tile, 8)
    xp = _pad_axis(x, 0, Rp)
    out = pl.pallas_call(
        _linear_kernel,
        out_shape=jax.ShapeDtypeStruct((Rp, Dout), jnp.float32),
        grid=(Rp // TR,),
        in_specs=[
            pl.BlockSpec((TR, Din), lambda i: (i, 0)),
            pl.BlockSpec((Din, Dout), lambda i: (0, 0)),
            pl.BlockSpec((1, Dout), lambda i: (0, 0)),
        ],
        out_specs=pl.BlockSpec((TR, Dout), lambda i: (i, 0)),
        compiler_params=pltpu.CompilerParams(dimension_semantics=("parallel",)),
    )(xp, w, b.reshape(1, Dout))
    return out[:R]


# ----------------------------------------------------------------------------
# Kernel 2: fused pairwise sq-distance + streaming top-k (nearest-first).
#   grid = (B, M-tiles, N-tiles), N innermost ("arbitrary").
#   Running best-K distances/indices live in a narrow (TM, 16) VMEM scratch.
#   NOTE: the output block index does not depend on ni and is written only at
#   the LAST ni, relying on Pallas flushing the (resident) output block once
#   per (b, mi) group — do not reorder the grid axes.
#   NOTE: neighbor indices are carried as f32 (exact for N < 2^24).
# ----------------------------------------------------------------------------
def _knn_kernel(q_ref, xt_ref, o_ref, best_d_ref, best_i_ref, *, k, n_valid):
    ni = pl.program_id(2)
    tm = q_ref.shape[1]
    tn = xt_ref.shape[2]

    @pl.when(ni == 0)
    def _init():
        best_d_ref[...] = jnp.full(best_d_ref.shape, INF, best_d_ref.dtype)
        best_i_ref[...] = jnp.zeros(best_i_ref.shape, best_i_ref.dtype)

    q = q_ref[0]                                          # (TM, 3)
    xt = xt_ref[0]                                        # (3, TN)
    qx, qy, qz = q[:, 0:1], q[:, 1:2], q[:, 2:3]
    xx, xy, xz = xt[0:1, :], xt[1:2, :], xt[2:3, :]
    qn = qx * qx + qy * qy + qz * qz                      # (TM, 1)   VPU only
    xn = xx * xx + xy * xy + xz * xz                      # (1, TN)   VPU only
    cross = qx * xx + qy * xy + qz * xz                   # (TM, TN)  VPU (no K=3 MXU)
    dist = qn + xn - 2.0 * cross                          # (TM, TN)

    tile_base = (ni * tn).astype(jnp.float32)
    tile_idx = tile_base + jax.lax.broadcasted_iota(
        jnp.int32, (tm, tn), 1).astype(jnp.float32)
    if n_valid is not None:                               # mask padded N columns
        dist = jnp.where(tile_idx < float(n_valid), dist, INF)

    kcol = jax.lax.broadcasted_iota(jnp.int32, (tm, IDX_PAD), 1)

    # --- tile-local top-k: k unrolled passes over (TM, TN), 2 reduces each ---
    loc_d = jnp.full((tm, IDX_PAD), INF, jnp.float32)
    loc_i = jnp.zeros((tm, IDX_PAD), jnp.float32)
    work = dist
    for kk in range(k):
        mval = jnp.min(work, axis=-1, keepdims=True)
        midx = jnp.min(jnp.where(work == mval, tile_idx, INF),
                       axis=-1, keepdims=True)
        loc_d = jnp.where(kcol == kk, mval, loc_d)
        loc_i = jnp.where(kcol == kk, midx, loc_i)
        work = jnp.where((work == mval) & (tile_idx == midx), INF, work)

    # --- merge tile-local top-k with running best over a narrow 32-lane pool ---
    cand_d = jnp.concatenate([best_d_ref[...], loc_d], axis=-1)   # (TM, 32)
    cand_i = jnp.concatenate([best_i_ref[...], loc_i], axis=-1)
    new_d = jnp.full((tm, IDX_PAD), INF, jnp.float32)
    new_i = jnp.zeros((tm, IDX_PAD), jnp.float32)
    for kk in range(k):
        mval = jnp.min(cand_d, axis=-1, keepdims=True)
        midx = jnp.min(jnp.where(cand_d == mval, cand_i, INF),
                       axis=-1, keepdims=True)
        new_d = jnp.where(kcol == kk, mval, new_d)
        new_i = jnp.where(kcol == kk, midx, new_i)
        cand_d = jnp.where((cand_d == mval) & (cand_i == midx), INF, cand_d)
    best_d_ref[...] = new_d
    best_i_ref[...] = new_i

    @pl.when(ni == pl.num_programs(2) - 1)
    def _emit():
        o_ref[0] = best_i_ref[...].astype(jnp.int32)      # (TM, 16) slab


def knn_pallas(query_xyz, xyz, k, m_tile=256, n_tile=2048):
    B, M, _ = query_xyz.shape
    N = xyz.shape[1]
    assert k <= IDX_PAD
    TM, Mp = _tile_and_pad(M, m_tile, 8)        # TM in sublanes -> align 8
    TN, Np = _tile_and_pad(N, n_tile, 128)      # TN in lanes    -> align 128
    qp = _pad_axis(query_xyz, 1, Mp)
    xp = _pad_axis(xyz, 1, Np)
    xyz_t = jnp.transpose(xp, (0, 2, 1))        # (B, 3, Np) glue
    n_valid = N if Np != N else None

    idx_pad = pl.pallas_call(
        functools.partial(_knn_kernel, k=k, n_valid=n_valid),
        out_shape=jax.ShapeDtypeStruct((B, Mp, IDX_PAD), jnp.int32),
        grid=(B, Mp // TM, Np // TN),
        in_specs=[
            pl.BlockSpec((1, TM, 3), lambda b, mi, ni: (b, mi, 0)),
            pl.BlockSpec((1, 3, TN), lambda b, mi, ni: (b, 0, ni)),
        ],
        out_specs=pl.BlockSpec((1, TM, IDX_PAD), lambda b, mi, ni: (b, mi, 0)),
        scratch_shapes=[
            pltpu.VMEM((TM, IDX_PAD), jnp.float32),
            pltpu.VMEM((TM, IDX_PAD), jnp.float32),
        ],
        compiler_params=pltpu.CompilerParams(
            dimension_semantics=("parallel", "parallel", "arbitrary")),
    )(qp, xyz_t)
    return idx_pad[:, :M, :k]


# ----------------------------------------------------------------------------
# Kernel 3: fused sincos pos-embed + fc_position MLP + belonging weight.
#   Inputs arrive in (B, K, M, C) layout; inside the kernel the K per-neighbor
#   slices are stacked along sublanes (TM % 8 == 0) so the embed + both MLP
#   matmuls run ONCE over K*TM rows (MXU stays fed), and the cos() half of the
#   embedding is folded into sin(x + pi/2) via a phase constant (halves EUP).
# ----------------------------------------------------------------------------
def _build_freq_const(embed_dim):
    half = embed_dim // 6                                  # 10
    omega = 1.0 / (10000.0 ** (np.arange(half, dtype=np.float32) / half))
    wf = np.zeros((3, embed_dim), np.float32)
    phase = np.zeros((1, embed_dim), np.float32)
    for ax in range(3):
        base = ax * 2 * half
        wf[ax, base:base + half] = omega                   # sin block
        wf[ax, base + half:base + 2 * half] = omega        # cos block
        phase[0, base + half:base + 2 * half] = np.pi / 2  # cos(x) = sin(x+pi/2)
    return jnp.asarray(wf), jnp.asarray(phase)


def _pos_weight_kernel(gxyz_ref, gfeat_ref, wf_ref, phase_ref,
                       w1_ref, b1_ref, w2_ref, b2_ref, o_ref):
    K = gfeat_ref.shape[1]
    TM = gfeat_ref.shape[2]
    D = gfeat_ref.shape[3]
    wf = wf_ref[...]                                       # (3, 60)
    phase = phase_ref[...]                                 # (1, 60)

    # Stack the K neighbor slices along sublanes (8-aligned) -> batched rows.
    xyz_all = jnp.concatenate([gxyz_ref[0, kk] for kk in range(K)], axis=0)    # (K*TM, 3)
    feat_all = jnp.concatenate([gfeat_ref[0, kk] for kk in range(K)], axis=0)  # (K*TM, D)

    # 3-term VPU broadcast (no degenerate K=3 MXU matmul), single EUP sin.
    arg = (xyz_all[:, 0:1] * wf[0:1, :]
           + xyz_all[:, 1:2] * wf[1:2, :]
           + xyz_all[:, 2:3] * wf[2:3, :])                 # (K*TM, 60)
    emb = jnp.sin(arg + phase)                             # sin & "cos" in one pass
    h = jnp.maximum(
        jnp.dot(emb, w1_ref[...], preferred_element_type=jnp.float32)
        + b1_ref[...], 0.0)                                # (K*TM, D)
    gp = jnp.dot(h, w2_ref[...], preferred_element_type=jnp.float32) + b2_ref[...]
    g = feat_all + gp                                      # (K*TM, D)

    g0 = g[0:TM]                                           # anchor rows (TM, D)
    col = jax.lax.broadcasted_iota(jnp.int32, (TM, K), 1)
    logits = jnp.zeros((TM, K), jnp.float32)
    for kk in range(K):                                    # unrolled, K = 12
        lk = jnp.sum(g[kk * TM:(kk + 1) * TM] * g0, axis=-1, keepdims=True)
        logits = jnp.where(col == kk, lk, logits)

    logits = logits - jnp.max(logits, axis=-1, keepdims=True)
    e = jnp.exp(logits)
    w = e * pl.reciprocal(jnp.sum(e, axis=-1, keepdims=True), approx=True)
    w = w * 0.4 + jnp.where(col == 0, 0.6, 0.0)
    o_ref[0] = w.astype(o_ref.dtype)


def pos_weight_pallas(g_xyz_t, g_feat_t, params, m_tile=512):
    B, K, M, D = g_feat_t.shape
    TM, Mp = _tile_and_pad(M, m_tile, 8)
    gx = _pad_axis(g_xyz_t, 2, Mp)
    gf = _pad_axis(g_feat_t, 2, Mp)
    wf, phase = _build_freq_const(POSITION_EMBED_DIM)
    out = pl.pallas_call(
        _pos_weight_kernel,
        out_shape=jax.ShapeDtypeStruct((B, Mp, K), jnp.float32),
        grid=(B, Mp // TM),
        in_specs=[
            pl.BlockSpec((1, K, TM, 3), lambda b, mi: (b, 0, mi, 0)),
            pl.BlockSpec((1, K, TM, D), lambda b, mi: (b, 0, mi, 0)),
            pl.BlockSpec((3, POSITION_EMBED_DIM), lambda b, mi: (0, 0)),
            pl.BlockSpec((1, POSITION_EMBED_DIM), lambda b, mi: (0, 0)),
            pl.BlockSpec((POSITION_EMBED_DIM, D), lambda b, mi: (0, 0)),
            pl.BlockSpec((1, D), lambda b, mi: (0, 0)),
            pl.BlockSpec((D, D), lambda b, mi: (0, 0)),
            pl.BlockSpec((1, D), lambda b, mi: (0, 0)),
        ],
        out_specs=pl.BlockSpec((1, TM, K), lambda b, mi: (b, mi, 0)),
        compiler_params=pltpu.CompilerParams(
            dimension_semantics=("parallel", "parallel")),
    )(gx, gf, wf, phase,
      params["fcp_w1"], params["fcp_b1"].reshape(1, D),
      params["fcp_w2"], params["fcp_b2"].reshape(1, D))
    return out[:, :M, :]


# ----------------------------------------------------------------------------
# Parameter init (deterministic, PyTorch-Linear-style uniform), (in, out).
# Only parameters actually used by forward() are materialized.
# ----------------------------------------------------------------------------
def _init_linear(key, fan_in, fan_out):
    kw, kb = jax.random.split(key)
    bound = 1.0 / math.sqrt(fan_in)
    w = jax.random.uniform(kw, (fan_in, fan_out), jnp.float32, -bound, bound)
    b = jax.random.uniform(kb, (fan_out,), jnp.float32, -bound, bound)
    return w, b


def init_params(key, input_dim, out_dim):
    k1, k2, k3 = jax.random.split(key, 3)
    prefix_w, prefix_b = _init_linear(k1, input_dim, out_dim)
    fcp_w1, fcp_b1 = _init_linear(k2, POSITION_EMBED_DIM, out_dim)
    fcp_w2, fcp_b2 = _init_linear(k3, out_dim, out_dim)
    # fc_shift / linear_t / linear_g / linear_w / linear_k / fc are unused by
    # the reference forward() and therefore not materialized.
    return dict(prefix_w=prefix_w, prefix_b=prefix_b,
                fcp_w1=fcp_w1, fcp_b1=fcp_b1, fcp_w2=fcp_w2, fcp_b2=fcp_b2)


# ----------------------------------------------------------------------------
# Forward pass (mirrors belong_weight_generator.forward)
# ----------------------------------------------------------------------------
def belong_weight_generator_forward(params, feature1, xyz1, query_xyz,
                                    error=None, shift_chose=None,
                                    normal=None, fps_num=None, knn_num=12,
                                    row_tile=1024, m_tile=256, n_tile=2048,
                                    w_m_tile=512):
    # Note for v7x (2 TC/chip): keep B * (M/m_tile) >= 2 so both cores get work;
    # defaults keep per-step VMEM well under the 32 MiB scoped limit.
    B, N, Din = feature1.shape
    D = params["prefix_w"].shape[1]

    # feature_1 = prefix_linear(feature1)                               [Pallas]
    feature_1 = linear_pallas(
        feature1.reshape(B * N, Din), params["prefix_w"], params["prefix_b"],
        row_tile=row_tile).reshape(B, N, D)

    # point_index = knn_point(knn_num, xyz1, query_xyz)                 [Pallas]
    point_index = knn_pallas(query_xyz, xyz1, knn_num,
                             m_tile=m_tile, n_tile=n_tile)   # (B, M, K)

    # Neighbor gathers, produced directly in (B, K, M, C) layout.       (glue)
    # TODO(synk): in-kernel DMA gather (see header) to drop this HBM round-trip.
    pidx_t = jnp.transpose(point_index, (0, 2, 1))           # (B, K, M)
    bidx = jnp.arange(B)[:, None, None]
    g_feature_t = feature_1[bidx, pidx_t]                    # (B, K, M, D)
    g_xyz_t = xyz1[bidx, pidx_t] - query_xyz[:, None, :, :]  # (B, K, M, 3)

    # fused sincos embed + fc_position + anchor softmax weight          [Pallas]
    weight = pos_weight_pallas(g_xyz_t, g_feature_t, params, m_tile=w_m_tile)
    return weight, point_index


# ----------------------------------------------------------------------------
# Pure-JAX reference of the tail (given indices), for validation only.
# ----------------------------------------------------------------------------
def _ref_weight_from_idx(params, feature1, xyz1, query_xyz, idx):
    P = jax.lax.Precision.HIGHEST
    B = feature1.shape[0]
    feature_1 = jnp.dot(feature1, params["prefix_w"], precision=P) + params["prefix_b"]
    bidx = jnp.arange(B)[:, None, None]
    g_feat = feature_1[bidx, idx]
    g_xyz = xyz1[bidx, idx] - query_xyz[:, :, None, :]
    half = POSITION_EMBED_DIM // 6
    omega = 1.0 / (10000.0 ** (jnp.arange(half, dtype=jnp.float32) / half))
    parts = []
    for ax in range(3):
        out = g_xyz[..., ax:ax + 1] * omega
        parts += [jnp.sin(out), jnp.cos(out)]
    emb = jnp.concatenate(parts, axis=-1)
    h = jax.nn.relu(jnp.dot(emb, params["fcp_w1"], precision=P) + params["fcp_b1"])
    gp = jnp.dot(h, params["fcp_w2"], precision=P) + params["fcp_b2"]
    g = g_feat + gp
    logits = jnp.einsum("bmkd,bmd->bmk", g, g[:, :, 0], precision=P)
    w = jax.nn.softmax(logits, axis=-1) * 0.4
    return w.at[:, :, 0].add(0.6)


# ----------------------------------------------------------------------------
# Test harness
# ----------------------------------------------------------------------------
def _run_case(key, B, N, M, input_dim, out_dim, knn_num,
              row_tile, m_tile, n_tile, w_m_tile):
    kf, kx, kq, kp = jax.random.split(key, 4)
    feature1 = jax.random.normal(kf, (B, N, input_dim), jnp.float32)
    xyz1 = jax.random.uniform(kx, (B, N, 3), jnp.float32)
    query_xyz = jax.random.uniform(kq, (B, M, 3), jnp.float32)
    error = jnp.zeros((B, M, 1), jnp.float32)        # unused by forward()
    shift_chose = jnp.zeros((B, M), jnp.int32)       # unused by forward()
    params = init_params(kp, input_dim, out_dim)

    fwd = jax.jit(belong_weight_generator_forward,
                  static_argnames=("knn_num", "row_tile", "m_tile",
                                   "n_tile", "w_m_tile"))
    weight, point_index = fwd(params, feature1, xyz1, query_xyz, error,
                              shift_chose, knn_num=knn_num,
                              row_tile=row_tile, m_tile=m_tile,
                              n_tile=n_tile, w_m_tile=w_m_tile)
    weight, point_index = jax.block_until_ready((weight, point_index))

    # ---- shape / dtype checks -------------------------------------------
    assert weight.shape == (B, M, knn_num)
    assert point_index.shape == (B, M, knn_num)
    assert bool(jnp.all((point_index >= 0) & (point_index < N)))

    # ---- kernel 1 direct check ------------------------------------------
    feat_k = linear_pallas(feature1.reshape(B * N, input_dim),
                           params["prefix_w"], params["prefix_b"],
                           row_tile=row_tile)
    feat_ref = jnp.dot(feature1.reshape(B * N, input_dim), params["prefix_w"],
                       precision=jax.lax.Precision.HIGHEST) + params["prefix_b"]
    assert bool(jnp.all(jnp.abs(feat_k - feat_ref) < 3e-2))

    # ---- kNN check: selected distances must equal the true k smallest ----
    qn = jnp.sum(query_xyz * query_xyz, -1, keepdims=True)
    xn = jnp.sum(xyz1 * xyz1, -1)[:, None, :]
    cross = jnp.einsum("bmc,bnc->bmn", query_xyz, xyz1,
                       precision=jax.lax.Precision.HIGHEST)
    sqd = qn + xn - 2.0 * cross
    d_sel = jnp.take_along_axis(sqd, point_index, axis=2)
    d_ref = -jax.lax.top_k(-sqd, knn_num)[0]
    assert bool(jnp.all(jnp.abs(d_sel - d_ref) < 1e-4))
    sorted_idx = jnp.sort(point_index, axis=-1)
    assert bool(jnp.all(sorted_idx[..., 1:] != sorted_idx[..., :-1]))

    # ---- weight check against pure-JAX tail on the kernel's indices ------
    ref_w = _ref_weight_from_idx(params, feature1, xyz1, query_xyz, point_index)
    assert bool(jnp.all(jnp.abs(weight - ref_w) < 1e-2))
    row_sums = jnp.sum(weight, axis=-1)
    assert bool(jnp.all(jnp.abs(row_sums - 1.0) < 5e-3))
    assert bool(jnp.all(weight[:, :, 0] >= 0.6))


if __name__ == "__main__":
    key = jax.random.PRNGKey(0)
    k1, k2 = jax.random.split(key)

    # Aligned shapes, small tiles so the multi-N-tile merge and multi-M-tile
    # paths are exercised.
    _run_case(k1, B=2, N=256, M=32, input_dim=32, out_dim=32, knn_num=12,
              row_tile=256, m_tile=16, n_tile=128, w_m_tile=16)

    # Ragged shapes exercising the padding + in-kernel N-mask path.
    _run_case(k2, B=2, N=250, M=20, input_dim=32, out_dim=32, knn_num=12,
              row_tile=256, m_tile=16, n_tile=128, w_m_tile=16)

    print("KERNEL_OK")
</pallas_src>

<mosaic_0001>
module attributes {stable_mosaic.version = 11 : i64} {
  func.func @_knn_kernel(%arg0: i32, %arg1: i32, %arg2: i32, %arg3: memref<1x16x3xf32, #tpu.memory_space<vmem>>, %arg4: memref<1x3x128xf32, #tpu.memory_space<vmem>>, %arg5: memref<1x16x16xi32, #tpu.memory_space<vmem>>, %arg6: memref<16x16xf32, #tpu.memory_space<vmem>>, %arg7: memref<16x16xf32, #tpu.memory_space<vmem>>) attributes {dimension_semantics = [#tpu.dimension_semantics<parallel>, #tpu.dimension_semantics<parallel>, #tpu.dimension_semantics<arbitrary>], iteration_bounds = array<i64: 2, 2, 2>, scalar_prefetch = 0 : i64, scratch_operands = 2 : i64, tpu.core_type = #tpu.core_type<tc>, window_params = [{transform_indices = @transform_0, window_bounds = array<i64: 1, 16, 3>}, {transform_indices = @transform_1, window_bounds = array<i64: 1, 3, 128>}, {transform_indices = @transform_2, window_bounds = array<i64: 1, 16, 16>}]} {
    %c0_i32 = arith.constant 0 : i32
    %0 = arith.cmpi eq, %arg2, %c0_i32 : i32
    %1 = arith.extui %0 : i1 to i32
    %c0_i32_0 = arith.constant 0 : i32
    %2 = arith.cmpi ne, %1, %c0_i32_0 : i32
    scf.if %2 {
      %cst_151 = arith.constant 0x7F800000 : f32
      %646 = vector.broadcast %cst_151 : f32 to vector<16x16xf32>
      %c0_152 = arith.constant 0 : index
      %c0_153 = arith.constant 0 : index
      %647 = vector.load %arg6[%c0_152, %c0_153] : memref<16x16xf32, #tpu.memory_space<vmem>>, vector<16x16xf32>
      tpu.vector_store %arg6[%c0_152, %c0_153], %646 {strides = array<i32>} : memref<16x16xf32, #tpu.memory_space<vmem>>, vector<16x16xf32>,
      %cst_154 = arith.constant 0.000000e+00 : f32
      %648 = vector.broadcast %cst_154 : f32 to vector<16x16xf32>
      %c0_155 = arith.constant 0 : index
      %c0_156 = arith.constant 0 : index
      %649 = vector.load %arg7[%c0_155, %c0_156] : memref<16x16xf32, #tpu.memory_space<vmem>>, vector<16x16xf32>
      tpu.vector_store %arg7[%c0_155, %c0_156], %648 {strides = array<i32>} : memref<16x16xf32, #tpu.memory_space<vmem>>, vector<16x16xf32>,
    } else {
    }
    %c0 = arith.constant 0 : index
    %c0_1 = arith.constant 0 : index
    %c0_2 = arith.constant 0 : index
    %3 = vector.load %arg3[%c0, %c0_1, %c0_2] : memref<1x16x3xf32, #tpu.memory_space<vmem>>, vector<1x16x3xf32>
    %4 = vector.shape_cast %3 : vector<1x16x3xf32> to vector<16x3xf32>
    %c0_3 = arith.constant 0 : index
    %c0_4 = arith.constant 0 : index
    %c0_5 = arith.constant 0 : index
    %5 = vector.load %arg4[%c0_3, %c0_4, %c0_5] : memref<1x3x128xf32, #tpu.memory_space<vmem>>, vector<1x3x128xf32>
    %6 = vector.shape_cast %5 : vector<1x3x128xf32> to vector<3x128xf32>
    %7 = vector.extract_strided_slice %4 {offsets = [0, 0], sizes = [16, 1], strides = [1, 1]} : vector<16x3xf32> to vector<16x1xf32>
    %8 = vector.extract_strided_slice %4 {offsets = [0, 1], sizes = [16, 1], strides = [1, 1]} : vector<16x3xf32> to vector<16x1xf32>
    %9 = vector.extract_strided_slice %4 {offsets = [0, 2], sizes = [16, 1], strides = [1, 1]} : vector<16x3xf32> to vector<16x1xf32>
    %10 = vector.extract_strided_slice %6 {offsets = [0, 0], sizes = [1, 128], strides = [1, 1]} : vector<3x128xf32> to vector<1x128xf32>
    %11 = vector.extract_strided_slice %6 {offsets = [1, 0], sizes = [1, 128], strides = [1, 1]} : vector<3x128xf32> to vector<1x128xf32>
    %12 = vector.extract_strided_slice %6 {offsets = [2, 0], sizes = [1, 128], strides = [1, 1]} : vector<3x128xf32> to vector<1x128xf32>
    %13 = arith.mulf %7, %7 : vector<16x1xf32>
    %14 = arith.mulf %8, %8 : vector<16x1xf32>
    %15 = arith.addf %13, %14 : vector<16x1xf32>
    %16 = arith.mulf %9, %9 : vector<16x1xf32>
    %17 = arith.addf %15, %16 : vector<16x1xf32>
    %18 = arith.mulf %10, %10 : vector<1x128xf32>
    %19 = arith.mulf %11, %11 : vector<1x128xf32>
    %20 = arith.addf %18, %19 : vector<1x128xf32>
    %21 = arith.mulf %12, %12 : vector<1x128xf32>
    %22 = arith.addf %20, %21 : vector<1x128xf32>
    %23 = vector.broadcast %7 : vector<16x1xf32> to vector<16x128xf32>
    %24 = vector.broadcast %10 : vector<1x128xf32> to vector<16x128xf32>
    %25 = arith.mulf %23, %24 : vector<16x128xf32>
    %26 = vector.broadcast %8 : vector<16x1xf32> to vector<16x128xf32>
    %27 = vector.broadcast %11 : vector<1x128xf32> to vector<16x128xf32>
    %28 = arith.mulf %26, %27 : vector<16x128xf32>
    %29 = arith.addf %25, %28 : vector<16x128xf32>
    %30 = vector.broadcast %9 : vector<16x1xf32> to vector<16x128xf32>
    %31 = vector.broadcast %12 : vector<1x128xf32> to vector<16x128xf32>
    %32 = arith.mulf %30, %31 : vector<16x128xf32>
    %33 = arith.addf %29, %32 : vector<16x128xf32>
    %34 = vector.broadcast %17 : vector<16x1xf32> to vector<16x128xf32>
    %35 = vector.broadcast %22 : vector<1x128xf32> to vector<16x128xf32>
    %36 = arith.addf %34, %35 : vector<16x128xf32>
    %cst = arith.constant 2.000000e+00 : f32
    %37 = vector.broadcast %cst : f32 to vector<16x128xf32>
    %38 = arith.mulf %37, %33 : vector<16x128xf32>
    %39 = arith.subf %36, %38 : vector<16x128xf32>
    %c128_i32 = arith.constant 128 : i32
    %40 = arith.muli %arg2, %c128_i32 : i32
    %41 = arith.sitofp %40 : i32 to f32
    %42 = tpu.iota {dimensions = array<i32: 1>} : vector<16x128xi32>
    %43 = arith.sitofp %42 : vector<16x128xi32> to vector<16x128xf32>
    %44 = vector.broadcast %41 : f32 to vector<16x128xf32>
    %45 = arith.addf %44, %43 : vector<16x128xf32>
    %46 = tpu.iota {dimensions = array<i32: 1>} : vector<16x16xi32>
    %cst_6 = arith.constant 0x7F800000 : f32
    %47 = vector.broadcast %cst_6 : f32 to vector<16x16xf32>
    %cst_7 = arith.constant 0.000000e+00 : f32
    %48 = vector.broadcast %cst_7 : f32 to vector<16x16xf32>
    %cst_8 = arith.constant dense<0x7F800000> : vector<16xf32>
    %49 = vector.multi_reduction <minimumf>, %39, %cst_8 [1] : vector<16x128xf32> to vector<16xf32>
    %50 = vector.shape_cast %49 : vector<16xf32> to vector<16x1xf32>
    %51 = vector.broadcast %50 : vector<16x1xf32> to vector<16x128xf32>
    %52 = arith.cmpf oeq, %39, %51 : vector<16x128xf32>
    %cst_9 = arith.constant 0x7F800000 : f32
    %53 = vector.broadcast %cst_9 : f32 to vector<16x128xf32>
    %54 = arith.select %52, %45, %53 : vector<16x128xi1>, vector<16x128xf32>
    %cst_10 = arith.constant dense<0x7F800000> : vector<16xf32>
    %55 = vector.multi_reduction <minimumf>, %54, %cst_10 [1] : vector<16x128xf32> to vector<16xf32>
    %56 = vector.shape_cast %55 : vector<16xf32> to vector<16x1xf32>
    %c0_i32_11 = arith.constant 0 : i32
    %57 = vector.broadcast %c0_i32_11 : i32 to vector<16x16xi32>
    %58 = arith.cmpi eq, %46, %57 : vector<16x16xi32>
    %59 = vector.shape_cast %50 : vector<16x1xf32> to vector<16x1xf32>
    %60 = vector.broadcast %59 : vector<16x1xf32> to vector<16x16xf32>
    %61 = arith.select %58, %60, %47 : vector<16x16xi1>, vector<16x16xf32>
    %c0_i32_12 = arith.constant 0 : i32
    %62 = vector.broadcast %c0_i32_12 : i32 to vector<16x16xi32>
    %63 = arith.cmpi eq, %46, %62 : vector<16x16xi32>
    %64 = vector.shape_cast %56 : vector<16x1xf32> to vector<16x1xf32>
    %65 = vector.broadcast %64 : vector<16x1xf32> to vector<16x16xf32>
    %66 = arith.select %63, %65, %48 : vector<16x16xi1>, vector<16x16xf32>
    %67 = vector.broadcast %50 : vector<16x1xf32> to vector<16x128xf32>
    %68 = arith.cmpf oeq, %39, %67 : vector<16x128xf32>
    %69 = vector.broadcast %56 : vector<16x1xf32> to vector<16x128xf32>
    %70 = arith.cmpf oeq, %45, %69 : vector<16x128xf32>
    %71 = arith.andi %68, %70 : vector<16x128xi1>
    %cst_13 = arith.constant 0x7F800000 : f32
    %72 = vector.broadcast %cst_13 : f32 to vector<16x128xf32>
    %73 = arith.select %71, %72, %39 : vector<16x128xi1>, vector<16x128xf32>
    %cst_14 = arith.constant dense<0x7F800000> : vector<16xf32>
    %74 = vector.multi_reduction <minimumf>, %73, %cst_14 [1] : vector<16x128xf32> to vector<16xf32>
    %75 = vector.shape_cast %74 : vector<16xf32> to vector<16x1xf32>
    %76 = vector.broadcast %75 : vector<16x1xf32> to vector<16x128xf32>
    %77 = arith.cmpf oeq, %73, %76 : vector<16x128xf32>
    %cst_15 = arith.constant 0x7F800000 : f32
    %78 = vector.broadcast %cst_15 : f32 to vector<16x128xf32>
    %79 = arith.select %77, %45, %78 : vector<16x128xi1>, vector<16x128xf32>
    %cst_16 = arith.constant dense<0x7F800000> : vector<16xf32>
    %80 = vector.multi_reduction <minimumf>, %79, %cst_16 [1] : vector<16x128xf32> to vector<16xf32>
    %81 = vector.shape_cast %80 : vector<16xf32> to vector<16x1xf32>
    %c1_i32 = arith.constant 1 : i32
    %82 = vector.broadcast %c1_i32 : i32 to vector<16x16xi32>
    %83 = arith.cmpi eq, %46, %82 : vector<16x16xi32>
    %84 = vector.shape_cast %75 : vector<16x1xf32> to vector<16x1xf32>
    %85 = vector.broadcast %84 : vector<16x1xf32> to vector<16x16xf32>
    %86 = arith.select %83, %85, %61 : vector<16x16xi1>, vector<16x16xf32>
    %c1_i32_17 = arith.constant 1 : i32
    %87 = vector.broadcast %c1_i32_17 : i32 to vector<16x16xi32>
    %88 = arith.cmpi eq, %46, %87 : vector<16x16xi32>
    %89 = vector.shape_cast %81 : vector<16x1xf32> to vector<16x1xf32>
    %90 = vector.broadcast %89 : vector<16x1xf32> to vector<16x16xf32>
    %91 = arith.select %88, %90, %66 : vector<16x16xi1>, vector<16x16xf32>
    %92 = vector.broadcast %75 : vector<16x1xf32> to vector<16x128xf32>
    %93 = arith.cmpf oeq, %73, %92 : vector<16x128xf32>
    %94 = vector.broadcast %81 : vector<16x1xf32> to vector<16x128xf32>
    %95 = arith.cmpf oeq, %45, %94 : vector<16x128xf32>
    %96 = arith.andi %93, %95 : vector<16x128xi1>
    %cst_18 = arith.constant 0x7F800000 : f32
    %97 = vector.broadcast %cst_18 : f32 to vector<16x128xf32>
    %98 = arith.select %96, %97, %73 : vector<16x128xi1>, vector<16x128xf32>
    %cst_19 = arith.constant dense<0x7F800000> : vector<16xf32>
    %99 = vector.multi_reduction <minimumf>, %98, %cst_19 [1] : vector<16x128xf32> to vector<16xf32>
    %100 = vector.shape_cast %99 : vector<16xf32> to vector<16x1xf32>
    %101 = vector.broadcast %100 : vector<16x1xf32> to vector<16x128xf32>
    %102 = arith.cmpf oeq, %98, %101 : vector<16x128xf32>
    %cst_20 = arith.constant 0x7F800000 : f32
    %103 = vector.broadcast %cst_20 : f32 to vector<16x128xf32>
    %104 = arith.select %102, %45, %103 : vector<16x128xi1>, vector<16x128xf32>
    %cst_21 = arith.constant dense<0x7F800000> : vector<16xf32>
    %105 = vector.multi_reduction <minimumf>, %104, %cst_21 [1] : vector<16x128xf32> to vector<16xf32>
    %106 = vector.shape_cast %105 : vector<16xf32> to vector<16x1xf32>
    %c2_i32 = arith.constant 2 : i32
    %107 = vector.broadcast %c2_i32 : i32 to vector<16x16xi32>
    %108 = arith.cmpi eq, %46, %107 : vector<16x16xi32>
    %109 = vector.shape_cast %100 : vector<16x1xf32> to vector<16x1xf32>
    %110 = vector.broadcast %109 : vector<16x1xf32> to vector<16x16xf32>
    %111 = arith.select %108, %110, %86 : vector<16x16xi1>, vector<16x16xf32>
    %c2_i32_22 = arith.constant 2 : i32
    %112 = vector.broadcast %c2_i32_22 : i32 to vector<16x16xi32>
    %113 = arith.cmpi eq, %46, %112 : vector<16x16xi32>
    %114 = vector.shape_cast %106 : vector<16x1xf32> to vector<16x1xf32>
    %115 = vector.broadcast %114 : vector<16x1xf32> to vector<16x16xf32>
    %116 = arith.select %113, %115, %91 : vector<16x16xi1>, vector<16x16xf32>
    %117 = vector.broadcast %100 : vector<16x1xf32> to vector<16x128xf32>
    %118 = arith.cmpf oeq, %98, %117 : vector<16x128xf32>
    %119 = vector.broadcast %106 : vector<16x1xf32> to vector<16x128xf32>
    %120 = arith.cmpf oeq, %45, %119 : vector<16x128xf32>
    %121 = arith.andi %118, %120 : vector<16x128xi1>
    %cst_23 = arith.constant 0x7F800000 : f32
    %122 = vector.broadcast %cst_23 : f32 to vector<16x128xf32>
    %123 = arith.select %121, %122, %98 : vector<16x128xi1>, vector<16x128xf32>
    %cst_24 = arith.constant dense<0x7F800000> : vector<16xf32>
    %124 = vector.multi_reduction <minimumf>, %123, %cst_24 [1] : vector<16x128xf32> to vector<16xf32>
    %125 = vector.shape_cast %124 : vector<16xf32> to vector<16x1xf32>
    %126 = vector.broadcast %125 : vector<16x1xf32> to vector<16x128xf32>
    %127 = arith.cmpf oeq, %123, %126 : vector<16x128xf32>
    %cst_25 = arith.constant 0x7F800000 : f32
    %128 = vector.broadcast %cst_25 : f32 to vector<16x128xf32>
    %129 = arith.select %127, %45, %128 : vector<16x128xi1>, vector<16x128xf32>
    %cst_26 = arith.constant dense<0x7F800000> : vector<16xf32>
    %130 = vector.multi_reduction <minimumf>, %129, %cst_26 [1] : vector<16x128xf32> to vector<16xf32>
    %131 = vector.shape_cast %130 : vector<16xf32> to vector<16x1xf32>
    %c3_i32 = arith.constant 3 : i32
    %132 = vector.broadcast %c3_i32 : i32 to vector<16x16xi32>
    %133 = arith.cmpi eq, %46, %132 : vector<16x16xi32>
    %134 = vector.shape_cast %125 : vector<16x1xf32> to vector<16x1xf32>
    %135 = vector.broadcast %134 : vector<16x1xf32> to vector<16x16xf32>
    %136 = arith.select %133, %135, %111 : vector<16x16xi1>, vector<16x16xf32>
    %c3_i32_27 = arith.constant 3 : i32
    %137 = vector.broadcast %c3_i32_27 : i32 to vector<16x16xi32>
    %138 = arith.cmpi eq, %46, %137 : vector<16x16xi32>
    %139 = vector.shape_cast %131 : vector<16x1xf32> to vector<16x1xf32>
    %140 = vector.broadcast %139 : vector<16x1xf32> to vector<16x16xf32>
    %141 = arith.select %138, %140, %116 : vector<16x16xi1>, vector<16x16xf32>
    %142 = vector.broadcast %125 : vector<16x1xf32> to vector<16x128xf32>
    %143 = arith.cmpf oeq, %123, %142 : vector<16x128xf32>
    %144 = vector.broadcast %131 : vector<16x1xf32> to vector<16x128xf32>
    %145 = arith.cmpf oeq, %45, %144 : vector<16x128xf32>
    %146 = arith.andi %143, %145 : vector<16x128xi1>
    %cst_28 = arith.constant 0x7F800000 : f32
    %147 = vector.broadcast %cst_28 : f32 to vector<16x128xf32>
    %148 = arith.select %146, %147, %123 : vector<16x128xi1>, vector<16x128xf32>
    %cst_29 = arith.constant dense<0x7F800000> : vector<16xf32>
    %149 = vector.multi_reduction <minimumf>, %148, %cst_29 [1] : vector<16x128xf32> to vector<16xf32>
    %150 = vector.shape_cast %149 : vector<16xf32> to vector<16x1xf32>
    %151 = vector.broadcast %150 : vector<16x1xf32> to vector<16x128xf32>
    %152 = arith.cmpf oeq, %148, %151 : vector<16x128xf32>
    %cst_30 = arith.constant 0x7F800000 : f32
    %153 = vector.broadcast %cst_30 : f32 to vector<16x128xf32>
    %154 = arith.select %152, %45, %153 : vector<16x128xi1>, vector<16x128xf32>
    %cst_31 = arith.constant dense<0x7F800000> : vector<16xf32>
    %155 = vector.multi_reduction <minimumf>, %154, %cst_31 [1] : vector<16x128xf32> to vector<16xf32>
    %156 = vector.shape_cast %155 : vector<16xf32> to vector<16x1xf32>
    %c4_i32 = arith.constant 4 : i32
    %157 = vector.broadcast %c4_i32 : i32 to vector<16x16xi32>
    %158 = arith.cmpi eq, %46, %157 : vector<16x16xi32>
    %159 = vector.shape_cast %150 : vector<16x1xf32> to vector<16x1xf32>
    %160 = vector.broadcast %159 : vector<16x1xf32> to vector<16x16xf32>
    %161 = arith.select %158, %160, %136 : vector<16x16xi1>, vector<16x16xf32>
    %c4_i32_32 = arith.constant 4 : i32
    %162 = vector.broadcast %c4_i32_32 : i32 to vector<16x16xi32>
    %163 = arith.cmpi eq, %46, %162 : vector<16x16xi32>
    %164 = vector.shape_cast %156 : vector<16x1xf32> to vector<16x1xf32>
    %165 = vector.broadcast %164 : vector<16x1xf32> to vector<16x16xf32>
    %166 = arith.select %163, %165, %141 : vector<16x16xi1>, vector<16x16xf32>
    %167 = vector.broadcast %150 : vector<16x1xf32> to vector<16x128xf32>
    %168 = arith.cmpf oeq, %148, %167 : vector<16x128xf32>
    %169 = vector.broadcast %156 : vector<16x1xf32> to vector<16x128xf32>
    %170 = arith.cmpf oeq, %45, %169 : vector<16x128xf32>
    %171 = arith.andi %168, %170 : vector<16x128xi1>
    %cst_33 = arith.constant 0x7F800000 : f32
    %172 = vector.broadcast %cst_33 : f32 to vector<16x128xf32>
    %173 = arith.select %171, %172, %148 : vector<16x128xi1>, vector<16x128xf32>
    %cst_34 = arith.constant dense<0x7F800000> : vector<16xf32>
    %174 = vector.multi_reduction <minimumf>, %173, %cst_34 [1] : vector<16x128xf32> to vector<16xf32>
    %175 = vector.shape_cast %174 : vector<16xf32> to vector<16x1xf32>
    %176 = vector.broadcast %175 : vector<16x1xf32> to vector<16x128xf32>
    %177 = arith.cmpf oeq, %173, %176 : vector<16x128xf32>
    %cst_35 = arith.constant 0x7F800000 : f32
    %178 = vector.broadcast %cst_35 : f32 to vector<16x128xf32>
    %179 = arith.select %177, %45, %178 : vector<16x128xi1>, vector<16x128xf32>
    %cst_36 = arith.constant dense<0x7F800000> : vector<16xf32>
    %180 = vector.multi_reduction <minimumf>, %179, %cst_36 [1] : vector<16x128xf32> to vector<16xf32>
    %181 = vector.shape_cast %180 : vector<16xf32> to vector<16x1xf32>
    %c5_i32 = arith.constant 5 : i32
    %182 = vector.broadcast %c5_i32 : i32 to vector<16x16xi32>
    %183 = arith.cmpi eq, %46, %182 : vector<16x16xi32>
    %184 = vector.shape_cast %175 : vector<16x1xf32> to vector<16x1xf32>
    %185 = vector.broadcast %184 : vector<16x1xf32> to vector<16x16xf32>
    %186 = arith.select %183, %185, %161 : vector<16x16xi1>, vector<16x16xf32>
    %c5_i32_37 = arith.constant 5 : i32
    %187 = vector.broadcast %c5_i32_37 : i32 to vector<16x16xi32>
    %188 = arith.cmpi eq, %46, %187 : vector<16x16xi32>
    %189 = vector.shape_cast %181 : vector<16x1xf32> to vector<16x1xf32>
    %190 = vector.broadcast %189 : vector<16x1xf32> to vector<16x16xf32>
    %191 = arith.select %188, %190, %166 : vector<16x16xi1>, vector<16x16xf32>
    %192 = vector.broadcast %175 : vector<16x1xf32> to vector<16x128xf32>
    %193 = arith.cmpf oeq, %173, %192 : vector<16x128xf32>
    %194 = vector.broadcast %181 : vector<16x1xf32> to vector<16x128xf32>
    %195 = arith.cmpf oeq, %45, %194 : vector<16x128xf32>
    %196 = arith.andi %193, %195 : vector<16x128xi1>
    %cst_38 = arith.constant 0x7F800000 : f32
    %197 = vector.broadcast %cst_38 : f32 to vector<16x128xf32>
    %198 = arith.select %196, %197, %173 : vector<16x128xi1>, vector<16x128xf32>
    %cst_39 = arith.constant dense<0x7F800000> : vector<16xf32>
    %199 = vector.multi_reduction <minimumf>, %198, %cst_39 [1] : vector<16x128xf32> to vector<16xf32>
    %200 = vector.shape_cast %199 : vector<16xf32> to vector<16x1xf32>
    %201 = vector.broadcast %200 : vector<16x1xf32> to vector<16x128xf32>
    %202 = arith.cmpf oeq, %198, %201 : vector<16x128xf32>
    %cst_40 = arith.constant 0x7F800000 : f32
    %203 = vector.broadcast %cst_40 : f32 to vector<16x128xf32>
    %204 = arith.select %202, %45, %203 : vector<16x128xi1>, vector<16x128xf32>
    %cst_41 = arith.constant dense<0x7F800000> : vector<16xf32>
    %205 = vector.multi_reduction <minimumf>, %204, %cst_41 [1] : vector<16x128xf32> to vector<16xf32>
    %206 = vector.shape_cast %205 : vector<16xf32> to vector<16x1xf32>
    %c6_i32 = arith.constant 6 : i32
    %207 = vector.broadcast %c6_i32 : i32 to vector<16x16xi32>
    %208 = arith.cmpi eq, %46, %207 : vector<16x16xi32>
    %209 = vector.shape_cast %200 : vector<16x1xf32> to vector<16x1xf32>
    %210 = vector.broadcast %209 : vector<16x1xf32> to vector<16x16xf32>
    %211 = arith.select %208, %210, %186 : vector<16x16xi1>, vector<16x16xf32>
    %c6_i32_42 = arith.constant 6 : i32
    %212 = vector.broadcast %c6_i32_42 : i32 to vector<16x16xi32>
    %213 = arith.cmpi eq, %46, %212 : vector<16x16xi32>
    %214 = vector.shape_cast %206 : vector<16x1xf32> to vector<16x1xf32>
    %215 = vector.broadcast %214 : vector<16x1xf32> to vector<16x16xf32>
    %216 = arith.select %213, %215, %191 : vector<16x16xi1>, vector<16x16xf32>
    %217 = vector.broadcast %200 : vector<16x1xf32> to vector<16x128xf32>
    %218 = arith.cmpf oeq, %198, %217 : vector<16x128xf32>
    %219 = vector.broadcast %206 : vector<16x1xf32> to vector<16x128xf32>
    %220 = arith.cmpf oeq, %45, %219 : vector<16x128xf32>
    %221 = arith.andi %218, %220 : vector<16x128xi1>
    %cst_43 = arith.constant 0x7F800000 : f32
    %222 = vector.broadcast %cst_43 : f32 to vector<16x128xf32>
    %223 = arith.select %221, %222, %198 : vector<16x128xi1>, vector<16x128xf32>
    %cst_44 = arith.constant dense<0x7F800000> : vector<16xf32>
    %224 = vector.multi_reduction <minimumf>, %223, %cst_44 [1] : vector<16x128xf32> to vector<16xf32>
    %225 = vector.shape_cast %224 : vector<16xf32> to vector<16x1xf32>
    %226 = vector.broadcast %225 : vector<16x1xf32> to vector<16x128xf32>
    %227 = arith.cmpf oeq, %223, %226 : vector<16x128xf32>
    %cst_45 = arith.constant 0x7F800000 : f32
    %228 = vector.broadcast %cst_45 : f32 to vector<16x128xf32>
    %229 = arith.select %227, %45, %228 : vector<16x128xi1>, vector<16x128xf32>
    %cst_46 = arith.constant dense<0x7F800000> : vector<16xf32>
    %230 = vector.multi_reduction <minimumf>, %229, %cst_46 [1] : vector<16x128xf32> to vector<16xf32>
    %231 = vector.shape_cast %230 : vector<16xf32> to vector<16x1xf32>
    %c7_i32 = arith.constant 7 : i32
    %232 = vector.broadcast %c7_i32 : i32 to vector<16x16xi32>
    %233 = arith.cmpi eq, %46, %232 : vector<16x16xi32>
    %234 = vector.shape_cast %225 : vector<16x1xf32> to vector<16x1xf32>
    %235 = vector.broadcast %234 : vector<16x1xf32> to vector<16x16xf32>
    %236 = arith.select %233, %235, %211 : vector<16x16xi1>, vector<16x16xf32>
    %c7_i32_47 = arith.constant 7 : i32
    %237 = vector.broadcast %c7_i32_47 : i32 to vector<16x16xi32>
    %238 = arith.cmpi eq, %46, %237 : vector<16x16xi32>
    %239 = vector.shape_cast %231 : vector<16x1xf32> to vector<16x1xf32>
    %240 = vector.broadcast %239 : vector<16x1xf32> to vector<16x16xf32>
    %241 = arith.select %238, %240, %216 : vector<16x16xi1>, vector<16x16xf32>
    %242 = vector.broadcast %225 : vector<16x1xf32> to vector<16x128xf32>
    %243 = arith.cmpf oeq, %223, %242 : vector<16x128xf32>
    %244 = vector.broadcast %231 : vector<16x1xf32> to vector<16x128xf32>
    %245 = arith.cmpf oeq, %45, %244 : vector<16x128xf32>
    %246 = arith.andi %243, %245 : vector<16x128xi1>
    %cst_48 = arith.constant 0x7F800000 : f32
    %247 = vector.broadcast %cst_48 : f32 to vector<16x128xf32>
    %248 = arith.select %246, %247, %223 : vector<16x128xi1>, vector<16x128xf32>
    %cst_49 = arith.constant dense<0x7F800000> : vector<16xf32>
    %249 = vector.multi_reduction <minimumf>, %248, %cst_49 [1] : vector<16x128xf32> to vector<16xf32>
    %250 = vector.shape_cast %249 : vector<16xf32> to vector<16x1xf32>
    %251 = vector.broadcast %250 : vector<16x1xf32> to vector<16x128xf32>
    %252 = arith.cmpf oeq, %248, %251 : vector<16x128xf32>
    %cst_50 = arith.constant 0x7F800000 : f32
    %253 = vector.broadcast %cst_50 : f32 to vector<16x128xf32>
    %254 = arith.select %252, %45, %253 : vector<16x128xi1>, vector<16x128xf32>
    %cst_51 = arith.constant dense<0x7F800000> : vector<16xf32>
    %255 = vector.multi_reduction <minimumf>, %254, %cst_51 [1] : vector<16x128xf32> to vector<16xf32>
    %256 = vector.shape_cast %255 : vector<16xf32> to vector<16x1xf32>
    %c8_i32 = arith.constant 8 : i32
    %257 = vector.broadcast %c8_i32 : i32 to vector<16x16xi32>
    %258 = arith.cmpi eq, %46, %257 : vector<16x16xi32>
    %259 = vector.shape_cast %250 : vector<16x1xf32> to vector<16x1xf32>
    %260 = vector.broadcast %259 : vector<16x1xf32> to vector<16x16xf32>
    %261 = arith.select %258, %260, %236 : vector<16x16xi1>, vector<16x16xf32>
    %c8_i32_52 = arith.constant 8 : i32
    %262 = vector.broadcast %c8_i32_52 : i32 to vector<16x16xi32>
    %263 = arith.cmpi eq, %46, %262 : vector<16x16xi32>
    %264 = vector.shape_cast %256 : vector<16x1xf32> to vector<16x1xf32>
    %265 = vector.broadcast %264 : vector<16x1xf32> to vector<16x16xf32>
    %266 = arith.select %263, %265, %241 : vector<16x16xi1>, vector<16x16xf32>
    %267 = vector.broadcast %250 : vector<16x1xf32> to vector<16x128xf32>
    %268 = arith.cmpf oeq, %248, %267 : vector<16x128xf32>
    %269 = vector.broadcast %256 : vector<16x1xf32> to vector<16x128xf32>
    %270 = arith.cmpf oeq, %45, %269 : vector<16x128xf32>
    %271 = arith.andi %268, %270 : vector<16x128xi1>
    %cst_53 = arith.constant 0x7F800000 : f32
    %272 = vector.broadcast %cst_53 : f32 to vector<16x128xf32>
    %273 = arith.select %271, %272, %248 : vector<16x128xi1>, vector<16x128xf32>
    %cst_54 = arith.constant dense<0x7F800000> : vector<16xf32>
    %274 = vector.multi_reduction <minimumf>, %273, %cst_54 [1] : vector<16x128xf32> to vector<16xf32>
    %275 = vector.shape_cast %274 : vector<16xf32> to vector<16x1xf32>
    %276 = vector.broadcast %275 : vector<16x1xf32> to vector<16x128xf32>
    %277 = arith.cmpf oeq, %273, %276 : vector<16x128xf32>
    %cst_55 = arith.constant 0x7F800000 : f32
    %278 = vector.broadcast %cst_55 : f32 to vector<16x128xf32>
    %279 = arith.select %277, %45, %278 : vector<16x128xi1>, vector<16x128xf32>
    %cst_56 = arith.constant dense<0x7F800000> : vector<16xf32>
    %280 = vector.multi_reduction <minimumf>, %279, %cst_56 [1] : vector<16x128xf32> to vector<16xf32>
    %281 = vector.shape_cast %280 : vector<16xf32> to vector<16x1xf32>
    %c9_i32 = arith.constant 9 : i32
    %282 = vector.broadcast %c9_i32 : i32 to vector<16x16xi32>
    %283 = arith.cmpi eq, %46, %282 : vector<16x16xi32>
    %284 = vector.shape_cast %275 : vector<16x1xf32> to vector<16x1xf32>
    %285 = vector.broadcast %284 : vector<16x1xf32> to vector<16x16xf32>
    %286 = arith.select %283, %285, %261 : vector<16x16xi1>, vector<16x16xf32>
    %c9_i32_57 = arith.constant 9 : i32
    %287 = vector.broadcast %c9_i32_57 : i32 to vector<16x16xi32>
    %288 = arith.cmpi eq, %46, %287 : vector<16x16xi32>
    %289 = vector.shape_cast %281 : vector<16x1xf32> to vector<16x1xf32>
    %290 = vector.broadcast %289 : vector<16x1xf32> to vector<16x16xf32>
    %291 = arith.select %288, %290, %266 : vector<16x16xi1>, vector<16x16xf32>
    %292 = vector.broadcast %275 : vector<16x1xf32> to vector<16x128xf32>
    %293 = arith.cmpf oeq, %273, %292 : vector<16x128xf32>
    %294 = vector.broadcast %281 : vector<16x1xf32> to vector<16x128xf32>
    %295 = arith.cmpf oeq, %45, %294 : vector<16x128xf32>
    %296 = arith.andi %293, %295 : vector<16x128xi1>
    %cst_58 = arith.constant 0x7F800000 : f32
    %297 = vector.broadcast %cst_58 : f32 to vector<16x128xf32>
    %298 = arith.select %296, %297, %273 : vector<16x128xi1>, vector<16x128xf32>
    %cst_59 = arith.constant dense<0x7F800000> : vector<16xf32>
    %299 = vector.multi_reduction <minimumf>, %298, %cst_59 [1] : vector<16x128xf32> to vector<16xf32>
    %300 = vector.shape_cast %299 : vector<16xf32> to vector<16x1xf32>
    %301 = vector.broadcast %300 : vector<16x1xf32> to vector<16x128xf32>
    %302 = arith.cmpf oeq, %298, %301 : vector<16x128xf32>
    %cst_60 = arith.constant 0x7F800000 : f32
    %303 = vector.broadcast %cst_60 : f32 to vector<16x128xf32>
    %304 = arith.select %302, %45, %303 : vector<16x128xi1>, vector<16x128xf32>
    %cst_61 = arith.constant dense<0x7F800000> : vector<16xf32>
    %305 = vector.multi_reduction <minimumf>, %304, %cst_61 [1] : vector<16x128xf32> to vector<16xf32>
    %306 = vector.shape_cast %305 : vector<16xf32> to vector<16x1xf32>
    %c10_i32 = arith.constant 10 : i32
    %307 = vector.broadcast %c10_i32 : i32 to vector<16x16xi32>
    %308 = arith.cmpi eq, %46, %307 : vector<16x16xi32>
    %309 = vector.shape_cast %300 : vector<16x1xf32> to vector<16x1xf32>
    %310 = vector.broadcast %309 : vector<16x1xf32> to vector<16x16xf32>
    %311 = arith.select %308, %310, %286 : vector<16x16xi1>, vector<16x16xf32>
    %c10_i32_62 = arith.constant 10 : i32
    %312 = vector.broadcast %c10_i32_62 : i32 to vector<16x16xi32>
    %313 = arith.cmpi eq, %46, %312 : vector<16x16xi32>
    %314 = vector.shape_cast %306 : vector<16x1xf32> to vector<16x1xf32>
    %315 = vector.broadcast %314 : vector<16x1xf32> to vector<16x16xf32>
    %316 = arith.select %313, %315, %291 : vector<16x16xi1>, vector<16x16xf32>
    %317 = vector.broadcast %300 : vector<16x1xf32> to vector<16x128xf32>
    %318 = arith.cmpf oeq, %298, %317 : vector<16x128xf32>
    %319 = vector.broadcast %306 : vector<16x1xf32> to vector<16x128xf32>
    %320 = arith.cmpf oeq, %45, %319 : vector<16x128xf32>
    %321 = arith.andi %318, %320 : vector<16x128xi1>
    %cst_63 = arith.constant 0x7F800000 : f32
    %322 = vector.broadcast %cst_63 : f32 to vector<16x128xf32>
    %323 = arith.select %321, %322, %298 : vector<16x128xi1>, vector<16x128xf32>
    %cst_64 = arith.constant dense<0x7F800000> : vector<16xf32>
    %324 = vector.multi_reduction <minimumf>, %323, %cst_64 [1] : vector<16x128xf32> to vector<16xf32>
    %325 = vector.shape_cast %324 : vector<16xf32> to vector<16x1xf32>
    %326 = vector.broadcast %325 : vector<16x1xf32> to vector<16x128xf32>
    %327 = arith.cmpf oeq, %323, %326 : vector<16x128xf32>
    %cst_65 = arith.constant 0x7F800000 : f32
    %328 = vector.broadcast %cst_65 : f32 to vector<16x128xf32>
    %329 = arith.select %327, %45, %328 : vector<16x128xi1>, vector<16x128xf32>
    %cst_66 = arith.constant dense<0x7F800000> : vector<16xf32>
    %330 = vector.multi_reduction <minimumf>, %329, %cst_66 [1] : vector<16x128xf32> to vector<16xf32>
    %331 = vector.shape_cast %330 : vector<16xf32> to vector<16x1xf32>
    %c11_i32 = arith.constant 11 : i32
    %332 = vector.broadcast %c11_i32 : i32 to vector<16x16xi32>
    %333 = arith.cmpi eq, %46, %332 : vector<16x16xi32>
    %334 = vector.shape_cast %325 : vector<16x1xf32> to vector<16x1xf32>
    %335 = vector.broadcast %334 : vector<16x1xf32> to vector<16x16xf32>
    %336 = arith.select %333, %335, %311 : vector<16x16xi1>, vector<16x16xf32>
    %c11_i32_67 = arith.constant 11 : i32
    %337 = vector.broadcast %c11_i32_67 : i32 to vector<16x16xi32>
    %338 = arith.cmpi eq, %46, %337 : vector<16x16xi32>
    %339 = vector.shape_cast %331 : vector<16x1xf32> to vector<16x1xf32>
    %340 = vector.broadcast %339 : vector<16x1xf32> to vector<16x16xf32>
    %341 = arith.select %338, %340, %316 : vector<16x16xi1>, vector<16x16xf32>
    %c0_68 = arith.constant 0 : index
    %c0_69 = arith.constant 0 : index
    %342 = vector.load %arg6[%c0_68, %c0_69] : memref<16x16xf32, #tpu.memory_space<vmem>>, vector<16x16xf32>
    %343 = tpu.concatenate %342, %336 in 1 : vector<16x16xf32>, vector<16x16xf32> -> vector<16x32xf32>
    %c0_70 = arith.constant 0 : index
    %c0_71 = arith.constant 0 : index
    %344 = vector.load %arg7[%c0_70, %c0_71] : memref<16x16xf32, #tpu.memory_space<vmem>>, vector<16x16xf32>
    %345 = tpu.concatenate %344, %341 in 1 : vector<16x16xf32>, vector<16x16xf32> -> vector<16x32xf32>
    %cst_72 = arith.constant 0x7F800000 : f32
    %346 = vector.broadcast %cst_72 : f32 to vector<16x16xf32>
    %cst_73 = arith.constant 0.000000e+00 : f32
    %347 = vector.broadcast %cst_73 : f32 to vector<16x16xf32>
    %cst_74 = arith.constant dense<0x7F800000> : vector<16xf32>
    %348 = vector.multi_reduction <minimumf>, %343, %cst_74 [1] : vector<16x32xf32> to vector<16xf32>
    %349 = vector.shape_cast %348 : vector<16xf32> to vector<16x1xf32>
    %350 = vector.broadcast %349 : vector<16x1xf32> to vector<16x32xf32>
    %351 = arith.cmpf oeq, %343, %350 : vector<16x32xf32>
    %cst_75 = arith.constant 0x7F800000 : f32
    %352 = vector.broadcast %cst_75 : f32 to vector<16x32xf32>
    %353 = arith.select %351, %345, %352 : vector<16x32xi1>, vector<16x32xf32>
    %cst_76 = arith.constant dense<0x7F800000> : vector<16xf32>
    %354 = vector.multi_reduction <minimumf>, %353, %cst_76 [1] : vector<16x32xf32> to vector<16xf32>
    %355 = vector.shape_cast %354 : vector<16xf32> to vector<16x1xf32>
    %c0_i32_77 = arith.constant 0 : i32
    %356 = vector.broadcast %c0_i32_77 : i32 to vector<16x16xi32>
    %357 = arith.cmpi eq, %46, %356 : vector<16x16xi32>
    %358 = vector.shape_cast %349 : vector<16x1xf32> to vector<16x1xf32>
    %359 = vector.broadcast %358 : vector<16x1xf32> to vector<16x16xf32>
    %360 = arith.select %357, %359, %346 : vector<16x16xi1>, vector<16x16xf32>
    %c0_i32_78 = arith.constant 0 : i32
    %361 = vector.broadcast %c0_i32_78 : i32 to vector<16x16xi32>
    %362 = arith.cmpi eq, %46, %361 : vector<16x16xi32>
    %363 = vector.shape_cast %355 : vector<16x1xf32> to vector<16x1xf32>
    %364 = vector.broadcast %363 : vector<16x1xf32> to vector<16x16xf32>
    %365 = arith.select %362, %364, %347 : vector<16x16xi1>, vector<16x16xf32>
    %366 = vector.broadcast %349 : vector<16x1xf32> to vector<16x32xf32>
    %367 = arith.cmpf oeq, %343, %366 : vector<16x32xf32>
    %368 = vector.broadcast %355 : vector<16x1xf32> to vector<16x32xf32>
    %369 = arith.cmpf oeq, %345, %368 : vector<16x32xf32>
    %370 = arith.andi %367, %369 : vector<16x32xi1>
    %cst_79 = arith.constant 0x7F800000 : f32
    %371 = vector.broadcast %cst_79 : f32 to vector<16x32xf32>
    %372 = arith.select %370, %371, %343 : vector<16x32xi1>, vector<16x32xf32>
    %cst_80 = arith.constant dense<0x7F800000> : vector<16xf32>
    %373 = vector.multi_reduction <minimumf>, %372, %cst_80 [1] : vector<16x32xf32> to vector<16xf32>
    %374 = vector.shape_cast %373 : vector<16xf32> to vector<16x1xf32>
    %375 = vector.broadcast %374 : vector<16x1xf32> to vector<16x32xf32>
    %376 = arith.cmpf oeq, %372, %375 : vector<16x32xf32>
    %cst_81 = arith.constant 0x7F800000 : f32
    %377 = vector.broadcast %cst_81 : f32 to vector<16x32xf32>
    %378 = arith.select %376, %345, %377 : vector<16x32xi1>, vector<16x32xf32>
    %cst_82 = arith.constant dense<0x7F800000> : vector<16xf32>
    %379 = vector.multi_reduction <minimumf>, %378, %cst_82 [1] : vector<16x32xf32> to vector<16xf32>
    %380 = vector.shape_cast %379 : vector<16xf32> to vector<16x1xf32>
    %c1_i32_83 = arith.constant 1 : i32
    %381 = vector.broadcast %c1_i32_83 : i32 to vector<16x16xi32>
    %382 = arith.cmpi eq, %46, %381 : vector<16x16xi32>
    %383 = vector.shape_cast %374 : vector<16x1xf32> to vector<16x1xf32>
    %384 = vector.broadcast %383 : vector<16x1xf32> to vector<16x16xf32>
    %385 = arith.select %382, %384, %360 : vector<16x16xi1>, vector<16x16xf32>
    %c1_i32_84 = arith.constant 1 : i32
    %386 = vector.broadcast %c1_i32_84 : i32 to vector<16x16xi32>
    %387 = arith.cmpi eq, %46, %386 : vector<16x16xi32>
    %388 = vector.shape_cast %380 : vector<16x1xf32> to vector<16x1xf32>
    %389 = vector.broadcast %388 : vector<16x1xf32> to vector<16x16xf32>
    %390 = arith.select %387, %389, %365 : vector<16x16xi1>, vector<16x16xf32>
    %391 = vector.broadcast %374 : vector<16x1xf32> to vector<16x32xf32>
    %392 = arith.cmpf oeq, %372, %391 : vector<16x32xf32>
    %393 = vector.broadcast %380 : vector<16x1xf32> to vector<16x32xf32>
    %394 = arith.cmpf oeq, %345, %393 : vector<16x32xf32>
    %395 = arith.andi %392, %394 : vector<16x32xi1>
    %cst_85 = arith.constant 0x7F800000 : f32
    %396 = vector.broadcast %cst_85 : f32 to vector<16x32xf32>
    %397 = arith.select %395, %396, %372 : vector<16x32xi1>, vector<16x32xf32>
    %cst_86 = arith.constant dense<0x7F800000> : vector<16xf32>
    %398 = vector.multi_reduction <minimumf>, %397, %cst_86 [1] : vector<16x32xf32> to vector<16xf32>
    %399 = vector.shape_cast %398 : vector<16xf32> to vector<16x1xf32>
    %400 = vector.broadcast %399 : vector<16x1xf32> to vector<16x32xf32>
    %401 = arith.cmpf oeq, %397, %400 : vector<16x32xf32>
    %cst_87 = arith.constant 0x7F800000 : f32
    %402 = vector.broadcast %cst_87 : f32 to vector<16x32xf32>
    %403 = arith.select %401, %345, %402 : vector<16x32xi1>, vector<16x32xf32>
    %cst_88 = arith.constant dense<0x7F800000> : vector<16xf32>
    %404 = vector.multi_reduction <minimumf>, %403, %cst_88 [1] : vector<16x32xf32> to vector<16xf32>
    %405 = vector.shape_cast %404 : vector<16xf32> to vector<16x1xf32>
    %c2_i32_89 = arith.constant 2 : i32
    %406 = vector.broadcast %c2_i32_89 : i32 to vector<16x16xi32>
    %407 = arith.cmpi eq, %46, %406 : vector<16x16xi32>
    %408 = vector.shape_cast %399 : vector<16x1xf32> to vector<16x1xf32>
    %409 = vector.broadcast %408 : vector<16x1xf32> to vector<16x16xf32>
    %410 = arith.select %407, %409, %385 : vector<16x16xi1>, vector<16x16xf32>
    %c2_i32_90 = arith.constant 2 : i32
    %411 = vector.broadcast %c2_i32_90 : i32 to vector<16x16xi32>
    %412 = arith.cmpi eq, %46, %411 : vector<16x16xi32>
    %413 = vector.shape_cast %405 : vector<16x1xf32> to vector<16x1xf32>
    %414 = vector.broadcast %413 : vector<16x1xf32> to vector<16x16xf32>
    %415 = arith.select %412, %414, %390 : vector<16x16xi1>, vector<16x16xf32>
    %416 = vector.broadcast %399 : vector<16x1xf32> to vector<16x32xf32>
    %417 = arith.cmpf oeq, %397, %416 : vector<16x32xf32>
    %418 = vector.broadcast %405 : vector<16x1xf32> to vector<16x32xf32>
    %419 = arith.cmpf oeq, %345, %418 : vector<16x32xf32>
    %420 = arith.andi %417, %419 : vector<16x32xi1>
    %cst_91 = arith.constant 0x7F800000 : f32
    %421 = vector.broadcast %cst_91 : f32 to vector<16x32xf32>
    %422 = arith.select %420, %421, %397 : vector<16x32xi1>, vector<16x32xf32>
    %cst_92 = arith.constant dense<0x7F800000> : vector<16xf32>
    %423 = vector.multi_reduction <minimumf>, %422, %cst_92 [1] : vector<16x32xf32> to vector<16xf32>
    %424 = vector.shape_cast %423 : vector<16xf32> to vector<16x1xf32>
    %425 = vector.broadcast %424 : vector<16x1xf32> to vector<16x32xf32>
    %426 = arith.cmpf oeq, %422, %425 : vector<16x32xf32>
    %cst_93 = arith.constant 0x7F800000 : f32
    %427 = vector.broadcast %cst_93 : f32 to vector<16x32xf32>
    %428 = arith.select %426, %345, %427 : vector<16x32xi1>, vector<16x32xf32>
    %cst_94 = arith.constant dense<0x7F800000> : vector<16xf32>
    %429 = vector.multi_reduction <minimumf>, %428, %cst_94 [1] : vector<16x32xf32> to vector<16xf32>
    %430 = vector.shape_cast %429 : vector<16xf32> to vector<16x1xf32>
    %c3_i32_95 = arith.constant 3 : i32
    %431 = vector.broadcast %c3_i32_95 : i32 to vector<16x16xi32>
    %432 = arith.cmpi eq, %46, %431 : vector<16x16xi32>
    %433 = vector.shape_cast %424 : vector<16x1xf32> to vector<16x1xf32>
    %434 = vector.broadcast %433 : vector<16x1xf32> to vector<16x16xf32>
    %435 = arith.select %432, %434, %410 : vector<16x16xi1>, vector<16x16xf32>
    %c3_i32_96 = arith.constant 3 : i32
    %436 = vector.broadcast %c3_i32_96 : i32 to vector<16x16xi32>
    %437 = arith.cmpi eq, %46, %436 : vector<16x16xi32>
    %438 = vector.shape_cast %430 : vector<16x1xf32> to vector<16x1xf32>
    %439 = vector.broadcast %438 : vector<16x1xf32> to vector<16x16xf32>
    %440 = arith.select %437, %439, %415 : vector<16x16xi1>, vector<16x16xf32>
    %441 = vector.broadcast %424 : vector<16x1xf32> to vector<16x32xf32>
    %442 = arith.cmpf oeq, %422, %441 : vector<16x32xf32>
    %443 = vector.broadcast %430 : vector<16x1xf32> to vector<16x32xf32>
    %444 = arith.cmpf oeq, %345, %443 : vector<16x32xf32>
    %445 = arith.andi %442, %444 : vector<16x32xi1>
    %cst_97 = arith.constant 0x7F800000 : f32
    %446 = vector.broadcast %cst_97 : f32 to vector<16x32xf32>
    %447 = arith.select %445, %446, %422 : vector<16x32xi1>, vector<16x32xf32>
    %cst_98 = arith.constant dense<0x7F800000> : vector<16xf32>
    %448 = vector.multi_reduction <minimumf>, %447, %cst_98 [1] : vector<16x32xf32> to vector<16xf32>
    %449 = vector.shape_cast %448 : vector<16xf32> to vector<16x1xf32>
    %450 = vector.broadcast %449 : vector<16x1xf32> to vector<16x32xf32>
    %451 = arith.cmpf oeq, %447, %450 : vector<16x32xf32>
    %cst_99 = arith.constant 0x7F800000 : f32
    %452 = vector.broadcast %cst_99 : f32 to vector<16x32xf32>
    %453 = arith.select %451, %345, %452 : vector<16x32xi1>, vector<16x32xf32>
    %cst_100 = arith.constant dense<0x7F800000> : vector<16xf32>
    %454 = vector.multi_reduction <minimumf>, %453, %cst_100 [1] : vector<16x32xf32> to vector<16xf32>
    %455 = vector.shape_cast %454 : vector<16xf32> to vector<16x1xf32>
    %c4_i32_101 = arith.constant 4 : i32
    %456 = vector.broadcast %c4_i32_101 : i32 to vector<16x16xi32>
    %457 = arith.cmpi eq, %46, %456 : vector<16x16xi32>
    %458 = vector.shape_cast %449 : vector<16x1xf32> to vector<16x1xf32>
    %459 = vector.broadcast %458 : vector<16x1xf32> to vector<16x16xf32>
    %460 = arith.select %457, %459, %435 : vector<16x16xi1>, vector<16x16xf32>
    %c4_i32_102 = arith.constant 4 : i32
    %461 = vector.broadcast %c4_i32_102 : i32 to vector<16x16xi32>
    %462 = arith.cmpi eq, %46, %461 : vector<16x16xi32>
    %463 = vector.shape_cast %455 : vector<16x1xf32> to vector<16x1xf32>
    %464 = vector.broadcast %463 : vector<16x1xf32> to vector<16x16xf32>
    %465 = arith.select %462, %464, %440 : vector<16x16xi1>, vector<16x16xf32>
    %466 = vector.broadcast %449 : vector<16x1xf32> to vector<16x32xf32>
    %467 = arith.cmpf oeq, %447, %466 : vector<16x32xf32>
    %468 = vector.broadcast %455 : vector<16x1xf32> to vector<16x32xf32>
    %469 = arith.cmpf oeq, %345, %468 : vector<16x32xf32>
    %470 = arith.andi %467, %469 : vector<16x32xi1>
    %cst_103 = arith.constant 0x7F800000 : f32
    %471 = vector.broadcast %cst_103 : f32 to vector<16x32xf32>
    %472 = arith.select %470, %471, %447 : vector<16x32xi1>, vector<16x32xf32>
    %cst_104 = arith.constant dense<0x7F800000> : vector<16xf32>
    %473 = vector.multi_reduction <minimumf>, %472, %cst_104 [1] : vector<16x32xf32> to vector<16xf32>
    %474 = vector.shape_cast %473 : vector<16xf32> to vector<16x1xf32>
    %475 = vector.broadcast %474 : vector<16x1xf32> to vector<16x32xf32>
    %476 = arith.cmpf oeq, %472, %475 : vector<16x32xf32>
    %cst_105 = arith.constant 0x7F800000 : f32
    %477 = vector.broadcast %cst_105 : f32 to vector<16x32xf32>
    %478 = arith.select %476, %345, %477 : vector<16x32xi1>, vector<16x32xf32>
    %cst_106 = arith.constant dense<0x7F800000> : vector<16xf32>
    %479 = vector.multi_reduction <minimumf>, %478, %cst_106 [1] : vector<16x32xf32> to vector<16xf32>
    %480 = vector.shape_cast %479 : vector<16xf32> to vector<16x1xf32>
    %c5_i32_107 = arith.constant 5 : i32
    %481 = vector.broadcast %c5_i32_107 : i32 to vector<16x16xi32>
    %482 = arith.cmpi eq, %46, %481 : vector<16x16xi32>
    %483 = vector.shape_cast %474 : vector<16x1xf32> to vector<16x1xf32>
    %484 = vector.broadcast %483 : vector<16x1xf32> to vector<16x16xf32>
    %485 = arith.select %482, %484, %460 : vector<16x16xi1>, vector<16x16xf32>
    %c5_i32_108 = arith.constant 5 : i32
    %486 = vector.broadcast %c5_i32_108 : i32 to vector<16x16xi32>
    %487 = arith.cmpi eq, %46, %486 : vector<16x16xi32>
    %488 = vector.shape_cast %480 : vector<16x1xf32> to vector<16x1xf32>
    %489 = vector.broadcast %488 : vector<16x1xf32> to vector<16x16xf32>
    %490 = arith.select %487, %489, %465 : vector<16x16xi1>, vector<16x16xf32>
    %491 = vector.broadcast %474 : vector<16x1xf32> to vector<16x32xf32>
    %492 = arith.cmpf oeq, %472, %491 : vector<16x32xf32>
    %493 = vector.broadcast %480 : vector<16x1xf32> to vector<16x32xf32>
    %494 = arith.cmpf oeq, %345, %493 : vector<16x32xf32>
    %495 = arith.andi %492, %494 : vector<16x32xi1>
    %cst_109 = arith.constant 0x7F800000 : f32
    %496 = vector.broadcast %cst_109 : f32 to vector<16x32xf32>
    %497 = arith.select %495, %496, %472 : vector<16x32xi1>, vector<16x32xf32>
    %cst_110 = arith.constant dense<0x7F800000> : vector<16xf32>
    %498 = vector.multi_reduction <minimumf>, %497, %cst_110 [1] : vector<16x32xf32> to vector<16xf32>
    %499 = vector.shape_cast %498 : vector<16xf32> to vector<16x1xf32>
    %500 = vector.broadcast %499 : vector<16x1xf32> to vector<16x32xf32>
    %501 = arith.cmpf oeq, %497, %500 : vector<16x32xf32>
    %cst_111 = arith.constant 0x7F800000 : f32
    %502 = vector.broadcast %cst_111 : f32 to vector<16x32xf32>
    %503 = arith.select %501, %345, %502 : vector<16x32xi1>, vector<16x32xf32>
    %cst_112 = arith.constant dense<0x7F800000> : vector<16xf32>
    %504 = vector.multi_reduction <minimumf>, %503, %cst_112 [1] : vector<16x32xf32> to vector<16xf32>
    %505 = vector.shape_cast %504 : vector<16xf32> to vector<16x1xf32>
    %c6_i32_113 = arith.constant 6 : i32
    %506 = vector.broadcast %c6_i32_113 : i32 to vector<16x16xi32>
    %507 = arith.cmpi eq, %46, %506 : vector<16x16xi32>
    %508 = vector.shape_cast %499 : vector<16x1xf32> to vector<16x1xf32>
    %509 = vector.broadcast %508 : vector<16x1xf32> to vector<16x16xf32>
    %510 = arith.select %507, %509, %485 : vector<16x16xi1>, vector<16x16xf32>
    %c6_i32_114 = arith.constant 6 : i32
    %511 = vector.broadcast %c6_i32_114 : i32 to vector<16x16xi32>
    %512 = arith.cmpi eq, %46, %511 : vector<16x16xi32>
    %513 = vector.shape_cast %505 : vector<16x1xf32> to vector<16x1xf32>
    %514 = vector.broadcast %513 : vector<16x1xf32> to vector<16x16xf32>
    %515 = arith.select %512, %514, %490 : vector<16x16xi1>, vector<16x16xf32>
    %516 = vector.broadcast %499 : vector<16x1xf32> to vector<16x32xf32>
    %517 = arith.cmpf oeq, %497, %516 : vector<16x32xf32>
    %518 = vector.broadcast %505 : vector<16x1xf32> to vector<16x32xf32>
    %519 = arith.cmpf oeq, %345, %518 : vector<16x32xf32>
    %520 = arith.andi %517, %519 : vector<16x32xi1>
    %cst_115 = arith.constant 0x7F800000 : f32
    %521 = vector.broadcast %cst_115 : f32 to vector<16x32xf32>
    %522 = arith.select %520, %521, %497 : vector<16x32xi1>, vector<16x32xf32>
    %cst_116 = arith.constant dense<0x7F800000> : vector<16xf32>
    %523 = vector.multi_reduction <minimumf>, %522, %cst_116 [1] : vector<16x32xf32> to vector<16xf32>
    %524 = vector.shape_cast %523 : vector<16xf32> to vector<16x1xf32>
    %525 = vector.broadcast %524 : vector<16x1xf32> to vector<16x32xf32>
    %526 = arith.cmpf oeq, %522, %525 : vector<16x32xf32>
    %cst_117 = arith.constant 0x7F800000 : f32
    %527 = vector.broadcast %cst_117 : f32 to vector<16x32xf32>
    %528 = arith.select %526, %345, %527 : vector<16x32xi1>, vector<16x32xf32>
    %cst_118 = arith.constant dense<0x7F800000> : vector<16xf32>
    %529 = vector.multi_reduction <minimumf>, %528, %cst_118 [1] : vector<16x32xf32> to vector<16xf32>
    %530 = vector.shape_cast %529 : vector<16xf32> to vector<16x1xf32>
    %c7_i32_119 = arith.constant 7 : i32
    %531 = vector.broadcast %c7_i32_119 : i32 to vector<16x16xi32>
    %532 = arith.cmpi eq, %46, %531 : vector<16x16xi32>
    %533 = vector.shape_cast %524 : vector<16x1xf32> to vector<16x1xf32>
    %534 = vector.broadcast %533 : vector<16x1xf32> to vector<16x16xf32>
    %535 = arith.select %532, %534, %510 : vector<16x16xi1>, vector<16x16xf32>
    %c7_i32_120 = arith.constant 7 : i32
    %536 = vector.broadcast %c7_i32_120 : i32 to vector<16x16xi32>
    %537 = arith.cmpi eq, %46, %536 : vector<16x16xi32>
    %538 = vector.shape_cast %530 : vector<16x1xf32> to vector<16x1xf32>
    %539 = vector.broadcast %538 : vector<16x1xf32> to vector<16x16xf32>
    %540 = arith.select %537, %539, %515 : vector<16x16xi1>, vector<16x16xf32>
    %541 = vector.broadcast %524 : vector<16x1xf32> to vector<16x32xf32>
    %542 = arith.cmpf oeq, %522, %541 : vector<16x32xf32>
    %543 = vector.broadcast %530 : vector<16x1xf32> to vector<16x32xf32>
    %544 = arith.cmpf oeq, %345, %543 : vector<16x32xf32>
    %545 = arith.andi %542, %544 : vector<16x32xi1>
    %cst_121 = arith.constant 0x7F800000 : f32
    %546 = vector.broadcast %cst_121 : f32 to vector<16x32xf32>
    %547 = arith.select %545, %546, %522 : vector<16x32xi1>, vector<16x32xf32>
    %cst_122 = arith.constant dense<0x7F800000> : vector<16xf32>
    %548 = vector.multi_reduction <minimumf>, %547, %cst_122 [1] : vector<16x32xf32> to vector<16xf32>
    %549 = vector.shape_cast %548 : vector<16xf32> to vector<16x1xf32>
    %550 = vector.broadcast %549 : vector<16x1xf32> to vector<16x32xf32>
    %551 = arith.cmpf oeq, %547, %550 : vector<16x32xf32>
    %cst_123 = arith.constant 0x7F800000 : f32
    %552 = vector.broadcast %cst_123 : f32 to vector<16x32xf32>
    %553 = arith.select %551, %345, %552 : vector<16x32xi1>, vector<16x32xf32>
    %cst_124 = arith.constant dense<0x7F800000> : vector<16xf32>
    %554 = vector.multi_reduction <minimumf>, %553, %cst_124 [1] : vector<16x32xf32> to vector<16xf32>
    %555 = vector.shape_cast %554 : vector<16xf32> to vector<16x1xf32>
    %c8_i32_125 = arith.constant 8 : i32
    %556 = vector.broadcast %c8_i32_125 : i32 to vector<16x16xi32>
    %557 = arith.cmpi eq, %46, %556 : vector<16x16xi32>
    %558 = vector.shape_cast %549 : vector<16x1xf32> to vector<16x1xf32>
    %559 = vector.broadcast %558 : vector<16x1xf32> to vector<16x16xf32>
    %560 = arith.select %557, %559, %535 : vector<16x16xi1>, vector<16x16xf32>
    %c8_i32_126 = arith.constant 8 : i32
    %561 = vector.broadcast %c8_i32_126 : i32 to vector<16x16xi32>
    %562 = arith.cmpi eq, %46, %561 : vector<16x16xi32>
    %563 = vector.shape_cast %555 : vector<16x1xf32> to vector<16x1xf32>
    %564 = vector.broadcast %563 : vector<16x1xf32> to vector<16x16xf32>
    %565 = arith.select %562, %564, %540 : vector<16x16xi1>, vector<16x16xf32>
    %566 = vector.broadcast %549 : vector<16x1xf32> to vector<16x32xf32>
    %567 = arith.cmpf oeq, %547, %566 : vector<16x32xf32>
    %568 = vector.broadcast %555 : vector<16x1xf32> to vector<16x32xf32>
    %569 = arith.cmpf oeq, %345, %568 : vector<16x32xf32>
    %570 = arith.andi %567, %569 : vector<16x32xi1>
    %cst_127 = arith.constant 0x7F800000 : f32
    %571 = vector.broadcast %cst_127 : f32 to vector<16x32xf32>
    %572 = arith.select %570, %571, %547 : vector<16x32xi1>, vector<16x32xf32>
    %cst_128 = arith.constant dense<0x7F800000> : vector<16xf32>
    %573 = vector.multi_reduction <minimumf>, %572, %cst_128 [1] : vector<16x32xf32> to vector<16xf32>
    %574 = vector.shape_cast %573 : vector<16xf32> to vector<16x1xf32>
    %575 = vector.broadcast %574 : vector<16x1xf32> to vector<16x32xf32>
    %576 = arith.cmpf oeq, %572, %575 : vector<16x32xf32>
    %cst_129 = arith.constant 0x7F800000 : f32
    %577 = vector.broadcast %cst_129 : f32 to vector<16x32xf32>
    %578 = arith.select %576, %345, %577 : vector<16x32xi1>, vector<16x32xf32>
    %cst_130 = arith.constant dense<0x7F800000> : vector<16xf32>
    %579 = vector.multi_reduction <minimumf>, %578, %cst_130 [1] : vector<16x32xf32> to vector<16xf32>
    %580 = vector.shape_cast %579 : vector<16xf32> to vector<16x1xf32>
    %c9_i32_131 = arith.constant 9 : i32
    %581 = vector.broadcast %c9_i32_131 : i32 to vector<16x16xi32>
    %582 = arith.cmpi eq, %46, %581 : vector<16x16xi32>
    %583 = vector.shape_cast %574 : vector<16x1xf32> to vector<16x1xf32>
    %584 = vector.broadcast %583 : vector<16x1xf32> to vector<16x16xf32>
    %585 = arith.select %582, %584, %560 : vector<16x16xi1>, vector<16x16xf32>
    %c9_i32_132 = arith.constant 9 : i32
    %586 = vector.broadcast %c9_i32_132 : i32 to vector<16x16xi32>
    %587 = arith.cmpi eq, %46, %586 : vector<16x16xi32>
    %588 = vector.shape_cast %580 : vector<16x1xf32> to vector<16x1xf32>
    %589 = vector.broadcast %588 : vector<16x1xf32> to vector<16x16xf32>
    %590 = arith.select %587, %589, %565 : vector<16x16xi1>, vector<16x16xf32>
    %591 = vector.broadcast %574 : vector<16x1xf32> to vector<16x32xf32>
    %592 = arith.cmpf oeq, %572, %591 : vector<16x32xf32>
    %593 = vector.broadcast %580 : vector<16x1xf32> to vector<16x32xf32>
    %594 = arith.cmpf oeq, %345, %593 : vector<16x32xf32>
    %595 = arith.andi %592, %594 : vector<16x32xi1>
    %cst_133 = arith.constant 0x7F800000 : f32
    %596 = vector.broadcast %cst_133 : f32 to vector<16x32xf32>
    %597 = arith.select %595, %596, %572 : vector<16x32xi1>, vector<16x32xf32>
    %cst_134 = arith.constant dense<0x7F800000> : vector<16xf32>
    %598 = vector.multi_reduction <minimumf>, %597, %cst_134 [1] : vector<16x32xf32> to vector<16xf32>
    %599 = vector.shape_cast %598 : vector<16xf32> to vector<16x1xf32>
    %600 = vector.broadcast %599 : vector<16x1xf32> to vector<16x32xf32>
    %601 = arith.cmpf oeq, %597, %600 : vector<16x32xf32>
    %cst_135 = arith.constant 0x7F800000 : f32
    %602 = vector.broadcast %cst_135 : f32 to vector<16x32xf32>
    %603 = arith.select %601, %345, %602 : vector<16x32xi1>, vector<16x32xf32>
    %cst_136 = arith.constant dense<0x7F800000> : vector<16xf32>
    %604 = vector.multi_reduction <minimumf>, %603, %cst_136 [1] : vector<16x32xf32> to vector<16xf32>
    %605 = vector.shape_cast %604 : vector<16xf32> to vector<16x1xf32>
    %c10_i32_137 = arith.constant 10 : i32
    %606 = vector.broadcast %c10_i32_137 : i32 to vector<16x16xi32>
    %607 = arith.cmpi eq, %46, %606 : vector<16x16xi32>
    %608 = vector.shape_cast %599 : vector<16x1xf32> to vector<16x1xf32>
    %609 = vector.broadcast %608 : vector<16x1xf32> to vector<16x16xf32>
    %610 = arith.select %607, %609, %585 : vector<16x16xi1>, vector<16x16xf32>
    %c10_i32_138 = arith.constant 10 : i32
    %611 = vector.broadcast %c10_i32_138 : i32 to vector<16x16xi32>
    %612 = arith.cmpi eq, %46, %611 : vector<16x16xi32>
    %613 = vector.shape_cast %605 : vector<16x1xf32> to vector<16x1xf32>
    %614 = vector.broadcast %613 : vector<16x1xf32> to vector<16x16xf32>
    %615 = arith.select %612, %614, %590 : vector<16x16xi1>, vector<16x16xf32>
    %616 = vector.broadcast %599 : vector<16x1xf32> to vector<16x32xf32>
    %617 = arith.cmpf oeq, %597, %616 : vector<16x32xf32>
    %618 = vector.broadcast %605 : vector<16x1xf32> to vector<16x32xf32>
    %619 = arith.cmpf oeq, %345, %618 : vector<16x32xf32>
    %620 = arith.andi %617, %619 : vector<16x32xi1>
    %cst_139 = arith.constant 0x7F800000 : f32
    %621 = vector.broadcast %cst_139 : f32 to vector<16x32xf32>
    %622 = arith.select %620, %621, %597 : vector<16x32xi1>, vector<16x32xf32>
    %cst_140 = arith.constant dense<0x7F800000> : vector<16xf32>
    %623 = vector.multi_reduction <minimumf>, %622, %cst_140 [1] : vector<16x32xf32> to vector<16xf32>
    %624 = vector.shape_cast %623 : vector<16xf32> to vector<16x1xf32>
    %625 = vector.broadcast %624 : vector<16x1xf32> to vector<16x32xf32>
    %626 = arith.cmpf oeq, %622, %625 : vector<16x32xf32>
    %cst_141 = arith.constant 0x7F800000 : f32
    %627 = vector.broadcast %cst_141 : f32 to vector<16x32xf32>
    %628 = arith.select %626, %345, %627 : vector<16x32xi1>, vector<16x32xf32>
    %cst_142 = arith.constant dense<0x7F800000> : vector<16xf32>
    %629 = vector.multi_reduction <minimumf>, %628, %cst_142 [1] : vector<16x32xf32> to vector<16xf32>
    %630 = vector.shape_cast %629 : vector<16xf32> to vector<16x1xf32>
    %c11_i32_143 = arith.constant 11 : i32
    %631 = vector.broadcast %c11_i32_143 : i32 to vector<16x16xi32>
    %632 = arith.cmpi eq, %46, %631 : vector<16x16xi32>
    %633 = vector.shape_cast %624 : vector<16x1xf32> to vector<16x1xf32>
    %634 = vector.broadcast %633 : vector<16x1xf32> to vector<16x16xf32>
    %635 = arith.select %632, %634, %610 : vector<16x16xi1>, vector<16x16xf32>
    %c11_i32_144 = arith.constant 11 : i32
    %636 = vector.broadcast %c11_i32_144 : i32 to vector<16x16xi32>
    %637 = arith.cmpi eq, %46, %636 : vector<16x16xi32>
    %638 = vector.shape_cast %630 : vector<16x1xf32> to vector<16x1xf32>
    %639 = vector.broadcast %638 : vector<16x1xf32> to vector<16x16xf32>
    %640 = arith.select %637, %639, %615 : vector<16x16xi1>, vector<16x16xf32>
    %c0_145 = arith.constant 0 : index
    %c0_146 = arith.constant 0 : index
    %641 = vector.load %arg6[%c0_145, %c0_146] : memref<16x16xf32, #tpu.memory_space<vmem>>, vector<16x16xf32>
    tpu.vector_store %arg6[%c0_145, %c0_146], %635 {strides = array<i32>} : memref<16x16xf32, #tpu.memory_space<vmem>>, vector<16x16xf32>,
    %c0_147 = arith.constant 0 : index
    %c0_148 = arith.constant 0 : index
    %642 = vector.load %arg7[%c0_147, %c0_148] : memref<16x16xf32, #tpu.memory_space<vmem>>, vector<16x16xf32>
    tpu.vector_store %arg7[%c0_147, %c0_148], %640 {strides = array<i32>} : memref<16x16xf32, #tpu.memory_space<vmem>>, vector<16x16xf32>,
    %c1_i32_149 = arith.constant 1 : i32
    %643 = arith.cmpi eq, %arg2, %c1_i32_149 : i32
    %644 = arith.extui %643 : i1 to i32
    %c0_i32_150 = arith.constant 0 : i32
    %645 = arith.cmpi ne, %644, %c0_i32_150 : i32
    scf.if %645 {
      %c0_151 = arith.constant 0 : index
      %c0_152 = arith.constant 0 : index
      %646 = vector.load %arg7[%c0_151, %c0_152] : memref<16x16xf32, #tpu.memory_space<vmem>>, vector<16x16xf32>
      %647 = arith.fptosi %646 : vector<16x16xf32> to vector<16x16xi32>
      %c0_153 = arith.constant 0 : index
      %c0_154 = arith.constant 0 : index
      %c0_155 = arith.constant 0 : index
      %648 = vector.load %arg5[%c0_153, %c0_154, %c0_155] : memref<1x16x16xi32, #tpu.memory_space<vmem>>, vector<1x16x16xi32>
      %649 = vector.shape_cast %648 : vector<1x16x16xi32> to vector<16x16xi32>
      %650 = vector.shape_cast %647 : vector<16x16xi32> to vector<1x16x16xi32>
      tpu.vector_store %arg5[%c0_153, %c0_154, %c0_155], %650 {strides = array<i32>} : memref<1x16x16xi32, #tpu.memory_space<vmem>>, vector<1x16x16xi32>,
    } else {
    }
    return
  }
  func.func @transform_0(%arg0: i32, %arg1: i32, %arg2: i32) -> (i32, i32, i32) {
    %c0_i32 = arith.constant 0 : i32
    %c0_i32_0 = arith.constant 0 : i32
    return %arg0, %arg1, %c0_i32 : i32, i32, i32
  }
  func.func @transform_1(%arg0: i32, %arg1: i32, %arg2: i32) -> (i32, i32, i32) {
    %c0_i32 = arith.constant 0 : i32
    %c0_i32_0 = arith.constant 0 : i32
    return %arg0, %c0_i32, %arg2 : i32, i32, i32
  }
  func.func @transform_2(%arg0: i32, %arg1: i32, %arg2: i32) -> (i32, i32, i32) {
    %c0_i32 = arith.constant 0 : i32
    %c0_i32_0 = arith.constant 0 : i32
    return %arg0, %arg1, %c0_i32 : i32, i32, i32
  }
}

module attributes {stable_mosaic.version = 11 : i64} {
  func.func @_linear_kernel(%arg0: i32, %arg1: memref<256x32xf32, #tpu.memory_space<vmem>>, %arg2: memref<32x32xf32, #tpu.memory_space<vmem>>, %arg3: memref<1x32xf32, #tpu.memory_space<vmem>>, %arg4: memref<256x32xf32, #tpu.memory_space<vmem>>) attributes {dimension_semantics = [#tpu.dimension_semantics<parallel>], iteration_bounds = array<i64: 2>, scalar_prefetch = 0 : i64, scratch_operands = 0 : i64, tpu.core_type = #tpu.core_type<tc>, window_params = [{transform_indices = @transform_0, window_bounds = array<i64: 256, 32>}, {pipeline_mode = #tpu.pipeline_mode<synchronous>, transform_indices = @transform_1, window_bounds = array<i64: 32, 32>}, {pipeline_mode = #tpu.pipeline_mode<synchronous>, transform_indices = @transform_2, window_bounds = array<i64: 1, 32>}, {transform_indices = @transform_3, window_bounds = array<i64: 256, 32>}]} {
    %c0 = arith.constant 0 : index
    %c0_0 = arith.constant 0 : index
    %0 = vector.load %arg1[%c0, %c0_0] : memref<256x32xf32, #tpu.memory_space<vmem>>, vector<256x32xf32>
    %c0_1 = arith.constant 0 : index
    %c0_2 = arith.constant 0 : index
    %1 = vector.load %arg2[%c0_1, %c0_2] : memref<32x32xf32, #tpu.memory_space<vmem>>, vector<32x32xf32>
    %cst = arith.constant dense<0.000000e+00> : vector<256x32xf32>
    %2 = tpu.matmul %0, %1, %cst {dimension_numbers = #tpu.dot_dimension_numbers<[1], [0], [0], [1], [0, 0, 1, 1], [], []>} : vector<256x32xf32>, vector<32x32xf32>, vector<256x32xf32> -> vector<256x32xf32>
    %c0_3 = arith.constant 0 : index
    %c0_4 = arith.constant 0 : index
    %3 = vector.load %arg3[%c0_3, %c0_4] : memref<1x32xf32, #tpu.memory_space<vmem>>, vector<1x32xf32>
    %4 = vector.broadcast %3 : vector<1x32xf32> to vector<256x32xf32>
    %5 = arith.addf %2, %4 : vector<256x32xf32>
    %c0_5 = arith.constant 0 : index
    %c0_6 = arith.constant 0 : index
    %6 = vector.load %arg4[%c0_5, %c0_6] : memref<256x32xf32, #tpu.memory_space<vmem>>, vector<256x32xf32>
    tpu.vector_store %arg4[%c0_5, %c0_6], %5 {strides = array<i32>} : memref<256x32xf32, #tpu.memory_space<vmem>>, vector<256x32xf32>,
    return
  }
  func.func @transform_0(%arg0: i32) -> (i32, i32) {
    %c0_i32 = arith.constant 0 : i32
    %c0_i32_0 = arith.constant 0 : i32
    return %arg0, %c0_i32 : i32, i32
  }
  func.func @transform_1(%arg0: i32) -> (i32, i32) {
    %c0_i32 = arith.constant 0 : i32
    %c0_i32_0 = arith.constant 0 : i32
    %c0_i32_1 = arith.constant 0 : i32
    return %c0_i32, %c0_i32_0 : i32, i32
  }
  func.func @transform_2(%arg0: i32) -> (i32, i32) {
    %c0_i32 = arith.constant 0 : i32
    %c0_i32_0 = arith.constant 0 : i32
    %c0_i32_1 = arith.constant 0 : i32
    return %c0_i32, %c0_i32_0 : i32, i32
  }
  func.func @transform_3(%arg0: i32) -> (i32, i32) {
    %c0_i32 = arith.constant 0 : i32
    %c0_i32_0 = arith.constant 0 : i32
    return %arg0, %c0_i32 : i32, i32
  }
}

module attributes {stable_mosaic.version = 11 : i64} {
  func.func @_pos_weight_kernel(%arg0: i32, %arg1: i32, %arg2: memref<1x12x16x3xf32, #tpu.memory_space<vmem>>, %arg3: memref<1x12x16x32xf32, #tpu.memory_space<vmem>>, %arg4: memref<3x60xf32, #tpu.memory_space<vmem>>, %arg5: memref<1x60xf32, #tpu.memory_space<vmem>>, %arg6: memref<60x32xf32, #tpu.memory_space<vmem>>, %arg7: memref<1x32xf32, #tpu.memory_space<vmem>>, %arg8: memref<32x32xf32, #tpu.memory_space<vmem>>, %arg9: memref<1x32xf32, #tpu.memory_space<vmem>>, %arg10: memref<1x16x12xf32, #tpu.memory_space<vmem>>) attributes {dimension_semantics = [#tpu.dimension_semantics<parallel>, #tpu.dimension_semantics<parallel>], iteration_bounds = array<i64: 2, 2>, scalar_prefetch = 0 : i64, scratch_operands = 0 : i64, tpu.core_type = #tpu.core_type<tc>, window_params = [{transform_indices = @transform_0, window_bounds = array<i64: 1, 12, 16, 3>}, {transform_indices = @transform_1, window_bounds = array<i64: 1, 12, 16, 32>}, {pipeline_mode = #tpu.pipeline_mode<synchronous>, transform_indices = @transform_2, window_bounds = array<i64: 3, 60>}, {pipeline_mode = #tpu.pipeline_mode<synchronous>, transform_indices = @transform_3, window_bounds = array<i64: 1, 60>}, {pipeline_mode = #tpu.pipeline_mode<synchronous>, transform_indices = @transform_4, window_bounds = array<i64: 60, 32>}, {pipeline_mode = #tpu.pipeline_mode<synchronous>, transform_indices = @transform_5, window_bounds = array<i64: 1, 32>}, {pipeline_mode = #tpu.pipeline_mode<synchronous>, transform_indices = @transform_6, window_bounds = array<i64: 32, 32>}, {pipeline_mode = #tpu.pipeline_mode<synchronous>, transform_indices = @transform_7, window_bounds = array<i64: 1, 32>}, {transform_indices = @transform_8, window_bounds = array<i64: 1, 16, 12>}]} {
    %c0 = arith.constant 0 : index
    %c0_0 = arith.constant 0 : index
    %0 = vector.load %arg4[%c0, %c0_0] : memref<3x60xf32, #tpu.memory_space<vmem>>, vector<3x60xf32>
    %c0_1 = arith.constant 0 : index
    %c0_2 = arith.constant 0 : index
    %1 = vector.load %arg5[%c0_1, %c0_2] : memref<1x60xf32, #tpu.memory_space<vmem>>, vector<1x60xf32>
    %c0_3 = arith.constant 0 : index
    %c0_4 = arith.constant 0 : index
    %c0_5 = arith.constant 0 : index
    %c0_6 = arith.constant 0 : index
    %2 = vector.load %arg2[%c0_3, %c0_4, %c0_5, %c0_6] : memref<1x12x16x3xf32, #tpu.memory_space<vmem>>, vector<1x1x16x3xf32>
    %3 = vector.shape_cast %2 : vector<1x1x16x3xf32> to vector<16x3xf32>
    %c0_7 = arith.constant 0 : index
    %c1 = arith.constant 1 : index
    %c0_8 = arith.constant 0 : index
    %c0_9 = arith.constant 0 : index
    %4 = vector.load %arg2[%c0_7, %c1, %c0_8, %c0_9] : memref<1x12x16x3xf32, #tpu.memory_space<vmem>>, vector<1x1x16x3xf32>
    %5 = vector.shape_cast %4 : vector<1x1x16x3xf32> to vector<16x3xf32>
    %c0_10 = arith.constant 0 : index
    %c2 = arith.constant 2 : index
    %c0_11 = arith.constant 0 : index
    %c0_12 = arith.constant 0 : index
    %6 = vector.load %arg2[%c0_10, %c2, %c0_11, %c0_12] : memref<1x12x16x3xf32, #tpu.memory_space<vmem>>, vector<1x1x16x3xf32>
    %7 = vector.shape_cast %6 : vector<1x1x16x3xf32> to vector<16x3xf32>
    %c0_13 = arith.constant 0 : index
    %c3 = arith.constant 3 : index
    %c0_14 = arith.constant 0 : index
    %c0_15 = arith.constant 0 : index
    %8 = vector.load %arg2[%c0_13, %c3, %c0_14, %c0_15] : memref<1x12x16x3xf32, #tpu.memory_space<vmem>>, vector<1x1x16x3xf32>
    %9 = vector.shape_cast %8 : vector<1x1x16x3xf32> to vector<16x3xf32>
    %c0_16 = arith.constant 0 : index
    %c4 = arith.constant 4 : index
    %c0_17 = arith.constant 0 : index
    %c0_18 = arith.constant 0 : index
    %10 = vector.load %arg2[%c0_16, %c4, %c0_17, %c0_18] : memref<1x12x16x3xf32, #tpu.memory_space<vmem>>, vector<1x1x16x3xf32>
    %11 = vector.shape_cast %10 : vector<1x1x16x3xf32> to vector<16x3xf32>
    %c0_19 = arith.constant 0 : index
    %c5 = arith.constant 5 : index
    %c0_20 = arith.constant 0 : index
    %c0_21 = arith.constant 0 : index
    %12 = vector.load %arg2[%c0_19, %c5, %c0_20, %c0_21] : memref<1x12x16x3xf32, #tpu.memory_space<vmem>>, vector<1x1x16x3xf32>
    %13 = vector.shape_cast %12 : vector<1x1x16x3xf32> to vector<16x3xf32>
    %c0_22 = arith.constant 0 : index
    %c6 = arith.constant 6 : index
    %c0_23 = arith.constant 0 : index
    %c0_24 = arith.constant 0 : index
    %14 = vector.load %arg2[%c0_22, %c6, %c0_23, %c0_24] : memref<1x12x16x3xf32, #tpu.memory_space<vmem>>, vector<1x1x16x3xf32>
    %15 = vector.shape_cast %14 : vector<1x1x16x3xf32> to vector<16x3xf32>
    %c0_25 = arith.constant 0 : index
    %c7 = arith.constant 7 : index
    %c0_26 = arith.constant 0 : index
    %c0_27 = arith.constant 0 : index
    %16 = vector.load %arg2[%c0_25, %c7, %c0_26, %c0_27] : memref<1x12x16x3xf32, #tpu.memory_space<vmem>>, vector<1x1x16x3xf32>
    %17 = vector.shape_cast %16 : vector<1x1x16x3xf32> to vector<16x3xf32>
    %c0_28 = arith.constant 0 : index
    %c8 = arith.constant 8 : index
    %c0_29 = arith.constant 0 : index
    %c0_30 = arith.constant 0 : index
    %18 = vector.load %arg2[%c0_28, %c8, %c0_29, %c0_30] : memref<1x12x16x3xf32, #tpu.memory_space<vmem>>, vector<1x1x16x3xf32>
    %19 = vector.shape_cast %18 : vector<1x1x16x3xf32> to vector<16x3xf32>
    %c0_31 = arith.constant 0 : index
    %c9 = arith.constant 9 : index
    %c0_32 = arith.constant 0 : index
    %c0_33 = arith.constant 0 : index
    %20 = vector.load %arg2[%c0_31, %c9, %c0_32, %c0_33] : memref<1x12x16x3xf32, #tpu.memory_space<vmem>>, vector<1x1x16x3xf32>
    %21 = vector.shape_cast %20 : vector<1x1x16x3xf32> to vector<16x3xf32>
    %c0_34 = arith.constant 0 : index
    %c10 = arith.constant 10 : index
    %c0_35 = arith.constant 0 : index
    %c0_36 = arith.constant 0 : index
    %22 = vector.load %arg2[%c0_34, %c10, %c0_35, %c0_36] : memref<1x12x16x3xf32, #tpu.memory_space<vmem>>, vector<1x1x16x3xf32>
    %23 = vector.shape_cast %22 : vector<1x1x16x3xf32> to vector<16x3xf32>
    %c0_37 = arith.constant 0 : index
    %c11 = arith.constant 11 : index
    %c0_38 = arith.constant 0 : index
    %c0_39 = arith.constant 0 : index
    %24 = vector.load %arg2[%c0_37, %c11, %c0_38, %c0_39] : memref<1x12x16x3xf32, #tpu.memory_space<vmem>>, vector<1x1x16x3xf32>
    %25 = vector.shape_cast %24 : vector<1x1x16x3xf32> to vector<16x3xf32>
    %26 = tpu.concatenate %3, %5, %7, %9, %11, %13, %15, %17, %19, %21, %23, %25 in 0 : vector<16x3xf32>, vector<16x3xf32>, vector<16x3xf32>, vector<16x3xf32>, vector<16x3xf32>, vector<16x3xf32>, vector<16x3xf32>, vector<16x3xf32>, vector<16x3xf32>, vector<16x3xf32>, vector<16x3xf32>, vector<16x3xf32> -> vector<192x3xf32>
    %c0_40 = arith.constant 0 : index
    %c0_41 = arith.constant 0 : index
    %c0_42 = arith.constant 0 : index
    %c0_43 = arith.constant 0 : index
    %27 = vector.load %arg3[%c0_40, %c0_41, %c0_42, %c0_43] : memref<1x12x16x32xf32, #tpu.memory_space<vmem>>, vector<1x1x16x32xf32>
    %28 = vector.shape_cast %27 : vector<1x1x16x32xf32> to vector<16x32xf32>
    %c0_44 = arith.constant 0 : index
    %c1_45 = arith.constant 1 : index
    %c0_46 = arith.constant 0 : index
    %c0_47 = arith.constant 0 : index
    %29 = vector.load %arg3[%c0_44, %c1_45, %c0_46, %c0_47] : memref<1x12x16x32xf32, #tpu.memory_space<vmem>>, vector<1x1x16x32xf32>
    %30 = vector.shape_cast %29 : vector<1x1x16x32xf32> to vector<16x32xf32>
    %c0_48 = arith.constant 0 : index
    %c2_49 = arith.constant 2 : index
    %c0_50 = arith.constant 0 : index
    %c0_51 = arith.constant 0 : index
    %31 = vector.load %arg3[%c0_48, %c2_49, %c0_50, %c0_51] : memref<1x12x16x32xf32, #tpu.memory_space<vmem>>, vector<1x1x16x32xf32>
    %32 = vector.shape_cast %31 : vector<1x1x16x32xf32> to vector<16x32xf32>
    %c0_52 = arith.constant 0 : index
    %c3_53 = arith.constant 3 : index
    %c0_54 = arith.constant 0 : index
    %c0_55 = arith.constant 0 : index
    %33 = vector.load %arg3[%c0_52, %c3_53, %c0_54, %c0_55] : memref<1x12x16x32xf32, #tpu.memory_space<vmem>>, vector<1x1x16x32xf32>
    %34 = vector.shape_cast %33 : vector<1x1x16x32xf32> to vector<16x32xf32>
    %c0_56 = arith.constant 0 : index
    %c4_57 = arith.constant 4 : index
    %c0_58 = arith.constant 0 : index
    %c0_59 = arith.constant 0 : index
    %35 = vector.load %arg3[%c0_56, %c4_57, %c0_58, %c0_59] : memref<1x12x16x32xf32, #tpu.memory_space<vmem>>, vector<1x1x16x32xf32>
    %36 = vector.shape_cast %35 : vector<1x1x16x32xf32> to vector<16x32xf32>
    %c0_60 = arith.constant 0 : index
    %c5_61 = arith.constant 5 : index
    %c0_62 = arith.constant 0 : index
    %c0_63 = arith.constant 0 : index
    %37 = vector.load %arg3[%c0_60, %c5_61, %c0_62, %c0_63] : memref<1x12x16x32xf32, #tpu.memory_space<vmem>>, vector<1x1x16x32xf32>
    %38 = vector.shape_cast %37 : vector<1x1x16x32xf32> to vector<16x32xf32>
    %c0_64 = arith.constant 0 : index
    %c6_65 = arith.constant 6 : index
    %c0_66 = arith.constant 0 : index
    %c0_67 = arith.constant 0 : index
    %39 = vector.load %arg3[%c0_64, %c6_65, %c0_66, %c0_67] : memref<1x12x16x32xf32, #tpu.memory_space<vmem>>, vector<1x1x16x32xf32>
    %40 = vector.shape_cast %39 : vector<1x1x16x32xf32> to vector<16x32xf32>
    %c0_68 = arith.constant 0 : index
    %c7_69 = arith.constant 7 : index
    %c0_70 = arith.constant 0 : index
    %c0_71 = arith.constant 0 : index
    %41 = vector.load %arg3[%c0_68, %c7_69, %c0_70, %c0_71] : memref<1x12x16x32xf32, #tpu.memory_space<vmem>>, vector<1x1x16x32xf32>
    %42 = vector.shape_cast %41 : vector<1x1x16x32xf32> to vector<16x32xf32>
    %c0_72 = arith.constant 0 : index
    %c8_73 = arith.constant 8 : index
    %c0_74 = arith.constant 0 : index
    %c0_75 = arith.constant 0 : index
    %43 = vector.load %arg3[%c0_72, %c8_73, %c0_74, %c0_75] : memref<1x12x16x32xf32, #tpu.memory_space<vmem>>, vector<1x1x16x32xf32>
    %44 = vector.shape_cast %43 : vector<1x1x16x32xf32> to vector<16x32xf32>
    %c0_76 = arith.constant 0 : index
    %c9_77 = arith.constant 9 : index
    %c0_78 = arith.constant 0 : index
    %c0_79 = arith.constant 0 : index
    %45 = vector.load %arg3[%c0_76, %c9_77, %c0_78, %c0_79] : memref<1x12x16x32xf32, #tpu.memory_space<vmem>>, vector<1x1x16x32xf32>
    %46 = vector.shape_cast %45 : vector<1x1x16x32xf32> to vector<16x32xf32>
    %c0_80 = arith.constant 0 : index
    %c10_81 = arith.constant 10 : index
    %c0_82 = arith.constant 0 : index
    %c0_83 = arith.constant 0 : index
    %47 = vector.load %arg3[%c0_80, %c10_81, %c0_82, %c0_83] : memref<1x12x16x32xf32, #tpu.memory_space<vmem>>, vector<1x1x16x32xf32>
    %48 = vector.shape_cast %47 : vector<1x1x16x32xf32> to vector<16x32xf32>
    %c0_84 = arith.constant 0 : index
    %c11_85 = arith.constant 11 : index
    %c0_86 = arith.constant 0 : index
    %c0_87 = arith.constant 0 : index
    %49 = vector.load %arg3[%c0_84, %c11_85, %c0_86, %c0_87] : memref<1x12x16x32xf32, #tpu.memory_space<vmem>>, vector<1x1x16x32xf32>
    %50 = vector.shape_cast %49 : vector<1x1x16x32xf32> to vector<16x32xf32>
    %51 = tpu.concatenate %28, %30, %32, %34, %36, %38, %40, %42, %44, %46, %48, %50 in 0 : vector<16x32xf32>, vector<16x32xf32>, vector<16x32xf32>, vector<16x32xf32>, vector<16x32xf32>, vector<16x32xf32>, vector<16x32xf32>, vector<16x32xf32>, vector<16x32xf32>, vector<16x32xf32>, vector<16x32xf32>, vector<16x32xf32> -> vector<192x32xf32>
    %52 = vector.extract_strided_slice %26 {offsets = [0, 0], sizes = [192, 1], strides = [1, 1]} : vector<192x3xf32> to vector<192x1xf32>
    %53 = vector.extract_strided_slice %0 {offsets = [0, 0], sizes = [1, 60], strides = [1, 1]} : vector<3x60xf32> to vector<1x60xf32>
    %54 = vector.broadcast %52 : vector<192x1xf32> to vector<192x60xf32>
    %55 = vector.broadcast %53 : vector<1x60xf32> to vector<192x60xf32>
    %56 = arith.mulf %54, %55 : vector<192x60xf32>
    %57 = vector.extract_strided_slice %26 {offsets = [0, 1], sizes = [192, 1], strides = [1, 1]} : vector<192x3xf32> to vector<192x1xf32>
    %58 = vector.extract_strided_slice %0 {offsets = [1, 0], sizes = [1, 60], strides = [1, 1]} : vector<3x60xf32> to vector<1x60xf32>
    %59 = vector.broadcast %57 : vector<192x1xf32> to vector<192x60xf32>
    %60 = vector.broadcast %58 : vector<1x60xf32> to vector<192x60xf32>
    %61 = arith.mulf %59, %60 : vector<192x60xf32>
    %62 = arith.addf %56, %61 : vector<192x60xf32>
    %63 = vector.extract_strided_slice %26 {offsets = [0, 2], sizes = [192, 1], strides = [1, 1]} : vector<192x3xf32> to vector<192x1xf32>
    %64 = vector.extract_strided_slice %0 {offsets = [2, 0], sizes = [1, 60], strides = [1, 1]} : vector<3x60xf32> to vector<1x60xf32>
    %65 = vector.broadcast %63 : vector<192x1xf32> to vector<192x60xf32>
    %66 = vector.broadcast %64 : vector<1x60xf32> to vector<192x60xf32>
    %67 = arith.mulf %65, %66 : vector<192x60xf32>
    %68 = arith.addf %62, %67 : vector<192x60xf32>
    %69 = vector.broadcast %1 : vector<1x60xf32> to vector<192x60xf32>
    %70 = arith.addf %68, %69 : vector<192x60xf32>
    %71 = math.sin %70 : vector<192x60xf32>
    %c0_88 = arith.constant 0 : index
    %c0_89 = arith.constant 0 : index
    %72 = vector.load %arg6[%c0_88, %c0_89] : memref<60x32xf32, #tpu.memory_space<vmem>>, vector<60x32xf32>
    %cst = arith.constant dense<0.000000e+00> : vector<192x32xf32>
    %73 = tpu.matmul %71, %72, %cst {dimension_numbers = #tpu.dot_dimension_numbers<[1], [0], [0], [1], [0, 0, 1, 1], [], []>} : vector<192x60xf32>, vector<60x32xf32>, vector<192x32xf32> -> vector<192x32xf32>
    %c0_90 = arith.constant 0 : index
    %c0_91 = arith.constant 0 : index
    %74 = vector.load %arg7[%c0_90, %c0_91] : memref<1x32xf32, #tpu.memory_space<vmem>>, vector<1x32xf32>
    %75 = vector.broadcast %74 : vector<1x32xf32> to vector<192x32xf32>
    %76 = arith.addf %73, %75 : vector<192x32xf32>
    %cst_92 = arith.constant 0.000000e+00 : f32
    %77 = vector.broadcast %cst_92 : f32 to vector<192x32xf32>
    %78 = arith.maximumf %76, %77 : vector<192x32xf32>
    %c0_93 = arith.constant 0 : index
    %c0_94 = arith.constant 0 : index
    %79 = vector.load %arg8[%c0_93, %c0_94] : memref<32x32xf32, #tpu.memory_space<vmem>>, vector<32x32xf32>
    %cst_95 = arith.constant dense<0.000000e+00> : vector<192x32xf32>
    %80 = tpu.matmul %78, %79, %cst_95 {dimension_numbers = #tpu.dot_dimension_numbers<[1], [0], [0], [1], [0, 0, 1, 1], [], []>} : vector<192x32xf32>, vector<32x32xf32>, vector<192x32xf32> -> vector<192x32xf32>
    %c0_96 = arith.constant 0 : index
    %c0_97 = arith.constant 0 : index
    %81 = vector.load %arg9[%c0_96, %c0_97] : memref<1x32xf32, #tpu.memory_space<vmem>>, vector<1x32xf32>
    %82 = vector.broadcast %81 : vector<1x32xf32> to vector<192x32xf32>
    %83 = arith.addf %80, %82 : vector<192x32xf32>
    %84 = arith.addf %51, %83 : vector<192x32xf32>
    %85 = vector.extract_strided_slice %84 {offsets = [0, 0], sizes = [16, 32], strides = [1, 1]} : vector<192x32xf32> to vector<16x32xf32>
    %86 = tpu.iota {dimensions = array<i32: 1>} : vector<16x12xi32>
    %cst_98 = arith.constant 0.000000e+00 : f32
    %87 = vector.broadcast %cst_98 : f32 to vector<16x12xf32>
    %88 = vector.extract_strided_slice %84 {offsets = [0, 0], sizes = [16, 32], strides = [1, 1]} : vector<192x32xf32> to vector<16x32xf32>
    %89 = arith.mulf %88, %85 : vector<16x32xf32>
    %cst_99 = arith.constant dense<0.000000e+00> : vector<16xf32>
    %90 = vector.multi_reduction <add>, %89, %cst_99 [1] : vector<16x32xf32> to vector<16xf32>
    %91 = vector.shape_cast %90 : vector<16xf32> to vector<16x1xf32>
    %c0_i32 = arith.constant 0 : i32
    %92 = vector.broadcast %c0_i32 : i32 to vector<16x12xi32>
    %93 = arith.cmpi eq, %86, %92 : vector<16x12xi32>
    %94 = vector.shape_cast %91 : vector<16x1xf32> to vector<16x1xf32>
    %95 = vector.broadcast %94 : vector<16x1xf32> to vector<16x12xf32>
    %96 = arith.select %93, %95, %87 : vector<16x12xi1>, vector<16x12xf32>
    %97 = vector.extract_strided_slice %84 {offsets = [16, 0], sizes = [16, 32], strides = [1, 1]} : vector<192x32xf32> to vector<16x32xf32>
    %98 = arith.mulf %97, %85 : vector<16x32xf32>
    %cst_100 = arith.constant dense<0.000000e+00> : vector<16xf32>
    %99 = vector.multi_reduction <add>, %98, %cst_100 [1] : vector<16x32xf32> to vector<16xf32>
    %100 = vector.shape_cast %99 : vector<16xf32> to vector<16x1xf32>
    %c1_i32 = arith.constant 1 : i32
    %101 = vector.broadcast %c1_i32 : i32 to vector<16x12xi32>
    %102 = arith.cmpi eq, %86, %101 : vector<16x12xi32>
    %103 = vector.shape_cast %100 : vector<16x1xf32> to vector<16x1xf32>
    %104 = vector.broadcast %103 : vector<16x1xf32> to vector<16x12xf32>
    %105 = arith.select %102, %104, %96 : vector<16x12xi1>, vector<16x12xf32>
    %106 = vector.extract_strided_slice %84 {offsets = [32, 0], sizes = [16, 32], strides = [1, 1]} : vector<192x32xf32> to vector<16x32xf32>
    %107 = arith.mulf %106, %85 : vector<16x32xf32>
    %cst_101 = arith.constant dense<0.000000e+00> : vector<16xf32>
    %108 = vector.multi_reduction <add>, %107, %cst_101 [1] : vector<16x32xf32> to vector<16xf32>
    %109 = vector.shape_cast %108 : vector<16xf32> to vector<16x1xf32>
    %c2_i32 = arith.constant 2 : i32
    %110 = vector.broadcast %c2_i32 : i32 to vector<16x12xi32>
    %111 = arith.cmpi eq, %86, %110 : vector<16x12xi32>
    %112 = vector.shape_cast %109 : vector<16x1xf32> to vector<16x1xf32>
    %113 = vector.broadcast %112 : vector<16x1xf32> to vector<16x12xf32>
    %114 = arith.select %111, %113, %105 : vector<16x12xi1>, vector<16x12xf32>
    %115 = vector.extract_strided_slice %84 {offsets = [48, 0], sizes = [16, 32], strides = [1, 1]} : vector<192x32xf32> to vector<16x32xf32>
    %116 = arith.mulf %115, %85 : vector<16x32xf32>
    %cst_102 = arith.constant dense<0.000000e+00> : vector<16xf32>
    %117 = vector.multi_reduction <add>, %116, %cst_102 [1] : vector<16x32xf32> to vector<16xf32>
    %118 = vector.shape_cast %117 : vector<16xf32> to vector<16x1xf32>
    %c3_i32 = arith.constant 3 : i32
    %119 = vector.broadcast %c3_i32 : i32 to vector<16x12xi32>
    %120 = arith.cmpi eq, %86, %119 : vector<16x12xi32>
    %121 = vector.shape_cast %118 : vector<16x1xf32> to vector<16x1xf32>
    %122 = vector.broadcast %121 : vector<16x1xf32> to vector<16x12xf32>
    %123 = arith.select %120, %122, %114 : vector<16x12xi1>, vector<16x12xf32>
    %124 = vector.extract_strided_slice %84 {offsets = [64, 0], sizes = [16, 32], strides = [1, 1]} : vector<192x32xf32> to vector<16x32xf32>
    %125 = arith.mulf %124, %85 : vector<16x32xf32>
    %cst_103 = arith.constant dense<0.000000e+00> : vector<16xf32>
    %126 = vector.multi_reduction <add>, %125, %cst_103 [1] : vector<16x32xf32> to vector<16xf32>
    %127 = vector.shape_cast %126 : vector<16xf32> to vector<16x1xf32>
    %c4_i32 = arith.constant 4 : i32
    %128 = vector.broadcast %c4_i32 : i32 to vector<16x12xi32>
    %129 = arith.cmpi eq, %86, %128 : vector<16x12xi32>
    %130 = vector.shape_cast %127 : vector<16x1xf32> to vector<16x1xf32>
    %131 = vector.broadcast %130 : vector<16x1xf32> to vector<16x12xf32>
    %132 = arith.select %129, %131, %123 : vector<16x12xi1>, vector<16x12xf32>
    %133 = vector.extract_strided_slice %84 {offsets = [80, 0], sizes = [16, 32], strides = [1, 1]} : vector<192x32xf32> to vector<16x32xf32>
    %134 = arith.mulf %133, %85 : vector<16x32xf32>
    %cst_104 = arith.constant dense<0.000000e+00> : vector<16xf32>
    %135 = vector.multi_reduction <add>, %134, %cst_104 [1] : vector<16x32xf32> to vector<16xf32>
    %136 = vector.shape_cast %135 : vector<16xf32> to vector<16x1xf32>
    %c5_i32 = arith.constant 5 : i32
    %137 = vector.broadcast %c5_i32 : i32 to vector<16x12xi32>
    %138 = arith.cmpi eq, %86, %137 : vector<16x12xi32>
    %139 = vector.shape_cast %136 : vector<16x1xf32> to vector<16x1xf32>
    %140 = vector.broadcast %139 : vector<16x1xf32> to vector<16x12xf32>
    %141 = arith.select %138, %140, %132 : vector<16x12xi1>, vector<16x12xf32>
    %142 = vector.extract_strided_slice %84 {offsets = [96, 0], sizes = [16, 32], strides = [1, 1]} : vector<192x32xf32> to vector<16x32xf32>
    %143 = arith.mulf %142, %85 : vector<16x32xf32>
    %cst_105 = arith.constant dense<0.000000e+00> : vector<16xf32>
    %144 = vector.multi_reduction <add>, %143, %cst_105 [1] : vector<16x32xf32> to vector<16xf32>
    %145 = vector.shape_cast %144 : vector<16xf32> to vector<16x1xf32>
    %c6_i32 = arith.constant 6 : i32
    %146 = vector.broadcast %c6_i32 : i32 to vector<16x12xi32>
    %147 = arith.cmpi eq, %86, %146 : vector<16x12xi32>
    %148 = vector.shape_cast %145 : vector<16x1xf32> to vector<16x1xf32>
    %149 = vector.broadcast %148 : vector<16x1xf32> to vector<16x12xf32>
    %150 = arith.select %147, %149, %141 : vector<16x12xi1>, vector<16x12xf32>
    %151 = vector.extract_strided_slice %84 {offsets = [112, 0], sizes = [16, 32], strides = [1, 1]} : vector<192x32xf32> to vector<16x32xf32>
    %152 = arith.mulf %151, %85 : vector<16x32xf32>
    %cst_106 = arith.constant dense<0.000000e+00> : vector<16xf32>
    %153 = vector.multi_reduction <add>, %152, %cst_106 [1] : vector<16x32xf32> to vector<16xf32>
    %154 = vector.shape_cast %153 : vector<16xf32> to vector<16x1xf32>
    %c7_i32 = arith.constant 7 : i32
    %155 = vector.broadcast %c7_i32 : i32 to vector<16x12xi32>
    %156 = arith.cmpi eq, %86, %155 : vector<16x12xi32>
    %157 = vector.shape_cast %154 : vector<16x1xf32> to vector<16x1xf32>
    %158 = vector.broadcast %157 : vector<16x1xf32> to vector<16x12xf32>
    %159 = arith.select %156, %158, %150 : vector<16x12xi1>, vector<16x12xf32>
    %160 = vector.extract_strided_slice %84 {offsets = [128, 0], sizes = [16, 32], strides = [1, 1]} : vector<192x32xf32> to vector<16x32xf32>
    %161 = arith.mulf %160, %85 : vector<16x32xf32>
    %cst_107 = arith.constant dense<0.000000e+00> : vector<16xf32>
    %162 = vector.multi_reduction <add>, %161, %cst_107 [1] : vector<16x32xf32> to vector<16xf32>
    %163 = vector.shape_cast %162 : vector<16xf32> to vector<16x1xf32>
    %c8_i32 = arith.constant 8 : i32
    %164 = vector.broadcast %c8_i32 : i32 to vector<16x12xi32>
    %165 = arith.cmpi eq, %86, %164 : vector<16x12xi32>
    %166 = vector.shape_cast %163 : vector<16x1xf32> to vector<16x1xf32>
    %167 = vector.broadcast %166 : vector<16x1xf32> to vector<16x12xf32>
    %168 = arith.select %165, %167, %159 : vector<16x12xi1>, vector<16x12xf32>
    %169 = vector.extract_strided_slice %84 {offsets = [144, 0], sizes = [16, 32], strides = [1, 1]} : vector<192x32xf32> to vector<16x32xf32>
    %170 = arith.mulf %169, %85 : vector<16x32xf32>
    %cst_108 = arith.constant dense<0.000000e+00> : vector<16xf32>
    %171 = vector.multi_reduction <add>, %170, %cst_108 [1] : vector<16x32xf32> to vector<16xf32>
    %172 = vector.shape_cast %171 : vector<16xf32> to vector<16x1xf32>
    %c9_i32 = arith.constant 9 : i32
    %173 = vector.broadcast %c9_i32 : i32 to vector<16x12xi32>
    %174 = arith.cmpi eq, %86, %173 : vector<16x12xi32>
    %175 = vector.shape_cast %172 : vector<16x1xf32> to vector<16x1xf32>
    %176 = vector.broadcast %175 : vector<16x1xf32> to vector<16x12xf32>
    %177 = arith.select %174, %176, %168 : vector<16x12xi1>, vector<16x12xf32>
    %178 = vector.extract_strided_slice %84 {offsets = [160, 0], sizes = [16, 32], strides = [1, 1]} : vector<192x32xf32> to vector<16x32xf32>
    %179 = arith.mulf %178, %85 : vector<16x32xf32>
    %cst_109 = arith.constant dense<0.000000e+00> : vector<16xf32>
    %180 = vector.multi_reduction <add>, %179, %cst_109 [1] : vector<16x32xf32> to vector<16xf32>
    %181 = vector.shape_cast %180 : vector<16xf32> to vector<16x1xf32>
    %c10_i32 = arith.constant 10 : i32
    %182 = vector.broadcast %c10_i32 : i32 to vector<16x12xi32>
    %183 = arith.cmpi eq, %86, %182 : vector<16x12xi32>
    %184 = vector.shape_cast %181 : vector<16x1xf32> to vector<16x1xf32>
    %185 = vector.broadcast %184 : vector<16x1xf32> to vector<16x12xf32>
    %186 = arith.select %183, %185, %177 : vector<16x12xi1>, vector<16x12xf32>
    %187 = vector.extract_strided_slice %84 {offsets = [176, 0], sizes = [16, 32], strides = [1, 1]} : vector<192x32xf32> to vector<16x32xf32>
    %188 = arith.mulf %187, %85 : vector<16x32xf32>
    %cst_110 = arith.constant dense<0.000000e+00> : vector<16xf32>
    %189 = vector.multi_reduction <add>, %188, %cst_110 [1] : vector<16x32xf32> to vector<16xf32>
    %190 = vector.shape_cast %189 : vector<16xf32> to vector<16x1xf32>
    %c11_i32 = arith.constant 11 : i32
    %191 = vector.broadcast %c11_i32 : i32 to vector<16x12xi32>
    %192 = arith.cmpi eq, %86, %191 : vector<16x12xi32>
    %193 = vector.shape_cast %190 : vector<16x1xf32> to vector<16x1xf32>
    %194 = vector.broadcast %193 : vector<16x1xf32> to vector<16x12xf32>
    %195 = arith.select %192, %194, %186 : vector<16x12xi1>, vector<16x12xf32>
    %cst_111 = arith.constant dense<0xFF800000> : vector<16xf32>
    %196 = vector.multi_reduction <maximumf>, %195, %cst_111 [1] : vector<16x12xf32> to vector<16xf32>
    %197 = vector.shape_cast %196 : vector<16xf32> to vector<16x1xf32>
    %198 = vector.broadcast %197 : vector<16x1xf32> to vector<16x12xf32>
    %199 = arith.subf %195, %198 : vector<16x12xf32>
    %200 = math.exp %199 : vector<16x12xf32>
    %cst_112 = arith.constant dense<0.000000e+00> : vector<16xf32>
    %201 = vector.multi_reduction <add>, %200, %cst_112 [1] : vector<16x12xf32> to vector<16xf32>
    %202 = vector.shape_cast %201 : vector<16xf32> to vector<16x1xf32>
    %203 = tpu.reciprocal %202 {approx = true} : vector<16x1xf32> -> vector<16x1xf32>
    %204 = vector.broadcast %203 : vector<16x1xf32> to vector<16x12xf32>
    %205 = arith.mulf %200, %204 : vector<16x12xf32>
    %cst_113 = arith.constant 4.000000e-01 : f32
    %206 = vector.broadcast %cst_113 : f32 to vector<16x12xf32>
    %207 = arith.mulf %205, %206 : vector<16x12xf32>
    %c0_i32_114 = arith.constant 0 : i32
    %208 = vector.broadcast %c0_i32_114 : i32 to vector<16x12xi32>
    %209 = arith.cmpi eq, %86, %208 : vector<16x12xi32>
    %cst_115 = arith.constant 6.000000e-01 : f32
    %cst_116 = arith.constant 0.000000e+00 : f32
    %210 = vector.broadcast %cst_115 : f32 to vector<16x12xf32>
    %211 = vector.broadcast %cst_116 : f32 to vector<16x12xf32>
    %212 = arith.select %209, %210, %211 : vector<16x12xi1>, vector<16x12xf32>
    %213 = arith.addf %207, %212 : vector<16x12xf32>
    %c0_117 = arith.constant 0 : index
    %c0_118 = arith.constant 0 : index
    %c0_119 = arith.constant 0 : index
    %214 = vector.load %arg10[%c0_117, %c0_118, %c0_119] : memref<1x16x12xf32, #tpu.memory_space<vmem>>, vector<1x16x12xf32>
    %215 = vector.shape_cast %214 : vector<1x16x12xf32> to vector<16x12xf32>
    %216 = vector.shape_cast %213 : vector<16x12xf32> to vector<1x16x12xf32>
    tpu.vector_store %arg10[%c0_117, %c0_118, %c0_119], %216 {strides = array<i32>} : memref<1x16x12xf32, #tpu.memory_space<vmem>>, vector<1x16x12xf32>,
    return
  }
  func.func @transform_0(%arg0: i32, %arg1: i32) -> (i32, i32, i32, i32) {
    %c0_i32 = arith.constant 0 : i32
    %c0_i32_0 = arith.constant 0 : i32
    %c0_i32_1 = arith.constant 0 : i32
    return %arg0, %c0_i32, %arg1, %c0_i32_0 : i32, i32, i32, i32
  }
  func.func @transform_1(%arg0: i32, %arg1: i32) -> (i32, i32, i32, i32) {
    %c0_i32 = arith.constant 0 : i32
    %c0_i32_0 = arith.constant 0 : i32
    %c0_i32_1 = arith.constant 0 : i32
    return %arg0, %c0_i32, %arg1, %c0_i32_0 : i32, i32, i32, i32
  }
  func.func @transform_2(%arg0: i32, %arg1: i32) -> (i32, i32) {
    %c0_i32 = arith.constant 0 : i32
    %c0_i32_0 = arith.constant 0 : i32
    %c0_i32_1 = arith.constant 0 : i32
    return %c0_i32, %c0_i32_0 : i32, i32
  }
  func.func @transform_3(%arg0: i32, %arg1: i32) -> (i32, i32) {
    %c0_i32 = arith.constant 0 : i32
    %c0_i32_0 = arith.constant 0 : i32
    %c0_i32_1 = arith.constant 0 : i32
    return %c0_i32, %c0_i32_0 : i32, i32
  }
  func.func @transform_4(%arg0: i32, %arg1: i32) -> (i32, i32) {
    %c0_i32 = arith.constant 0 : i32
    %c0_i32_0 = arith.constant 0 : i32
    %c0_i32_1 = arith.constant 0 : i32
    return %c0_i32, %c0_i32_0 : i32, i32
  }
  func.func @transform_5(%arg0: i32, %arg1: i32) -> (i32, i32) {
    %c0_i32 = arith.constant 0 : i32
    %c0_i32_0 = arith.constant 0 : i32
    %c0_i32_1 = arith.constant 0 : i32
    return %c0_i32, %c0_i32_0 : i32, i32
  }
  func.func @transform_6(%arg0: i32, %arg1: i32) -> (i32, i32) {
    %c0_i32 = arith.constant 0 : i32
    %c0_i32_0 = arith.constant 0 : i32
    %c0_i32_1 = arith.constant 0 : i32
    return %c0_i32, %c0_i32_0 : i32, i32
  }
  func.func @transform_7(%arg0: i32, %arg1: i32) -> (i32, i32) {
    %c0_i32 = arith.constant 0 : i32
    %c0_i32_0 = arith.constant 0 : i32
    %c0_i32_1 = arith.constant 0 : i32
    return %c0_i32, %c0_i32_0 : i32, i32
  }
  func.func @transform_8(%arg0: i32, %arg1: i32) -> (i32, i32, i32) {
    %c0_i32 = arith.constant 0 : i32
    %c0_i32_0 = arith.constant 0 : i32
    return %arg0, %arg1, %c0_i32 : i32, i32, i32
  }
}

</mosaic_0001>

<llo_original>
// kernel: belong_weight_generator_forward.3
$region0: #{belong_weight_generator_forward.3}
  #allocation0 [shape = 'u32[]', space=smem, size = 0x4, offset = 0x4, fixed_abs, tag = 'smem constant byte address 0x4 - core index']
  #allocation1 [shape = 'u32[144,128]{1,0:T(1,128)}', space=vmem, size = 0x12000, scoped, tag = 'internal scratch']
  %s0 = inlined_call_operand.vmem [shape: f32[512,32], index: 0, kind: input, shape index: {}]
  %s1 = inlined_call_operand.vmem [shape: f32[32,32], index: 1, kind: input, shape index: {}]
  %s2 = inlined_call_operand.vmem [shape: f32[1,32], index: 2, kind: input, shape index: {}]
  %s3 = inlined_call_operand.vmem [shape: f32[512,32], index: 3, kind: output, shape index: {}]
  %s4 = sld [smem:[#allocation0]]
  $region45: #{belong_weight_generator_forward.3} parent=0
    _
  %s6 = ssub.s32 1, %s4
  %s7 = scalar_select 0, %s6, %s4
  loop: start=0, step=1, limit=4
  $region2: #{belong_weight_generator_forward.3} parent=0 // loop_pre_header
    _
  $region3: #{belong_weight_generator_forward.3} parent=0 // loop_header
    %s9 = sphi 0, %s13
    %p10 = scmp.ge.s32.totalorder %s9, 4
    %s19 = sphi 0, %s21
    %s22 = sphi 0, %s19
    %s23 = sphi 0, %s22
    %s39 = sphi 0, %s23
    %s43 = sphi 0, %s43
    %s45 = sphi 0, %s43
    %s46 = sphi 0, %s45
    %s60 = sphi 0, %s46
    %s64 = sphi 0, %s64
    %s66 = sphi 0, %s64
    %s67 = sphi 0, %s66
    %s81 = sphi 0, %s67
    %s87 = sphi 0, %s89
    %s90 = sphi 0, %s87
    %s91 = sphi 0, %s90
    %s107 = sphi 0, %s91
  $region4: #{belong_weight_generator_forward.3} parent=0 // loop_header_branch
    %12 = sbr.rel (%p10) target = $region8
  $region5: #{belong_weight_generator_forward.3} parent=0 // loop_body
    %s14 = ssub.s32 %s9, 1
    %s15 = ssub.s32 %s9, 2
    %s16 = sadd.s32 %s9, 1
    %s17 = ssub.s32 %s9, %s16
    %p18 = scmp.eq.s32.totalorder %s17, 0
    %s20 = sadd.s32 %s19, 1
    %s21 = scalar_select %p18, %s19, %s20
    %p24 = pneg %p18
    %p25 = scmp.eq.s32.totalorder %s9, 1
    %p26 = por %p24, %p25
    %p27 = scmp.ne.s32.totalorder %s19, %s22
    %p28 = scmp.eq.s32.totalorder %s9, 0
    %p29 = por %p27, %p28
    %p30 = scmp.ne.s32.totalorder %s19, %s22
    %p31 = scmp.eq.s32.totalorder %s14, 1
    %p32 = por %p30, %p31
    %p33 = scmp.ne.s32.totalorder %s22, %s23
    %p34 = scmp.eq.s32.totalorder %s14, 0
    %p35 = por %p33, %p34
    %p36 = scmp.ne.s32.totalorder %s22, %s23
    %p37 = scmp.eq.s32.totalorder %s15, 1
    %p38 = por %p36, %p37
    %p40 = scmp.ne.s32.totalorder %s23, %s39
    %p41 = scmp.eq.s32.totalorder %s15, 0
    %p42 = por %p40, %p41
    %s44 = sadd.s32 %s43, 1
    %p47 = scmp.eq.s32.totalorder %s9, 1
    %p48 = scmp.ne.s32.totalorder %s43, %s45
    %p49 = scmp.eq.s32.totalorder %s9, 0
    %p50 = por %p48, %p49
    %p51 = scmp.ne.s32.totalorder %s43, %s45
    %p52 = scmp.eq.s32.totalorder %s14, 1
    %p53 = por %p51, %p52
    %p54 = scmp.ne.s32.totalorder %s45, %s46
    %p55 = scmp.eq.s32.totalorder %s14, 0
    %p56 = por %p54, %p55
    %p57 = scmp.ne.s32.totalorder %s45, %s46
    %p58 = scmp.eq.s32.totalorder %s15, 1
    %p59 = por %p57, %p58
    %p61 = scmp.ne.s32.totalorder %s46, %s60
    %p62 = scmp.eq.s32.totalorder %s15, 0
    %p63 = por %p61, %p62
    %s65 = sadd.s32 %s64, 1
    %p68 = scmp.eq.s32.totalorder %s9, 1
    %p69 = scmp.ne.s32.totalorder %s64, %s66
    %p70 = scmp.eq.s32.totalorder %s9, 0
    %p71 = por %p69, %p70
    %p72 = scmp.ne.s32.totalorder %s64, %s66
    %p73 = scmp.eq.s32.totalorder %s14, 1
    %p74 = por %p72, %p73
    %p75 = scmp.ne.s32.totalorder %s66, %s67
    %p76 = scmp.eq.s32.totalorder %s14, 0
    %p77 = por %p75, %p76
    %p78 = scmp.ne.s32.totalorder %s66, %s67
    %p79 = scmp.eq.s32.totalorder %s15, 1
    %p80 = por %p78, %p79
    %p82 = scmp.ne.s32.totalorder %s67, %s81
    %p83 = scmp.eq.s32.totalorder %s15, 0
    %p84 = por %p82, %p83
    %s85 = ssub.s32 %s9, %s16
    %p86 = scmp.eq.s32.totalorder %s85, 0
    %s88 = sadd.s32 %s87, 1
    %s89 = scalar_select %p86, %s87, %s88
    %p92 = pneg %p86
    %p93 = scmp.eq.s32.totalorder %s9, 1
    %p94 = por %p92, %p93
    %p95 = scmp.ne.s32.totalorder %s87, %s90
    %p96 = scmp.eq.s32.totalorder %s9, 0
    %p97 = por %p95, %p96
    %p98 = scmp.ne.s32.totalorder %s87, %s90
    %p99 = scmp.eq.s32.totalorder %s14, 1
    %p100 = por %p98, %p99
    %p101 = scmp.ne.s32.totalorder %s90, %s91
    %p102 = scmp.eq.s32.totalorder %s14, 0
    %p103 = por %p101, %p102
    %p104 = scmp.ne.s32.totalorder %s90, %s91
    %p105 = scmp.eq.s32.totalorder %s15, 1
    %p106 = por %p104, %p105
    %p108 = scmp.ne.s32.totalorder %s91, %s107
    %p109 = scmp.eq.s32.totalorder %s15, 0
    %p110 = por %p108, %p109
    %p111 = scmp.le.s32.totalorder 1, %s9
    %p112 = scmp.lt.s32.totalorder %s9, 3
    %p113 = pnand %p111, %p112
    %p114 = pneg %p113
    // Predicated region
    $region9: #{belong_weight_generator_forward.3} parent=5 // pred_check
      _
    $region10: #{belong_weight_generator_forward.3} parent=5 // pred_check_branch
      %116 = sbr.rel (%p113) target = $region12
    $region11: #{belong_weight_generator_forward.3} parent=5 // pred_region
      %s117 = ssub.s32 %s9, 1
      // Predicated region
      $region13: #{belong_weight_generator_forward.3} parent=11 // pred_check
        %p118 = pneg %p56
      $region14: #{belong_weight_generator_forward.3} parent=11 // pred_check_branch
        %120 = sbr.rel (%p118) target = $region16
      $region15: #{belong_weight_generator_forward.3} parent=11 // pred_region
        _
      $region16: #{belong_weight_generator_forward.3} parent=11 // pred_fallthru
        _
      // Predicated region
      $region17: #{belong_weight_generator_forward.3} parent=11 // pred_check
        %p121 = pneg %p77
      $region18: #{belong_weight_generator_forward.3} parent=11 // pred_check_branch
        %123 = sbr.rel (%p121) target = $region20
      $region19: #{belong_weight_generator_forward.3} parent=11 // pred_region
        _
      $region20: #{belong_weight_generator_forward.3} parent=11 // pred_fallthru
        _
    $region12: #{belong_weight_generator_forward.3} parent=5 // pred_fallthru
      _
    %p124 = scmp.lt.s32.totalorder %s9, 2
    // Predicated region
    $region21: #{belong_weight_generator_forward.3} parent=5 // pred_check
      %p125 = pneg %p124
    $region22: #{belong_weight_generator_forward.3} parent=5 // pred_check_branch
      %127 = sbr.rel (%p125) target = $region24
    $region23: #{belong_weight_generator_forward.3} parent=5 // pred_region
      // Predicated region
      $region25: #{belong_weight_generator_forward.3} parent=23 // pred_check
        %p128 = pneg %p29
      $region26: #{belong_weight_generator_forward.3} parent=23 // pred_check_branch
        %130 = sbr.rel (%p128) target = $region28
      $region27: #{belong_weight_generator_forward.3} parent=23 // pred_region
        %s131 = smul.u32 32, %s9
        %p132 = scmp.lt.s32.totalorder %s131, 63
        %s133 = scalar_select %p132, %s131, 63
        %s134 = smul.addr %s133, 8
        %s135 = scalar_lea.vmem %s0, %s134
        %s136 = smul.u32 32, %s9
      $region28: #{belong_weight_generator_forward.3} parent=23 // pred_fallthru
        _
    $region24: #{belong_weight_generator_forward.3} parent=5 // pred_fallthru
      _
    %p137 = scmp.le.s32.totalorder 1, %s9
    %p138 = scmp.lt.s32.totalorder %s9, 3
    %p139 = pnand %p137, %p138
    %p140 = pneg %p139
    // Predicated region
    $region29: #{belong_weight_generator_forward.3} parent=5 // pred_check
      _
    $region30: #{belong_weight_generator_forward.3} parent=5 // pred_check_branch
      %142 = sbr.rel (%p139) target = $region32
    $region31: #{belong_weight_generator_forward.3} parent=5 // pred_region
      %s143 = ssub.s32 %s9, 1
      %s144 = smul.u32 32, %s14
      %p145 = scmp.lt.s32.totalorder %s144, 63
      %s146 = scalar_select %p145, %s144, 63
      %s147 = smul.addr %s146, 8
      %s148 = scalar_lea.vmem %s0, %s147
      %p149 = pneg %p35
      %p150 = pneg %p32
      %p151 = pneg %p56
      %p152 = pneg %p53
      %p153 = pneg %p77
      %p154 = pneg %p74
      %p155 = pneg %p103
      %p156 = pneg %p100
      %s157 = smul.u32 32, %s14
      %p158 = scmp.lt.s32.totalorder %s157, 63
      %s159 = scalar_select %p158, %s157, 63
      %s160 = smul.addr %s159, 8
      %s161 = scalar_lea.vmem %s3, %s160
      %s162 = smul.u32 32, %s14
      %p163 = scmp.lt.s32.totalorder %s162, 63
      %s164 = scalar_select %p163, %s162, 63
      %s165 = smul.addr %s164, 8
      %s166 = scalar_lea.vmem %s0, %s165
      %s167 = smul.u32 32, %s14
      %s168 = smul.u32 32, %s14
      %p169 = scmp.lt.s32.totalorder %s168, 63
      %s170 = scalar_select %p169, %s168, 63
      %s171 = smul.addr %s170, 8
      %s172 = scalar_lea.vmem %s3, %s171
      %s173 = smul.u32 32, %s14
      %v174 = vld [vmem:[%s166] sm:$0xff]
      %v175 = vld [vmem:[%s166 + $0x8] sm:$0xff]
      %v176 = vld [vmem:[%s166 + $0x10] sm:$0xff]
      %v177 = vld [vmem:[%s166 + $0x18] sm:$0xff]
      %v178 = vld [vmem:[%s166 + $0x20] sm:$0xff]
      %v179 = vld [vmem:[%s166 + $0x28] sm:$0xff]
      %v180 = vld [vmem:[%s166 + $0x30] sm:$0xff]
      %v181 = vld [vmem:[%s166 + $0x38] sm:$0xff]
      %v182 = vld [vmem:[%s166 + $0x40] sm:$0xff]
      %v183 = vld [vmem:[%s166 + $0x48] sm:$0xff]
      %v184 = vld [vmem:[%s166 + $0x50] sm:$0xff]
      %v185 = vld [vmem:[%s166 + $0x58] sm:$0xff]
      %v186 = vld [vmem:[%s166 + $0x60] sm:$0xff]
      %v187 = vld [vmem:[%s166 + $0x68] sm:$0xff]
      %v188 = vld [vmem:[%s166 + $0x70] sm:$0xff]
      %v189 = vld [vmem:[%s166 + $0x78] sm:$0xff]
      %v190 = vld [vmem:[%s166 + $0x80] sm:$0xff]
      %v191 = vld [vmem:[%s166 + $0x88] sm:$0xff]
      %v192 = vld [vmem:[%s166 + $0x90] sm:$0xff]
      %v193 = vld [vmem:[%s166 + $0x98] sm:$0xff]
      %v194 = vld [vmem:[%s166 + $0xa0] sm:$0xff]
      %v195 = vld [vmem:[%s166 + $0xa8] sm:$0xff]
      %v196 = vld [vmem:[%s166 + $0xb0] sm:$0xff]
      %v197 = vld [vmem:[%s166 + $0xb8] sm:$0xff]
      %v198 = vld [vmem:[%s166 + $0xc0] sm:$0xff]
      %v199 = vld [vmem:[%s166 + $0xc8] sm:$0xff]
      %v200 = vld [vmem:[%s166 + $0xd0] sm:$0xff]
      %v201 = vld [vmem:[%s166 + $0xd8] sm:$0xff]
      %v202 = vld [vmem:[%s166 + $0xe0] sm:$0xff]
      %v203 = vld [vmem:[%s166 + $0xe8] sm:$0xff]
      %v204 = vld [vmem:[%s166 + $0xf0] sm:$0xff]
      %v205 = vld [vmem:[%s166 + $0xf8] sm:$0xff]
      %v206 = vld [vmem:[%s1] sm:$0xff]
      %v207 = vld [vmem:[%s1 + $0x8] sm:$0xff]
      %v208 = vld [vmem:[%s1 + $0x10] sm:$0xff]
      %v209 = vld [vmem:[%s1 + $0x18] sm:$0xff]
      %v210 = vld [vmem:[%s2] sm:$0x1]
      %v212 = vlaneseq
      %v213 = vshrl.u32 %v212, 7
      %v214 = vsub.s32 0, %v213
      %v215 = vrot.slane %v210, %v214
      %vm217 = vcmask 261120
      %v219 = vsel %vm217, %v174, 0
      %v222 = vsel %vm217, %v175, 0
      %v225 = vsel %vm217, %v176, 0
      %v228 = vsel %vm217, %v177, 0
      %v231 = vsel %vm217, %v178, 0
      %v234 = vsel %vm217, %v179, 0
      %v237 = vsel %vm217, %v180, 0
      %v240 = vsel %vm217, %v181, 0
      %v243 = vsel %vm217, %v182, 0
      %v246 = vsel %vm217, %v183, 0
      %v249 = vsel %vm217, %v184, 0
      %v252 = vsel %vm217, %v185, 0
      %v255 = vsel %vm217, %v186, 0
      %v258 = vsel %vm217, %v187, 0
      %v261 = vsel %vm217, %v188, 0
      %v264 = vsel %vm217, %v189, 0
      %v267 = vsel %vm217, %v190, 0
      %v270 = vsel %vm217, %v191, 0
      %v273 = vsel %vm217, %v192, 0
      %v276 = vsel %vm217, %v193, 0
      %v279 = vsel %vm217, %v194, 0
      %v282 = vsel %vm217, %v195, 0
      %v285 = vsel %vm217, %v196, 0
      %v288 = vsel %vm217, %v197, 0
      %v291 = vsel %vm217, %v198, 0
      %v294 = vsel %vm217, %v199, 0
      %v297 = vsel %vm217, %v200, 0
      %v300 = vsel %vm217, %v201, 0
      %v303 = vsel %vm217, %v202, 0
      %v306 = vsel %vm217, %v203, 0
      %v309 = vsel %vm217, %v204, 0
      %v312 = vsel %vm217, %v205, 0
      %314 = vmatprep.subr.mxu0 0.0
      %315 = vmatpush1.msra.mxu0 %v206
      %316 = vmatprep.subr.mxu0 0.0
      %317 = vmatpush1.msra.mxu0 %v207
      %318 = vmatprep.subr.mxu0 0.0
      %319 = vmatpush1.msra.mxu0 %v208
      %320 = vmatprep.subr.mxu0 0.0
      %321 = vmatpush1.msra.mxu0 %v209
      %322 = vmatprep.subr.mxu0 0.0
      %323 = vmatpush1.msra.mxu0 0.0
      %324 = vmatprep.subr.mxu0 0.0
      %325 = vmatpush1.msra.mxu0 0.0
      %326 = vmatprep.subr.mxu0 0.0
      %327 = vmatpush1.msra.mxu0 0.0
      %328 = vmatprep.subr.mxu0 0.0
      %329 = vmatpush1.msra.mxu0 0.0
      %330 = vmatprep.subr.mxu0 0.0
      %331 = vmatpush1.msra.mxu0 0.0
      %332 = vmatprep.subr.mxu0 0.0
      %333 = vmatpush1.msra.mxu0 0.0
      %334 = vmatprep.subr.mxu0 0.0
      %335 = vmatpush1.msra.mxu0 0.0
      %336 = vmatprep.subr.mxu0 0.0
      %337 = vmatpush1.msra.mxu0 0.0
      %338 = vmatprep.subr.mxu0 0.0
      %339 = vmatpush1.msra.mxu0 0.0
      %340 = vmatprep.subr.mxu0 0.0
      %341 = vmatpush1.msra.mxu0 0.0
      %342 = vmatprep.subr.mxu0 0.0
      %343 = vmatpush1.msra.mxu0 0.0
      %344 = vmatprep.subr.mxu0 0.0
      %345 = vmatpush1.msra.mxu0 0.0
      %346 = vmatprep.subr.mxu0 0.0
      %347 = vmatpush1.msra.mxu0 0.0
      %348 = vmatprep.subr.mxu0 0.0
      %349 = vmatpush1.msra.mxu0 0.0
      %350 = vmatprep.subr.mxu0 0.0
      %351 = vmatpush1.msra.mxu0 0.0
      %352 = vmatprep.subr.mxu0 0.0
      %353 = vmatpush1.msra.mxu0 0.0
      %354 = vmatprep.subr.mxu0 0.0
      %355 = vmatpush1.msra.mxu0 0.0
      %356 = vmatprep.subr.mxu0 0.0
      %357 = vmatpush1.msra.mxu0 0.0
      %358 = vmatprep.subr.mxu0 0.0
      %359 = vmatpush1.msra.mxu0 0.0
      %360 = vmatprep.subr.mxu0 0.0
      %361 = vmatpush1.msra.mxu0 0.0
      %362 = vmatprep.subr.mxu0 0.0
      %363 = vmatpush1.msra.mxu0 0.0
      %364 = vmatprep.subr.mxu0 0.0
      %365 = vmatpush1.msra.mxu0 0.0
      %366 = vmatprep.subr.mxu0 0.0
      %367 = vmatpush1.msra.mxu0 0.0
      %368 = vmatprep.subr.mxu0 0.0
      %369 = vmatpush1.msra.mxu0 0.0
      %370 = vmatprep.subr.mxu0 0.0
      %371 = vmatpush1.msra.mxu0 0.0
      %372 = vmatprep.subr.mxu0 0.0
      %373 = vmatpush1.msra.mxu0 0.0
      %374 = vmatprep.subr.mxu0 0.0
      %375 = vmatpush1.msra.mxu0 0.0
      %376 = vmatprep.subr.mxu0 0.0
      %377 = vmatpush1.msra.mxu0 0.0
      %378 = vmatprep.mubr.f32.mxu0 0.0
      %379 = vmatmul.mubr.f32.gmra.mrb[0].mxu0 %v219
      %v380 = vpop.f32.mrb[0].mxu0
      %v381 = vadd.f32 %v215, %v380
      %v382 = vpop.f32.mrb[0].mxu0
      %383 = vmatprep.mubr.f32.mxu0 0.0
      %384 = vmatmul.mubr.f32.gmra.mrb[0].mxu0 %v222
      %v385 = vpop.f32.mrb[0].mxu0
      %v386 = vadd.f32 %v215, %v385
      %v387 = vpop.f32.mrb[0].mxu0
      %388 = vmatprep.mubr.f32.mxu0 0.0
      %389 = vmatmul.mubr.f32.gmra.mrb[0].mxu0 %v225
      %v390 = vpop.f32.mrb[0].mxu0
      %v391 = vadd.f32 %v215, %v390
      %v392 = vpop.f32.mrb[0].mxu0
      %393 = vmatprep.mubr.f32.mxu0 0.0
      %394 = vmatmul.mubr.f32.gmra.mrb[0].mxu0 %v228
      %v395 = vpop.f32.mrb[0].mxu0
      %v396 = vadd.f32 %v215, %v395
      %v397 = vpop.f32.mrb[0].mxu0
      %398 = vmatprep.mubr.f32.mxu0 0.0
      %399 = vmatmul.mubr.f32.gmra.mrb[0].mxu0 %v231
      %v400 = vpop.f32.mrb[0].mxu0
      %v401 = vadd.f32 %v215, %v400
      %v402 = vpop.f32.mrb[0].mxu0
      %403 = vmatprep.mubr.f32.mxu0 0.0
      %404 = vmatmul.mubr.f32.gmra.mrb[0].mxu0 %v234
      %v405 = vpop.f32.mrb[0].mxu0
      %v406 = vadd.f32 %v215, %v405
      %v407 = vpop.f32.mrb[0].mxu0
      %408 = vmatprep.mubr.f32.mxu0 0.0
      %409 = vmatmul.mubr.f32.gmra.mrb[0].mxu0 %v237
      %v410 = vpop.f32.mrb[0].mxu0
      %v411 = vadd.f32 %v215, %v410
      %v412 = vpop.f32.mrb[0].mxu0
      %413 = vmatprep.mubr.f32.mxu0 0.0
      %414 = vmatmul.mubr.f32.gmra.mrb[0].mxu0 %v240
      %v415 = vpop.f32.mrb[0].mxu0
      %v416 = vadd.f32 %v215, %v415
      %v417 = vpop.f32.mrb[0].mxu0
      %418 = vmatprep.mubr.f32.mxu0 0.0
      %419 = vmatmul.mubr.f32.gmra.mrb[0].mxu0 %v243
      %v420 = vpop.f32.mrb[0].mxu0
      %v421 = vadd.f32 %v215, %v420
      %v422 = vpop.f32.mrb[0].mxu0
      %423 = vmatprep.mubr.f32.mxu0 0.0
      %424 = vmatmul.mubr.f32.gmra.mrb[0].mxu0 %v246
      %v425 = vpop.f32.mrb[0].mxu0
      %v426 = vadd.f32 %v215, %v425
      %v427 = vpop.f32.mrb[0].mxu0
      %428 = vmatprep.mubr.f32.mxu0 0.0
      %429 = vmatmul.mubr.f32.gmra.mrb[0].mxu0 %v249
      %v430 = vpop.f32.mrb[0].mxu0
      %v431 = vadd.f32 %v215, %v430
      %v432 = vpop.f32.mrb[0].mxu0
      %433 = vmatprep.mubr.f32.mxu0 0.0
      %434 = vmatmul.mubr.f32.gmra.mrb[0].mxu0 %v252
      %v435 = vpop.f32.mrb[0].mxu0
      %v436 = vadd.f32 %v215, %v435
      %v437 = vpop.f32.mrb[0].mxu0
      %438 = vmatprep.mubr.f32.mxu0 0.0
      %439 = vmatmul.mubr.f32.gmra.mrb[0].mxu0 %v255
      %v440 = vpop.f32.mrb[0].mxu0
      %v441 = vadd.f32 %v215, %v440
      %v442 = vpop.f32.mrb[0].mxu0
      %443 = vmatprep.mubr.f32.mxu0 0.0
      %444 = vmatmul.mubr.f32.gmra.mrb[0].mxu0 %v258
      %v445 = vpop.f32.mrb[0].mxu0
      %v446 = vadd.f32 %v215, %v445
      %v447 = vpop.f32.mrb[0].mxu0
      %448 = vmatprep.mubr.f32.mxu0 0.0
      %449 = vmatmul.mubr.f32.gmra.mrb[0].mxu0 %v261
      %v450 = vpop.f32.mrb[0].mxu0
      %v451 = vadd.f32 %v215, %v450
      %v452 = vpop.f32.mrb[0].mxu0
      %453 = vmatprep.mubr.f32.mxu0 0.0
      %454 = vmatmul.mubr.f32.gmra.mrb[0].mxu0 %v264
      %v455 = vpop.f32.mrb[0].mxu0
      %v456 = vadd.f32 %v215, %v455
      %v457 = vpop.f32.mrb[0].mxu0
      %458 = vmatprep.mubr.f32.mxu0 0.0
      %459 = vmatmul.mubr.f32.gmra.mrb[0].mxu0 %v267
      %v460 = vpop.f32.mrb[0].mxu0
      %v461 = vadd.f32 %v215, %v460
      %v462 = vpop.f32.mrb[0].mxu0
      %463 = vmatprep.mubr.f32.mxu0 0.0
      %464 = vmatmul.mubr.f32.gmra.mrb[0].mxu0 %v270
      %v465 = vpop.f32.mrb[0].mxu0
      %v466 = vadd.f32 %v215, %v465
      %v467 = vpop.f32.mrb[0].mxu0
      %468 = vmatprep.mubr.f32.mxu0 0.0
      %469 = vmatmul.mubr.f32.gmra.mrb[0].mxu0 %v273
      %v470 = vpop.f32.mrb[0].mxu0
      %v471 = vadd.f32 %v215, %v470
      %v472 = vpop.f32.mrb[0].mxu0
      %473 = vmatprep.mubr.f32.mxu0 0.0
      %474 = vmatmul.mubr.f32.gmra.mrb[0].mxu0 %v276
      %v475 = vpop.f32.mrb[0].mxu0
      %v476 = vadd.f32 %v215, %v475
      %v477 = vpop.f32.mrb[0].mxu0
      %478 = vmatprep.mubr.f32.mxu0 0.0
      %479 = vmatmul.mubr.f32.gmra.mrb[0].mxu0 %v279
      %v480 = vpop.f32.mrb[0].mxu0
      %v481 = vadd.f32 %v215, %v480
      %v482 = vpop.f32.mrb[0].mxu0
      %483 = vmatprep.mubr.f32.mxu0 0.0
      %484 = vmatmul.mubr.f32.gmra.mrb[0].mxu0 %v282
      %v485 = vpop.f32.mrb[0].mxu0
      %v486 = vadd.f32 %v215, %v485
      %v487 = vpop.f32.mrb[0].mxu0
      %488 = vmatprep.mubr.f32.mxu0 0.0
      %489 = vmatmul.mubr.f32.gmra.mrb[0].mxu0 %v285
      %v490 = vpop.f32.mrb[0].mxu0
      %v491 = vadd.f32 %v215, %v490
      %v492 = vpop.f32.mrb[0].mxu0
      %493 = vmatprep.mubr.f32.mxu0 0.0
      %494 = vmatmul.mubr.f32.gmra.mrb[0].mxu0 %v288
      %v495 = vpop.f32.mrb[0].mxu0
      %v496 = vadd.f32 %v215, %v495
      %v497 = vpop.f32.mrb[0].mxu0
      %498 = vmatprep.mubr.f32.mxu0 0.0
      %499 = vmatmul.mubr.f32.gmra.mrb[0].mxu0 %v291
      %v500 = vpop.f32.mrb[0].mxu0
      %v501 = vadd.f32 %v215, %v500
      %v502 = vpop.f32.mrb[0].mxu0
      %503 = vmatprep.mubr.f32.mxu0 0.0
      %504 = vmatmul.mubr.f32.gmra.mrb[0].mxu0 %v294
      %v505 = vpop.f32.mrb[0].mxu0
      %v506 = vadd.f32 %v215, %v505
      %v507 = vpop.f32.mrb[0].mxu0
      %508 = vmatprep.mubr.f32.mxu0 0.0
      %509 = vmatmul.mubr.f32.gmra.mrb[0].mxu0 %v297
      %v510 = vpop.f32.mrb[0].mxu0
      %v511 = vadd.f32 %v215, %v510
      %v512 = vpop.f32.mrb[0].mxu0
      %513 = vmatprep.mubr.f32.mxu0 0.0
      %514 = vmatmul.mubr.f32.gmra.mrb[0].mxu0 %v300
      %v515 = vpop.f32.mrb[0].mxu0
      %v516 = vadd.f32 %v215, %v515
      %v517 = vpop.f32.mrb[0].mxu0
      %518 = vmatprep.mubr.f32.mxu0 0.0
      %519 = vmatmul.mubr.f32.gmra.mrb[0].mxu0 %v303
      %v520 = vpop.f32.mrb[0].mxu0
      %v521 = vadd.f32 %v215, %v520
      %v522 = vpop.f32.mrb[0].mxu0
      %523 = vmatprep.mubr.f32.mxu0 0.0
      %524 = vmatmul.mubr.f32.gmra.mrb[0].mxu0 %v306
      %v525 = vpop.f32.mrb[0].mxu0
      %v526 = vadd.f32 %v215, %v525
      %v527 = vpop.f32.mrb[0].mxu0
      %528 = vmatprep.mubr.f32.mxu0 0.0
      %529 = vmatmul.mubr.f32.gmra.mrb[0].mxu0 %v309
      %v530 = vpop.f32.mrb[0].mxu0
      %v531 = vadd.f32 %v215, %v530
      %v532 = vpop.f32.mrb[0].mxu0
      %533 = vmatprep.mubr.f32.mxu0 0.0
      %534 = vmatmul.mubr.f32.gmra.mrb[0].mxu0 %v312
      %v535 = vpop.f32.mrb[0].mxu0
      %v536 = vadd.f32 %v215, %v535
      %v537 = vpop.f32.mrb[0].mxu0
      %538 = vdwg.mxu0
      %539 = vst.msk [vmem:[%s172] sm:$0xff] %vm217, %v381
      %540 = vst.msk [vmem:[%s172 + $0x8] sm:$0xff] %vm217, %v386
      %541 = vst.msk [vmem:[%s172 + $0x10] sm:$0xff] %vm217, %v391
      %542 = vst.msk [vmem:[%s172 + $0x18] sm:$0xff] %vm217, %v396
      %543 = vst.msk [vmem:[%s172 + $0x20] sm:$0xff] %vm217, %v401
      %544 = vst.msk [vmem:[%s172 + $0x28] sm:$0xff] %vm217, %v406
      %545 = vst.msk [vmem:[%s172 + $0x30] sm:$0xff] %vm217, %v411
      %546 = vst.msk [vmem:[%s172 + $0x38] sm:$0xff] %vm217, %v416
      %547 = vst.msk [vmem:[%s172 + $0x40] sm:$0xff] %vm217, %v421
      %548 = vst.msk [vmem:[%s172 + $0x48] sm:$0xff] %vm217, %v426
      %549 = vst.msk [vmem:[%s172 + $0x50] sm:$0xff] %vm217, %v431
      %550 = vst.msk [vmem:[%s172 + $0x58] sm:$0xff] %vm217, %v436
      %551 = vst.msk [vmem:[%s172 + $0x60] sm:$0xff] %vm217, %v441
      %552 = vst.msk [vmem:[%s172 + $0x68] sm:$0xff] %vm217, %v446
      %553 = vst.msk [vmem:[%s172 + $0x70] sm:$0xff] %vm217, %v451
      %554 = vst.msk [vmem:[%s172 + $0x78] sm:$0xff] %vm217, %v456
      %555 = vst.msk [vmem:[%s172 + $0x80] sm:$0xff] %vm217, %v461
      %556 = vst.msk [vmem:[%s172 + $0x88] sm:$0xff] %vm217, %v466
      %557 = vst.msk [vmem:[%s172 + $0x90] sm:$0xff] %vm217, %v471
      %558 = vst.msk [vmem:[%s172 + $0x98] sm:$0xff] %vm217, %v476
      %559 = vst.msk [vmem:[%s172 + $0xa0] sm:$0xff] %vm217, %v481
      %560 = vst.msk [vmem:[%s172 + $0xa8] sm:$0xff] %vm217, %v486
      %561 = vst.msk [vmem:[%s172 + $0xb0] sm:$0xff] %vm217, %v491
      %562 = vst.msk [vmem:[%s172 + $0xb8] sm:$0xff] %vm217, %v496
      %563 = vst.msk [vmem:[%s172 + $0xc0] sm:$0xff] %vm217, %v501
      %564 = vst.msk [vmem:[%s172 + $0xc8] sm:$0xff] %vm217, %v506
      %565 = vst.msk [vmem:[%s172 + $0xd0] sm:$0xff] %vm217, %v511
      %566 = vst.msk [vmem:[%s172 + $0xd8] sm:$0xff] %vm217, %v516
      %567 = vst.msk [vmem:[%s172 + $0xe0] sm:$0xff] %vm217, %v521
      %568 = vst.msk [vmem:[%s172 + $0xe8] sm:$0xff] %vm217, %v526
      %569 = vst.msk [vmem:[%s172 + $0xf0] sm:$0xff] %vm217, %v531
      %570 = vst.msk [vmem:[%s172 + $0xf8] sm:$0xff] %vm217, %v536
      %s571 = smul.u32 32, %s14
      %p572 = scmp.lt.s32.totalorder %s571, 63
      %s573 = scalar_select %p572, %s571, 63
      %s574 = smul.addr %s573, 8
      %s575 = scalar_lea.vmem %s3, %s574
      // Predicated region
      $region33: #{belong_weight_generator_forward.3} parent=31 // pred_check
        %p576 = pneg %p100
      $region34: #{belong_weight_generator_forward.3} parent=31 // pred_check_branch
        %578 = sbr.rel (%p576) target = $region36
      $region35: #{belong_weight_generator_forward.3} parent=31 // pred_region
        %s579 = smul.u32 32, %s14
      $region36: #{belong_weight_generator_forward.3} parent=31 // pred_fallthru
        _
    $region32: #{belong_weight_generator_forward.3} parent=5 // pred_fallthru
      _
    %p580 = scmp.le.s32.totalorder 2, %s9
    // Predicated region
    $region37: #{belong_weight_generator_forward.3} parent=5 // pred_check
      %p581 = pneg %p580
    $region38: #{belong_weight_generator_forward.3} parent=5 // pred_check_branch
      %583 = sbr.rel (%p581) target = $region40
    $region39: #{belong_weight_generator_forward.3} parent=5 // pred_region
      %s584 = ssub.s32 %s9, 2
      // Predicated region
      $region41: #{belong_weight_generator_forward.3} parent=39 // pred_check
        %p585 = pneg %p106
      $region42: #{belong_weight_generator_forward.3} parent=39 // pred_check_branch
        %587 = sbr.rel (%p585) target = $region44
      $region43: #{belong_weight_generator_forward.3} parent=39 // pred_region
        %s588 = smul.u32 32, %s15
        %p589 = scmp.lt.s32.totalorder %s588, 63
        %s590 = scalar_select %p589, %s588, 63
        %s591 = smul.addr %s590, 8
        %s592 = scalar_lea.vmem %s3, %s591
      $region44: #{belong_weight_generator_forward.3} parent=39 // pred_fallthru
        _
    $region40: #{belong_weight_generator_forward.3} parent=5 // pred_fallthru
      _
  $region6: #{belong_weight_generator_forward.3} parent=0 // loop_footer
    %s13 = sadd.s32 1, %s9
  $region7: #{belong_weight_generator_forward.3} parent=0 // loop_footer_branch
    %8 = sbr.rel target = $region3
  $region8: #{belong_weight_generator_forward.3} parent=0 // loop_exit
    _

// kernel: belong_weight_generator_forward.4
$region0: #{belong_weight_generator_forward.4}
  #allocation0 [shape = 'u32[]', space=smem, size = 0x4, offset = 0x4, fixed_abs, tag = 'smem constant byte address 0x4 - core index']
  #allocation1 [shape = 'u32[144,128]{1,0:T(1,128)}', space=vmem, size = 0x12000, scoped, tag = 'internal scratch']
  #allocation2 [shape = 'f32[16,16]{1,0:T(8,128)}', space=vmem, size = 0x2000, scoped, tag = 'scratch operand']
  #allocation3 [shape = 'f32[16,16]{1,0:T(8,128)}', space=vmem, size = 0x2000, scoped, tag = 'scratch operand']
  %s0 = inlined_call_operand.vmem [shape: f32[2,32,3], index: 0, kind: input, shape index: {}]
  %s1 = inlined_call_operand.vmem [shape: f32[2,3,256], index: 1, kind: input, shape index: {}]
  %s2 = inlined_call_operand.vmem [shape: s32[2,32,16], index: 2, kind: output, shape index: {}]
  %s3 = sld [smem:[#allocation0]]
  $region49: #{belong_weight_generator_forward.4} parent=0
    _
  %s5 = ssub.s32 1, %s3
  %s6 = scalar_select 0, %s5, %s3
  loop: start=0, step=1, limit=10
  $region2: #{belong_weight_generator_forward.4} parent=0 // loop_pre_header
    _
  $region3: #{belong_weight_generator_forward.4} parent=0 // loop_header
    %s8 = sphi 0, %s12
    %p9 = scmp.ge.s32.totalorder %s8, 10
    %s15 = sphi 0, %s34
    %s16 = sphi 0, %s30
    %s17 = sphi 0, %s26
    %s18 = sphi 0, %s15
    %s19 = sphi 0, %s16
    %s20 = sphi 0, %s17
    %s21 = sphi 0, %s18
    %s22 = sphi 0, %s19
    %s23 = sphi 0, %s20
    %s39 = sphi 0, %s41
    %s42 = sphi 0, %s39
    %s43 = sphi 0, %s42
    %s59 = sphi 0, %s43
    %s67 = sphi 0, %s69
    %s70 = sphi 0, %s67
    %s71 = sphi 0, %s70
    %s87 = sphi 0, %s71
    %s95 = sphi 0, %s97
    %s98 = sphi 0, %s95
    %s99 = sphi 0, %s98
    %s115 = sphi 0, %s99
  $region4: #{belong_weight_generator_forward.4} parent=0 // loop_header_branch
    %11 = sbr.rel (%p9) target = $region8
  $region5: #{belong_weight_generator_forward.4} parent=0 // loop_body
    %s13 = ssub.s32 %s8, 1
    %s14 = ssub.s32 %s8, 2
    %s24 = sadd.s32 1, %s17
    %p25 = scmp.ge.s32.totalorder %s24, 2
    %s26 = scalar_select %p25, 0, %s24
    %s27 = sadd.s32 1, %s16
    %s28 = scalar_select %p25, %s27, %s16
    %p29 = scmp.ge.s32.totalorder %s28, 2
    %s30 = scalar_select %p29, 0, %s28
    %s31 = sadd.s32 1, %s15
    %s32 = scalar_select %p29, %s31, %s15
    %p33 = scmp.ge.s32.totalorder %s32, 2
    %s34 = scalar_select %p33, 0, %s32
    %s35 = ssub.s32 %s15, %s34
    %s36 = ssub.s32 %s16, %s30
    %s37 = sor.u32 %s35, %s36
    %p38 = scmp.eq.s32.totalorder %s37, 0
    %s40 = sadd.s32 %s39, 1
    %s41 = scalar_select %p38, %s39, %s40
    %p44 = pneg %p38
    %p45 = scmp.eq.s32.totalorder %s8, 7
    %p46 = por %p44, %p45
    %p47 = scmp.ne.s32.totalorder %s39, %s42
    %p48 = scmp.eq.s32.totalorder %s8, 0
    %p49 = por %p47, %p48
    %p50 = scmp.ne.s32.totalorder %s39, %s42
    %p51 = scmp.eq.s32.totalorder %s13, 7
    %p52 = por %p50, %p51
    %p53 = scmp.ne.s32.totalorder %s42, %s43
    %p54 = scmp.eq.s32.totalorder %s13, 0
    %p55 = por %p53, %p54
    %p56 = scmp.ne.s32.totalorder %s42, %s43
    %p57 = scmp.eq.s32.totalorder %s14, 7
    %p58 = por %p56, %p57
    %p60 = scmp.ne.s32.totalorder %s43, %s59
    %p61 = scmp.eq.s32.totalorder %s14, 0
    %p62 = por %p60, %p61
    %s63 = ssub.s32 %s15, %s34
    %s64 = ssub.s32 %s17, %s26
    %s65 = sor.u32 %s63, %s64
    %p66 = scmp.eq.s32.totalorder %s65, 0
    %s68 = sadd.s32 %s67, 1
    %s69 = scalar_select %p66, %s67, %s68
    %p72 = pneg %p66
    %p73 = scmp.eq.s32.totalorder %s8, 7
    %p74 = por %p72, %p73
    %p75 = scmp.ne.s32.totalorder %s67, %s70
    %p76 = scmp.eq.s32.totalorder %s8, 0
    %p77 = por %p75, %p76
    %p78 = scmp.ne.s32.totalorder %s67, %s70
    %p79 = scmp.eq.s32.totalorder %s13, 7
    %p80 = por %p78, %p79
    %p81 = scmp.ne.s32.totalorder %s70, %s71
    %p82 = scmp.eq.s32.totalorder %s13, 0
    %p83 = por %p81, %p82
    %p84 = scmp.ne.s32.totalorder %s70, %s71
    %p85 = scmp.eq.s32.totalorder %s14, 7
    %p86 = por %p84, %p85
    %p88 = scmp.ne.s32.totalorder %s71, %s87
    %p89 = scmp.eq.s32.totalorder %s14, 0
    %p90 = por %p88, %p89
    %s91 = ssub.s32 %s15, %s34
    %s92 = ssub.s32 %s16, %s30
    %s93 = sor.u32 %s91, %s92
    %p94 = scmp.eq.s32.totalorder %s93, 0
    %s96 = sadd.s32 %s95, 1
    %s97 = scalar_select %p94, %s95, %s96
    %p100 = pneg %p94
    %p101 = scmp.eq.s32.totalorder %s8, 7
    %p102 = por %p100, %p101
    %p103 = scmp.ne.s32.totalorder %s95, %s98
    %p104 = scmp.eq.s32.totalorder %s8, 0
    %p105 = por %p103, %p104
    %p106 = scmp.ne.s32.totalorder %s95, %s98
    %p107 = scmp.eq.s32.totalorder %s13, 7
    %p108 = por %p106, %p107
    %p109 = scmp.ne.s32.totalorder %s98, %s99
    %p110 = scmp.eq.s32.totalorder %s13, 0
    %p111 = por %p109, %p110
    %p112 = scmp.ne.s32.totalorder %s98, %s99
    %p113 = scmp.eq.s32.totalorder %s14, 7
    %p114 = por %p112, %p113
    %p116 = scmp.ne.s32.totalorder %s99, %s115
    %p117 = scmp.eq.s32.totalorder %s14, 0
    %p118 = por %p116, %p117
    %p119 = scmp.le.s32.totalorder 1, %s8
    %p120 = scmp.lt.s32.totalorder %s8, 9
    %p121 = pnand %p119, %p120
    %p122 = pneg %p121
    // Predicated region
    $region9: #{belong_weight_generator_forward.4} parent=5 // pred_check
      _
    $region10: #{belong_weight_generator_forward.4} parent=5 // pred_check_branch
      %124 = sbr.rel (%p121) target = $region12
    $region11: #{belong_weight_generator_forward.4} parent=5 // pred_region
      %s125 = ssub.s32 %s8, 1
    $region12: #{belong_weight_generator_forward.4} parent=5 // pred_fallthru
      _
    %p126 = scmp.lt.s32.totalorder %s8, 8
    // Predicated region
    $region13: #{belong_weight_generator_forward.4} parent=5 // pred_check
      %p127 = pneg %p126
    $region14: #{belong_weight_generator_forward.4} parent=5 // pred_check_branch
      %129 = sbr.rel (%p127) target = $region16
    $region15: #{belong_weight_generator_forward.4} parent=5 // pred_region
      // Predicated region
      $region17: #{belong_weight_generator_forward.4} parent=15 // pred_check
        %p130 = pneg %p49
      $region18: #{belong_weight_generator_forward.4} parent=15 // pred_check_branch
        %132 = sbr.rel (%p130) target = $region20
      $region19: #{belong_weight_generator_forward.4} parent=15 // pred_region
        %s133 = smul.u32 2, %s16
        %p134 = scmp.lt.s32.totalorder %s15, 1
        %s135 = scalar_select %p134, %s15, 1
        %p136 = scmp.lt.s32.totalorder %s133, 3
        %s137 = scalar_select %p136, %s133, 3
        %s138 = smul.addr %s135, 4
        %s139 = sadd.s32 %s137, %s138
        %s140 = smul.addr %s139, 8
        %s141 = scalar_lea.vmem %s0, %s140
        %s142 = smul.u32 2, %s16
      $region20: #{belong_weight_generator_forward.4} parent=15 // pred_fallthru
        _
      // Predicated region
      $region21: #{belong_weight_generator_forward.4} parent=15 // pred_check
        %p143 = pneg %p77
      $region22: #{belong_weight_generator_forward.4} parent=15 // pred_check_branch
        %145 = sbr.rel (%p143) target = $region24
      $region23: #{belong_weight_generator_forward.4} parent=15 // pred_region
        %p146 = scmp.lt.s32.totalorder %s15, 1
        %s147 = scalar_select %p146, %s15, 1
        %p148 = scmp.lt.s32.totalorder %s17, 1
        %s149 = scalar_select %p148, %s17, 1
        %s150 = smul.addr %s147, 2
        %s151 = sadd.s32 %s149, %s150
        %s152 = smul.addr %s151, 4
        %s153 = scalar_lea.vmem %s1, %s152
      $region24: #{belong_weight_generator_forward.4} parent=15 // pred_fallthru
        _
    $region16: #{belong_weight_generator_forward.4} parent=5 // pred_fallthru
      _
    %p154 = scmp.le.s32.totalorder 1, %s8
    %p155 = scmp.lt.s32.totalorder %s8, 9
    %p156 = pnand %p154, %p155
    %p157 = pneg %p156
    // Predicated region
    $region25: #{belong_weight_generator_forward.4} parent=5 // pred_check
      _
    $region26: #{belong_weight_generator_forward.4} parent=5 // pred_check_branch
      %159 = sbr.rel (%p156) target = $region28
    $region27: #{belong_weight_generator_forward.4} parent=5 // pred_region
      %s160 = ssub.s32 %s8, 1
      %s161 = smul.u32 2, %s19
      %p162 = scmp.lt.s32.totalorder %s18, 1
      %s163 = scalar_select %p162, %s18, 1
      %p164 = scmp.lt.s32.totalorder %s161, 3
      %s165 = scalar_select %p164, %s161, 3
      %s166 = smul.addr %s163, 4
      %s167 = sadd.s32 %s165, %s166
      %s168 = smul.addr %s167, 8
      %s169 = scalar_lea.vmem %s0, %s168
      %p170 = pneg %p55
      %p171 = pneg %p52
      %p172 = scmp.lt.s32.totalorder %s18, 1
      %s173 = scalar_select %p172, %s18, 1
      %p174 = scmp.lt.s32.totalorder %s20, 1
      %s175 = scalar_select %p174, %s20, 1
      %s176 = smul.addr %s173, 2
      %s177 = sadd.s32 %s175, %s176
      %s178 = smul.addr %s177, 4
      %s179 = scalar_lea.vmem %s1, %s178
      %p180 = pneg %p83
      %p181 = pneg %p80
      %p182 = pneg %p111
      %p183 = pneg %p108
      %s184 = smul.u32 2, %s19
      %p185 = scmp.lt.s32.totalorder %s18, 1
      %s186 = scalar_select %p185, %s18, 1
      %p187 = scmp.lt.s32.totalorder %s184, 3
      %s188 = scalar_select %p187, %s184, 3
      %s189 = smul.addr %s186, 4
      %s190 = sadd.s32 %s188, %s189
      %s191 = smul.addr %s190, 8
      %s192 = scalar_lea.vmem %s2, %s191
      %s193 = smul.u32 2, %s19
      %p194 = scmp.lt.s32.totalorder %s18, 1
      %s195 = scalar_select %p194, %s18, 1
      %p196 = scmp.lt.s32.totalorder %s193, 3
      %s197 = scalar_select %p196, %s193, 3
      %s198 = smul.addr %s195, 4
      %s199 = sadd.s32 %s197, %s198
      %s200 = smul.addr %s199, 8
      %s201 = scalar_lea.vmem %s0, %s200
      %s202 = smul.u32 2, %s19
      %p203 = scmp.lt.s32.totalorder %s18, 1
      %s204 = scalar_select %p203, %s18, 1
      %p205 = scmp.lt.s32.totalorder %s20, 1
      %s206 = scalar_select %p205, %s20, 1
      %s207 = smul.addr %s204, 2
      %s208 = sadd.s32 %s206, %s207
      %s209 = smul.addr %s208, 4
      %s210 = scalar_lea.vmem %s1, %s209
      %s211 = smul.u32 2, %s19
      %p212 = scmp.lt.s32.totalorder %s18, 1
      %s213 = scalar_select %p212, %s18, 1
      %p214 = scmp.lt.s32.totalorder %s211, 3
      %s215 = scalar_select %p214, %s211, 3
      %s216 = smul.addr %s213, 4
      %s217 = sadd.s32 %s215, %s216
      %s218 = smul.addr %s217, 8
      %s219 = scalar_lea.vmem %s2, %s218
      %s220 = smul.u32 2, %s19
      %p221 = scmp.eq.s32.totalorder %s20, 0
      // Predicated region
      $region29: #{belong_weight_generator_forward.4} parent=27 // pred_check
        %p222 = pneg %p221
      $region30: #{belong_weight_generator_forward.4} parent=27 // pred_check_branch
        %224 = sbr.rel (%p222) target = $region32
      $region31: #{belong_weight_generator_forward.4} parent=27 // pred_region
        %vm225 = vcmask 130048
        %226 = vst.msk [vmem:[#allocation2] sm:$0xff] %vm225, inf
        %227 = vst.msk [vmem:[#allocation2 + $0x8] sm:$0xff] %vm225, inf
        %228 = vst.msk [vmem:[#allocation3] sm:$0xff] %vm225, 0.0
        %229 = vst.msk [vmem:[#allocation3 + $0x8] sm:$0xff] %vm225, 0.0
      $region32: #{belong_weight_generator_forward.4} parent=27 // pred_fallthru
        _
      %v230 = vld [vmem:[%s201] sm:$0xff]
      %v231 = vld [vmem:[%s201 + $0x8] sm:$0xff]
      %v232 = vld [vmem:[%s210] sm:$0x7]
      %v233 = vmul.f32 %v230, %v230
      %v234 = vmul.f32 %v231, %v231
      %237 = vrot.lane.b32.xlu0 %v233, 127
      %v238 = vpop.permute.xlu0 %237
      %239 = vrot.lane.b32.xlu0 %v234, 127
      %v240 = vpop.permute.xlu0 %239
      %v243 = vadd.f32 %v233, %v238
      %v244 = vadd.f32 %v234, %v240
      %245 = vrot.lane.b32.xlu0 %v233, 126
      %v246 = vpop.permute.xlu0 %245
      %247 = vrot.lane.b32.xlu0 %v234, 126
      %v248 = vpop.permute.xlu0 %247
      %v251 = vadd.f32 %v243, %v246
      %v252 = vadd.f32 %v244, %v248
      %v253 = vmul.f32 %v232, %v232
      %v255 = vrot.slane %v253, 1
      %v257 = vadd.f32 %v253, %v255
      %v258 = vrot.slane %v253, 2
      %v260 = vadd.f32 %v257, %v258
      %262 = vset.pattern.permute.xlu0 0
      %263 = vperm.xlu0 %262, %v230
      %v264 = vpop.permute.xlu0 %263
      %267 = vset.pattern.permute.xlu0 0
      %268 = vperm.xlu0 %267, %v231
      %v269 = vpop.permute.xlu0 %268
      %v271 = vlaneseq
      %v272 = vshrl.u32 %v271, 7
      %v273 = vsub.s32 0, %v272
      %v274 = vrot.slane %v232, %v273
      %v275 = vmul.f32 %v264, %v274
      %v276 = vmul.f32 %v269, %v274
      %277 = vset.pattern.permute.xlu0 1
      %278 = vperm.xlu0 %277, %v230
      %v279 = vpop.permute.xlu0 %278
      %281 = vset.pattern.permute.xlu0 1
      %282 = vperm.xlu0 %281, %v231
      %v283 = vpop.permute.xlu0 %282
      %v285 = vlaneseq
      %v286 = vshrl.u32 %v285, 7
      %v287 = vsub.s32 1, %v286
      %v288 = vrot.slane %v232, %v287
      %v289 = vmul.f32 %v279, %v288
      %v290 = vmul.f32 %v283, %v288
      %v291 = vadd.f32 %v275, %v289
      %v292 = vadd.f32 %v276, %v290
      %293 = vset.pattern.permute.xlu0 2
      %294 = vperm.xlu0 %293, %v230
      %v295 = vpop.permute.xlu0 %294
      %297 = vset.pattern.permute.xlu0 2
      %298 = vperm.xlu0 %297, %v231
      %v299 = vpop.permute.xlu0 %298
      %v301 = vlaneseq
      %v302 = vshrl.u32 %v301, 7
      %v303 = vsub.s32 2, %v302
      %v304 = vrot.slane %v232, %v303
      %v305 = vmul.f32 %v295, %v304
      %v306 = vmul.f32 %v299, %v304
      %v307 = vadd.f32 %v291, %v305
      %v308 = vadd.f32 %v292, %v306
      %310 = vset.pattern.permute.xlu0 0
      %311 = vperm.xlu0 %310, %v251
      %v312 = vpop.permute.xlu0 %311
      %315 = vset.pattern.permute.xlu0 0
      %316 = vperm.xlu0 %315, %v252
      %v317 = vpop.permute.xlu0 %316
      %v319 = vlaneseq
      %v320 = vshrl.u32 %v319, 7
      %v321 = vsub.s32 0, %v320
      %v322 = vrot.slane %v260, %v321
      %v323 = vadd.f32 %v312, %v322
      %v324 = vadd.f32 %v317, %v322
      %v325 = vmul.f32 %v307, 2.0
      %v326 = vmul.f32 %v308, 2.0
      %v327 = vsub.f32 %v323, %v325
      %v328 = vsub.f32 %v324, %v326
      %s329 = smul.u32 %s20, 128
      %s330 = scvt.s32.f32 %s329
      %v331 = vlaneseq
      %v332 = vand.u32 %v331, 127
      %v333 = vcvt.s32.f32 %v332
      %v334 = vstv %s330
      %v335 = vadd.f32 %v334, %v333
      %336 = vmin.xlane.f32.xlu0 %v327
      %v337 = vpop.xlane.xlu0 %336
      %338 = vmin.xlane.f32.xlu0 %v328
      %v339 = vpop.xlane.xlu0 %338
      %vm340 = vcmp.eq.f32.partialorder %v327, %v337
      %vm341 = vcmp.eq.f32.partialorder %v328, %v339
      %v342 = vsel %vm340, %v335, inf
      %v343 = vsel %vm341, %v335, inf
      %344 = vmin.xlane.f32.xlu0 %v342
      %v345 = vpop.xlane.xlu0 %344
      %346 = vmin.xlane.f32.xlu0 %v343
      %v347 = vpop.xlane.xlu0 %346
      %vm348 = vcmp.eq.s32.totalorder %v332, 0
      %v349 = vsel %vm348, %v337, inf
      %v350 = vsel %vm348, %v339, inf
      %v351 = vsel %vm348, %v345, 0.0
      %v352 = vsel %vm348, %v347, 0.0
      %vm353 = vcmp.eq.f32.partialorder %v335, %v345
      %vm354 = vcmp.eq.f32.partialorder %v335, %v347
      %vm355 = vmand %vm340, %vm353
      %vm356 = vmand %vm341, %vm354
      %v357 = vsel %vm355, inf, %v327
      %v358 = vsel %vm356, inf, %v328
      %359 = vmin.xlane.f32.xlu0 %v357
      %v360 = vpop.xlane.xlu0 %359
      %361 = vmin.xlane.f32.xlu0 %v358
      %v362 = vpop.xlane.xlu0 %361
      %vm363 = vcmp.eq.f32.partialorder %v357, %v360
      %vm364 = vcmp.eq.f32.partialorder %v358, %v362
      %v365 = vsel %vm363, %v335, inf
      %v366 = vsel %vm364, %v335, inf
      %367 = vmin.xlane.f32.xlu0 %v365
      %v368 = vpop.xlane.xlu0 %367
      %369 = vmin.xlane.f32.xlu0 %v366
      %v370 = vpop.xlane.xlu0 %369
      %vm371 = vcmp.eq.s32.totalorder %v332, 1
      %v372 = vsel %vm371, %v360, %v349
      %v373 = vsel %vm371, %v362, %v350
      %v374 = vsel %vm371, %v368, %v351
      %v375 = vsel %vm371, %v370, %v352
      %vm376 = vcmp.eq.f32.partialorder %v335, %v368
      %vm377 = vcmp.eq.f32.partialorder %v335, %v370
      %vm378 = vmand %vm363, %vm376
      %vm379 = vmand %vm364, %vm377
      %v380 = vsel %vm378, inf, %v357
      %v381 = vsel %vm379, inf, %v358
      %382 = vmin.xlane.f32.xlu0 %v380
      %v383 = vpop.xlane.xlu0 %382
      %384 = vmin.xlane.f32.xlu0 %v381
      %v385 = vpop.xlane.xlu0 %384
      %vm386 = vcmp.eq.f32.partialorder %v380, %v383
      %vm387 = vcmp.eq.f32.partialorder %v381, %v385
      %v388 = vsel %vm386, %v335, inf
      %v389 = vsel %vm387, %v335, inf
      %390 = vmin.xlane.f32.xlu0 %v388
      %v391 = vpop.xlane.xlu0 %390
      %392 = vmin.xlane.f32.xlu0 %v389
      %v393 = vpop.xlane.xlu0 %392
      %vm394 = vcmp.eq.s32.totalorder %v332, 2
      %v395 = vsel %vm394, %v383, %v372
      %v396 = vsel %vm394, %v385, %v373
      %v397 = vsel %vm394, %v391, %v374
      %v398 = vsel %vm394, %v393, %v375
      %vm399 = vcmp.eq.f32.partialorder %v335, %v391
      %vm400 = vcmp.eq.f32.partialorder %v335, %v393
      %vm401 = vmand %vm386, %vm399
      %vm402 = vmand %vm387, %vm400
      %v403 = vsel %vm401, inf, %v380
      %v404 = vsel %vm402, inf, %v381
      %405 = vmin.xlane.f32.xlu0 %v403
      %v406 = vpop.xlane.xlu0 %405
      %407 = vmin.xlane.f32.xlu0 %v404
      %v408 = vpop.xlane.xlu0 %407
      %vm409 = vcmp.eq.f32.partialorder %v403, %v406
      %vm410 = vcmp.eq.f32.partialorder %v404, %v408
      %v411 = vsel %vm409, %v335, inf
      %v412 = vsel %vm410, %v335, inf
      %413 = vmin.xlane.f32.xlu0 %v411
      %v414 = vpop.xlane.xlu0 %413
      %415 = vmin.xlane.f32.xlu0 %v412
      %v416 = vpop.xlane.xlu0 %415
      %vm417 = vcmp.eq.s32.totalorder %v332, 3
      %v418 = vsel %vm417, %v406, %v395
      %v419 = vsel %vm417, %v408, %v396
      %v420 = vsel %vm417, %v414, %v397
      %v421 = vsel %vm417, %v416, %v398
      %vm422 = vcmp.eq.f32.partialorder %v335, %v414
      %vm423 = vcmp.eq.f32.partialorder %v335, %v416
      %vm424 = vmand %vm409, %vm422
      %vm425 = vmand %vm410, %vm423
      %v426 = vsel %vm424, inf, %v403
      %v427 = vsel %vm425, inf, %v404
      %428 = vmin.xlane.f32.xlu0 %v426
      %v429 = vpop.xlane.xlu0 %428
      %430 = vmin.xlane.f32.xlu0 %v427
      %v431 = vpop.xlane.xlu0 %430
      %vm432 = vcmp.eq.f32.partialorder %v426, %v429
      %vm433 = vcmp.eq.f32.partialorder %v427, %v431
      %v434 = vsel %vm432, %v335, inf
      %v435 = vsel %vm433, %v335, inf
      %436 = vmin.xlane.f32.xlu0 %v434
      %v437 = vpop.xlane.xlu0 %436
      %438 = vmin.xlane.f32.xlu0 %v435
      %v439 = vpop.xlane.xlu0 %438
      %vm440 = vcmp.eq.s32.totalorder %v332, 4
      %v441 = vsel %vm440, %v429, %v418
      %v442 = vsel %vm440, %v431, %v419
      %v443 = vsel %vm440, %v437, %v420
      %v444 = vsel %vm440, %v439, %v421
      %vm445 = vcmp.eq.f32.partialorder %v335, %v437
      %vm446 = vcmp.eq.f32.partialorder %v335, %v439
      %vm447 = vmand %vm432, %vm445
      %vm448 = vmand %vm433, %vm446
      %v449 = vsel %vm447, inf, %v426
      %v450 = vsel %vm448, inf, %v427
      %451 = vmin.xlane.f32.xlu0 %v449
      %v452 = vpop.xlane.xlu0 %451
      %453 = vmin.xlane.f32.xlu0 %v450
      %v454 = vpop.xlane.xlu0 %453
      %vm455 = vcmp.eq.f32.partialorder %v449, %v452
      %vm456 = vcmp.eq.f32.partialorder %v450, %v454
      %v457 = vsel %vm455, %v335, inf
      %v458 = vsel %vm456, %v335, inf
      %459 = vmin.xlane.f32.xlu0 %v457
      %v460 = vpop.xlane.xlu0 %459
      %461 = vmin.xlane.f32.xlu0 %v458
      %v462 = vpop.xlane.xlu0 %461
      %vm463 = vcmp.eq.s32.totalorder %v332, 5
      %v464 = vsel %vm463, %v452, %v441
      %v465 = vsel %vm463, %v454, %v442
      %v466 = vsel %vm463, %v460, %v443
      %v467 = vsel %vm463, %v462, %v444
      %vm468 = vcmp.eq.f32.partialorder %v335, %v460
      %vm469 = vcmp.eq.f32.partialorder %v335, %v462
      %vm470 = vmand %vm455, %vm468
      %vm471 = vmand %vm456, %vm469
      %v472 = vsel %vm470, inf, %v449
      %v473 = vsel %vm471, inf, %v450
      %474 = vmin.xlane.f32.xlu0 %v472
      %v475 = vpop.xlane.xlu0 %474
      %476 = vmin.xlane.f32.xlu0 %v473
      %v477 = vpop.xlane.xlu0 %476
      %vm478 = vcmp.eq.f32.partialorder %v472, %v475
      %vm479 = vcmp.eq.f32.partialorder %v473, %v477
      %v480 = vsel %vm478, %v335, inf
      %v481 = vsel %vm479, %v335, inf
      %482 = vmin.xlane.f32.xlu0 %v480
      %v483 = vpop.xlane.xlu0 %482
      %484 = vmin.xlane.f32.xlu0 %v481
      %v485 = vpop.xlane.xlu0 %484
      %vm486 = vcmp.eq.s32.totalorder %v332, 6
      %v487 = vsel %vm486, %v475, %v464
      %v488 = vsel %vm486, %v477, %v465
      %v489 = vsel %vm486, %v483, %v466
      %v490 = vsel %vm486, %v485, %v467
      %vm491 = vcmp.eq.f32.partialorder %v335, %v483
      %vm492 = vcmp.eq.f32.partialorder %v335, %v485
      %vm493 = vmand %vm478, %vm491
      %vm494 = vmand %vm479, %vm492
      %v495 = vsel %vm493, inf, %v472
      %v496 = vsel %vm494, inf, %v473
      %497 = vmin.xlane.f32.xlu0 %v495
      %v498 = vpop.xlane.xlu0 %497
      %499 = vmin.xlane.f32.xlu0 %v496
      %v500 = vpop.xlane.xlu0 %499
      %vm501 = vcmp.eq.f32.partialorder %v495, %v498
      %vm502 = vcmp.eq.f32.partialorder %v496, %v500
      %v503 = vsel %vm501, %v335, inf
      %v504 = vsel %vm502, %v335, inf
      %505 = vmin.xlane.f32.xlu0 %v503
      %v506 = vpop.xlane.xlu0 %505
      %507 = vmin.xlane.f32.xlu0 %v504
      %v508 = vpop.xlane.xlu0 %507
      %vm509 = vcmp.eq.s32.totalorder %v332, 7
      %v510 = vsel %vm509, %v498, %v487
      %v511 = vsel %vm509, %v500, %v488
      %v512 = vsel %vm509, %v506, %v489
      %v513 = vsel %vm509, %v508, %v490
      %vm514 = vcmp.eq.f32.partialorder %v335, %v506
      %vm515 = vcmp.eq.f32.partialorder %v335, %v508
      %vm516 = vmand %vm501, %vm514
      %vm517 = vmand %vm502, %vm515
      %v518 = vsel %vm516, inf, %v495
      %v519 = vsel %vm517, inf, %v496
      %520 = vmin.xlane.f32.xlu0 %v518
      %v521 = vpop.xlane.xlu0 %520
      %522 = vmin.xlane.f32.xlu0 %v519
      %v523 = vpop.xlane.xlu0 %522
      %vm524 = vcmp.eq.f32.partialorder %v518, %v521
      %vm525 = vcmp.eq.f32.partialorder %v519, %v523
      %v526 = vsel %vm524, %v335, inf
      %v527 = vsel %vm525, %v335, inf
      %528 = vmin.xlane.f32.xlu0 %v526
      %v529 = vpop.xlane.xlu0 %528
      %530 = vmin.xlane.f32.xlu0 %v527
      %v531 = vpop.xlane.xlu0 %530
      %vm532 = vcmp.eq.s32.totalorder %v332, 8
      %v533 = vsel %vm532, %v521, %v510
      %v534 = vsel %vm532, %v523, %v511
      %v535 = vsel %vm532, %v529, %v512
      %v536 = vsel %vm532, %v531, %v513
      %vm537 = vcmp.eq.f32.partialorder %v335, %v529
      %vm538 = vcmp.eq.f32.partialorder %v335, %v531
      %vm539 = vmand %vm524, %vm537
      %vm540 = vmand %vm525, %vm538
      %v541 = vsel %vm539, inf, %v518
      %v542 = vsel %vm540, inf, %v519
      %543 = vmin.xlane.f32.xlu0 %v541
      %v544 = vpop.xlane.xlu0 %543
      %545 = vmin.xlane.f32.xlu0 %v542
      %v546 = vpop.xlane.xlu0 %545
      %vm547 = vcmp.eq.f32.partialorder %v541, %v544
      %vm548 = vcmp.eq.f32.partialorder %v542, %v546
      %v549 = vsel %vm547, %v335, inf
      %v550 = vsel %vm548, %v335, inf
      %551 = vmin.xlane.f32.xlu0 %v549
      %v552 = vpop.xlane.xlu0 %551
      %553 = vmin.xlane.f32.xlu0 %v550
      %v554 = vpop.xlane.xlu0 %553
      %vm555 = vcmp.eq.s32.totalorder %v332, 9
      %v556 = vsel %vm555, %v544, %v533
      %v557 = vsel %vm555, %v546, %v534
      %v558 = vsel %vm555, %v552, %v535
      %v559 = vsel %vm555, %v554, %v536
      %vm560 = vcmp.eq.f32.partialorder %v335, %v552
      %vm561 = vcmp.eq.f32.partialorder %v335, %v554
      %vm562 = vmand %vm547, %vm560
      %vm563 = vmand %vm548, %vm561
      %v564 = vsel %vm562, inf, %v541
      %v565 = vsel %vm563, inf, %v542
      %566 = vmin.xlane.f32.xlu0 %v564
      %v567 = vpop.xlane.xlu0 %566
      %568 = vmin.xlane.f32.xlu0 %v565
      %v569 = vpop.xlane.xlu0 %568
      %vm570 = vcmp.eq.f32.partialorder %v564, %v567
      %vm571 = vcmp.eq.f32.partialorder %v565, %v569
      %v572 = vsel %vm570, %v335, inf
      %v573 = vsel %vm571, %v335, inf
      %574 = vmin.xlane.f32.xlu0 %v572
      %v575 = vpop.xlane.xlu0 %574
      %576 = vmin.xlane.f32.xlu0 %v573
      %v577 = vpop.xlane.xlu0 %576
      %vm578 = vcmp.eq.s32.totalorder %v332, 10
      %v579 = vsel %vm578, %v567, %v556
      %v580 = vsel %vm578, %v569, %v557
      %v581 = vsel %vm578, %v575, %v558
      %v582 = vsel %vm578, %v577, %v559
      %vm583 = vcmp.eq.f32.partialorder %v335, %v575
      %vm584 = vcmp.eq.f32.partialorder %v335, %v577
      %vm585 = vmand %vm570, %vm583
      %vm586 = vmand %vm571, %vm584
      %v587 = vsel %vm585, inf, %v564
      %v588 = vsel %vm586, inf, %v565
      %589 = vmin.xlane.f32.xlu0 %v587
      %v590 = vpop.xlane.xlu0 %589
      %591 = vmin.xlane.f32.xlu0 %v588
      %v592 = vpop.xlane.xlu0 %591
      %vm593 = vcmp.eq.f32.partialorder %v587, %v590
      %vm594 = vcmp.eq.f32.partialorder %v588, %v592
      %v595 = vsel %vm593, %v335, inf
      %v596 = vsel %vm594, %v335, inf
      %597 = vmin.xlane.f32.xlu0 %v595
      %v598 = vpop.xlane.xlu0 %597
      %599 = vmin.xlane.f32.xlu0 %v596
      %v600 = vpop.xlane.xlu0 %599
      %vm601 = vcmp.eq.s32.totalorder %v332, 11
      %v602 = vsel %vm601, %v590, %v579
      %v603 = vsel %vm601, %v592, %v580
      %v604 = vsel %vm601, %v598, %v581
      %v605 = vsel %vm601, %v600, %v582
      %v606 = vld [vmem:[#allocation2] sm:$0xff]
      %v607 = vld [vmem:[#allocation2 + $0x8] sm:$0xff]
      %610 = vrot.lane.b32.xlu0 %v602, 16
      %v611 = vpop.permute.xlu0 %610
      %612 = vrot.lane.b32.xlu0 %v603, 16
      %v613 = vpop.permute.xlu0 %612
      %vm616 = vcmask 130048
      %v617 = vsel %vm616, %v606, %v611
      %v618 = vsel %vm616, %v607, %v613
      %v619 = vld [vmem:[#allocation3] sm:$0xff]
      %v620 = vld [vmem:[#allocation3 + $0x8] sm:$0xff]
      %623 = vrot.lane.b32.xlu0 %v604, 16
      %v624 = vpop.permute.xlu0 %623
      %625 = vrot.lane.b32.xlu0 %v605, 16
      %v626 = vpop.permute.xlu0 %625
      %v629 = vsel %vm616, %v619, %v624
      %v630 = vsel %vm616, %v620, %v626
      %vm631 = vcmask 261120
      %v632 = vsel %vm631, %v617, inf
      %633 = vmin.xlane.f32.xlu0 %v632
      %v634 = vpop.xlane.xlu0 %633
      %v635 = vsel %vm631, %v618, inf
      %636 = vmin.xlane.f32.xlu0 %v635
      %v637 = vpop.xlane.xlu0 %636
      %vm638 = vcmp.eq.f32.partialorder %v617, %v634
      %vm639 = vcmp.eq.f32.partialorder %v618, %v637
      %v640 = vsel %vm638, %v629, inf
      %v641 = vsel %vm639, %v630, inf
      %v642 = vsel %vm631, %v640, inf
      %643 = vmin.xlane.f32.xlu0 %v642
      %v644 = vpop.xlane.xlu0 %643
      %v645 = vsel %vm631, %v641, inf
      %646 = vmin.xlane.f32.xlu0 %v645
      %v647 = vpop.xlane.xlu0 %646
      %v648 = vsel %vm348, %v634, inf
      %v649 = vsel %vm348, %v637, inf
      %v650 = vsel %vm348, %v644, 0.0
      %v651 = vsel %vm348, %v647, 0.0
      %vm652 = vcmp.eq.f32.partialorder %v629, %v644
      %vm653 = vcmp.eq.f32.partialorder %v630, %v647
      %vm654 = vmand %vm638, %vm652
      %vm655 = vmand %vm639, %vm653
      %v656 = vsel %vm654, inf, %v617
      %v657 = vsel %vm655, inf, %v618
      %v658 = vsel %vm631, %v656, inf
      %659 = vmin.xlane.f32.xlu0 %v658
      %v660 = vpop.xlane.xlu0 %659
      %v661 = vsel %vm631, %v657, inf
      %662 = vmin.xlane.f32.xlu0 %v661
      %v663 = vpop.xlane.xlu0 %662
      %vm664 = vcmp.eq.f32.partialorder %v656, %v660
      %vm665 = vcmp.eq.f32.partialorder %v657, %v663
      %v666 = vsel %vm664, %v629, inf
      %v667 = vsel %vm665, %v630, inf
      %v668 = vsel %vm631, %v666, inf
      %669 = vmin.xlane.f32.xlu0 %v668
      %v670 = vpop.xlane.xlu0 %669
      %v671 = vsel %vm631, %v667, inf
      %672 = vmin.xlane.f32.xlu0 %v671
      %v673 = vpop.xlane.xlu0 %672
      %v674 = vsel %vm371, %v660, %v648
      %v675 = vsel %vm371, %v663, %v649
      %v676 = vsel %vm371, %v670, %v650
      %v677 = vsel %vm371, %v673, %v651
      %vm678 = vcmp.eq.f32.partialorder %v629, %v670
      %vm679 = vcmp.eq.f32.partialorder %v630, %v673
      %vm680 = vmand %vm664, %vm678
      %vm681 = vmand %vm665, %vm679
      %v682 = vsel %vm680, inf, %v656
      %v683 = vsel %vm681, inf, %v657
      %v684 = vsel %vm631, %v682, inf
      %685 = vmin.xlane.f32.xlu0 %v684
      %v686 = vpop.xlane.xlu0 %685
      %v687 = vsel %vm631, %v683, inf
      %688 = vmin.xlane.f32.xlu0 %v687
      %v689 = vpop.xlane.xlu0 %688
      %vm690 = vcmp.eq.f32.partialorder %v682, %v686
      %vm691 = vcmp.eq.f32.partialorder %v683, %v689
      %v692 = vsel %vm690, %v629, inf
      %v693 = vsel %vm691, %v630, inf
      %v694 = vsel %vm631, %v692, inf
      %695 = vmin.xlane.f32.xlu0 %v694
      %v696 = vpop.xlane.xlu0 %695
      %v697 = vsel %vm631, %v693, inf
      %698 = vmin.xlane.f32.xlu0 %v697
      %v699 = vpop.xlane.xlu0 %698
      %v700 = vsel %vm394, %v686, %v674
      %v701 = vsel %vm394, %v689, %v675
      %v702 = vsel %vm394, %v696, %v676
      %v703 = vsel %vm394, %v699, %v677
      %vm704 = vcmp.eq.f32.partialorder %v629, %v696
      %vm705 = vcmp.eq.f32.partialorder %v630, %v699
      %vm706 = vmand %vm690, %vm704
      %vm707 = vmand %vm691, %vm705
      %v708 = vsel %vm706, inf, %v682
      %v709 = vsel %vm707, inf, %v683
      %v710 = vsel %vm631, %v708, inf
      %711 = vmin.xlane.f32.xlu0 %v710
      %v712 = vpop.xlane.xlu0 %711
      %v713 = vsel %vm631, %v709, inf
      %714 = vmin.xlane.f32.xlu0 %v713
      %v715 = vpop.xlane.xlu0 %714
      %vm716 = vcmp.eq.f32.partialorder %v708, %v712
      %vm717 = vcmp.eq.f32.partialorder %v709, %v715
      %v718 = vsel %vm716, %v629, inf
      %v719 = vsel %vm717, %v630, inf
      %v720 = vsel %vm631, %v718, inf
      %721 = vmin.xlane.f32.xlu0 %v720
      %v722 = vpop.xlane.xlu0 %721
      %v723 = vsel %vm631, %v719, inf
      %724 = vmin.xlane.f32.xlu0 %v723
      %v725 = vpop.xlane.xlu0 %724
      %v726 = vsel %vm417, %v712, %v700
      %v727 = vsel %vm417, %v715, %v701
      %v728 = vsel %vm417, %v722, %v702
      %v729 = vsel %vm417, %v725, %v703
      %vm730 = vcmp.eq.f32.partialorder %v629, %v722
      %vm731 = vcmp.eq.f32.partialorder %v630, %v725
      %vm732 = vmand %vm716, %vm730
      %vm733 = vmand %vm717, %vm731
      %v734 = vsel %vm732, inf, %v708
      %v735 = vsel %vm733, inf, %v709
      %v736 = vsel %vm631, %v734, inf
      %737 = vmin.xlane.f32.xlu0 %v736
      %v738 = vpop.xlane.xlu0 %737
      %v739 = vsel %vm631, %v735, inf
      %740 = vmin.xlane.f32.xlu0 %v739
      %v741 = vpop.xlane.xlu0 %740
      %vm742 = vcmp.eq.f32.partialorder %v734, %v738
      %vm743 = vcmp.eq.f32.partialorder %v735, %v741
      %v744 = vsel %vm742, %v629, inf
      %v745 = vsel %vm743, %v630, inf
      %v746 = vsel %vm631, %v744, inf
      %747 = vmin.xlane.f32.xlu0 %v746
      %v748 = vpop.xlane.xlu0 %747
      %v749 = vsel %vm631, %v745, inf
      %750 = vmin.xlane.f32.xlu0 %v749
      %v751 = vpop.xlane.xlu0 %750
      %v752 = vsel %vm440, %v738, %v726
      %v753 = vsel %vm440, %v741, %v727
      %v754 = vsel %vm440, %v748, %v728
      %v755 = vsel %vm440, %v751, %v729
      %vm756 = vcmp.eq.f32.partialorder %v629, %v748
      %vm757 = vcmp.eq.f32.partialorder %v630, %v751
      %vm758 = vmand %vm742, %vm756
      %vm759 = vmand %vm743, %vm757
      %v760 = vsel %vm758, inf, %v734
      %v761 = vsel %vm759, inf, %v735
      %v762 = vsel %vm631, %v760, inf
      %763 = vmin.xlane.f32.xlu0 %v762
      %v764 = vpop.xlane.xlu0 %763
      %v765 = vsel %vm631, %v761, inf
      %766 = vmin.xlane.f32.xlu0 %v765
      %v767 = vpop.xlane.xlu0 %766
      %vm768 = vcmp.eq.f32.partialorder %v760, %v764
      %vm769 = vcmp.eq.f32.partialorder %v761, %v767
      %v770 = vsel %vm768, %v629, inf
      %v771 = vsel %vm769, %v630, inf
      %v772 = vsel %vm631, %v770, inf
      %773 = vmin.xlane.f32.xlu0 %v772
      %v774 = vpop.xlane.xlu0 %773
      %v775 = vsel %vm631, %v771, inf
      %776 = vmin.xlane.f32.xlu0 %v775
      %v777 = vpop.xlane.xlu0 %776
      %v778 = vsel %vm463, %v764, %v752
      %v779 = vsel %vm463, %v767, %v753
      %v780 = vsel %vm463, %v774, %v754
      %v781 = vsel %vm463, %v777, %v755
      %vm782 = vcmp.eq.f32.partialorder %v629, %v774
      %vm783 = vcmp.eq.f32.partialorder %v630, %v777
      %vm784 = vmand %vm768, %vm782
      %vm785 = vmand %vm769, %vm783
      %v786 = vsel %vm784, inf, %v760
      %v787 = vsel %vm785, inf, %v761
      %v788 = vsel %vm631, %v786, inf
      %789 = vmin.xlane.f32.xlu0 %v788
      %v790 = vpop.xlane.xlu0 %789
      %v791 = vsel %vm631, %v787, inf
      %792 = vmin.xlane.f32.xlu0 %v791
      %v793 = vpop.xlane.xlu0 %792
      %vm794 = vcmp.eq.f32.partialorder %v786, %v790
      %vm795 = vcmp.eq.f32.partialorder %v787, %v793
      %v796 = vsel %vm794, %v629, inf
      %v797 = vsel %vm795, %v630, inf
      %v798 = vsel %vm631, %v796, inf
      %799 = vmin.xlane.f32.xlu0 %v798
      %v800 = vpop.xlane.xlu0 %799
      %v801 = vsel %vm631, %v797, inf
      %802 = vmin.xlane.f32.xlu0 %v801
      %v803 = vpop.xlane.xlu0 %802
      %v804 = vsel %vm486, %v790, %v778
      %v805 = vsel %vm486, %v793, %v779
      %v806 = vsel %vm486, %v800, %v780
      %v807 = vsel %vm486, %v803, %v781
      %vm808 = vcmp.eq.f32.partialorder %v629, %v800
      %vm809 = vcmp.eq.f32.partialorder %v630, %v803
      %vm810 = vmand %vm794, %vm808
      %vm811 = vmand %vm795, %vm809
      %v812 = vsel %vm810, inf, %v786
      %v813 = vsel %vm811, inf, %v787
      %v814 = vsel %vm631, %v812, inf
      %815 = vmin.xlane.f32.xlu0 %v814
      %v816 = vpop.xlane.xlu0 %815
      %v817 = vsel %vm631, %v813, inf
      %818 = vmin.xlane.f32.xlu0 %v817
      %v819 = vpop.xlane.xlu0 %818
      %vm820 = vcmp.eq.f32.partialorder %v812, %v816
      %vm821 = vcmp.eq.f32.partialorder %v813, %v819
      %v822 = vsel %vm820, %v629, inf
      %v823 = vsel %vm821, %v630, inf
      %v824 = vsel %vm631, %v822, inf
      %825 = vmin.xlane.f32.xlu0 %v824
      %v826 = vpop.xlane.xlu0 %825
      %v827 = vsel %vm631, %v823, inf
      %828 = vmin.xlane.f32.xlu0 %v827
      %v829 = vpop.xlane.xlu0 %828
      %v830 = vsel %vm509, %v816, %v804
      %v831 = vsel %vm509, %v819, %v805
      %v832 = vsel %vm509, %v826, %v806
      %v833 = vsel %vm509, %v829, %v807
      %vm834 = vcmp.eq.f32.partialorder %v629, %v826
      %vm835 = vcmp.eq.f32.partialorder %v630, %v829
      %vm836 = vmand %vm820, %vm834
      %vm837 = vmand %vm821, %vm835
      %v838 = vsel %vm836, inf, %v812
      %v839 = vsel %vm837, inf, %v813
      %v840 = vsel %vm631, %v838, inf
      %841 = vmin.xlane.f32.xlu0 %v840
      %v842 = vpop.xlane.xlu0 %841
      %v843 = vsel %vm631, %v839, inf
      %844 = vmin.xlane.f32.xlu0 %v843
      %v845 = vpop.xlane.xlu0 %844
      %vm846 = vcmp.eq.f32.partialorder %v838, %v842
      %vm847 = vcmp.eq.f32.partialorder %v839, %v845
      %v848 = vsel %vm846, %v629, inf
      %v849 = vsel %vm847, %v630, inf
      %v850 = vsel %vm631, %v848, inf
      %851 = vmin.xlane.f32.xlu0 %v850
      %v852 = vpop.xlane.xlu0 %851
      %v853 = vsel %vm631, %v849, inf
      %854 = vmin.xlane.f32.xlu0 %v853
      %v855 = vpop.xlane.xlu0 %854
      %v856 = vsel %vm532, %v842, %v830
      %v857 = vsel %vm532, %v845, %v831
      %v858 = vsel %vm532, %v852, %v832
      %v859 = vsel %vm532, %v855, %v833
      %vm860 = vcmp.eq.f32.partialorder %v629, %v852
      %vm861 = vcmp.eq.f32.partialorder %v630, %v855
      %vm862 = vmand %vm846, %vm860
      %vm863 = vmand %vm847, %vm861
      %v864 = vsel %vm862, inf, %v838
      %v865 = vsel %vm863, inf, %v839
      %v866 = vsel %vm631, %v864, inf
      %867 = vmin.xlane.f32.xlu0 %v866
      %v868 = vpop.xlane.xlu0 %867
      %v869 = vsel %vm631, %v865, inf
      %870 = vmin.xlane.f32.xlu0 %v869
      %v871 = vpop.xlane.xlu0 %870
      %vm872 = vcmp.eq.f32.partialorder %v864, %v868
      %vm873 = vcmp.eq.f32.partialorder %v865, %v871
      %v874 = vsel %vm872, %v629, inf
      %v875 = vsel %vm873, %v630, inf
      %v876 = vsel %vm631, %v874, inf
      %877 = vmin.xlane.f32.xlu0 %v876
      %v878 = vpop.xlane.xlu0 %877
      %v879 = vsel %vm631, %v875, inf
      %880 = vmin.xlane.f32.xlu0 %v879
      %v881 = vpop.xlane.xlu0 %880
      %v882 = vsel %vm555, %v868, %v856
      %v883 = vsel %vm555, %v871, %v857
      %v884 = vsel %vm555, %v878, %v858
      %v885 = vsel %vm555, %v881, %v859
      %vm886 = vcmp.eq.f32.partialorder %v629, %v878
      %vm887 = vcmp.eq.f32.partialorder %v630, %v881
      %vm888 = vmand %vm872, %vm886
      %vm889 = vmand %vm873, %vm887
      %v890 = vsel %vm888, inf, %v864
      %v891 = vsel %vm889, inf, %v865
      %v892 = vsel %vm631, %v890, inf
      %893 = vmin.xlane.f32.xlu0 %v892
      %v894 = vpop.xlane.xlu0 %893
      %v895 = vsel %vm631, %v891, inf
      %896 = vmin.xlane.f32.xlu0 %v895
      %v897 = vpop.xlane.xlu0 %896
      %vm898 = vcmp.eq.f32.partialorder %v890, %v894
      %vm899 = vcmp.eq.f32.partialorder %v891, %v897
      %v900 = vsel %vm898, %v629, inf
      %v901 = vsel %vm899, %v630, inf
      %v902 = vsel %vm631, %v900, inf
      %903 = vmin.xlane.f32.xlu0 %v902
      %v904 = vpop.xlane.xlu0 %903
      %v905 = vsel %vm631, %v901, inf
      %906 = vmin.xlane.f32.xlu0 %v905
      %v907 = vpop.xlane.xlu0 %906
      %v908 = vsel %vm578, %v894, %v882
      %v909 = vsel %vm578, %v897, %v883
      %v910 = vsel %vm578, %v904, %v884
      %v911 = vsel %vm578, %v907, %v885
      %vm912 = vcmp.eq.f32.partialorder %v629, %v904
      %vm913 = vcmp.eq.f32.partialorder %v630, %v907
      %vm914 = vmand %vm898, %vm912
      %vm915 = vmand %vm899, %vm913
      %v916 = vsel %vm914, inf, %v890
      %v917 = vsel %vm915, inf, %v891
      %v918 = vsel %vm631, %v916, inf
      %919 = vmin.xlane.f32.xlu0 %v918
      %v920 = vpop.xlane.xlu0 %919
      %v921 = vsel %vm631, %v917, inf
      %922 = vmin.xlane.f32.xlu0 %v921
      %v923 = vpop.xlane.xlu0 %922
      %vm924 = vcmp.eq.f32.partialorder %v916, %v920
      %vm925 = vcmp.eq.f32.partialorder %v917, %v923
      %v926 = vsel %vm924, %v629, inf
      %v927 = vsel %vm925, %v630, inf
      %v928 = vsel %vm631, %v926, inf
      %929 = vmin.xlane.f32.xlu0 %v928
      %v930 = vpop.xlane.xlu0 %929
      %v931 = vsel %vm631, %v927, inf
      %932 = vmin.xlane.f32.xlu0 %v931
      %v933 = vpop.xlane.xlu0 %932
      %v934 = vsel %vm601, %v920, %v908
      %v935 = vsel %vm601, %v923, %v909
      %v936 = vsel %vm601, %v930, %v910
      %v937 = vsel %vm601, %v933, %v911
      %938 = vst.msk [vmem:[#allocation2] sm:$0xff] %vm616, %v934
      %939 = vst.msk [vmem:[#allocation2 + $0x8] sm:$0xff] %vm616, %v935
      %940 = vst.msk [vmem:[#allocation3] sm:$0xff] %vm616, %v936
      %941 = vst.msk [vmem:[#allocation3 + $0x8] sm:$0xff] %vm616, %v937
      %p942 = scmp.eq.s32.totalorder %s20, 1
      // Predicated region
      $region33: #{belong_weight_generator_forward.4} parent=27 // pred_check
        %p943 = pneg %p942
      $region34: #{belong_weight_generator_forward.4} parent=27 // pred_check_branch
        %945 = sbr.rel (%p943) target = $region36
      $region35: #{belong_weight_generator_forward.4} parent=27 // pred_region
        %v946 = vld [vmem:[#allocation3] sm:$0xff]
        %v947 = vld [vmem:[#allocation3 + $0x8] sm:$0xff]
        %v948 = vcvt.f32.s32.to.zero.pseudo %v946
        %v949 = vcvt.f32.s32.to.zero.pseudo %v947
        %950 = vst.msk [vmem:[%s219] sm:$0xff] %vm616, %v948
        %951 = vst.msk [vmem:[%s219 + $0x8] sm:$0xff] %vm616, %v949
      $region36: #{belong_weight_generator_forward.4} parent=27 // pred_fallthru
        _
      %s952 = smul.u32 2, %s19
      %p953 = scmp.lt.s32.totalorder %s18, 1
      %s954 = scalar_select %p953, %s18, 1
      %p955 = scmp.lt.s32.totalorder %s952, 3
      %s956 = scalar_select %p955, %s952, 3
      %s957 = smul.addr %s954, 4
      %s958 = sadd.s32 %s956, %s957
      %s959 = smul.addr %s958, 8
      %s960 = scalar_lea.vmem %s2, %s959
      // Predicated region
      $region37: #{belong_weight_generator_forward.4} parent=27 // pred_check
        %p961 = pneg %p108
      $region38: #{belong_weight_generator_forward.4} parent=27 // pred_check_branch
        %963 = sbr.rel (%p961) target = $region40
      $region39: #{belong_weight_generator_forward.4} parent=27 // pred_region
        %s964 = smul.u32 2, %s19
      $region40: #{belong_weight_generator_forward.4} parent=27 // pred_fallthru
        _
    $region28: #{belong_weight_generator_forward.4} parent=5 // pred_fallthru
      _
    %p965 = scmp.le.s32.totalorder 2, %s8
    // Predicated region
    $region41: #{belong_weight_generator_forward.4} parent=5 // pred_check
      %p966 = pneg %p965
    $region42: #{belong_weight_generator_forward.4} parent=5 // pred_check_branch
      %968 = sbr.rel (%p966) target = $region44
    $region43: #{belong_weight_generator_forward.4} parent=5 // pred_region
      %s969 = ssub.s32 %s8, 2
      // Predicated region
      $region45: #{belong_weight_generator_forward.4} parent=43 // pred_check
        %p970 = pneg %p114
      $region46: #{belong_weight_generator_forward.4} parent=43 // pred_check_branch
        %972 = sbr.rel (%p970) target = $region48
      $region47: #{belong_weight_generator_forward.4} parent=43 // pred_region
        %s973 = smul.u32 2, %s22
        %p974 = scmp.lt.s32.totalorder %s21, 1
        %s975 = scalar_select %p974, %s21, 1
        %p976 = scmp.lt.s32.totalorder %s973, 3
        %s977 = scalar_select %p976, %s973, 3
        %s978 = smul.addr %s975, 4
        %s979 = sadd.s32 %s977, %s978
        %s980 = smul.addr %s979, 8
        %s981 = scalar_lea.vmem %s2, %s980
      $region48: #{belong_weight_generator_forward.4} parent=43 // pred_fallthru
        _
    $region44: #{belong_weight_generator_forward.4} parent=5 // pred_fallthru
      _
  $region6: #{belong_weight_generator_forward.4} parent=0 // loop_footer
    %s12 = sadd.s32 1, %s8
  $region7: #{belong_weight_generator_forward.4} parent=0 // loop_footer_branch
    %7 = sbr.rel target = $region3
  $region8: #{belong_weight_generator_forward.4} parent=0 // loop_exit
    _

// kernel: belong_weight_generator_forward.5
$region0: #{belong_weight_generator_forward.5}
  #allocation0 [shape = 'u32[]', space=smem, size = 0x4, offset = 0x4, fixed_abs, tag = 'smem constant byte address 0x4 - core index']
  #allocation1 [shape = 'u32[144,128]{1,0:T(1,128)}', space=vmem, size = 0x12000, scoped, tag = 'internal scratch']
  %s0 = inlined_call_operand.vmem [shape: f32[2,12,32,3], index: 0, kind: input, shape index: {}]
  %s1 = inlined_call_operand.vmem [shape: f32[2,12,32,32], index: 1, kind: input, shape index: {}]
  %s2 = inlined_call_operand.vmem [shape: f32[3,60], index: 2, kind: input, shape index: {}]
  %s3 = inlined_call_operand.vmem [shape: f32[1,60], index: 3, kind: input, shape index: {}]
  %s4 = inlined_call_operand.vmem [shape: f32[60,32], index: 4, kind: input, shape index: {}]
  %s5 = inlined_call_operand.vmem [shape: f32[1,32], index: 5, kind: input, shape index: {}]
  %s6 = inlined_call_operand.vmem [shape: f32[32,32], index: 6, kind: input, shape index: {}]
  %s7 = inlined_call_operand.vmem [shape: f32[1,32], index: 7, kind: input, shape index: {}]
  %s8 = inlined_call_operand.vmem [shape: f32[2,32,12], index: 8, kind: output, shape index: {}]
  %s9 = sld [smem:[#allocation0]]
  $region141: #{belong_weight_generator_forward.5} parent=0
    _
  %s11 = ssub.s32 1, %s9
  %s12 = scalar_select 0, %s11, %s9
  $region1: #{belong_weight_generator_forward.5} parent=0
    #allocation2 [shape = 'u8[196608]{0}', space=vmem, size = 0x30000, scoped, tag = 'input window, operand 0']
    #allocation3 [shape = 'u8[196608]{0}', space=vmem, size = 0x30000, scoped, tag = 'input window, operand 1']
    loop: start=0, step=1, limit=6
    $region2: #{belong_weight_generator_forward.5} parent=1 // loop_pre_header
      _
    $region3: #{belong_weight_generator_forward.5} parent=1 // loop_header
      %s14 = sphi 0, %s18
      %p15 = scmp.ge.s32.totalorder %s14, 6
      %s21 = sphi 0, %s33
      %s22 = sphi 0, %s29
      %s23 = sphi 0, %s21
      %s24 = sphi 0, %s22
      %s25 = sphi 0, %s23
      %s26 = sphi 0, %s24
      %s38 = sphi 0, %s40
      %s41 = sphi 0, %s38
      %s42 = sphi 0, %s41
      %s58 = sphi 0, %s42
      %s66 = sphi 0, %s68
      %s69 = sphi 0, %s66
      %s70 = sphi 0, %s69
      %s86 = sphi 0, %s70
      %s90 = sphi 0, %s90
      %s92 = sphi 0, %s90
      %s93 = sphi 0, %s92
      %s107 = sphi 0, %s93
      %s111 = sphi 0, %s111
      %s113 = sphi 0, %s111
      %s114 = sphi 0, %s113
      %s128 = sphi 0, %s114
      %s132 = sphi 0, %s132
      %s134 = sphi 0, %s132
      %s135 = sphi 0, %s134
      %s149 = sphi 0, %s135
      %s153 = sphi 0, %s153
      %s155 = sphi 0, %s153
      %s156 = sphi 0, %s155
      %s170 = sphi 0, %s156
      %s174 = sphi 0, %s174
      %s176 = sphi 0, %s174
      %s177 = sphi 0, %s176
      %s191 = sphi 0, %s177
      %s195 = sphi 0, %s195
      %s197 = sphi 0, %s195
      %s198 = sphi 0, %s197
      %s212 = sphi 0, %s198
      %s220 = sphi 0, %s222
      %s223 = sphi 0, %s220
      %s224 = sphi 0, %s223
      %s240 = sphi 0, %s224
    $region4: #{belong_weight_generator_forward.5} parent=1 // loop_header_branch
      %17 = sbr.rel (%p15) target = $region8
    $region5: #{belong_weight_generator_forward.5} parent=1 // loop_body
      %s19 = ssub.s32 %s14, 1
      %s20 = ssub.s32 %s14, 2
      %s27 = sadd.s32 1, %s22
      %p28 = scmp.ge.s32.totalorder %s27, 2
      %s29 = scalar_select %p28, 0, %s27
      %s30 = sadd.s32 1, %s21
      %s31 = scalar_select %p28, %s30, %s21
      %p32 = scmp.ge.s32.totalorder %s31, 2
      %s33 = scalar_select %p32, 0, %s31
      %s34 = ssub.s32 %s21, %s33
      %s35 = ssub.s32 %s22, %s29
      %s36 = sor.u32 %s34, %s35
      %p37 = scmp.eq.s32.totalorder %s36, 0
      %s39 = sadd.s32 %s38, 1
      %s40 = scalar_select %p37, %s38, %s39
      %p43 = pneg %p37
      %p44 = scmp.eq.s32.totalorder %s14, 3
      %p45 = por %p43, %p44
      %p46 = scmp.ne.s32.totalorder %s38, %s41
      %p47 = scmp.eq.s32.totalorder %s14, 0
      %p48 = por %p46, %p47
      %p49 = scmp.ne.s32.totalorder %s38, %s41
      %p50 = scmp.eq.s32.totalorder %s19, 3
      %p51 = por %p49, %p50
      %p52 = scmp.ne.s32.totalorder %s41, %s42
      %p53 = scmp.eq.s32.totalorder %s19, 0
      %p54 = por %p52, %p53
      %p55 = scmp.ne.s32.totalorder %s41, %s42
      %p56 = scmp.eq.s32.totalorder %s20, 3
      %p57 = por %p55, %p56
      %p59 = scmp.ne.s32.totalorder %s42, %s58
      %p60 = scmp.eq.s32.totalorder %s20, 0
      %p61 = por %p59, %p60
      %s62 = ssub.s32 %s21, %s33
      %s63 = ssub.s32 %s22, %s29
      %s64 = sor.u32 %s62, %s63
      %p65 = scmp.eq.s32.totalorder %s64, 0
      %s67 = sadd.s32 %s66, 1
      %s68 = scalar_select %p65, %s66, %s67
      %p71 = pneg %p65
      %p72 = scmp.eq.s32.totalorder %s14, 3
      %p73 = por %p71, %p72
      %p74 = scmp.ne.s32.totalorder %s66, %s69
      %p75 = scmp.eq.s32.totalorder %s14, 0
      %p76 = por %p74, %p75
      %p77 = scmp.ne.s32.totalorder %s66, %s69
      %p78 = scmp.eq.s32.totalorder %s19, 3
      %p79 = por %p77, %p78
      %p80 = scmp.ne.s32.totalorder %s69, %s70
      %p81 = scmp.eq.s32.totalorder %s19, 0
      %p82 = por %p80, %p81
      %p83 = scmp.ne.s32.totalorder %s69, %s70
      %p84 = scmp.eq.s32.totalorder %s20, 3
      %p85 = por %p83, %p84
      %p87 = scmp.ne.s32.totalorder %s70, %s86
      %p88 = scmp.eq.s32.totalorder %s20, 0
      %p89 = por %p87, %p88
      %s91 = sadd.s32 %s90, 1
      %p94 = scmp.eq.s32.totalorder %s14, 3
      %p95 = scmp.ne.s32.totalorder %s90, %s92
      %p96 = scmp.eq.s32.totalorder %s14, 0
      %p97 = por %p95, %p96
      %p98 = scmp.ne.s32.totalorder %s90, %s92
      %p99 = scmp.eq.s32.totalorder %s19, 3
      %p100 = por %p98, %p99
      %p101 = scmp.ne.s32.totalorder %s92, %s93
      %p102 = scmp.eq.s32.totalorder %s19, 0
      %p103 = por %p101, %p102
      %p104 = scmp.ne.s32.totalorder %s92, %s93
      %p105 = scmp.eq.s32.totalorder %s20, 3
      %p106 = por %p104, %p105
      %p108 = scmp.ne.s32.totalorder %s93, %s107
      %p109 = scmp.eq.s32.totalorder %s20, 0
      %p110 = por %p108, %p109
      %s112 = sadd.s32 %s111, 1
      %p115 = scmp.eq.s32.totalorder %s14, 3
      %p116 = scmp.ne.s32.totalorder %s111, %s113
      %p117 = scmp.eq.s32.totalorder %s14, 0
      %p118 = por %p116, %p117
      %p119 = scmp.ne.s32.totalorder %s111, %s113
      %p120 = scmp.eq.s32.totalorder %s19, 3
      %p121 = por %p119, %p120
      %p122 = scmp.ne.s32.totalorder %s113, %s114
      %p123 = scmp.eq.s32.totalorder %s19, 0
      %p124 = por %p122, %p123
      %p125 = scmp.ne.s32.totalorder %s113, %s114
      %p126 = scmp.eq.s32.totalorder %s20, 3
      %p127 = por %p125, %p126
      %p129 = scmp.ne.s32.totalorder %s114, %s128
      %p130 = scmp.eq.s32.totalorder %s20, 0
      %p131 = por %p129, %p130
      %s133 = sadd.s32 %s132, 1
      %p136 = scmp.eq.s32.totalorder %s14, 3
      %p137 = scmp.ne.s32.totalorder %s132, %s134
      %p138 = scmp.eq.s32.totalorder %s14, 0
      %p139 = por %p137, %p138
      %p140 = scmp.ne.s32.totalorder %s132, %s134
      %p141 = scmp.eq.s32.totalorder %s19, 3
      %p142 = por %p140, %p141
      %p143 = scmp.ne.s32.totalorder %s134, %s135
      %p144 = scmp.eq.s32.totalorder %s19, 0
      %p145 = por %p143, %p144
      %p146 = scmp.ne.s32.totalorder %s134, %s135
      %p147 = scmp.eq.s32.totalorder %s20, 3
      %p148 = por %p146, %p147
      %p150 = scmp.ne.s32.totalorder %s135, %s149
      %p151 = scmp.eq.s32.totalorder %s20, 0
      %p152 = por %p150, %p151
      %s154 = sadd.s32 %s153, 1
      %p157 = scmp.eq.s32.totalorder %s14, 3
      %p158 = scmp.ne.s32.totalorder %s153, %s155
      %p159 = scmp.eq.s32.totalorder %s14, 0
      %p160 = por %p158, %p159
      %p161 = scmp.ne.s32.totalorder %s153, %s155
      %p162 = scmp.eq.s32.totalorder %s19, 3
      %p163 = por %p161, %p162
      %p164 = scmp.ne.s32.totalorder %s155, %s156
      %p165 = scmp.eq.s32.totalorder %s19, 0
      %p166 = por %p164, %p165
      %p167 = scmp.ne.s32.totalorder %s155, %s156
      %p168 = scmp.eq.s32.totalorder %s20, 3
      %p169 = por %p167, %p168
      %p171 = scmp.ne.s32.totalorder %s156, %s170
      %p172 = scmp.eq.s32.totalorder %s20, 0
      %p173 = por %p171, %p172
      %s175 = sadd.s32 %s174, 1
      %p178 = scmp.eq.s32.totalorder %s14, 3
      %p179 = scmp.ne.s32.totalorder %s174, %s176
      %p180 = scmp.eq.s32.totalorder %s14, 0
      %p181 = por %p179, %p180
      %p182 = scmp.ne.s32.totalorder %s174, %s176
      %p183 = scmp.eq.s32.totalorder %s19, 3
      %p184 = por %p182, %p183
      %p185 = scmp.ne.s32.totalorder %s176, %s177
      %p186 = scmp.eq.s32.totalorder %s19, 0
      %p187 = por %p185, %p186
      %p188 = scmp.ne.s32.totalorder %s176, %s177
      %p189 = scmp.eq.s32.totalorder %s20, 3
      %p190 = por %p188, %p189
      %p192 = scmp.ne.s32.totalorder %s177, %s191
      %p193 = scmp.eq.s32.totalorder %s20, 0
      %p194 = por %p192, %p193
      %s196 = sadd.s32 %s195, 1
      %p199 = scmp.eq.s32.totalorder %s14, 3
      %p200 = scmp.ne.s32.totalorder %s195, %s197
      %p201 = scmp.eq.s32.totalorder %s14, 0
      %p202 = por %p200, %p201
      %p203 = scmp.ne.s32.totalorder %s195, %s197
      %p204 = scmp.eq.s32.totalorder %s19, 3
      %p205 = por %p203, %p204
      %p206 = scmp.ne.s32.totalorder %s197, %s198
      %p207 = scmp.eq.s32.totalorder %s19, 0
      %p208 = por %p206, %p207
      %p209 = scmp.ne.s32.totalorder %s197, %s198
      %p210 = scmp.eq.s32.totalorder %s20, 3
      %p211 = por %p209, %p210
      %p213 = scmp.ne.s32.totalorder %s198, %s212
      %p214 = scmp.eq.s32.totalorder %s20, 0
      %p215 = por %p213, %p214
      %s216 = ssub.s32 %s21, %s33
      %s217 = ssub.s32 %s22, %s29
      %s218 = sor.u32 %s216, %s217
      %p219 = scmp.eq.s32.totalorder %s218, 0
      %s221 = sadd.s32 %s220, 1
      %s222 = scalar_select %p219, %s220, %s221
      %p225 = pneg %p219
      %p226 = scmp.eq.s32.totalorder %s14, 3
      %p227 = por %p225, %p226
      %p228 = scmp.ne.s32.totalorder %s220, %s223
      %p229 = scmp.eq.s32.totalorder %s14, 0
      %p230 = por %p228, %p229
      %p231 = scmp.ne.s32.totalorder %s220, %s223
      %p232 = scmp.eq.s32.totalorder %s19, 3
      %p233 = por %p231, %p232
      %p234 = scmp.ne.s32.totalorder %s223, %s224
      %p235 = scmp.eq.s32.totalorder %s19, 0
      %p236 = por %p234, %p235
      %p237 = scmp.ne.s32.totalorder %s223, %s224
      %p238 = scmp.eq.s32.totalorder %s20, 3
      %p239 = por %p237, %p238
      %p241 = scmp.ne.s32.totalorder %s224, %s240
      %p242 = scmp.eq.s32.totalorder %s20, 0
      %p243 = por %p241, %p242
      %p244 = scmp.le.s32.totalorder 1, %s14
      %p245 = scmp.lt.s32.totalorder %s14, 5
      %p246 = pnand %p244, %p245
      %p247 = pneg %p246
      // Predicated region
      $region9: #{belong_weight_generator_forward.5} parent=5 // pred_check
        _
      $region10: #{belong_weight_generator_forward.5} parent=5 // pred_check_branch
        %249 = sbr.rel (%p246) target = $region12
      $region11: #{belong_weight_generator_forward.5} parent=5 // pred_region
        %s250 = ssub.s32 %s14, 1
        // Predicated region
        $region13: #{belong_weight_generator_forward.5} parent=11 // pred_check
          %p251 = pneg %p103
        $region14: #{belong_weight_generator_forward.5} parent=11 // pred_check_branch
          %253 = sbr.rel (%p251) target = $region16
        $region15: #{belong_weight_generator_forward.5} parent=11 // pred_region
          _
        $region16: #{belong_weight_generator_forward.5} parent=11 // pred_fallthru
          _
        // Predicated region
        $region17: #{belong_weight_generator_forward.5} parent=11 // pred_check
          %p254 = pneg %p124
        $region18: #{belong_weight_generator_forward.5} parent=11 // pred_check_branch
          %256 = sbr.rel (%p254) target = $region20
        $region19: #{belong_weight_generator_forward.5} parent=11 // pred_region
          _
        $region20: #{belong_weight_generator_forward.5} parent=11 // pred_fallthru
          _
        // Predicated region
        $region21: #{belong_weight_generator_forward.5} parent=11 // pred_check
          %p257 = pneg %p145
        $region22: #{belong_weight_generator_forward.5} parent=11 // pred_check_branch
          %259 = sbr.rel (%p257) target = $region24
        $region23: #{belong_weight_generator_forward.5} parent=11 // pred_region
          _
        $region24: #{belong_weight_generator_forward.5} parent=11 // pred_fallthru
          _
        // Predicated region
        $region25: #{belong_weight_generator_forward.5} parent=11 // pred_check
          %p260 = pneg %p166
        $region26: #{belong_weight_generator_forward.5} parent=11 // pred_check_branch
          %262 = sbr.rel (%p260) target = $region28
        $region27: #{belong_weight_generator_forward.5} parent=11 // pred_region
          _
        $region28: #{belong_weight_generator_forward.5} parent=11 // pred_fallthru
          _
        // Predicated region
        $region29: #{belong_weight_generator_forward.5} parent=11 // pred_check
          %p263 = pneg %p187
        $region30: #{belong_weight_generator_forward.5} parent=11 // pred_check_branch
          %265 = sbr.rel (%p263) target = $region32
        $region31: #{belong_weight_generator_forward.5} parent=11 // pred_region
          _
        $region32: #{belong_weight_generator_forward.5} parent=11 // pred_fallthru
          _
        // Predicated region
        $region33: #{belong_weight_generator_forward.5} parent=11 // pred_check
          %p266 = pneg %p208
        $region34: #{belong_weight_generator_forward.5} parent=11 // pred_check_branch
          %268 = sbr.rel (%p266) target = $region36
        $region35: #{belong_weight_generator_forward.5} parent=11 // pred_region
          _
        $region36: #{belong_weight_generator_forward.5} parent=11 // pred_fallthru
          _
      $region12: #{belong_weight_generator_forward.5} parent=5 // pred_fallthru
        _
      %p269 = scmp.lt.s32.totalorder %s14, 4
      // Predicated region
      $region37: #{belong_weight_generator_forward.5} parent=5 // pred_check
        %p270 = pneg %p269
      $region38: #{belong_weight_generator_forward.5} parent=5 // pred_check_branch
        %272 = sbr.rel (%p270) target = $region40
      $region39: #{belong_weight_generator_forward.5} parent=5 // pred_region
        // Predicated region
        $region41: #{belong_weight_generator_forward.5} parent=39 // pred_check
          %p273 = pneg %p48
        $region42: #{belong_weight_generator_forward.5} parent=39 // pred_check_branch
          %275 = sbr.rel (%p273) target = $region44
        $region43: #{belong_weight_generator_forward.5} parent=39 // pred_region
          %s276 = sand.u32 %s38, 1
          %s277 = sand.u32 %s38, 1
          %s278 = smul.addr %s277, 192
          %s279 = scalar_lea.vmem [#allocation2], %s278
          %s280 = smul.u32 2, %s22
          %s281 = smul.addr %s21, 48
          %s282 = sadd.s32 %s280, %s281
          %s283 = smul.addr %s282, 8
          %s284 = scalar_lea.vmem %s0, %s283
          // Predicated region
          $region45: #{belong_weight_generator_forward.5} parent=43 // pred_check
            _
          $region46: #{belong_weight_generator_forward.5} parent=43 // pred_check_branch
            %286 = sbr.rel (0) target = $region48
          $region47: #{belong_weight_generator_forward.5} parent=43 // pred_region
            // Predicated region
            $region49: #{belong_weight_generator_forward.5} parent=47 // pred_check
              _
            $region50: #{belong_weight_generator_forward.5} parent=47 // pred_check_branch
              %288 = sbr.rel (0) target = $region52
            $region51: #{belong_weight_generator_forward.5} parent=47 // pred_region
              // Predicated region
              $region64: #{belong_weight_generator_forward.5} parent=51 // pred_check
                _
              $region65: #{belong_weight_generator_forward.5} parent=51 // pred_check_branch
                %349 = sbr.rel (0) target = $region67
              $region66: #{belong_weight_generator_forward.5} parent=51 // pred_region
                loop: start=0, step=1, limit=1
                $region68: #{belong_weight_generator_forward.5} parent=66 // loop_pre_header
                  _
                $region69: #{belong_weight_generator_forward.5} parent=66 // loop_header
                  %s351 = sphi 0, %s355
                  %p352 = scmp.ge.s32.totalorder %s351, 1
                  %s356 = sphi %s284, %s284
                  %s357 = sphi %s279, %s279
                $region70: #{belong_weight_generator_forward.5} parent=66 // loop_header_branch
                  %354 = sbr.rel (%p352) target = $region74
                $region71: #{belong_weight_generator_forward.5} parent=66 // loop_body
                  %v358 = vld [vmem:[%s356] sm:$0xff]
                  %359 = vst [vmem:[%s357] sm:$0xff] %v358
                  %v360 = vld [vmem:[%s356 + $0x8] sm:$0xff]
                  %361 = vst [vmem:[%s357 + $0x8] sm:$0xff] %v360
                  %v362 = vld [vmem:[%s356 + $0x20] sm:$0xff]
                  %363 = vst [vmem:[%s357 + $0x10] sm:$0xff] %v362
                  %v364 = vld [vmem:[%s356 + $0x28] sm:$0xff]
                  %365 = vst [vmem:[%s357 + $0x18] sm:$0xff] %v364
                  %v366 = vld [vmem:[%s356 + $0x40] sm:$0xff]
                  %367 = vst [vmem:[%s357 + $0x20] sm:$0xff] %v366
                  %v368 = vld [vmem:[%s356 + $0x48] sm:$0xff]
                  %369 = vst [vmem:[%s357 + $0x28] sm:$0xff] %v368
                  %v370 = vld [vmem:[%s356 + $0x60] sm:$0xff]
                  %371 = vst [vmem:[%s357 + $0x30] sm:$0xff] %v370
                  %v372 = vld [vmem:[%s356 + $0x68] sm:$0xff]
                  %373 = vst [vmem:[%s357 + $0x38] sm:$0xff] %v372
                  %v374 = vld [vmem:[%s356 + $0x80] sm:$0xff]
                  %375 = vst [vmem:[%s357 + $0x40] sm:$0xff] %v374
                  %v376 = vld [vmem:[%s356 + $0x88] sm:$0xff]
                  %377 = vst [vmem:[%s357 + $0x48] sm:$0xff] %v376
                  %v378 = vld [vmem:[%s356 + $0xa0] sm:$0xff]
                  %379 = vst [vmem:[%s357 + $0x50] sm:$0xff] %v378
                  %v380 = vld [vmem:[%s356 + $0xa8] sm:$0xff]
                  %381 = vst [vmem:[%s357 + $0x58] sm:$0xff] %v380
                  %v382 = vld [vmem:[%s356 + $0xc0] sm:$0xff]
                  %383 = vst [vmem:[%s357 + $0x60] sm:$0xff] %v382
                  %v384 = vld [vmem:[%s356 + $0xc8] sm:$0xff]
                  %385 = vst [vmem:[%s357 + $0x68] sm:$0xff] %v384
                  %v386 = vld [vmem:[%s356 + $0xe0] sm:$0xff]
                  %387 = vst [vmem:[%s357 + $0x70] sm:$0xff] %v386
                  %v388 = vld [vmem:[%s356 + $0xe8] sm:$0xff]
                  %389 = vst [vmem:[%s357 + $0x78] sm:$0xff] %v388
                  %v390 = vld [vmem:[%s356 + $0x100] sm:$0xff]
                  %391 = vst [vmem:[%s357 + $0x80] sm:$0xff] %v390
                  %v392 = vld [vmem:[%s356 + $0x108] sm:$0xff]
                  %393 = vst [vmem:[%s357 + $0x88] sm:$0xff] %v392
                  %v394 = vld [vmem:[%s356 + $0x120] sm:$0xff]
                  %395 = vst [vmem:[%s357 + $0x90] sm:$0xff] %v394
                  %v396 = vld [vmem:[%s356 + $0x128] sm:$0xff]
                  %397 = vst [vmem:[%s357 + $0x98] sm:$0xff] %v396
                  %v398 = vld [vmem:[%s356 + $0x140] sm:$0xff]
                  %399 = vst [vmem:[%s357 + $0xa0] sm:$0xff] %v398
                  %v400 = vld [vmem:[%s356 + $0x148] sm:$0xff]
                  %401 = vst [vmem:[%s357 + $0xa8] sm:$0xff] %v400
                  %v402 = vld [vmem:[%s356 + $0x160] sm:$0xff]
                  %403 = vst [vmem:[%s357 + $0xb0] sm:$0xff] %v402
                  %v404 = vld [vmem:[%s356 + $0x168] sm:$0xff]
                  %405 = vst [vmem:[%s357 + $0xb8] sm:$0xff] %v404
                $region72: #{belong_weight_generator_forward.5} parent=66 // loop_footer
                  %s355 = sadd.s32 1, %s351
                $region73: #{belong_weight_generator_forward.5} parent=66 // loop_footer_branch
                  %350 = sbr.rel target = $region69
                $region74: #{belong_weight_generator_forward.5} parent=66 // loop_exit
                  _
              $region67: #{belong_weight_generator_forward.5} parent=51 // pred_fallthru
                _
              // Predicated region
              $region75: #{belong_weight_generator_forward.5} parent=51 // pred_check
                _
              $region76: #{belong_weight_generator_forward.5} parent=51 // pred_check_branch
                %407 = sbr.rel target = $region78
              $region77: #{belong_weight_generator_forward.5} parent=51 // pred_region
                _
              $region78: #{belong_weight_generator_forward.5} parent=51 // pred_fallthru
                _
            $region52: #{belong_weight_generator_forward.5} parent=47 // pred_fallthru
              _
            // Predicated region
            $region53: #{belong_weight_generator_forward.5} parent=47 // pred_check
              _
            $region54: #{belong_weight_generator_forward.5} parent=47 // pred_check_branch
              %290 = sbr.rel target = $region56
            $region55: #{belong_weight_generator_forward.5} parent=47 // pred_region
              loop: start=0, step=1, limit=1
              $region57: #{belong_weight_generator_forward.5} parent=55 // loop_pre_header
                _
              $region58: #{belong_weight_generator_forward.5} parent=55 // loop_header
                %s293 = sphi 0, %s297
                %p294 = scmp.ge.s32.totalorder %s293, 1
                %s298 = sphi %s284, %s284
                %s299 = sphi %s279, %s279
              $region59: #{belong_weight_generator_forward.5} parent=55 // loop_header_branch
                %296 = sbr.rel (%p294) target = $region63
              $region60: #{belong_weight_generator_forward.5} parent=55 // loop_body
                %v300 = vld [vmem:[%s298] sm:$0xff]
                %301 = vst [vmem:[%s299] sm:$0xff] %v300
                %v302 = vld [vmem:[%s298 + $0x8] sm:$0xff]
                %303 = vst [vmem:[%s299 + $0x8] sm:$0xff] %v302
                %v304 = vld [vmem:[%s298 + $0x20] sm:$0xff]
                %305 = vst [vmem:[%s299 + $0x10] sm:$0xff] %v304
                %v306 = vld [vmem:[%s298 + $0x28] sm:$0xff]
                %307 = vst [vmem:[%s299 + $0x18] sm:$0xff] %v306
                %v308 = vld [vmem:[%s298 + $0x40] sm:$0xff]
                %309 = vst [vmem:[%s299 + $0x20] sm:$0xff] %v308
                %v310 = vld [vmem:[%s298 + $0x48] sm:$0xff]
                %311 = vst [vmem:[%s299 + $0x28] sm:$0xff] %v310
                %v312 = vld [vmem:[%s298 + $0x60] sm:$0xff]
                %313 = vst [vmem:[%s299 + $0x30] sm:$0xff] %v312
                %v314 = vld [vmem:[%s298 + $0x68] sm:$0xff]
                %315 = vst [vmem:[%s299 + $0x38] sm:$0xff] %v314
                %v316 = vld [vmem:[%s298 + $0x80] sm:$0xff]
                %317 = vst [vmem:[%s299 + $0x40] sm:$0xff] %v316
                %v318 = vld [vmem:[%s298 + $0x88] sm:$0xff]
                %319 = vst [vmem:[%s299 + $0x48] sm:$0xff] %v318
                %v320 = vld [vmem:[%s298 + $0xa0] sm:$0xff]
                %321 = vst [vmem:[%s299 + $0x50] sm:$0xff] %v320
                %v322 = vld [vmem:[%s298 + $0xa8] sm:$0xff]
                %323 = vst [vmem:[%s299 + $0x58] sm:$0xff] %v322
                %v324 = vld [vmem:[%s298 + $0xc0] sm:$0xff]
                %325 = vst [vmem:[%s299 + $0x60] sm:$0xff] %v324
                %v326 = vld [vmem:[%s298 + $0xc8] sm:$0xff]
                %327 = vst [vmem:[%s299 + $0x68] sm:$0xff] %v326
                %v328 = vld [vmem:[%s298 + $0xe0] sm:$0xff]
                %329 = vst [vmem:[%s299 + $0x70] sm:$0xff] %v328
                %v330 = vld [vmem:[%s298 + $0xe8] sm:$0xff]
                %331 = vst [vmem:[%s299 + $0x78] sm:$0xff] %v330
                %v332 = vld [vmem:[%s298 + $0x100] sm:$0xff]
                %333 = vst [vmem:[%s299 + $0x80] sm:$0xff] %v332
                %v334 = vld [vmem:[%s298 + $0x108] sm:$0xff]
                %335 = vst [vmem:[%s299 + $0x88] sm:$0xff] %v334
                %v336 = vld [vmem:[%s298 + $0x120] sm:$0xff]
                %337 = vst [vmem:[%s299 + $0x90] sm:$0xff] %v336
                %v338 = vld [vmem:[%s298 + $0x128] sm:$0xff]
                %339 = vst [vmem:[%s299 + $0x98] sm:$0xff] %v338
                %v340 = vld [vmem:[%s298 + $0x140] sm:$0xff]
                %341 = vst [vmem:[%s299 + $0xa0] sm:$0xff] %v340
                %v342 = vld [vmem:[%s298 + $0x148] sm:$0xff]
                %343 = vst [vmem:[%s299 + $0xa8] sm:$0xff] %v342
                %v344 = vld [vmem:[%s298 + $0x160] sm:$0xff]
                %345 = vst [vmem:[%s299 + $0xb0] sm:$0xff] %v344
                %v346 = vld [vmem:[%s298 + $0x168] sm:$0xff]
                %347 = vst [vmem:[%s299 + $0xb8] sm:$0xff] %v346
              $region61: #{belong_weight_generator_forward.5} parent=55 // loop_footer
                %s297 = sadd.s32 1, %s293
              $region62: #{belong_weight_generator_forward.5} parent=55 // loop_footer_branch
                %292 = sbr.rel target = $region58
              $region63: #{belong_weight_generator_forward.5} parent=55 // loop_exit
                _
            $region56: #{belong_weight_generator_forward.5} parent=47 // pred_fallthru
              _
          $region48: #{belong_weight_generator_forward.5} parent=43 // pred_fallthru
            _
          %408 = vnop
        $region44: #{belong_weight_generator_forward.5} parent=39 // pred_fallthru
          _
        // Predicated region
        $region79: #{belong_weight_generator_forward.5} parent=39 // pred_check
          %p409 = pneg %p76
        $region80: #{belong_weight_generator_forward.5} parent=39 // pred_check_branch
          %411 = sbr.rel (%p409) target = $region82
        $region81: #{belong_weight_generator_forward.5} parent=39 // pred_region
          %s412 = sand.u32 %s66, 1
          %s413 = sand.u32 %s66, 1
          %s414 = smul.addr %s413, 192
          %s415 = scalar_lea.vmem [#allocation3], %s414
          %s416 = smul.u32 2, %s22
          %s417 = smul.addr %s21, 48
          %s418 = sadd.s32 %s416, %s417
          %s419 = smul.addr %s418, 8
          %s420 = scalar_lea.vmem %s1, %s419
          // Predicated region
          $region83: #{belong_weight_generator_forward.5} parent=81 // pred_check
            _
          $region84: #{belong_weight_generator_forward.5} parent=81 // pred_check_branch
            %422 = sbr.rel (0) target = $region86
          $region85: #{belong_weight_generator_forward.5} parent=81 // pred_region
            // Predicated region
            $region87: #{belong_weight_generator_forward.5} parent=85 // pred_check
              _
            $region88: #{belong_weight_generator_forward.5} parent=85 // pred_check_branch
              %424 = sbr.rel (0) target = $region90
            $region89: #{belong_weight_generator_forward.5} parent=85 // pred_region
              // Predicated region
              $region102: #{belong_weight_generator_forward.5} parent=89 // pred_check
                _
              $region103: #{belong_weight_generator_forward.5} parent=89 // pred_check_branch
                %485 = sbr.rel (0) target = $region105
              $region104: #{belong_weight_generator_forward.5} parent=89 // pred_region
                loop: start=0, step=1, limit=1
                $region106: #{belong_weight_generator_forward.5} parent=104 // loop_pre_header
                  _
                $region107: #{belong_weight_generator_forward.5} parent=104 // loop_header
                  %s487 = sphi 0, %s491
                  %p488 = scmp.ge.s32.totalorder %s487, 1
                  %s492 = sphi %s420, %s420
                  %s493 = sphi %s415, %s415
                $region108: #{belong_weight_generator_forward.5} parent=104 // loop_header_branch
                  %490 = sbr.rel (%p488) target = $region112
                $region109: #{belong_weight_generator_forward.5} parent=104 // loop_body
                  %v494 = vld [vmem:[%s492] sm:$0xff]
                  %495 = vst [vmem:[%s493] sm:$0xff] %v494
                  %v496 = vld [vmem:[%s492 + $0x8] sm:$0xff]
                  %497 = vst [vmem:[%s493 + $0x8] sm:$0xff] %v496
                  %v498 = vld [vmem:[%s492 + $0x20] sm:$0xff]
                  %499 = vst [vmem:[%s493 + $0x10] sm:$0xff] %v498
                  %v500 = vld [vmem:[%s492 + $0x28] sm:$0xff]
                  %501 = vst [vmem:[%s493 + $0x18] sm:$0xff] %v500
                  %v502 = vld [vmem:[%s492 + $0x40] sm:$0xff]
                  %503 = vst [vmem:[%s493 + $0x20] sm:$0xff] %v502
                  %v504 = vld [vmem:[%s492 + $0x48] sm:$0xff]
                  %505 = vst [vmem:[%s493 + $0x28] sm:$0xff] %v504
                  %v506 = vld [vmem:[%s492 + $0x60] sm:$0xff]
                  %507 = vst [vmem:[%s493 + $0x30] sm:$0xff] %v506
                  %v508 = vld [vmem:[%s492 + $0x68] sm:$0xff]
                  %509 = vst [vmem:[%s493 + $0x38] sm:$0xff] %v508
                  %v510 = vld [vmem:[%s492 + $0x80] sm:$0xff]
                  %511 = vst [vmem:[%s493 + $0x40] sm:$0xff] %v510
                  %v512 = vld [vmem:[%s492 + $0x88] sm:$0xff]
                  %513 = vst [vmem:[%s493 + $0x48] sm:$0xff] %v512
                  %v514 = vld [vmem:[%s492 + $0xa0] sm:$0xff]
                  %515 = vst [vmem:[%s493 + $0x50] sm:$0xff] %v514
                  %v516 = vld [vmem:[%s492 + $0xa8] sm:$0xff]
                  %517 = vst [vmem:[%s493 + $0x58] sm:$0xff] %v516
                  %v518 = vld [vmem:[%s492 + $0xc0] sm:$0xff]
                  %519 = vst [vmem:[%s493 + $0x60] sm:$0xff] %v518
                  %v520 = vld [vmem:[%s492 + $0xc8] sm:$0xff]
                  %521 = vst [vmem:[%s493 + $0x68] sm:$0xff] %v520
                  %v522 = vld [vmem:[%s492 + $0xe0] sm:$0xff]
                  %523 = vst [vmem:[%s493 + $0x70] sm:$0xff] %v522
                  %v524 = vld [vmem:[%s492 + $0xe8] sm:$0xff]
                  %525 = vst [vmem:[%s493 + $0x78] sm:$0xff] %v524
                  %v526 = vld [vmem:[%s492 + $0x100] sm:$0xff]
                  %527 = vst [vmem:[%s493 + $0x80] sm:$0xff] %v526
                  %v528 = vld [vmem:[%s492 + $0x108] sm:$0xff]
                  %529 = vst [vmem:[%s493 + $0x88] sm:$0xff] %v528
                  %v530 = vld [vmem:[%s492 + $0x120] sm:$0xff]
                  %531 = vst [vmem:[%s493 + $0x90] sm:$0xff] %v530
                  %v532 = vld [vmem:[%s492 + $0x128] sm:$0xff]
                  %533 = vst [vmem:[%s493 + $0x98] sm:$0xff] %v532
                  %v534 = vld [vmem:[%s492 + $0x140] sm:$0xff]
                  %535 = vst [vmem:[%s493 + $0xa0] sm:$0xff] %v534
                  %v536 = vld [vmem:[%s492 + $0x148] sm:$0xff]
                  %537 = vst [vmem:[%s493 + $0xa8] sm:$0xff] %v536
                  %v538 = vld [vmem:[%s492 + $0x160] sm:$0xff]
                  %539 = vst [vmem:[%s493 + $0xb0] sm:$0xff] %v538
                  %v540 = vld [vmem:[%s492 + $0x168] sm:$0xff]
                  %541 = vst [vmem:[%s493 + $0xb8] sm:$0xff] %v540
                $region110: #{belong_weight_generator_forward.5} parent=104 // loop_footer
                  %s491 = sadd.s32 1, %s487
                $region111: #{belong_weight_generator_forward.5} parent=104 // loop_footer_branch
                  %486 = sbr.rel target = $region107
                $region112: #{belong_weight_generator_forward.5} parent=104 // loop_exit
                  _
              $region105: #{belong_weight_generator_forward.5} parent=89 // pred_fallthru
                _
              // Predicated region
              $region113: #{belong_weight_generator_forward.5} parent=89 // pred_check
                _
              $region114: #{belong_weight_generator_forward.5} parent=89 // pred_check_branch
                %543 = sbr.rel target = $region116
              $region115: #{belong_weight_generator_forward.5} parent=89 // pred_region
                _
              $region116: #{belong_weight_generator_forward.5} parent=89 // pred_fallthru
                _
            $region90: #{belong_weight_generator_forward.5} parent=85 // pred_fallthru
              _
            // Predicated region
            $region91: #{belong_weight_generator_forward.5} parent=85 // pred_check
              _
            $region92: #{belong_weight_generator_forward.5} parent=85 // pred_check_branch
              %426 = sbr.rel target = $region94
            $region93: #{belong_weight_generator_forward.5} parent=85 // pred_region
              loop: start=0, step=1, limit=1
              $region95: #{belong_weight_generator_forward.5} parent=93 // loop_pre_header
                _
              $region96: #{belong_weight_generator_forward.5} parent=93 // loop_header
                %s429 = sphi 0, %s433
                %p430 = scmp.ge.s32.totalorder %s429, 1
                %s434 = sphi %s420, %s420
                %s435 = sphi %s415, %s415
              $region97: #{belong_weight_generator_forward.5} parent=93 // loop_header_branch
                %432 = sbr.rel (%p430) target = $region101
              $region98: #{belong_weight_generator_forward.5} parent=93 // loop_body
                %v436 = vld [vmem:[%s434] sm:$0xff]
                %437 = vst [vmem:[%s435] sm:$0xff] %v436
                %v438 = vld [vmem:[%s434 + $0x8] sm:$0xff]
                %439 = vst [vmem:[%s435 + $0x8] sm:$0xff] %v438
                %v440 = vld [vmem:[%s434 + $0x20] sm:$0xff]
                %441 = vst [vmem:[%s435 + $0x10] sm:$0xff] %v440
                %v442 = vld [vmem:[%s434 + $0x28] sm:$0xff]
                %443 = vst [vmem:[%s435 + $0x18] sm:$0xff] %v442
                %v444 = vld [vmem:[%s434 + $0x40] sm:$0xff]
                %445 = vst [vmem:[%s435 + $0x20] sm:$0xff] %v444
                %v446 = vld [vmem:[%s434 + $0x48] sm:$0xff]
                %447 = vst [vmem:[%s435 + $0x28] sm:$0xff] %v446
                %v448 = vld [vmem:[%s434 + $0x60] sm:$0xff]
                %449 = vst [vmem:[%s435 + $0x30] sm:$0xff] %v448
                %v450 = vld [vmem:[%s434 + $0x68] sm:$0xff]
                %451 = vst [vmem:[%s435 + $0x38] sm:$0xff] %v450
                %v452 = vld [vmem:[%s434 + $0x80] sm:$0xff]
                %453 = vst [vmem:[%s435 + $0x40] sm:$0xff] %v452
                %v454 = vld [vmem:[%s434 + $0x88] sm:$0xff]
                %455 = vst [vmem:[%s435 + $0x48] sm:$0xff] %v454
                %v456 = vld [vmem:[%s434 + $0xa0] sm:$0xff]
                %457 = vst [vmem:[%s435 + $0x50] sm:$0xff] %v456
                %v458 = vld [vmem:[%s434 + $0xa8] sm:$0xff]
                %459 = vst [vmem:[%s435 + $0x58] sm:$0xff] %v458
                %v460 = vld [vmem:[%s434 + $0xc0] sm:$0xff]
                %461 = vst [vmem:[%s435 + $0x60] sm:$0xff] %v460
                %v462 = vld [vmem:[%s434 + $0xc8] sm:$0xff]
                %463 = vst [vmem:[%s435 + $0x68] sm:$0xff] %v462
                %v464 = vld [vmem:[%s434 + $0xe0] sm:$0xff]
                %465 = vst [vmem:[%s435 + $0x70] sm:$0xff] %v464
                %v466 = vld [vmem:[%s434 + $0xe8] sm:$0xff]
                %467 = vst [vmem:[%s435 + $0x78] sm:$0xff] %v466
                %v468 = vld [vmem:[%s434 + $0x100] sm:$0xff]
                %469 = vst [vmem:[%s435 + $0x80] sm:$0xff] %v468
                %v470 = vld [vmem:[%s434 + $0x108] sm:$0xff]
                %471 = vst [vmem:[%s435 + $0x88] sm:$0xff] %v470
                %v472 = vld [vmem:[%s434 + $0x120] sm:$0xff]
                %473 = vst [vmem:[%s435 + $0x90] sm:$0xff] %v472
                %v474 = vld [vmem:[%s434 + $0x128] sm:$0xff]
                %475 = vst [vmem:[%s435 + $0x98] sm:$0xff] %v474
                %v476 = vld [vmem:[%s434 + $0x140] sm:$0xff]
                %477 = vst [vmem:[%s435 + $0xa0] sm:$0xff] %v476
                %v478 = vld [vmem:[%s434 + $0x148] sm:$0xff]
                %479 = vst [vmem:[%s435 + $0xa8] sm:$0xff] %v478
                %v480 = vld [vmem:[%s434 + $0x160] sm:$0xff]
                %481 = vst [vmem:[%s435 + $0xb0] sm:$0xff] %v480
                %v482 = vld [vmem:[%s434 + $0x168] sm:$0xff]
                %483 = vst [vmem:[%s435 + $0xb8] sm:$0xff] %v482
              $region99: #{belong_weight_generator_forward.5} parent=93 // loop_footer
                %s433 = sadd.s32 1, %s429
              $region100: #{belong_weight_generator_forward.5} parent=93 // loop_footer_branch
                %428 = sbr.rel target = $region96
              $region101: #{belong_weight_generator_forward.5} parent=93 // loop_exit
                _
            $region94: #{belong_weight_generator_forward.5} parent=85 // pred_fallthru
              _
          $region86: #{belong_weight_generator_forward.5} parent=81 // pred_fallthru
            _
          %544 = vnop
        $region82: #{belong_weight_generator_forward.5} parent=39 // pred_fallthru
          _
      $region40: #{belong_weight_generator_forward.5} parent=5 // pred_fallthru
        _
      %p545 = scmp.le.s32.totalorder 1, %s14
      %p546 = scmp.lt.s32.totalorder %s14, 5
      %p547 = pnand %p545, %p546
      %p548 = pneg %p547
      // Predicated region
      $region117: #{belong_weight_generator_forward.5} parent=5 // pred_check
        _
      $region118: #{belong_weight_generator_forward.5} parent=5 // pred_check_branch
        %550 = sbr.rel (%p547) target = $region120
      $region119: #{belong_weight_generator_forward.5} parent=5 // pred_region
        %s551 = ssub.s32 %s14, 1
        %s552 = sand.u32 %s41, 1
        %s553 = sand.u32 %s41, 1
        %s554 = smul.addr %s553, 192
        %s555 = scalar_lea.vmem [#allocation2], %s554
        // Predicated region
        $region121: #{belong_weight_generator_forward.5} parent=119 // pred_check
          %p556 = pneg %p54
        $region122: #{belong_weight_generator_forward.5} parent=119 // pred_check_branch
          %558 = sbr.rel (%p556) target = $region124
        $region123: #{belong_weight_generator_forward.5} parent=119 // pred_region
          _
        $region124: #{belong_weight_generator_forward.5} parent=119 // pred_fallthru
          _
        %s559 = sand.u32 %s69, 1
        %s560 = sand.u32 %s69, 1
        %s561 = smul.addr %s560, 192
        %s562 = scalar_lea.vmem [#allocation3], %s561
        // Predicated region
        $region125: #{belong_weight_generator_forward.5} parent=119 // pred_check
          %p563 = pneg %p82
        $region126: #{belong_weight_generator_forward.5} parent=119 // pred_check_branch
          %565 = sbr.rel (%p563) target = $region128
        $region127: #{belong_weight_generator_forward.5} parent=119 // pred_region
          _
        $region128: #{belong_weight_generator_forward.5} parent=119 // pred_fallthru
          _
        %s566 = sand.u32 %s41, 1
        %s567 = sand.u32 %s41, 1
        %s568 = smul.addr %s567, 192
        %s569 = scalar_lea.vmem [#allocation2], %s568
        %p570 = pneg %p54
        %p571 = pneg %p51
        %s572 = sand.u32 %s69, 1
        %s573 = sand.u32 %s69, 1
        %s574 = smul.addr %s573, 192
        %s575 = scalar_lea.vmem [#allocation3], %s574
        %p576 = pneg %p82
        %p577 = pneg %p79
        %p578 = pneg %p103
        %p579 = pneg %p100
        %p580 = pneg %p124
        %p581 = pneg %p121
        %p582 = pneg %p145
        %p583 = pneg %p142
        %p584 = pneg %p166
        %p585 = pneg %p163
        %p586 = pneg %p187
        %p587 = pneg %p184
        %p588 = pneg %p208
        %p589 = pneg %p205
        %p590 = pneg %p236
        %p591 = pneg %p233
        %s592 = smul.u32 2, %s24
        %p593 = scmp.lt.s32.totalorder %s23, 1
        %s594 = scalar_select %p593, %s23, 1
        %p595 = scmp.lt.s32.totalorder %s592, 3
        %s596 = scalar_select %p595, %s592, 3
        %s597 = smul.addr %s594, 4
        %s598 = sadd.s32 %s596, %s597
        %s599 = smul.addr %s598, 8
        %s600 = scalar_lea.vmem %s8, %s599
        %s601 = smul.u32 2, %s24
        %s602 = smul.u32 2, %s24
        %s603 = smul.u32 2, %s24
        %p604 = scmp.lt.s32.totalorder %s23, 1
        %s605 = scalar_select %p604, %s23, 1
        %p606 = scmp.lt.s32.totalorder %s603, 3
        %s607 = scalar_select %p606, %s603, 3
        %s608 = smul.addr %s605, 4
        %s609 = sadd.s32 %s607, %s608
        %s610 = smul.addr %s609, 8
        %s611 = scalar_lea.vmem %s8, %s610
        %s612 = smul.u32 2, %s24
        %v613 = vld [vmem:[%s2] sm:$0x7]
        %v614 = vld [vmem:[%s3] sm:$0x1]
        %v615 = vld [vmem:[%s555] sm:$0xff]
        %v616 = vld [vmem:[%s555 + $0x8] sm:$0xff]
        %s617 = scalar_lea.vmem %s555, 16 [#allocation2]
        %v618 = vld [vmem:[%s617] sm:$0xff]
        %v619 = vld [vmem:[%s617 + $0x8] sm:$0xff]
        %s620 = scalar_lea.vmem %s555, 32 [#allocation2]
        %v621 = vld [vmem:[%s620] sm:$0xff]
        %v622 = vld [vmem:[%s620 + $0x8] sm:$0xff]
        %s623 = scalar_lea.vmem %s555, 48 [#allocation2]
        %v624 = vld [vmem:[%s623] sm:$0xff]
        %v625 = vld [vmem:[%s623 + $0x8] sm:$0xff]
        %s626 = scalar_lea.vmem %s555, 64 [#allocation2]
        %v627 = vld [vmem:[%s626] sm:$0xff]
        %v628 = vld [vmem:[%s626 + $0x8] sm:$0xff]
        %s629 = scalar_lea.vmem %s555, 80 [#allocation2]
        %v630 = vld [vmem:[%s629] sm:$0xff]
        %v631 = vld [vmem:[%s629 + $0x8] sm:$0xff]
        %s632 = scalar_lea.vmem %s555, 96 [#allocation2]
        %v633 = vld [vmem:[%s632] sm:$0xff]
        %v634 = vld [vmem:[%s632 + $0x8] sm:$0xff]
        %s635 = scalar_lea.vmem %s555, 112 [#allocation2]
        %v636 = vld [vmem:[%s635] sm:$0xff]
        %v637 = vld [vmem:[%s635 + $0x8] sm:$0xff]
        %s638 = scalar_lea.vmem %s555, 128 [#allocation2]
        %v639 = vld [vmem:[%s638] sm:$0xff]
        %v640 = vld [vmem:[%s638 + $0x8] sm:$0xff]
        %s641 = scalar_lea.vmem %s555, 144 [#allocation2]
        %v642 = vld [vmem:[%s641] sm:$0xff]
        %v643 = vld [vmem:[%s641 + $0x8] sm:$0xff]
        %s644 = scalar_lea.vmem %s555, 160 [#allocation2]
        %v645 = vld [vmem:[%s644] sm:$0xff]
        %v646 = vld [vmem:[%s644 + $0x8] sm:$0xff]
        %s647 = scalar_lea.vmem %s555, 176 [#allocation2]
        %v648 = vld [vmem:[%s647] sm:$0xff]
        %v649 = vld [vmem:[%s647 + $0x8] sm:$0xff]
        %v650 = vld [vmem:[%s562] sm:$0xff]
        %v651 = vld [vmem:[%s562 + $0x8] sm:$0xff]
        %s652 = scalar_lea.vmem %s562, 16 [#allocation3]
        %v653 = vld [vmem:[%s652] sm:$0xff]
        %v654 = vld [vmem:[%s652 + $0x8] sm:$0xff]
        %s655 = scalar_lea.vmem %s562, 32 [#allocation3]
        %v656 = vld [vmem:[%s655] sm:$0xff]
        %v657 = vld [vmem:[%s655 + $0x8] sm:$0xff]
        %s658 = scalar_lea.vmem %s562, 48 [#allocation3]
        %v659 = vld [vmem:[%s658] sm:$0xff]
        %v660 = vld [vmem:[%s658 + $0x8] sm:$0xff]
        %s661 = scalar_lea.vmem %s562, 64 [#allocation3]
        %v662 = vld [vmem:[%s661] sm:$0xff]
        %v663 = vld [vmem:[%s661 + $0x8] sm:$0xff]
        %s664 = scalar_lea.vmem %s562, 80 [#allocation3]
        %v665 = vld [vmem:[%s664] sm:$0xff]
        %v666 = vld [vmem:[%s664 + $0x8] sm:$0xff]
        %s667 = scalar_lea.vmem %s562, 96 [#allocation3]
        %v668 = vld [vmem:[%s667] sm:$0xff]
        %v669 = vld [vmem:[%s667 + $0x8] sm:$0xff]
        %s670 = scalar_lea.vmem %s562, 112 [#allocation3]
        %v671 = vld [vmem:[%s670] sm:$0xff]
        %v672 = vld [vmem:[%s670 + $0x8] sm:$0xff]
        %s673 = scalar_lea.vmem %s562, 128 [#allocation3]
        %v674 = vld [vmem:[%s673] sm:$0xff]
        %v675 = vld [vmem:[%s673 + $0x8] sm:$0xff]
        %s676 = scalar_lea.vmem %s562, 144 [#allocation3]
        %v677 = vld [vmem:[%s676] sm:$0xff]
        %v678 = vld [vmem:[%s676 + $0x8] sm:$0xff]
        %s679 = scalar_lea.vmem %s562, 160 [#allocation3]
        %v680 = vld [vmem:[%s679] sm:$0xff]
        %v681 = vld [vmem:[%s679 + $0x8] sm:$0xff]
        %s682 = scalar_lea.vmem %s562, 176 [#allocation3]
        %v683 = vld [vmem:[%s682] sm:$0xff]
        %v684 = vld [vmem:[%s682 + $0x8] sm:$0xff]
        %686 = vset.pattern.permute.xlu0 0
        %687 = vperm.xlu0 %686, %v615
        %v688 = vpop.permute.xlu0 %687
        %691 = vset.pattern.permute.xlu0 0
        %692 = vperm.xlu0 %691, %v616
        %v693 = vpop.permute.xlu0 %692
        %696 = vset.pattern.permute.xlu0 0
        %697 = vperm.xlu0 %696, %v618
        %v698 = vpop.permute.xlu0 %697
        %701 = vset.pattern.permute.xlu0 0
        %702 = vperm.xlu0 %701, %v619
        %v703 = vpop.permute.xlu0 %702
        %706 = vset.pattern.permute.xlu0 0
        %707 = vperm.xlu0 %706, %v621
        %v708 = vpop.permute.xlu0 %707
        %711 = vset.pattern.permute.xlu0 0
        %712 = vperm.xlu0 %711, %v622
        %v713 = vpop.permute.xlu0 %712
        %716 = vset.pattern.permute.xlu0 0
        %717 = vperm.xlu0 %716, %v624
        %v718 = vpop.permute.xlu0 %717
        %721 = vset.pattern.permute.xlu0 0
        %722 = vperm.xlu0 %721, %v625
        %v723 = vpop.permute.xlu0 %722
        %726 = vset.pattern.permute.xlu0 0
        %727 = vperm.xlu0 %726, %v627
        %v728 = vpop.permute.xlu0 %727
        %731 = vset.pattern.permute.xlu0 0
        %732 = vperm.xlu0 %731, %v628
        %v733 = vpop.permute.xlu0 %732
        %736 = vset.pattern.permute.xlu0 0
        %737 = vperm.xlu0 %736, %v630
        %v738 = vpop.permute.xlu0 %737
        %741 = vset.pattern.permute.xlu0 0
        %742 = vperm.xlu0 %741, %v631
        %v743 = vpop.permute.xlu0 %742
        %746 = vset.pattern.permute.xlu0 0
        %747 = vperm.xlu0 %746, %v633
        %v748 = vpop.permute.xlu0 %747
        %751 = vset.pattern.permute.xlu0 0
        %752 = vperm.xlu0 %751, %v634
        %v753 = vpop.permute.xlu0 %752
        %756 = vset.pattern.permute.xlu0 0
        %757 = vperm.xlu0 %756, %v636
        %v758 = vpop.permute.xlu0 %757
        %761 = vset.pattern.permute.xlu0 0
        %762 = vperm.xlu0 %761, %v637
        %v763 = vpop.permute.xlu0 %762
        %766 = vset.pattern.permute.xlu0 0
        %767 = vperm.xlu0 %766, %v639
        %v768 = vpop.permute.xlu0 %767
        %771 = vset.pattern.permute.xlu0 0
        %772 = vperm.xlu0 %771, %v640
        %v773 = vpop.permute.xlu0 %772
        %776 = vset.pattern.permute.xlu0 0
        %777 = vperm.xlu0 %776, %v642
        %v778 = vpop.permute.xlu0 %777
        %781 = vset.pattern.permute.xlu0 0
        %782 = vperm.xlu0 %781, %v643
        %v783 = vpop.permute.xlu0 %782
        %786 = vset.pattern.permute.xlu0 0
        %787 = vperm.xlu0 %786, %v645
        %v788 = vpop.permute.xlu0 %787
        %791 = vset.pattern.permute.xlu0 0
        %792 = vperm.xlu0 %791, %v646
        %v793 = vpop.permute.xlu0 %792
        %796 = vset.pattern.permute.xlu0 0
        %797 = vperm.xlu0 %796, %v648
        %v798 = vpop.permute.xlu0 %797
        %801 = vset.pattern.permute.xlu0 0
        %802 = vperm.xlu0 %801, %v649
        %v803 = vpop.permute.xlu0 %802
        %v805 = vlaneseq
        %v806 = vshrl.u32 %v805, 7
        %v807 = vsub.s32 0, %v806
        %v808 = vrot.slane %v613, %v807
        %v809 = vmul.f32 %v688, %v808
        %v810 = vmul.f32 %v693, %v808
        %v811 = vmul.f32 %v698, %v808
        %v812 = vmul.f32 %v703, %v808
        %v813 = vmul.f32 %v708, %v808
        %v814 = vmul.f32 %v713, %v808
        %v815 = vmul.f32 %v718, %v808
        %v816 = vmul.f32 %v723, %v808
        %v817 = vmul.f32 %v728, %v808
        %v818 = vmul.f32 %v733, %v808
        %v819 = vmul.f32 %v738, %v808
        %v820 = vmul.f32 %v743, %v808
        %v821 = vmul.f32 %v748, %v808
        %v822 = vmul.f32 %v753, %v808
        %v823 = vmul.f32 %v758, %v808
        %v824 = vmul.f32 %v763, %v808
        %v825 = vmul.f32 %v768, %v808
        %v826 = vmul.f32 %v773, %v808
        %v827 = vmul.f32 %v778, %v808
        %v828 = vmul.f32 %v783, %v808
        %v829 = vmul.f32 %v788, %v808
        %v830 = vmul.f32 %v793, %v808
        %v831 = vmul.f32 %v798, %v808
        %v832 = vmul.f32 %v803, %v808
        %833 = vset.pattern.permute.xlu0 1
        %834 = vperm.xlu0 %833, %v615
        %v835 = vpop.permute.xlu0 %834
        %837 = vset.pattern.permute.xlu0 1
        %838 = vperm.xlu0 %837, %v616
        %v839 = vpop.permute.xlu0 %838
        %841 = vset.pattern.permute.xlu0 1
        %842 = vperm.xlu0 %841, %v618
        %v843 = vpop.permute.xlu0 %842
        %845 = vset.pattern.permute.xlu0 1
        %846 = vperm.xlu0 %845, %v619
        %v847 = vpop.permute.xlu0 %846
        %849 = vset.pattern.permute.xlu0 1
        %850 = vperm.xlu0 %849, %v621
        %v851 = vpop.permute.xlu0 %850
        %853 = vset.pattern.permute.xlu0 1
        %854 = vperm.xlu0 %853, %v622
        %v855 = vpop.permute.xlu0 %854
        %857 = vset.pattern.permute.xlu0 1
        %858 = vperm.xlu0 %857, %v624
        %v859 = vpop.permute.xlu0 %858
        %861 = vset.pattern.permute.xlu0 1
        %862 = vperm.xlu0 %861, %v625
        %v863 = vpop.permute.xlu0 %862
        %865 = vset.pattern.permute.xlu0 1
        %866 = vperm.xlu0 %865, %v627
        %v867 = vpop.permute.xlu0 %866
        %869 = vset.pattern.permute.xlu0 1
        %870 = vperm.xlu0 %869, %v628
        %v871 = vpop.permute.xlu0 %870
        %873 = vset.pattern.permute.xlu0 1
        %874 = vperm.xlu0 %873, %v630
        %v875 = vpop.permute.xlu0 %874
        %877 = vset.pattern.permute.xlu0 1
        %878 = vperm.xlu0 %877, %v631
        %v879 = vpop.permute.xlu0 %878
        %881 = vset.pattern.permute.xlu0 1
        %882 = vperm.xlu0 %881, %v633
        %v883 = vpop.permute.xlu0 %882
        %885 = vset.pattern.permute.xlu0 1
        %886 = vperm.xlu0 %885, %v634
        %v887 = vpop.permute.xlu0 %886
        %889 = vset.pattern.permute.xlu0 1
        %890 = vperm.xlu0 %889, %v636
        %v891 = vpop.permute.xlu0 %890
        %893 = vset.pattern.permute.xlu0 1
        %894 = vperm.xlu0 %893, %v637
        %v895 = vpop.permute.xlu0 %894
        %897 = vset.pattern.permute.xlu0 1
        %898 = vperm.xlu0 %897, %v639
        %v899 = vpop.permute.xlu0 %898
        %901 = vset.pattern.permute.xlu0 1
        %902 = vperm.xlu0 %901, %v640
        %v903 = vpop.permute.xlu0 %902
        %905 = vset.pattern.permute.xlu0 1
        %906 = vperm.xlu0 %905, %v642
        %v907 = vpop.permute.xlu0 %906
        %909 = vset.pattern.permute.xlu0 1
        %910 = vperm.xlu0 %909, %v643
        %v911 = vpop.permute.xlu0 %910
        %913 = vset.pattern.permute.xlu0 1
        %914 = vperm.xlu0 %913, %v645
        %v915 = vpop.permute.xlu0 %914
        %917 = vset.pattern.permute.xlu0 1
        %918 = vperm.xlu0 %917, %v646
        %v919 = vpop.permute.xlu0 %918
        %921 = vset.pattern.permute.xlu0 1
        %922 = vperm.xlu0 %921, %v648
        %v923 = vpop.permute.xlu0 %922
        %925 = vset.pattern.permute.xlu0 1
        %926 = vperm.xlu0 %925, %v649
        %v927 = vpop.permute.xlu0 %926
        %v929 = vlaneseq
        %v930 = vshrl.u32 %v929, 7
        %v931 = vsub.s32 1, %v930
        %v932 = vrot.slane %v613, %v931
        %v933 = vmul.f32 %v835, %v932
        %v934 = vmul.f32 %v839, %v932
        %v935 = vmul.f32 %v843, %v932
        %v936 = vmul.f32 %v847, %v932
        %v937 = vmul.f32 %v851, %v932
        %v938 = vmul.f32 %v855, %v932
        %v939 = vmul.f32 %v859, %v932
        %v940 = vmul.f32 %v863, %v932
        %v941 = vmul.f32 %v867, %v932
        %v942 = vmul.f32 %v871, %v932
        %v943 = vmul.f32 %v875, %v932
        %v944 = vmul.f32 %v879, %v932
        %v945 = vmul.f32 %v883, %v932
        %v946 = vmul.f32 %v887, %v932
        %v947 = vmul.f32 %v891, %v932
        %v948 = vmul.f32 %v895, %v932
        %v949 = vmul.f32 %v899, %v932
        %v950 = vmul.f32 %v903, %v932
        %v951 = vmul.f32 %v907, %v932
        %v952 = vmul.f32 %v911, %v932
        %v953 = vmul.f32 %v915, %v932
        %v954 = vmul.f32 %v919, %v932
        %v955 = vmul.f32 %v923, %v932
        %v956 = vmul.f32 %v927, %v932
        %v957 = vadd.f32 %v809, %v933
        %v958 = vadd.f32 %v810, %v934
        %v959 = vadd.f32 %v811, %v935
        %v960 = vadd.f32 %v812, %v936
        %v961 = vadd.f32 %v813, %v937
        %v962 = vadd.f32 %v814, %v938
        %v963 = vadd.f32 %v815, %v939
        %v964 = vadd.f32 %v816, %v940
        %v965 = vadd.f32 %v817, %v941
        %v966 = vadd.f32 %v818, %v942
        %v967 = vadd.f32 %v819, %v943
        %v968 = vadd.f32 %v820, %v944
        %v969 = vadd.f32 %v821, %v945
        %v970 = vadd.f32 %v822, %v946
        %v971 = vadd.f32 %v823, %v947
        %v972 = vadd.f32 %v824, %v948
        %v973 = vadd.f32 %v825, %v949
        %v974 = vadd.f32 %v826, %v950
        %v975 = vadd.f32 %v827, %v951
        %v976 = vadd.f32 %v828, %v952
        %v977 = vadd.f32 %v829, %v953
        %v978 = vadd.f32 %v830, %v954
        %v979 = vadd.f32 %v831, %v955
        %v980 = vadd.f32 %v832, %v956
        %981 = vset.pattern.permute.xlu0 2
        %982 = vperm.xlu0 %981, %v615
        %v983 = vpop.permute.xlu0 %982
        %985 = vset.pattern.permute.xlu0 2
        %986 = vperm.xlu0 %985, %v616
        %v987 = vpop.permute.xlu0 %986
        %989 = vset.pattern.permute.xlu0 2
        %990 = vperm.xlu0 %989, %v618
        %v991 = vpop.permute.xlu0 %990
        %993 = vset.pattern.permute.xlu0 2
        %994 = vperm.xlu0 %993, %v619
        %v995 = vpop.permute.xlu0 %994
        %997 = vset.pattern.permute.xlu0 2
        %998 = vperm.xlu0 %997, %v621
        %v999 = vpop.permute.xlu0 %998
        %1001 = vset.pattern.permute.xlu0 2
        %1002 = vperm.xlu0 %1001, %v622
        %v1003 = vpop.permute.xlu0 %1002
        %1005 = vset.pattern.permute.xlu0 2
        %1006 = vperm.xlu0 %1005, %v624
        %v1007 = vpop.permute.xlu0 %1006
        %1009 = vset.pattern.permute.xlu0 2
        %1010 = vperm.xlu0 %1009, %v625
        %v1011 = vpop.permute.xlu0 %1010
        %1013 = vset.pattern.permute.xlu0 2
        %1014 = vperm.xlu0 %1013, %v627
        %v1015 = vpop.permute.xlu0 %1014
        %1017 = vset.pattern.permute.xlu0 2
        %1018 = vperm.xlu0 %1017, %v628
        %v1019 = vpop.permute.xlu0 %1018
        %1021 = vset.pattern.permute.xlu0 2
        %1022 = vperm.xlu0 %1021, %v630
        %v1023 = vpop.permute.xlu0 %1022
        %1025 = vset.pattern.permute.xlu0 2
        %1026 = vperm.xlu0 %1025, %v631
        %v1027 = vpop.permute.xlu0 %1026
        %1029 = vset.pattern.permute.xlu0 2
        %1030 = vperm.xlu0 %1029, %v633
        %v1031 = vpop.permute.xlu0 %1030
        %1033 = vset.pattern.permute.xlu0 2
        %1034 = vperm.xlu0 %1033, %v634
        %v1035 = vpop.permute.xlu0 %1034
        %1037 = vset.pattern.permute.xlu0 2
        %1038 = vperm.xlu0 %1037, %v636
        %v1039 = vpop.permute.xlu0 %1038
        %1041 = vset.pattern.permute.xlu0 2
        %1042 = vperm.xlu0 %1041, %v637
        %v1043 = vpop.permute.xlu0 %1042
        %1045 = vset.pattern.permute.xlu0 2
        %1046 = vperm.xlu0 %1045, %v639
        %v1047 = vpop.permute.xlu0 %1046
        %1049 = vset.pattern.permute.xlu0 2
        %1050 = vperm.xlu0 %1049, %v640
        %v1051 = vpop.permute.xlu0 %1050
        %1053 = vset.pattern.permute.xlu0 2
        %1054 = vperm.xlu0 %1053, %v642
        %v1055 = vpop.permute.xlu0 %1054
        %1057 = vset.pattern.permute.xlu0 2
        %1058 = vperm.xlu0 %1057, %v643
        %v1059 = vpop.permute.xlu0 %1058
        %1061 = vset.pattern.permute.xlu0 2
        %1062 = vperm.xlu0 %1061, %v645
        %v1063 = vpop.permute.xlu0 %1062
        %1065 = vset.pattern.permute.xlu0 2
        %1066 = vperm.xlu0 %1065, %v646
        %v1067 = vpop.permute.xlu0 %1066
        %1069 = vset.pattern.permute.xlu0 2
        %1070 = vperm.xlu0 %1069, %v648
        %v1071 = vpop.permute.xlu0 %1070
        %1073 = vset.pattern.permute.xlu0 2
        %1074 = vperm.xlu0 %1073, %v649
        %v1075 = vpop.permute.xlu0 %1074
        %v1077 = vlaneseq
        %v1078 = vshrl.u32 %v1077, 7
        %v1079 = vsub.s32 2, %v1078
        %v1080 = vrot.slane %v613, %v1079
        %v1081 = vmul.f32 %v983, %v1080
        %v1082 = vmul.f32 %v987, %v1080
        %v1083 = vmul.f32 %v991, %v1080
        %v1084 = vmul.f32 %v995, %v1080
        %v1085 = vmul.f32 %v999, %v1080
        %v1086 = vmul.f32 %v1003, %v1080
        %v1087 = vmul.f32 %v1007, %v1080
        %v1088 = vmul.f32 %v1011, %v1080
        %v1089 = vmul.f32 %v1015, %v1080
        %v1090 = vmul.f32 %v1019, %v1080
        %v1091 = vmul.f32 %v1023, %v1080
        %v1092 = vmul.f32 %v1027, %v1080
        %v1093 = vmul.f32 %v1031, %v1080
        %v1094 = vmul.f32 %v1035, %v1080
        %v1095 = vmul.f32 %v1039, %v1080
        %v1096 = vmul.f32 %v1043, %v1080
        %v1097 = vmul.f32 %v1047, %v1080
        %v1098 = vmul.f32 %v1051, %v1080
        %v1099 = vmul.f32 %v1055, %v1080
        %v1100 = vmul.f32 %v1059, %v1080
        %v1101 = vmul.f32 %v1063, %v1080
        %v1102 = vmul.f32 %v1067, %v1080
        %v1103 = vmul.f32 %v1071, %v1080
        %v1104 = vmul.f32 %v1075, %v1080
        %v1105 = vadd.f32 %v957, %v1081
        %v1106 = vadd.f32 %v958, %v1082
        %v1107 = vadd.f32 %v959, %v1083
        %v1108 = vadd.f32 %v960, %v1084
        %v1109 = vadd.f32 %v961, %v1085
        %v1110 = vadd.f32 %v962, %v1086
        %v1111 = vadd.f32 %v963, %v1087
        %v1112 = vadd.f32 %v964, %v1088
        %v1113 = vadd.f32 %v965, %v1089
        %v1114 = vadd.f32 %v966, %v1090
        %v1115 = vadd.f32 %v967, %v1091
        %v1116 = vadd.f32 %v968, %v1092
        %v1117 = vadd.f32 %v969, %v1093
        %v1118 = vadd.f32 %v970, %v1094
        %v1119 = vadd.f32 %v971, %v1095
        %v1120 = vadd.f32 %v972, %v1096
        %v1121 = vadd.f32 %v973, %v1097
        %v1122 = vadd.f32 %v974, %v1098
        %v1123 = vadd.f32 %v975, %v1099
        %v1124 = vadd.f32 %v976, %v1100
        %v1125 = vadd.f32 %v977, %v1101
        %v1126 = vadd.f32 %v978, %v1102
        %v1127 = vadd.f32 %v979, %v1103
        %v1128 = vadd.f32 %v980, %v1104
        %v1130 = vlaneseq
        %v1131 = vshrl.u32 %v1130, 7
        %v1132 = vsub.s32 0, %v1131
        %v1133 = vrot.slane %v614, %v1132
        %v1135 = vadd.f32 %v1105, %v1133
        %v1136 = vadd.f32 %v1106, %v1133
        %v1137 = vadd.f32 %v1107, %v1133
        %v1138 = vadd.f32 %v1108, %v1133
        %v1139 = vadd.f32 %v1109, %v1133
        %v1140 = vadd.f32 %v1110, %v1133
        %v1141 = vadd.f32 %v1111, %v1133
        %v1142 = vadd.f32 %v1112, %v1133
        %v1143 = vadd.f32 %v1113, %v1133
        %v1144 = vadd.f32 %v1114, %v1133
        %v1145 = vadd.f32 %v1115, %v1133
        %v1146 = vadd.f32 %v1116, %v1133
        %v1147 = vadd.f32 %v1117, %v1133
        %v1148 = vadd.f32 %v1118, %v1133
        %v1149 = vadd.f32 %v1119, %v1133
        %v1150 = vadd.f32 %v1120, %v1133
        %v1151 = vadd.f32 %v1121, %v1133
        %v1152 = vadd.f32 %v1122, %v1133
        %v1153 = vadd.f32 %v1123, %v1133
        %v1154 = vadd.f32 %v1124, %v1133
        %v1155 = vadd.f32 %v1125, %v1133
        %v1156 = vadd.f32 %v1126, %v1133
        %v1157 = vadd.f32 %v1127, %v1133
        %v1158 = vadd.f32 %v1128, %v1133
        %v1159 = vand.u32 2147483647, %v1135
        %vm1160 = vcmp.le.f32.partialorder %v1159, 0.7853982
        %vm1161 = vcmp.lt.s32.totalorder %v1135, 0
        %v1162 = vand.u32 %v1135, 2139095040
        %v1163 = vshrl.u32 %v1162, 23
        %v1164 = vsub.s32 %v1163, 127
        %v1165 = vand.u32 2147483647, %v1135
        %v1166 = vand.u32 %v1165, 8388607
        %v1167 = vor.u32 %v1166, 8388608
        %v1168 = vsub.s32 0, %v1167
        %v1169 = vadd.s32 %v1164, 1
        %vm1170 = vcmp.gt.s32.totalorder %v1169, 0
        %v1171 = vsel %vm1170, %v1169, 0
        %v1172 = vshrl.u32 %v1171, 5
        %v1173 = vand.u32 %v1171, 31
        %v1174 = vsub.s32 32, %v1173
        %v1175 = vshrl.u32 683565275, %v1174
        %v1176 = vshll.u32 683565275, %v1173
        %v1177 = vshrl.u32 2475754826, %v1174
        %v1178 = vor.u32 %v1176, %v1177
        %v1179 = vshll.u32 2475754826, %v1173
        %v1180 = vshrl.u32 2131351028, %v1174
        %v1181 = vor.u32 %v1179, %v1180
        %v1182 = vshll.u32 2131351028, %v1173
        %v1183 = vshrl.u32 2102212464, %v1174
        %v1184 = vor.u32 %v1182, %v1183
        %v1185 = vshll.u32 2102212464, %v1173
        %v1186 = vshrl.u32 920167782, %v1174
        %v1187 = vor.u32 %v1185, %v1186
        %v1188 = vshll.u32 920167782, %v1173
        %v1189 = vshrl.u32 1326507024, %v1174
        %v1190 = vor.u32 %v1188, %v1189
        %vm1191 = vcmp.lt.s32.totalorder %v1172, 1
        %vm1192 = vcmp.lt.s32.totalorder %v1172, 2
        %vm1193 = vcmp.lt.s32.totalorder %v1172, 3
        %vm1194 = vcmp.lt.s32.totalorder %v1172, 4
        %v1195 = vsel %vm1191, %v1175, %v1178
        %v1196 = vsel %vm1194, %v1184, 2102212464
        %v1197 = vsel %vm1193, %v1181, %v1196
        %v1198 = vsel %vm1192, %v1195, %v1197
        %v1199 = vsel %vm1191, %v1178, %v1181
        %v1200 = vsel %vm1194, %v1187, 920167782
        %v1201 = vsel %vm1193, %v1184, %v1200
        %v1202 = vsel %vm1192, %v1199, %v1201
        %v1203 = vsel %vm1191, %v1181, %v1184
        %v1204 = vsel %vm1194, %v1190, 1326507024
        %v1205 = vsel %vm1193, %v1187, %v1204
        %v1206 = vsel %vm1192, %v1203, %v1205
        %v1207 = vshll.u32 %v1167, 8
        %v1208 = vmul.u32.u64.compose %v1207, %v1206
        %v1209 = vextract.low.u32 %v1208
        %v1210 = vextract.high.u32 %v1208
        %v1211 = vmul.u32.u64.compose %v1207, %v1202
        %v1212 = vextract.low.u32 %v1211
        %v1213 = vextract.high.u32 %v1211
        %v1214 = vmul.u32 %v1207, %v1198
        %v1215 = vadd.s32 %v1210, %v1212
        %vm1216 = vc.u32 %v1210, %v1212
        %v1217 = vadd.s32 %v1213, 1
        %v1218 = vsel %vm1216, %v1217, %v1213
        %v1219 = vadd.s32 %v1214, %v1218
        %v1220 = vadd.s32 %v1219, 536870912
        %v1221 = vshrl.u32 %v1220, 30
        %v1222 = vshll.u32 %v1221, 30
        %v1223 = vsub.s32 %v1219, %v1222
        %vm1224 = vcmp.lt.s32.totalorder %v1223, 0
        %v1225 = vsub.s32 0, %v1223
        %v1226 = vsel %vm1224, %v1225, %v1223
        %v1227 = vclz %v1226
        %v1228 = vsub.s32 %v1227, 2
        %vm1229 = vcmp.gt.s32.totalorder 0, %v1228
        %v1230 = vsel %vm1229, 0, %v1228
        %v1231 = vsub.s32 32, %v1230
        %v1232 = vshll.u32 %v1223, %v1230
        %v1233 = vshrl.u32 %v1215, %v1231
        %v1234 = vor.u32 %v1232, %v1233
        %v1235 = vsub.s32 4294967266, %v1230
        %v1236 = vadd.s32 %v1235, 127
        %v1237 = vshll.u32 %v1236, 23
        %v1238 = vor.u32 4788187, %v1237
        %v1239 = vand.u32 2147483647, %v1238
        %v1241 = vcvt.s32.f32 %v1234
        %v1242 = vmul.f32 %v1241, %v1239
        %v1243 = vxor.u32 %v1242, 2147483648
        %v1244 = vsel %vm1161, %v1243, %v1242
        %v1245 = vsub.s32 4, %v1221
        %v1246 = vsel %vm1161, %v1245, %v1221
        %v1247 = vsel %vm1160, %v1135, %v1244
        %v1248 = vsel %vm1160, 0, %v1246
        %v1249 = vcosq.f32.pop %v1247
        %v1250 = vsinq.f32.pop %v1247
        %vm1251 = vweird.f32 %v1135
        %v1252 = vadd.s32 %v1248, 3
        %v1253 = vand.u32 %v1252, 3
        %vm1254 = vcmp.lt.s32.totalorder %v1253, 2
        %vm1255 = vcmp.eq.s32.totalorder %v1253, 0
        %v1256 = vxor.u32 %v1250, 2147483648
        %v1257 = vsel %vm1255, %v1249, %v1256
        %vm1258 = vcmp.eq.s32.totalorder %v1253, 2
        %v1259 = vxor.u32 %v1249, 2147483648
        %v1260 = vsel %vm1258, %v1259, %v1250
        %v1261 = vsel %vm1254, %v1257, %v1260
        %v1262 = vsel %vm1251, nan, %v1261
        %v1263 = vand.u32 2147483647, %v1136
        %vm1264 = vcmp.le.f32.partialorder %v1263, 0.7853982
        %vm1265 = vcmp.lt.s32.totalorder %v1136, 0
        %v1266 = vand.u32 %v1136, 2139095040
        %v1267 = vshrl.u32 %v1266, 23
        %v1268 = vsub.s32 %v1267, 127
        %v1269 = vand.u32 2147483647, %v1136
        %v1270 = vand.u32 %v1269, 8388607
        %v1271 = vor.u32 %v1270, 8388608
        %v1272 = vsub.s32 0, %v1271
        %v1273 = vadd.s32 %v1268, 1
        %vm1274 = vcmp.gt.s32.totalorder %v1273, 0
        %v1275 = vsel %vm1274, %v1273, 0
        %v1276 = vshrl.u32 %v1275, 5
        %v1277 = vand.u32 %v1275, 31
        %v1278 = vsub.s32 32, %v1277
        %v1279 = vshrl.u32 683565275, %v1278
        %v1280 = vshll.u32 683565275, %v1277
        %v1281 = vshrl.u32 2475754826, %v1278
        %v1282 = vor.u32 %v1280, %v1281
        %v1283 = vshll.u32 2475754826, %v1277
        %v1284 = vshrl.u32 2131351028, %v1278
        %v1285 = vor.u32 %v1283, %v1284
        %v1286 = vshll.u32 2131351028, %v1277
        %v1287 = vshrl.u32 2102212464, %v1278
        %v1288 = vor.u32 %v1286, %v1287
        %v1289 = vshll.u32 2102212464, %v1277
        %v1290 = vshrl.u32 920167782, %v1278
        %v1291 = vor.u32 %v1289, %v1290
        %v1292 = vshll.u32 920167782, %v1277
        %v1293 = vshrl.u32 1326507024, %v1278
        %v1294 = vor.u32 %v1292, %v1293
        %vm1295 = vcmp.lt.s32.totalorder %v1276, 1
        %vm1296 = vcmp.lt.s32.totalorder %v1276, 2
        %vm1297 = vcmp.lt.s32.totalorder %v1276, 3
        %vm1298 = vcmp.lt.s32.totalorder %v1276, 4
        %v1299 = vsel %vm1295, %v1279, %v1282
        %v1300 = vsel %vm1298, %v1288, 2102212464
        %v1301 = vsel %vm1297, %v1285, %v1300
        %v1302 = vsel %vm1296, %v1299, %v1301
        %v1303 = vsel %vm1295, %v1282, %v1285
        %v1304 = vsel %vm1298, %v1291, 920167782
        %v1305 = vsel %vm1297, %v1288, %v1304
        %v1306 = vsel %vm1296, %v1303, %v1305
        %v1307 = vsel %vm1295, %v1285, %v1288
        %v1308 = vsel %vm1298, %v1294, 1326507024
        %v1309 = vsel %vm1297, %v1291, %v1308
        %v1310 = vsel %vm1296, %v1307, %v1309
        %v1311 = vshll.u32 %v1271, 8
        %v1312 = vmul.u32.u64.compose %v1311, %v1310
        %v1313 = vextract.low.u32 %v1312
        %v1314 = vextract.high.u32 %v1312
        %v1315 = vmul.u32.u64.compose %v1311, %v1306
        %v1316 = vextract.low.u32 %v1315
        %v1317 = vextract.high.u32 %v1315
        %v1318 = vmul.u32 %v1311, %v1302
        %v1319 = vadd.s32 %v1314, %v1316
        %vm1320 = vc.u32 %v1314, %v1316
        %v1321 = vadd.s32 %v1317, 1
        %v1322 = vsel %vm1320, %v1321, %v1317
        %v1323 = vadd.s32 %v1318, %v1322
        %v1324 = vadd.s32 %v1323, 536870912
        %v1325 = vshrl.u32 %v1324, 30
        %v1326 = vshll.u32 %v1325, 30
        %v1327 = vsub.s32 %v1323, %v1326
        %vm1328 = vcmp.lt.s32.totalorder %v1327, 0
        %v1329 = vsub.s32 0, %v1327
        %v1330 = vsel %vm1328, %v1329, %v1327
        %v1331 = vclz %v1330
        %v1332 = vsub.s32 %v1331, 2
        %vm1333 = vcmp.gt.s32.totalorder 0, %v1332
        %v1334 = vsel %vm1333, 0, %v1332
        %v1335 = vsub.s32 32, %v1334
        %v1336 = vshll.u32 %v1327, %v1334
        %v1337 = vshrl.u32 %v1319, %v1335
        %v1338 = vor.u32 %v1336, %v1337
        %v1339 = vsub.s32 4294967266, %v1334
        %v1340 = vadd.s32 %v1339, 127
        %v1341 = vshll.u32 %v1340, 23
        %v1342 = vor.u32 4788187, %v1341
        %v1343 = vand.u32 2147483647, %v1342
        %v1345 = vcvt.s32.f32 %v1338
        %v1346 = vmul.f32 %v1345, %v1343
        %v1347 = vxor.u32 %v1346, 2147483648
        %v1348 = vsel %vm1265, %v1347, %v1346
        %v1349 = vsub.s32 4, %v1325
        %v1350 = vsel %vm1265, %v1349, %v1325
        %v1351 = vsel %vm1264, %v1136, %v1348
        %v1352 = vsel %vm1264, 0, %v1350
        %v1353 = vcosq.f32.pop %v1351
        %v1354 = vsinq.f32.pop %v1351
        %vm1355 = vweird.f32 %v1136
        %v1356 = vadd.s32 %v1352, 3
        %v1357 = vand.u32 %v1356, 3
        %vm1358 = vcmp.lt.s32.totalorder %v1357, 2
        %vm1359 = vcmp.eq.s32.totalorder %v1357, 0
        %v1360 = vxor.u32 %v1354, 2147483648
        %v1361 = vsel %vm1359, %v1353, %v1360
        %vm1362 = vcmp.eq.s32.totalorder %v1357, 2
        %v1363 = vxor.u32 %v1353, 2147483648
        %v1364 = vsel %vm1362, %v1363, %v1354
        %v1365 = vsel %vm1358, %v1361, %v1364
        %v1366 = vsel %vm1355, nan, %v1365
        %v1367 = vand.u32 2147483647, %v1137
        %vm1368 = vcmp.le.f32.partialorder %v1367, 0.7853982
        %vm1369 = vcmp.lt.s32.totalorder %v1137, 0
        %v1370 = vand.u32 %v1137, 2139095040
        %v1371 = vshrl.u32 %v1370, 23
        %v1372 = vsub.s32 %v1371, 127
        %v1373 = vand.u32 2147483647, %v1137
        %v1374 = vand.u32 %v1373, 8388607
        %v1375 = vor.u32 %v1374, 8388608
        %v1376 = vsub.s32 0, %v1375
        %v1377 = vadd.s32 %v1372, 1
        %vm1378 = vcmp.gt.s32.totalorder %v1377, 0
        %v1379 = vsel %vm1378, %v1377, 0
        %v1380 = vshrl.u32 %v1379, 5
        %v1381 = vand.u32 %v1379, 31
        %v1382 = vsub.s32 32, %v1381
        %v1383 = vshrl.u32 683565275, %v1382
        %v1384 = vshll.u32 683565275, %v1381
        %v1385 = vshrl.u32 2475754826, %v1382
        %v1386 = vor.u32 %v1384, %v1385
        %v1387 = vshll.u32 2475754826, %v1381
        %v1388 = vshrl.u32 2131351028, %v1382
        %v1389 = vor.u32 %v1387, %v1388
        %v1390 = vshll.u32 2131351028, %v1381
        %v1391 = vshrl.u32 2102212464, %v1382
        %v1392 = vor.u32 %v1390, %v1391
        %v1393 = vshll.u32 2102212464, %v1381
        %v1394 = vshrl.u32 920167782, %v1382
        %v1395 = vor.u32 %v1393, %v1394
        %v1396 = vshll.u32 920167782, %v1381
        %v1397 = vshrl.u32 1326507024, %v1382
        %v1398 = vor.u32 %v1396, %v1397
        %vm1399 = vcmp.lt.s32.totalorder %v1380, 1
        %vm1400 = vcmp.lt.s32.totalorder %v1380, 2
        %vm1401 = vcmp.lt.s32.totalorder %v1380, 3
        %vm1402 = vcmp.lt.s32.totalorder %v1380, 4
        %v1403 = vsel %vm1399, %v1383, %v1386
        %v1404 = vsel %vm1402, %v1392, 2102212464
        %v1405 = vsel %vm1401, %v1389, %v1404
        %v1406 = vsel %vm1400, %v1403, %v1405
        %v1407 = vsel %vm1399, %v1386, %v1389
        %v1408 = vsel %vm1402, %v1395, 920167782
        %v1409 = vsel %vm1401, %v1392, %v1408
        %v1410 = vsel %vm1400, %v1407, %v1409
        %v1411 = vsel %vm1399, %v1389, %v1392
        %v1412 = vsel %vm1402, %v1398, 1326507024
        %v1413 = vsel %vm1401, %v1395, %v1412
        %v1414 = vsel %vm1400, %v1411, %v1413
        %v1415 = vshll.u32 %v1375, 8
        %v1416 = vmul.u32.u64.compose %v1415, %v1414
        %v1417 = vextract.low.u32 %v1416
        %v1418 = vextract.high.u32 %v1416
        %v1419 = vmul.u32.u64.compose %v1415, %v1410
        %v1420 = vextract.low.u32 %v1419
        %v1421 = vextract.high.u32 %v1419
        %v1422 = vmul.u32 %v1415, %v1406
        %v1423 = vadd.s32 %v1418, %v1420
        %vm1424 = vc.u32 %v1418, %v1420
        %v1425 = vadd.s32 %v1421, 1
        %v1426 = vsel %vm1424, %v1425, %v1421
        %v1427 = vadd.s32 %v1422, %v1426
        %v1428 = vadd.s32 %v1427, 536870912
        %v1429 = vshrl.u32 %v1428, 30
        %v1430 = vshll.u32 %v1429, 30
        %v1431 = vsub.s32 %v1427, %v1430
        %vm1432 = vcmp.lt.s32.totalorder %v1431, 0
        %v1433 = vsub.s32 0, %v1431
        %v1434 = vsel %vm1432, %v1433, %v1431
        %v1435 = vclz %v1434
        %v1436 = vsub.s32 %v1435, 2
        %vm1437 = vcmp.gt.s32.totalorder 0, %v1436
        %v1438 = vsel %vm1437, 0, %v1436
        %v1439 = vsub.s32 32, %v1438
        %v1440 = vshll.u32 %v1431, %v1438
        %v1441 = vshrl.u32 %v1423, %v1439
        %v1442 = vor.u32 %v1440, %v1441
        %v1443 = vsub.s32 4294967266, %v1438
        %v1444 = vadd.s32 %v1443, 127
        %v1445 = vshll.u32 %v1444, 23
        %v1446 = vor.u32 4788187, %v1445
        %v1447 = vand.u32 2147483647, %v1446
        %v1449 = vcvt.s32.f32 %v1442
        %v1450 = vmul.f32 %v1449, %v1447
        %v1451 = vxor.u32 %v1450, 2147483648
        %v1452 = vsel %vm1369, %v1451, %v1450
        %v1453 = vsub.s32 4, %v1429
        %v1454 = vsel %vm1369, %v1453, %v1429
        %v1455 = vsel %vm1368, %v1137, %v1452
        %v1456 = vsel %vm1368, 0, %v1454
        %v1457 = vcosq.f32.pop %v1455
        %v1458 = vsinq.f32.pop %v1455
        %vm1459 = vweird.f32 %v1137
        %v1460 = vadd.s32 %v1456, 3
        %v1461 = vand.u32 %v1460, 3
        %vm1462 = vcmp.lt.s32.totalorder %v1461, 2
        %vm1463 = vcmp.eq.s32.totalorder %v1461, 0
        %v1464 = vxor.u32 %v1458, 2147483648
        %v1465 = vsel %vm1463, %v1457, %v1464
        %vm1466 = vcmp.eq.s32.totalorder %v1461, 2
        %v1467 = vxor.u32 %v1457, 2147483648
        %v1468 = vsel %vm1466, %v1467, %v1458
        %v1469 = vsel %vm1462, %v1465, %v1468
        %v1470 = vsel %vm1459, nan, %v1469
        %v1471 = vand.u32 2147483647, %v1138
        %vm1472 = vcmp.le.f32.partialorder %v1471, 0.7853982
        %vm1473 = vcmp.lt.s32.totalorder %v1138, 0
        %v1474 = vand.u32 %v1138, 2139095040
        %v1475 = vshrl.u32 %v1474, 23
        %v1476 = vsub.s32 %v1475, 127
        %v1477 = vand.u32 2147483647, %v1138
        %v1478 = vand.u32 %v1477, 8388607
        %v1479 = vor.u32 %v1478, 8388608
        %v1480 = vsub.s32 0, %v1479
        %v1481 = vadd.s32 %v1476, 1
        %vm1482 = vcmp.gt.s32.totalorder %v1481, 0
        %v1483 = vsel %vm1482, %v1481, 0
        %v1484 = vshrl.u32 %v1483, 5
        %v1485 = vand.u32 %v1483, 31
        %v1486 = vsub.s32 32, %v1485
        %v1487 = vshrl.u32 683565275, %v1486
        %v1488 = vshll.u32 683565275, %v1485
        %v1489 = vshrl.u32 2475754826, %v1486
        %v1490 = vor.u32 %v1488, %v1489
        %v1491 = vshll.u32 2475754826, %v1485
        %v1492 = vshrl.u32 2131351028, %v1486
        %v1493 = vor.u32 %v1491, %v1492
        %v1494 = vshll.u32 2131351028, %v1485
        %v1495 = vshrl.u32 2102212464, %v1486
        %v1496 = vor.u32 %v1494, %v1495
        %v1497 = vshll.u32 2102212464, %v1485
        %v1498 = vshrl.u32 920167782, %v1486
        %v1499 = vor.u32 %v1497, %v1498
        %v1500 = vshll.u32 920167782, %v1485
        %v1501 = vshrl.u32 1326507024, %v1486
        %v1502 = vor.u32 %v1500, %v1501
        %vm1503 = vcmp.lt.s32.totalorder %v1484, 1
        %vm1504 = vcmp.lt.s32.totalorder %v1484, 2
        %vm1505 = vcmp.lt.s32.totalorder %v1484, 3
        %vm1506 = vcmp.lt.s32.totalorder %v1484, 4
        %v1507 = vsel %vm1503, %v1487, %v1490
        %v1508 = vsel %vm1506, %v1496, 2102212464
        %v1509 = vsel %vm1505, %v1493, %v1508
        %v1510 = vsel %vm1504, %v1507, %v1509
        %v1511 = vsel %vm1503, %v1490, %v1493
        %v1512 = vsel %vm1506, %v1499, 920167782
        %v1513 = vsel %vm1505, %v1496, %v1512
        %v1514 = vsel %vm1504, %v1511, %v1513
        %v1515 = vsel %vm1503, %v1493, %v1496
        %v1516 = vsel %vm1506, %v1502, 1326507024
        %v1517 = vsel %vm1505, %v1499, %v1516
        %v1518 = vsel %vm1504, %v1515, %v1517
        %v1519 = vshll.u32 %v1479, 8
        %v1520 = vmul.u32.u64.compose %v1519, %v1518
        %v1521 = vextract.low.u32 %v1520
        %v1522 = vextract.high.u32 %v1520
        %v1523 = vmul.u32.u64.compose %v1519, %v1514
        %v1524 = vextract.low.u32 %v1523
        %v1525 = vextract.high.u32 %v1523
        %v1526 = vmul.u32 %v1519, %v1510
        %v1527 = vadd.s32 %v1522, %v1524
        %vm1528 = vc.u32 %v1522, %v1524
        %v1529 = vadd.s32 %v1525, 1
        %v1530 = vsel %vm1528, %v1529, %v1525
        %v1531 = vadd.s32 %v1526, %v1530
        %v1532 = vadd.s32 %v1531, 536870912
        %v1533 = vshrl.u32 %v1532, 30
        %v1534 = vshll.u32 %v1533, 30
        %v1535 = vsub.s32 %v1531, %v1534
        %vm1536 = vcmp.lt.s32.totalorder %v1535, 0
        %v1537 = vsub.s32 0, %v1535
        %v1538 = vsel %vm1536, %v1537, %v1535
        %v1539 = vclz %v1538
        %v1540 = vsub.s32 %v1539, 2
        %vm1541 = vcmp.gt.s32.totalorder 0, %v1540
        %v1542 = vsel %vm1541, 0, %v1540
        %v1543 = vsub.s32 32, %v1542
        %v1544 = vshll.u32 %v1535, %v1542
        %v1545 = vshrl.u32 %v1527, %v1543
        %v1546 = vor.u32 %v1544, %v1545
        %v1547 = vsub.s32 4294967266, %v1542
        %v1548 = vadd.s32 %v1547, 127
        %v1549 = vshll.u32 %v1548, 23
        %v1550 = vor.u32 4788187, %v1549
        %v1551 = vand.u32 2147483647, %v1550
        %v1553 = vcvt.s32.f32 %v1546
        %v1554 = vmul.f32 %v1553, %v1551
        %v1555 = vxor.u32 %v1554, 2147483648
        %v1556 = vsel %vm1473, %v1555, %v1554
        %v1557 = vsub.s32 4, %v1533
        %v1558 = vsel %vm1473, %v1557, %v1533
        %v1559 = vsel %vm1472, %v1138, %v1556
        %v1560 = vsel %vm1472, 0, %v1558
        %v1561 = vcosq.f32.pop %v1559
        %v1562 = vsinq.f32.pop %v1559
        %vm1563 = vweird.f32 %v1138
        %v1564 = vadd.s32 %v1560, 3
        %v1565 = vand.u32 %v1564, 3
        %vm1566 = vcmp.lt.s32.totalorder %v1565, 2
        %vm1567 = vcmp.eq.s32.totalorder %v1565, 0
        %v1568 = vxor.u32 %v1562, 2147483648
        %v1569 = vsel %vm1567, %v1561, %v1568
        %vm1570 = vcmp.eq.s32.totalorder %v1565, 2
        %v1571 = vxor.u32 %v1561, 2147483648
        %v1572 = vsel %vm1570, %v1571, %v1562
        %v1573 = vsel %vm1566, %v1569, %v1572
        %v1574 = vsel %vm1563, nan, %v1573
        %v1575 = vand.u32 2147483647, %v1139
        %vm1576 = vcmp.le.f32.partialorder %v1575, 0.7853982
        %vm1577 = vcmp.lt.s32.totalorder %v1139, 0
        %v1578 = vand.u32 %v1139, 2139095040
        %v1579 = vshrl.u32 %v1578, 23
        %v1580 = vsub.s32 %v1579, 127
        %v1581 = vand.u32 2147483647, %v1139
        %v1582 = vand.u32 %v1581, 8388607
        %v1583 = vor.u32 %v1582, 8388608
        %v1584 = vsub.s32 0, %v1583
        %v1585 = vadd.s32 %v1580, 1
        %vm1586 = vcmp.gt.s32.totalorder %v1585, 0
        %v1587 = vsel %vm1586, %v1585, 0
        %v1588 = vshrl.u32 %v1587, 5
        %v1589 = vand.u32 %v1587, 31
        %v1590 = vsub.s32 32, %v1589
        %v1591 = vshrl.u32 683565275, %v1590
        %v1592 = vshll.u32 683565275, %v1589
        %v1593 = vshrl.u32 2475754826, %v1590
        %v1594 = vor.u32 %v1592, %v1593
        %v1595 = vshll.u32 2475754826, %v1589
        %v1596 = vshrl.u32 2131351028, %v1590
        %v1597 = vor.u32 %v1595, %v1596
        %v1598 = vshll.u32 2131351028, %v1589
        %v1599 = vshrl.u32 2102212464, %v1590
        %v1600 = vor.u32 %v1598, %v1599
        %v1601 = vshll.u32 2102212464, %v1589
        %v1602 = vshrl.u32 920167782, %v1590
        %v1603 = vor.u32 %v1601, %v1602
        %v1604 = vshll.u32 920167782, %v1589
        %v1605 = vshrl.u32 1326507024, %v1590
        %v1606 = vor.u32 %v1604, %v1605
        %vm1607 = vcmp.lt.s32.totalorder %v1588, 1
        %vm1608 = vcmp.lt.s32.totalorder %v1588, 2
        %vm1609 = vcmp.lt.s32.totalorder %v1588, 3
        %vm1610 = vcmp.lt.s32.totalorder %v1588, 4
        %v1611 = vsel %vm1607, %v1591, %v1594
        %v1612 = vsel %vm1610, %v1600, 2102212464
        %v1613 = vsel %vm1609, %v1597, %v1612
        %v1614 = vsel %vm1608, %v1611, %v1613
        %v1615 = vsel %vm1607, %v1594, %v1597
        %v1616 = vsel %vm1610, %v1603, 920167782
        %v1617 = vsel %vm1609, %v1600, %v1616
        %v1618 = vsel %vm1608, %v1615, %v1617
        %v1619 = vsel %vm1607, %v1597, %v1600
        %v1620 = vsel %vm1610, %v1606, 1326507024
        %v1621 = vsel %vm1609, %v1603, %v1620
        %v1622 = vsel %vm1608, %v1619, %v1621
        %v1623 = vshll.u32 %v1583, 8
        %v1624 = vmul.u32.u64.compose %v1623, %v1622
        %v1625 = vextract.low.u32 %v1624
        %v1626 = vextract.high.u32 %v1624
        %v1627 = vmul.u32.u64.compose %v1623, %v1618
        %v1628 = vextract.low.u32 %v1627
        %v1629 = vextract.high.u32 %v1627
        %v1630 = vmul.u32 %v1623, %v1614
        %v1631 = vadd.s32 %v1626, %v1628
        %vm1632 = vc.u32 %v1626, %v1628
        %v1633 = vadd.s32 %v1629, 1
        %v1634 = vsel %vm1632, %v1633, %v1629
        %v1635 = vadd.s32 %v1630, %v1634
        %v1636 = vadd.s32 %v1635, 536870912
        %v1637 = vshrl.u32 %v1636, 30
        %v1638 = vshll.u32 %v1637, 30
        %v1639 = vsub.s32 %v1635, %v1638
        %vm1640 = vcmp.lt.s32.totalorder %v1639, 0
        %v1641 = vsub.s32 0, %v1639
        %v1642 = vsel %vm1640, %v1641, %v1639
        %v1643 = vclz %v1642
        %v1644 = vsub.s32 %v1643, 2
        %vm1645 = vcmp.gt.s32.totalorder 0, %v1644
        %v1646 = vsel %vm1645, 0, %v1644
        %v1647 = vsub.s32 32, %v1646
        %v1648 = vshll.u32 %v1639, %v1646
        %v1649 = vshrl.u32 %v1631, %v1647
        %v1650 = vor.u32 %v1648, %v1649
        %v1651 = vsub.s32 4294967266, %v1646
        %v1652 = vadd.s32 %v1651, 127
        %v1653 = vshll.u32 %v1652, 23
        %v1654 = vor.u32 4788187, %v1653
        %v1655 = vand.u32 2147483647, %v1654
        %v1657 = vcvt.s32.f32 %v1650
        %v1658 = vmul.f32 %v1657, %v1655
        %v1659 = vxor.u32 %v1658, 2147483648
        %v1660 = vsel %vm1577, %v1659, %v1658
        %v1661 = vsub.s32 4, %v1637
        %v1662 = vsel %vm1577, %v1661, %v1637
        %v1663 = vsel %vm1576, %v1139, %v1660
        %v1664 = vsel %vm1576, 0, %v1662
        %v1665 = vcosq.f32.pop %v1663
        %v1666 = vsinq.f32.pop %v1663
        %vm1667 = vweird.f32 %v1139
        %v1668 = vadd.s32 %v1664, 3
        %v1669 = vand.u32 %v1668, 3
        %vm1670 = vcmp.lt.s32.totalorder %v1669, 2
        %vm1671 = vcmp.eq.s32.totalorder %v1669, 0
        %v1672 = vxor.u32 %v1666, 2147483648
        %v1673 = vsel %vm1671, %v1665, %v1672
        %vm1674 = vcmp.eq.s32.totalorder %v1669, 2
        %v1675 = vxor.u32 %v1665, 2147483648
        %v1676 = vsel %vm1674, %v1675, %v1666
        %v1677 = vsel %vm1670, %v1673, %v1676
        %v1678 = vsel %vm1667, nan, %v1677
        %v1679 = vand.u32 2147483647, %v1140
        %vm1680 = vcmp.le.f32.partialorder %v1679, 0.7853982
        %vm1681 = vcmp.lt.s32.totalorder %v1140, 0
        %v1682 = vand.u32 %v1140, 2139095040
        %v1683 = vshrl.u32 %v1682, 23
        %v1684 = vsub.s32 %v1683, 127
        %v1685 = vand.u32 2147483647, %v1140
        %v1686 = vand.u32 %v1685, 8388607
        %v1687 = vor.u32 %v1686, 8388608
        %v1688 = vsub.s32 0, %v1687
        %v1689 = vadd.s32 %v1684, 1
        %vm1690 = vcmp.gt.s32.totalorder %v1689, 0
        %v1691 = vsel %vm1690, %v1689, 0
        %v1692 = vshrl.u32 %v1691, 5
        %v1693 = vand.u32 %v1691, 31
        %v1694 = vsub.s32 32, %v1693
        %v1695 = vshrl.u32 683565275, %v1694
        %v1696 = vshll.u32 683565275, %v1693
        %v1697 = vshrl.u32 2475754826, %v1694
        %v1698 = vor.u32 %v1696, %v1697
        %v1699 = vshll.u32 2475754826, %v1693
        %v1700 = vshrl.u32 2131351028, %v1694
        %v1701 = vor.u32 %v1699, %v1700
        %v1702 = vshll.u32 2131351028, %v1693
        %v1703 = vshrl.u32 2102212464, %v1694
        %v1704 = vor.u32 %v1702, %v1703
        %v1705 = vshll.u32 2102212464, %v1693
        %v1706 = vshrl.u32 920167782, %v1694
        %v1707 = vor.u32 %v1705, %v1706
        %v1708 = vshll.u32 920167782, %v1693
        %v1709 = vshrl.u32 1326507024, %v1694
        %v1710 = vor.u32 %v1708, %v1709
        %vm1711 = vcmp.lt.s32.totalorder %v1692, 1
        %vm1712 = vcmp.lt.s32.totalorder %v1692, 2
        %vm1713 = vcmp.lt.s32.totalorder %v1692, 3
        %vm1714 = vcmp.lt.s32.totalorder %v1692, 4
        %v1715 = vsel %vm1711, %v1695, %v1698
        %v1716 = vsel %vm1714, %v1704, 2102212464
        %v1717 = vsel %vm1713, %v1701, %v1716
        %v1718 = vsel %vm1712, %v1715, %v1717
        %v1719 = vsel %vm1711, %v1698, %v1701
        %v1720 = vsel %vm1714, %v1707, 920167782
        %v1721 = vsel %vm1713, %v1704, %v1720
        %v1722 = vsel %vm1712, %v1719, %v1721
        %v1723 = vsel %vm1711, %v1701, %v1704
        %v1724 = vsel %vm1714, %v1710, 1326507024
        %v1725 = vsel %vm1713, %v1707, %v1724
        %v1726 = vsel %vm1712, %v1723, %v1725
        %v1727 = vshll.u32 %v1687, 8
        %v1728 = vmul.u32.u64.compose %v1727, %v1726
        %v1729 = vextract.low.u32 %v1728
        %v1730 = vextract.high.u32 %v1728
        %v1731 = vmul.u32.u64.compose %v1727, %v1722
        %v1732 = vextract.low.u32 %v1731
        %v1733 = vextract.high.u32 %v1731
        %v1734 = vmul.u32 %v1727, %v1718
        %v1735 = vadd.s32 %v1730, %v1732
        %vm1736 = vc.u32 %v1730, %v1732
        %v1737 = vadd.s32 %v1733, 1
        %v1738 = vsel %vm1736, %v1737, %v1733
        %v1739 = vadd.s32 %v1734, %v1738
        %v1740 = vadd.s32 %v1739, 536870912
        %v1741 = vshrl.u32 %v1740, 30
        %v1742 = vshll.u32 %v1741, 30
        %v1743 = vsub.s32 %v1739, %v1742
        %vm1744 = vcmp.lt.s32.totalorder %v1743, 0
        %v1745 = vsub.s32 0, %v1743
        %v1746 = vsel %vm1744, %v1745, %v1743
        %v1747 = vclz %v1746
        %v1748 = vsub.s32 %v1747, 2
        %vm1749 = vcmp.gt.s32.totalorder 0, %v1748
        %v1750 = vsel %vm1749, 0, %v1748
        %v1751 = vsub.s32 32, %v1750
        %v1752 = vshll.u32 %v1743, %v1750
        %v1753 = vshrl.u32 %v1735, %v1751
        %v1754 = vor.u32 %v1752, %v1753
        %v1755 = vsub.s32 4294967266, %v1750
        %v1756 = vadd.s32 %v1755, 127
        %v1757 = vshll.u32 %v1756, 23
        %v1758 = vor.u32 4788187, %v1757
        %v1759 = vand.u32 2147483647, %v1758
        %v1761 = vcvt.s32.f32 %v1754
        %v1762 = vmul.f32 %v1761, %v1759
        %v1763 = vxor.u32 %v1762, 2147483648
        %v1764 = vsel %vm1681, %v1763, %v1762
        %v1765 = vsub.s32 4, %v1741
        %v1766 = vsel %vm1681, %v1765, %v1741
        %v1767 = vsel %vm1680, %v1140, %v1764
        %v1768 = vsel %vm1680, 0, %v1766
        %v1769 = vcosq.f32.pop %v1767
        %v1770 = vsinq.f32.pop %v1767
        %vm1771 = vweird.f32 %v1140
        %v1772 = vadd.s32 %v1768, 3
        %v1773 = vand.u32 %v1772, 3
        %vm1774 = vcmp.lt.s32.totalorder %v1773, 2
        %vm1775 = vcmp.eq.s32.totalorder %v1773, 0
        %v1776 = vxor.u32 %v1770, 2147483648
        %v1777 = vsel %vm1775, %v1769, %v1776
        %vm1778 = vcmp.eq.s32.totalorder %v1773, 2
        %v1779 = vxor.u32 %v1769, 2147483648
        %v1780 = vsel %vm1778, %v1779, %v1770
        %v1781 = vsel %vm1774, %v1777, %v1780
        %v1782 = vsel %vm1771, nan, %v1781
        %v1783 = vand.u32 2147483647, %v1141
        %vm1784 = vcmp.le.f32.partialorder %v1783, 0.7853982
        %vm1785 = vcmp.lt.s32.totalorder %v1141, 0
        %v1786 = vand.u32 %v1141, 2139095040
        %v1787 = vshrl.u32 %v1786, 23
        %v1788 = vsub.s32 %v1787, 127
        %v1789 = vand.u32 2147483647, %v1141
        %v1790 = vand.u32 %v1789, 8388607
        %v1791 = vor.u32 %v1790, 8388608
        %v1792 = vsub.s32 0, %v1791
        %v1793 = vadd.s32 %v1788, 1
        %vm1794 = vcmp.gt.s32.totalorder %v1793, 0
        %v1795 = vsel %vm1794, %v1793, 0
        %v1796 = vshrl.u32 %v1795, 5
        %v1797 = vand.u32 %v1795, 31
        %v1798 = vsub.s32 32, %v1797
        %v1799 = vshrl.u32 683565275, %v1798
        %v1800 = vshll.u32 683565275, %v1797
        %v1801 = vshrl.u32 2475754826, %v1798
        %v1802 = vor.u32 %v1800, %v1801
        %v1803 = vshll.u32 2475754826, %v1797
        %v1804 = vshrl.u32 2131351028, %v1798
        %v1805 = vor.u32 %v1803, %v1804
        %v1806 = vshll.u32 2131351028, %v1797
        %v1807 = vshrl.u32 2102212464, %v1798
        %v1808 = vor.u32 %v1806, %v1807
        %v1809 = vshll.u32 2102212464, %v1797
        %v1810 = vshrl.u32 920167782, %v1798
        %v1811 = vor.u32 %v1809, %v1810
        %v1812 = vshll.u32 920167782, %v1797
        %v1813 = vshrl.u32 1326507024, %v1798
        %v1814 = vor.u32 %v1812, %v1813
        %vm1815 = vcmp.lt.s32.totalorder %v1796, 1
        %vm1816 = vcmp.lt.s32.totalorder %v1796, 2
        %vm1817 = vcmp.lt.s32.totalorder %v1796, 3
        %vm1818 = vcmp.lt.s32.totalorder %v1796, 4
        %v1819 = vsel %vm1815, %v1799, %v1802
        %v1820 = vsel %vm1818, %v1808, 2102212464
        %v1821 = vsel %vm1817, %v1805, %v1820
        %v1822 = vsel %vm1816, %v1819, %v1821
        %v1823 = vsel %vm1815, %v1802, %v1805
        %v1824 = vsel %vm1818, %v1811, 920167782
        %v1825 = vsel %vm1817, %v1808, %v1824
        %v1826 = vsel %vm1816, %v1823, %v1825
        %v1827 = vsel %vm1815, %v1805, %v1808
        %v1828 = vsel %vm1818, %v1814, 1326507024
        %v1829 = vsel %vm1817, %v1811, %v1828
        %v1830 = vsel %vm1816, %v1827, %v1829
        %v1831 = vshll.u32 %v1791, 8
        %v1832 = vmul.u32.u64.compose %v1831, %v1830
        %v1833 = vextract.low.u32 %v1832
        %v1834 = vextract.high.u32 %v1832
        %v1835 = vmul.u32.u64.compose %v1831, %v1826
        %v1836 = vextract.low.u32 %v1835
        %v1837 = vextract.high.u32 %v1835
        %v1838 = vmul.u32 %v1831, %v1822
        %v1839 = vadd.s32 %v1834, %v1836
        %vm1840 = vc.u32 %v1834, %v1836
        %v1841 = vadd.s32 %v1837, 1
        %v1842 = vsel %vm1840, %v1841, %v1837
        %v1843 = vadd.s32 %v1838, %v1842
        %v1844 = vadd.s32 %v1843, 536870912
        %v1845 = vshrl.u32 %v1844, 30
        %v1846 = vshll.u32 %v1845, 30
        %v1847 = vsub.s32 %v1843, %v1846
        %vm1848 = vcmp.lt.s32.totalorder %v1847, 0
        %v1849 = vsub.s32 0, %v1847
        %v1850 = vsel %vm1848, %v1849, %v1847
        %v1851 = vclz %v1850
        %v1852 = vsub.s32 %v1851, 2
        %vm1853 = vcmp.gt.s32.totalorder 0, %v1852
        %v1854 = vsel %vm1853, 0, %v1852
        %v1855 = vsub.s32 32, %v1854
        %v1856 = vshll.u32 %v1847, %v1854
        %v1857 = vshrl.u32 %v1839, %v1855
        %v1858 = vor.u32 %v1856, %v1857
        %v1859 = vsub.s32 4294967266, %v1854
        %v1860 = vadd.s32 %v1859, 127
        %v1861 = vshll.u32 %v1860, 23
        %v1862 = vor.u32 4788187, %v1861
        %v1863 = vand.u32 2147483647, %v1862
        %v1865 = vcvt.s32.f32 %v1858
        %v1866 = vmul.f32 %v1865, %v1863
        %v1867 = vxor.u32 %v1866, 2147483648
        %v1868 = vsel %vm1785, %v1867, %v1866
        %v1869 = vsub.s32 4, %v1845
        %v1870 = vsel %vm1785, %v1869, %v1845
        %v1871 = vsel %vm1784, %v1141, %v1868
        %v1872 = vsel %vm1784, 0, %v1870
        %v1873 = vcosq.f32.pop %v1871
        %v1874 = vsinq.f32.pop %v1871
        %vm1875 = vweird.f32 %v1141
        %v1876 = vadd.s32 %v1872, 3
        %v1877 = vand.u32 %v1876, 3
        %vm1878 = vcmp.lt.s32.totalorder %v1877, 2
        %vm1879 = vcmp.eq.s32.totalorder %v1877, 0
        %v1880 = vxor.u32 %v1874, 2147483648
        %v1881 = vsel %vm1879, %v1873, %v1880
        %vm1882 = vcmp.eq.s32.totalorder %v1877, 2
        %v1883 = vxor.u32 %v1873, 2147483648
        %v1884 = vsel %vm1882, %v1883, %v1874
        %v1885 = vsel %vm1878, %v1881, %v1884
        %v1886 = vsel %vm1875, nan, %v1885
        %v1887 = vand.u32 2147483647, %v1142
        %vm1888 = vcmp.le.f32.partialorder %v1887, 0.7853982
        %vm1889 = vcmp.lt.s32.totalorder %v1142, 0
        %v1890 = vand.u32 %v1142, 2139095040
        %v1891 = vshrl.u32 %v1890, 23
        %v1892 = vsub.s32 %v1891, 127
        %v1893 = vand.u32 2147483647, %v1142
        %v1894 = vand.u32 %v1893, 8388607
        %v1895 = vor.u32 %v1894, 8388608
        %v1896 = vsub.s32 0, %v1895
        %v1897 = vadd.s32 %v1892, 1
        %vm1898 = vcmp.gt.s32.totalorder %v1897, 0
        %v1899 = vsel %vm1898, %v1897, 0
        %v1900 = vshrl.u32 %v1899, 5
        %v1901 = vand.u32 %v1899, 31
        %v1902 = vsub.s32 32, %v1901
        %v1903 = vshrl.u32 683565275, %v1902
        %v1904 = vshll.u32 683565275, %v1901
        %v1905 = vshrl.u32 2475754826, %v1902
        %v1906 = vor.u32 %v1904, %v1905
        %v1907 = vshll.u32 2475754826, %v1901
        %v1908 = vshrl.u32 2131351028, %v1902
        %v1909 = vor.u32 %v1907, %v1908
        %v1910 = vshll.u32 2131351028, %v1901
        %v1911 = vshrl.u32 2102212464, %v1902
        %v1912 = vor.u32 %v1910, %v1911
        %v1913 = vshll.u32 2102212464, %v1901
        %v1914 = vshrl.u32 920167782, %v1902
        %v1915 = vor.u32 %v1913, %v1914
        %v1916 = vshll.u32 920167782, %v1901
        %v1917 = vshrl.u32 1326507024, %v1902
        %v1918 = vor.u32 %v1916, %v1917
        %vm1919 = vcmp.lt.s32.totalorder %v1900, 1
        %vm1920 = vcmp.lt.s32.totalorder %v1900, 2
        %vm1921 = vcmp.lt.s32.totalorder %v1900, 3
        %vm1922 = vcmp.lt.s32.totalorder %v1900, 4
        %v1923 = vsel %vm1919, %v1903, %v1906
        %v1924 = vsel %vm1922, %v1912, 2102212464
        %v1925 = vsel %vm1921, %v1909, %v1924
        %v1926 = vsel %vm1920, %v1923, %v1925
        %v1927 = vsel %vm1919, %v1906, %v1909
        %v1928 = vsel %vm1922, %v1915, 920167782
        %v1929 = vsel %vm1921, %v1912, %v1928
        %v1930 = vsel %vm1920, %v1927, %v1929
        %v1931 = vsel %vm1919, %v1909, %v1912
        %v1932 = vsel %vm1922, %v1918, 1326507024
        %v1933 = vsel %vm1921, %v1915, %v1932
        %v1934 = vsel %vm1920, %v1931, %v1933
        %v1935 = vshll.u32 %v1895, 8
        %v1936 = vmul.u32.u64.compose %v1935, %v1934
        %v1937 = vextract.low.u32 %v1936
        %v1938 = vextract.high.u32 %v1936
        %v1939 = vmul.u32.u64.compose %v1935, %v1930
        %v1940 = vextract.low.u32 %v1939
        %v1941 = vextract.high.u32 %v1939
        %v1942 = vmul.u32 %v1935, %v1926
        %v1943 = vadd.s32 %v1938, %v1940
        %vm1944 = vc.u32 %v1938, %v1940
        %v1945 = vadd.s32 %v1941, 1
        %v1946 = vsel %vm1944, %v1945, %v1941
        %v1947 = vadd.s32 %v1942, %v1946
        %v1948 = vadd.s32 %v1947, 536870912
        %v1949 = vshrl.u32 %v1948, 30
        %v1950 = vshll.u32 %v1949, 30
        %v1951 = vsub.s32 %v1947, %v1950
        %vm1952 = vcmp.lt.s32.totalorder %v1951, 0
        %v1953 = vsub.s32 0, %v1951
        %v1954 = vsel %vm1952, %v1953, %v1951
        %v1955 = vclz %v1954
        %v1956 = vsub.s32 %v1955, 2
        %vm1957 = vcmp.gt.s32.totalorder 0, %v1956
        %v1958 = vsel %vm1957, 0, %v1956
        %v1959 = vsub.s32 32, %v1958
        %v1960 = vshll.u32 %v1951, %v1958
        %v1961 = vshrl.u32 %v1943, %v1959
        %v1962 = vor.u32 %v1960, %v1961
        %v1963 = vsub.s32 4294967266, %v1958
        %v1964 = vadd.s32 %v1963, 127
        %v1965 = vshll.u32 %v1964, 23
        %v1966 = vor.u32 4788187, %v1965
        %v1967 = vand.u32 2147483647, %v1966
        %v1969 = vcvt.s32.f32 %v1962
        %v1970 = vmul.f32 %v1969, %v1967
        %v1971 = vxor.u32 %v1970, 2147483648
        %v1972 = vsel %vm1889, %v1971, %v1970
        %v1973 = vsub.s32 4, %v1949
        %v1974 = vsel %vm1889, %v1973, %v1949
        %v1975 = vsel %vm1888, %v1142, %v1972
        %v1976 = vsel %vm1888, 0, %v1974
        %v1977 = vcosq.f32.pop %v1975
        %v1978 = vsinq.f32.pop %v1975
        %vm1979 = vweird.f32 %v1142
        %v1980 = vadd.s32 %v1976, 3
        %v1981 = vand.u32 %v1980, 3
        %vm1982 = vcmp.lt.s32.totalorder %v1981, 2
        %vm1983 = vcmp.eq.s32.totalorder %v1981, 0
        %v1984 = vxor.u32 %v1978, 2147483648
        %v1985 = vsel %vm1983, %v1977, %v1984
        %vm1986 = vcmp.eq.s32.totalorder %v1981, 2
        %v1987 = vxor.u32 %v1977, 2147483648
        %v1988 = vsel %vm1986, %v1987, %v1978
        %v1989 = vsel %vm1982, %v1985, %v1988
        %v1990 = vsel %vm1979, nan, %v1989
        %v1991 = vand.u32 2147483647, %v1143
        %vm1992 = vcmp.le.f32.partialorder %v1991, 0.7853982
        %vm1993 = vcmp.lt.s32.totalorder %v1143, 0
        %v1994 = vand.u32 %v1143, 2139095040
        %v1995 = vshrl.u32 %v1994, 23
        %v1996 = vsub.s32 %v1995, 127
        %v1997 = vand.u32 2147483647, %v1143
        %v1998 = vand.u32 %v1997, 8388607
        %v1999 = vor.u32 %v1998, 8388608
        %v2000 = vsub.s32 0, %v1999
        %v2001 = vadd.s32 %v1996, 1
        %vm2002 = vcmp.gt.s32.totalorder %v2001, 0
        %v2003 = vsel %vm2002, %v2001, 0
        %v2004 = vshrl.u32 %v2003, 5
        %v2005 = vand.u32 %v2003, 31
        %v2006 = vsub.s32 32, %v2005
        %v2007 = vshrl.u32 683565275, %v2006
        %v2008 = vshll.u32 683565275, %v2005
        %v2009 = vshrl.u32 2475754826, %v2006
        %v2010 = vor.u32 %v2008, %v2009
        %v2011 = vshll.u32 2475754826, %v2005
        %v2012 = vshrl.u32 2131351028, %v2006
        %v2013 = vor.u32 %v2011, %v2012
        %v2014 = vshll.u32 2131351028, %v2005
        %v2015 = vshrl.u32 2102212464, %v2006
        %v2016 = vor.u32 %v2014, %v2015
        %v2017 = vshll.u32 2102212464, %v2005
        %v2018 = vshrl.u32 920167782, %v2006
        %v2019 = vor.u32 %v2017, %v2018
        %v2020 = vshll.u32 920167782, %v2005
        %v2021 = vshrl.u32 1326507024, %v2006
        %v2022 = vor.u32 %v2020, %v2021
        %vm2023 = vcmp.lt.s32.totalorder %v2004, 1
        %vm2024 = vcmp.lt.s32.totalorder %v2004, 2
        %vm2025 = vcmp.lt.s32.totalorder %v2004, 3
        %vm2026 = vcmp.lt.s32.totalorder %v2004, 4
        %v2027 = vsel %vm2023, %v2007, %v2010
        %v2028 = vsel %vm2026, %v2016, 2102212464
        %v2029 = vsel %vm2025, %v2013, %v2028
        %v2030 = vsel %vm2024, %v2027, %v2029
        %v2031 = vsel %vm2023, %v2010, %v2013
        %v2032 = vsel %vm2026, %v2019, 920167782
        %v2033 = vsel %vm2025, %v2016, %v2032
        %v2034 = vsel %vm2024, %v2031, %v2033
        %v2035 = vsel %vm2023, %v2013, %v2016
        %v2036 = vsel %vm2026, %v2022, 1326507024
        %v2037 = vsel %vm2025, %v2019, %v2036
        %v2038 = vsel %vm2024, %v2035, %v2037
        %v2039 = vshll.u32 %v1999, 8
        %v2040 = vmul.u32.u64.compose %v2039, %v2038
        %v2041 = vextract.low.u32 %v2040
        %v2042 = vextract.high.u32 %v2040
        %v2043 = vmul.u32.u64.compose %v2039, %v2034
        %v2044 = vextract.low.u32 %v2043
        %v2045 = vextract.high.u32 %v2043
        %v2046 = vmul.u32 %v2039, %v2030
        %v2047 = vadd.s32 %v2042, %v2044
        %vm2048 = vc.u32 %v2042, %v2044
        %v2049 = vadd.s32 %v2045, 1
        %v2050 = vsel %vm2048, %v2049, %v2045
        %v2051 = vadd.s32 %v2046, %v2050
        %v2052 = vadd.s32 %v2051, 536870912
        %v2053 = vshrl.u32 %v2052, 30
        %v2054 = vshll.u32 %v2053, 30
        %v2055 = vsub.s32 %v2051, %v2054
        %vm2056 = vcmp.lt.s32.totalorder %v2055, 0
        %v2057 = vsub.s32 0, %v2055
        %v2058 = vsel %vm2056, %v2057, %v2055
        %v2059 = vclz %v2058
        %v2060 = vsub.s32 %v2059, 2
        %vm2061 = vcmp.gt.s32.totalorder 0, %v2060
        %v2062 = vsel %vm2061, 0, %v2060
        %v2063 = vsub.s32 32, %v2062
        %v2064 = vshll.u32 %v2055, %v2062
        %v2065 = vshrl.u32 %v2047, %v2063
        %v2066 = vor.u32 %v2064, %v2065
        %v2067 = vsub.s32 4294967266, %v2062
        %v2068 = vadd.s32 %v2067, 127
        %v2069 = vshll.u32 %v2068, 23
        %v2070 = vor.u32 4788187, %v2069
        %v2071 = vand.u32 2147483647, %v2070
        %v2073 = vcvt.s32.f32 %v2066
        %v2074 = vmul.f32 %v2073, %v2071
        %v2075 = vxor.u32 %v2074, 2147483648
        %v2076 = vsel %vm1993, %v2075, %v2074
        %v2077 = vsub.s32 4, %v2053
        %v2078 = vsel %vm1993, %v2077, %v2053
        %v2079 = vsel %vm1992, %v1143, %v2076
        %v2080 = vsel %vm1992, 0, %v2078
        %v2081 = vcosq.f32.pop %v2079
        %v2082 = vsinq.f32.pop %v2079
        %vm2083 = vweird.f32 %v1143
        %v2084 = vadd.s32 %v2080, 3
        %v2085 = vand.u32 %v2084, 3
        %vm2086 = vcmp.lt.s32.totalorder %v2085, 2
        %vm2087 = vcmp.eq.s32.totalorder %v2085, 0
        %v2088 = vxor.u32 %v2082, 2147483648
        %v2089 = vsel %vm2087, %v2081, %v2088
        %vm2090 = vcmp.eq.s32.totalorder %v2085, 2
        %v2091 = vxor.u32 %v2081, 2147483648
        %v2092 = vsel %vm2090, %v2091, %v2082
        %v2093 = vsel %vm2086, %v2089, %v2092
        %v2094 = vsel %vm2083, nan, %v2093
        %v2095 = vand.u32 2147483647, %v1144
        %vm2096 = vcmp.le.f32.partialorder %v2095, 0.7853982
        %vm2097 = vcmp.lt.s32.totalorder %v1144, 0
        %v2098 = vand.u32 %v1144, 2139095040
        %v2099 = vshrl.u32 %v2098, 23
        %v2100 = vsub.s32 %v2099, 127
        %v2101 = vand.u32 2147483647, %v1144
        %v2102 = vand.u32 %v2101, 8388607
        %v2103 = vor.u32 %v2102, 8388608
        %v2104 = vsub.s32 0, %v2103
        %v2105 = vadd.s32 %v2100, 1
        %vm2106 = vcmp.gt.s32.totalorder %v2105, 0
        %v2107 = vsel %vm2106, %v2105, 0
        %v2108 = vshrl.u32 %v2107, 5
        %v2109 = vand.u32 %v2107, 31
        %v2110 = vsub.s32 32, %v2109
        %v2111 = vshrl.u32 683565275, %v2110
        %v2112 = vshll.u32 683565275, %v2109
        %v2113 = vshrl.u32 2475754826, %v2110
        %v2114 = vor.u32 %v2112, %v2113
        %v2115 = vshll.u32 2475754826, %v2109
        %v2116 = vshrl.u32 2131351028, %v2110
        %v2117 = vor.u32 %v2115, %v2116
        %v2118 = vshll.u32 2131351028, %v2109
        %v2119 = vshrl.u32 2102212464, %v2110
        %v2120 = vor.u32 %v2118, %v2119
        %v2121 = vshll.u32 2102212464, %v2109
        %v2122 = vshrl.u32 920167782, %v2110
        %v2123 = vor.u32 %v2121, %v2122
        %v2124 = vshll.u32 920167782, %v2109
        %v2125 = vshrl.u32 1326507024, %v2110
        %v2126 = vor.u32 %v2124, %v2125
        %vm2127 = vcmp.lt.s32.totalorder %v2108, 1
        %vm2128 = vcmp.lt.s32.totalorder %v2108, 2
        %vm2129 = vcmp.lt.s32.totalorder %v2108, 3
        %vm2130 = vcmp.lt.s32.totalorder %v2108, 4
        %v2131 = vsel %vm2127, %v2111, %v2114
        %v2132 = vsel %vm2130, %v2120, 2102212464
        %v2133 = vsel %vm2129, %v2117, %v2132
        %v2134 = vsel %vm2128, %v2131, %v2133
        %v2135 = vsel %vm2127, %v2114, %v2117
        %v2136 = vsel %vm2130, %v2123, 920167782
        %v2137 = vsel %vm2129, %v2120, %v2136
        %v2138 = vsel %vm2128, %v2135, %v2137
        %v2139 = vsel %vm2127, %v2117, %v2120
        %v2140 = vsel %vm2130, %v2126, 1326507024
        %v2141 = vsel %vm2129, %v2123, %v2140
        %v2142 = vsel %vm2128, %v2139, %v2141
        %v2143 = vshll.u32 %v2103, 8
        %v2144 = vmul.u32.u64.compose %v2143, %v2142
        %v2145 = vextract.low.u32 %v2144
        %v2146 = vextract.high.u32 %v2144
        %v2147 = vmul.u32.u64.compose %v2143, %v2138
        %v2148 = vextract.low.u32 %v2147
        %v2149 = vextract.high.u32 %v2147
        %v2150 = vmul.u32 %v2143, %v2134
        %v2151 = vadd.s32 %v2146, %v2148
        %vm2152 = vc.u32 %v2146, %v2148
        %v2153 = vadd.s32 %v2149, 1
        %v2154 = vsel %vm2152, %v2153, %v2149
        %v2155 = vadd.s32 %v2150, %v2154
        %v2156 = vadd.s32 %v2155, 536870912
        %v2157 = vshrl.u32 %v2156, 30
        %v2158 = vshll.u32 %v2157, 30
        %v2159 = vsub.s32 %v2155, %v2158
        %vm2160 = vcmp.lt.s32.totalorder %v2159, 0
        %v2161 = vsub.s32 0, %v2159
        %v2162 = vsel %vm2160, %v2161, %v2159
        %v2163 = vclz %v2162
        %v2164 = vsub.s32 %v2163, 2
        %vm2165 = vcmp.gt.s32.totalorder 0, %v2164
        %v2166 = vsel %vm2165, 0, %v2164
        %v2167 = vsub.s32 32, %v2166
        %v2168 = vshll.u32 %v2159, %v2166
        %v2169 = vshrl.u32 %v2151, %v2167
        %v2170 = vor.u32 %v2168, %v2169
        %v2171 = vsub.s32 4294967266, %v2166
        %v2172 = vadd.s32 %v2171, 127
        %v2173 = vshll.u32 %v2172, 23
        %v2174 = vor.u32 4788187, %v2173
        %v2175 = vand.u32 2147483647, %v2174
        %v2177 = vcvt.s32.f32 %v2170
        %v2178 = vmul.f32 %v2177, %v2175
        %v2179 = vxor.u32 %v2178, 2147483648
        %v2180 = vsel %vm2097, %v2179, %v2178
        %v2181 = vsub.s32 4, %v2157
        %v2182 = vsel %vm2097, %v2181, %v2157
        %v2183 = vsel %vm2096, %v1144, %v2180
        %v2184 = vsel %vm2096, 0, %v2182
        %v2185 = vcosq.f32.pop %v2183
        %v2186 = vsinq.f32.pop %v2183
        %vm2187 = vweird.f32 %v1144
        %v2188 = vadd.s32 %v2184, 3
        %v2189 = vand.u32 %v2188, 3
        %vm2190 = vcmp.lt.s32.totalorder %v2189, 2
        %vm2191 = vcmp.eq.s32.totalorder %v2189, 0
        %v2192 = vxor.u32 %v2186, 2147483648
        %v2193 = vsel %vm2191, %v2185, %v2192
        %vm2194 = vcmp.eq.s32.totalorder %v2189, 2
        %v2195 = vxor.u32 %v2185, 2147483648
        %v2196 = vsel %vm2194, %v2195, %v2186
        %v2197 = vsel %vm2190, %v2193, %v2196
        %v2198 = vsel %vm2187, nan, %v2197
        %v2199 = vand.u32 2147483647, %v1145
        %vm2200 = vcmp.le.f32.partialorder %v2199, 0.7853982
        %vm2201 = vcmp.lt.s32.totalorder %v1145, 0
        %v2202 = vand.u32 %v1145, 2139095040
        %v2203 = vshrl.u32 %v2202, 23
        %v2204 = vsub.s32 %v2203, 127
        %v2205 = vand.u32 2147483647, %v1145
        %v2206 = vand.u32 %v2205, 8388607
        %v2207 = vor.u32 %v2206, 8388608
        %v2208 = vsub.s32 0, %v2207
        %v2209 = vadd.s32 %v2204, 1
        %vm2210 = vcmp.gt.s32.totalorder %v2209, 0
        %v2211 = vsel %vm2210, %v2209, 0
        %v2212 = vshrl.u32 %v2211, 5
        %v2213 = vand.u32 %v2211, 31
        %v2214 = vsub.s32 32, %v2213
        %v2215 = vshrl.u32 683565275, %v2214
        %v2216 = vshll.u32 683565275, %v2213
        %v2217 = vshrl.u32 2475754826, %v2214
        %v2218 = vor.u32 %v2216, %v2217
        %v2219 = vshll.u32 2475754826, %v2213
        %v2220 = vshrl.u32 2131351028, %v2214
        %v2221 = vor.u32 %v2219, %v2220
        %v2222 = vshll.u32 2131351028, %v2213
        %v2223 = vshrl.u32 2102212464, %v2214
        %v2224 = vor.u32 %v2222, %v2223
        %v2225 = vshll.u32 2102212464, %v2213
        %v2226 = vshrl.u32 920167782, %v2214
        %v2227 = vor.u32 %v2225, %v2226
        %v2228 = vshll.u32 920167782, %v2213
        %v2229 = vshrl.u32 1326507024, %v2214
        %v2230 = vor.u32 %v2228, %v2229
        %vm2231 = vcmp.lt.s32.totalorder %v2212, 1
        %vm2232 = vcmp.lt.s32.totalorder %v2212, 2
        %vm2233 = vcmp.lt.s32.totalorder %v2212, 3
        %vm2234 = vcmp.lt.s32.totalorder %v2212, 4
        %v2235 = vsel %vm2231, %v2215, %v2218
        %v2236 = vsel %vm2234, %v2224, 2102212464
        %v2237 = vsel %vm2233, %v2221, %v2236
        %v2238 = vsel %vm2232, %v2235, %v2237
        %v2239 = vsel %vm2231, %v2218, %v2221
        %v2240 = vsel %vm2234, %v2227, 920167782
        %v2241 = vsel %vm2233, %v2224, %v2240
        %v2242 = vsel %vm2232, %v2239, %v2241
        %v2243 = vsel %vm2231, %v2221, %v2224
        %v2244 = vsel %vm2234, %v2230, 1326507024
        %v2245 = vsel %vm2233, %v2227, %v2244
        %v2246 = vsel %vm2232, %v2243, %v2245
        %v2247 = vshll.u32 %v2207, 8
        %v2248 = vmul.u32.u64.compose %v2247, %v2246
        %v2249 = vextract.low.u32 %v2248
        %v2250 = vextract.high.u32 %v2248
        %v2251 = vmul.u32.u64.compose %v2247, %v2242
        %v2252 = vextract.low.u32 %v2251
        %v2253 = vextract.high.u32 %v2251
        %v2254 = vmul.u32 %v2247, %v2238
        %v2255 = vadd.s32 %v2250, %v2252
        %vm2256 = vc.u32 %v2250, %v2252
        %v2257 = vadd.s32 %v2253, 1
        %v2258 = vsel %vm2256, %v2257, %v2253
        %v2259 = vadd.s32 %v2254, %v2258
        %v2260 = vadd.s32 %v2259, 536870912
        %v2261 = vshrl.u32 %v2260, 30
        %v2262 = vshll.u32 %v2261, 30
        %v2263 = vsub.s32 %v2259, %v2262
        %vm2264 = vcmp.lt.s32.totalorder %v2263, 0
        %v2265 = vsub.s32 0, %v2263
        %v2266 = vsel %vm2264, %v2265, %v2263
        %v2267 = vclz %v2266
        %v2268 = vsub.s32 %v2267, 2
        %vm2269 = vcmp.gt.s32.totalorder 0, %v2268
        %v2270 = vsel %vm2269, 0, %v2268
        %v2271 = vsub.s32 32, %v2270
        %v2272 = vshll.u32 %v2263, %v2270
        %v2273 = vshrl.u32 %v2255, %v2271
        %v2274 = vor.u32 %v2272, %v2273
        %v2275 = vsub.s32 4294967266, %v2270
        %v2276 = vadd.s32 %v2275, 127
        %v2277 = vshll.u32 %v2276, 23
        %v2278 = vor.u32 4788187, %v2277
        %v2279 = vand.u32 2147483647, %v2278
        %v2281 = vcvt.s32.f32 %v2274
        %v2282 = vmul.f32 %v2281, %v2279
        %v2283 = vxor.u32 %v2282, 2147483648
        %v2284 = vsel %vm2201, %v2283, %v2282
        %v2285 = vsub.s32 4, %v2261
        %v2286 = vsel %vm2201, %v2285, %v2261
        %v2287 = vsel %vm2200, %v1145, %v2284
        %v2288 = vsel %vm2200, 0, %v2286
        %v2289 = vcosq.f32.pop %v2287
        %v2290 = vsinq.f32.pop %v2287
        %vm2291 = vweird.f32 %v1145
        %v2292 = vadd.s32 %v2288, 3
        %v2293 = vand.u32 %v2292, 3
        %vm2294 = vcmp.lt.s32.totalorder %v2293, 2
        %vm2295 = vcmp.eq.s32.totalorder %v2293, 0
        %v2296 = vxor.u32 %v2290, 2147483648
        %v2297 = vsel %vm2295, %v2289, %v2296
        %vm2298 = vcmp.eq.s32.totalorder %v2293, 2
        %v2299 = vxor.u32 %v2289, 2147483648
        %v2300 = vsel %vm2298, %v2299, %v2290
        %v2301 = vsel %vm2294, %v2297, %v2300
        %v2302 = vsel %vm2291, nan, %v2301
        %v2303 = vand.u32 2147483647, %v1146
        %vm2304 = vcmp.le.f32.partialorder %v2303, 0.7853982
        %vm2305 = vcmp.lt.s32.totalorder %v1146, 0
        %v2306 = vand.u32 %v1146, 2139095040
        %v2307 = vshrl.u32 %v2306, 23
        %v2308 = vsub.s32 %v2307, 127
        %v2309 = vand.u32 2147483647, %v1146
        %v2310 = vand.u32 %v2309, 8388607
        %v2311 = vor.u32 %v2310, 8388608
        %v2312 = vsub.s32 0, %v2311
        %v2313 = vadd.s32 %v2308, 1
        %vm2314 = vcmp.gt.s32.totalorder %v2313, 0
        %v2315 = vsel %vm2314, %v2313, 0
        %v2316 = vshrl.u32 %v2315, 5
        %v2317 = vand.u32 %v2315, 31
        %v2318 = vsub.s32 32, %v2317
        %v2319 = vshrl.u32 683565275, %v2318
        %v2320 = vshll.u32 683565275, %v2317
        %v2321 = vshrl.u32 2475754826, %v2318
        %v2322 = vor.u32 %v2320, %v2321
        %v2323 = vshll.u32 2475754826, %v2317
        %v2324 = vshrl.u32 2131351028, %v2318
        %v2325 = vor.u32 %v2323, %v2324
        %v2326 = vshll.u32 2131351028, %v2317
        %v2327 = vshrl.u32 2102212464, %v2318
        %v2328 = vor.u32 %v2326, %v2327
        %v2329 = vshll.u32 2102212464, %v2317
        %v2330 = vshrl.u32 920167782, %v2318
        %v2331 = vor.u32 %v2329, %v2330
        %v2332 = vshll.u32 920167782, %v2317
        %v2333 = vshrl.u32 1326507024, %v2318
        %v2334 = vor.u32 %v2332, %v2333
        %vm2335 = vcmp.lt.s32.totalorder %v2316, 1
        %vm2336 = vcmp.lt.s32.totalorder %v2316, 2
        %vm2337 = vcmp.lt.s32.totalorder %v2316, 3
        %vm2338 = vcmp.lt.s32.totalorder %v2316, 4
        %v2339 = vsel %vm2335, %v2319, %v2322
        %v2340 = vsel %vm2338, %v2328, 2102212464
        %v2341 = vsel %vm2337, %v2325, %v2340
        %v2342 = vsel %vm2336, %v2339, %v2341
        %v2343 = vsel %vm2335, %v2322, %v2325
        %v2344 = vsel %vm2338, %v2331, 920167782
        %v2345 = vsel %vm2337, %v2328, %v2344
        %v2346 = vsel %vm2336, %v2343, %v2345
        %v2347 = vsel %vm2335, %v2325, %v2328
        %v2348 = vsel %vm2338, %v2334, 1326507024
        %v2349 = vsel %vm2337, %v2331, %v2348
        %v2350 = vsel %vm2336, %v2347, %v2349
        %v2351 = vshll.u32 %v2311, 8
        %v2352 = vmul.u32.u64.compose %v2351, %v2350
        %v2353 = vextract.low.u32 %v2352
        %v2354 = vextract.high.u32 %v2352
        %v2355 = vmul.u32.u64.compose %v2351, %v2346
        %v2356 = vextract.low.u32 %v2355
        %v2357 = vextract.high.u32 %v2355
        %v2358 = vmul.u32 %v2351, %v2342
        %v2359 = vadd.s32 %v2354, %v2356
        %vm2360 = vc.u32 %v2354, %v2356
        %v2361 = vadd.s32 %v2357, 1
        %v2362 = vsel %vm2360, %v2361, %v2357
        %v2363 = vadd.s32 %v2358, %v2362
        %v2364 = vadd.s32 %v2363, 536870912
        %v2365 = vshrl.u32 %v2364, 30
        %v2366 = vshll.u32 %v2365, 30
        %v2367 = vsub.s32 %v2363, %v2366
        %vm2368 = vcmp.lt.s32.totalorder %v2367, 0
        %v2369 = vsub.s32 0, %v2367
        %v2370 = vsel %vm2368, %v2369, %v2367
        %v2371 = vclz %v2370
        %v2372 = vsub.s32 %v2371, 2
        %vm2373 = vcmp.gt.s32.totalorder 0, %v2372
        %v2374 = vsel %vm2373, 0, %v2372
        %v2375 = vsub.s32 32, %v2374
        %v2376 = vshll.u32 %v2367, %v2374
        %v2377 = vshrl.u32 %v2359, %v2375
        %v2378 = vor.u32 %v2376, %v2377
        %v2379 = vsub.s32 4294967266, %v2374
        %v2380 = vadd.s32 %v2379, 127
        %v2381 = vshll.u32 %v2380, 23
        %v2382 = vor.u32 4788187, %v2381
        %v2383 = vand.u32 2147483647, %v2382
        %v2385 = vcvt.s32.f32 %v2378
        %v2386 = vmul.f32 %v2385, %v2383
        %v2387 = vxor.u32 %v2386, 2147483648
        %v2388 = vsel %vm2305, %v2387, %v2386
        %v2389 = vsub.s32 4, %v2365
        %v2390 = vsel %vm2305, %v2389, %v2365
        %v2391 = vsel %vm2304, %v1146, %v2388
        %v2392 = vsel %vm2304, 0, %v2390
        %v2393 = vcosq.f32.pop %v2391
        %v2394 = vsinq.f32.pop %v2391
        %vm2395 = vweird.f32 %v1146
        %v2396 = vadd.s32 %v2392, 3
        %v2397 = vand.u32 %v2396, 3
        %vm2398 = vcmp.lt.s32.totalorder %v2397, 2
        %vm2399 = vcmp.eq.s32.totalorder %v2397, 0
        %v2400 = vxor.u32 %v2394, 2147483648
        %v2401 = vsel %vm2399, %v2393, %v2400
        %vm2402 = vcmp.eq.s32.totalorder %v2397, 2
        %v2403 = vxor.u32 %v2393, 2147483648
        %v2404 = vsel %vm2402, %v2403, %v2394
        %v2405 = vsel %vm2398, %v2401, %v2404
        %v2406 = vsel %vm2395, nan, %v2405
        %v2407 = vand.u32 2147483647, %v1147
        %vm2408 = vcmp.le.f32.partialorder %v2407, 0.7853982
        %vm2409 = vcmp.lt.s32.totalorder %v1147, 0
        %v2410 = vand.u32 %v1147, 2139095040
        %v2411 = vshrl.u32 %v2410, 23
        %v2412 = vsub.s32 %v2411, 127
        %v2413 = vand.u32 2147483647, %v1147
        %v2414 = vand.u32 %v2413, 8388607
        %v2415 = vor.u32 %v2414, 8388608
        %v2416 = vsub.s32 0, %v2415
        %v2417 = vadd.s32 %v2412, 1
        %vm2418 = vcmp.gt.s32.totalorder %v2417, 0
        %v2419 = vsel %vm2418, %v2417, 0
        %v2420 = vshrl.u32 %v2419, 5
        %v2421 = vand.u32 %v2419, 31
        %v2422 = vsub.s32 32, %v2421
        %v2423 = vshrl.u32 683565275, %v2422
        %v2424 = vshll.u32 683565275, %v2421
        %v2425 = vshrl.u32 2475754826, %v2422
        %v2426 = vor.u32 %v2424, %v2425
        %v2427 = vshll.u32 2475754826, %v2421
        %v2428 = vshrl.u32 2131351028, %v2422
        %v2429 = vor.u32 %v2427, %v2428
        %v2430 = vshll.u32 2131351028, %v2421
        %v2431 = vshrl.u32 2102212464, %v2422
        %v2432 = vor.u32 %v2430, %v2431
        %v2433 = vshll.u32 2102212464, %v2421
        %v2434 = vshrl.u32 920167782, %v2422
        %v2435 = vor.u32 %v2433, %v2434
        %v2436 = vshll.u32 920167782, %v2421
        %v2437 = vshrl.u32 1326507024, %v2422
        %v2438 = vor.u32 %v2436, %v2437
        %vm2439 = vcmp.lt.s32.totalorder %v2420, 1
        %vm2440 = vcmp.lt.s32.totalorder %v2420, 2
        %vm2441 = vcmp.lt.s32.totalorder %v2420, 3
        %vm2442 = vcmp.lt.s32.totalorder %v2420, 4
        %v2443 = vsel %vm2439, %v2423, %v2426
        %v2444 = vsel %vm2442, %v2432, 2102212464
        %v2445 = vsel %vm2441, %v2429, %v2444
        %v2446 = vsel %vm2440, %v2443, %v2445
        %v2447 = vsel %vm2439, %v2426, %v2429
        %v2448 = vsel %vm2442, %v2435, 920167782
        %v2449 = vsel %vm2441, %v2432, %v2448
        %v2450 = vsel %vm2440, %v2447, %v2449
        %v2451 = vsel %vm2439, %v2429, %v2432
        %v2452 = vsel %vm2442, %v2438, 1326507024
        %v2453 = vsel %vm2441, %v2435, %v2452
        %v2454 = vsel %vm2440, %v2451, %v2453
        %v2455 = vshll.u32 %v2415, 8
        %v2456 = vmul.u32.u64.compose %v2455, %v2454
        %v2457 = vextract.low.u32 %v2456
        %v2458 = vextract.high.u32 %v2456
        %v2459 = vmul.u32.u64.compose %v2455, %v2450
        %v2460 = vextract.low.u32 %v2459
        %v2461 = vextract.high.u32 %v2459
        %v2462 = vmul.u32 %v2455, %v2446
        %v2463 = vadd.s32 %v2458, %v2460
        %vm2464 = vc.u32 %v2458, %v2460
        %v2465 = vadd.s32 %v2461, 1
        %v2466 = vsel %vm2464, %v2465, %v2461
        %v2467 = vadd.s32 %v2462, %v2466
        %v2468 = vadd.s32 %v2467, 536870912
        %v2469 = vshrl.u32 %v2468, 30
        %v2470 = vshll.u32 %v2469, 30
        %v2471 = vsub.s32 %v2467, %v2470
        %vm2472 = vcmp.lt.s32.totalorder %v2471, 0
        %v2473 = vsub.s32 0, %v2471
        %v2474 = vsel %vm2472, %v2473, %v2471
        %v2475 = vclz %v2474
        %v2476 = vsub.s32 %v2475, 2
        %vm2477 = vcmp.gt.s32.totalorder 0, %v2476
        %v2478 = vsel %vm2477, 0, %v2476
        %v2479 = vsub.s32 32, %v2478
        %v2480 = vshll.u32 %v2471, %v2478
        %v2481 = vshrl.u32 %v2463, %v2479
        %v2482 = vor.u32 %v2480, %v2481
        %v2483 = vsub.s32 4294967266, %v2478
        %v2484 = vadd.s32 %v2483, 127
        %v2485 = vshll.u32 %v2484, 23
        %v2486 = vor.u32 4788187, %v2485
        %v2487 = vand.u32 2147483647, %v2486
        %v2489 = vcvt.s32.f32 %v2482
        %v2490 = vmul.f32 %v2489, %v2487
        %v2491 = vxor.u32 %v2490, 2147483648
        %v2492 = vsel %vm2409, %v2491, %v2490
        %v2493 = vsub.s32 4, %v2469
        %v2494 = vsel %vm2409, %v2493, %v2469
        %v2495 = vsel %vm2408, %v1147, %v2492
        %v2496 = vsel %vm2408, 0, %v2494
        %v2497 = vcosq.f32.pop %v2495
        %v2498 = vsinq.f32.pop %v2495
        %vm2499 = vweird.f32 %v1147
        %v2500 = vadd.s32 %v2496, 3
        %v2501 = vand.u32 %v2500, 3
        %vm2502 = vcmp.lt.s32.totalorder %v2501, 2
        %vm2503 = vcmp.eq.s32.totalorder %v2501, 0
        %v2504 = vxor.u32 %v2498, 2147483648
        %v2505 = vsel %vm2503, %v2497, %v2504
        %vm2506 = vcmp.eq.s32.totalorder %v2501, 2
        %v2507 = vxor.u32 %v2497, 2147483648
        %v2508 = vsel %vm2506, %v2507, %v2498
        %v2509 = vsel %vm2502, %v2505, %v2508
        %v2510 = vsel %vm2499, nan, %v2509
        %v2511 = vand.u32 2147483647, %v1148
        %vm2512 = vcmp.le.f32.partialorder %v2511, 0.7853982
        %vm2513 = vcmp.lt.s32.totalorder %v1148, 0
        %v2514 = vand.u32 %v1148, 2139095040
        %v2515 = vshrl.u32 %v2514, 23
        %v2516 = vsub.s32 %v2515, 127
        %v2517 = vand.u32 2147483647, %v1148
        %v2518 = vand.u32 %v2517, 8388607
        %v2519 = vor.u32 %v2518, 8388608
        %v2520 = vsub.s32 0, %v2519
        %v2521 = vadd.s32 %v2516, 1
        %vm2522 = vcmp.gt.s32.totalorder %v2521, 0
        %v2523 = vsel %vm2522, %v2521, 0
        %v2524 = vshrl.u32 %v2523, 5
        %v2525 = vand.u32 %v2523, 31
        %v2526 = vsub.s32 32, %v2525
        %v2527 = vshrl.u32 683565275, %v2526
        %v2528 = vshll.u32 683565275, %v2525
        %v2529 = vshrl.u32 2475754826, %v2526
        %v2530 = vor.u32 %v2528, %v2529
        %v2531 = vshll.u32 2475754826, %v2525
        %v2532 = vshrl.u32 2131351028, %v2526
        %v2533 = vor.u32 %v2531, %v2532
        %v2534 = vshll.u32 2131351028, %v2525
        %v2535 = vshrl.u32 2102212464, %v2526
        %v2536 = vor.u32 %v2534, %v2535
        %v2537 = vshll.u32 2102212464, %v2525
        %v2538 = vshrl.u32 920167782, %v2526
        %v2539 = vor.u32 %v2537, %v2538
        %v2540 = vshll.u32 920167782, %v2525
        %v2541 = vshrl.u32 1326507024, %v2526
        %v2542 = vor.u32 %v2540, %v2541
        %vm2543 = vcmp.lt.s32.totalorder %v2524, 1
        %vm2544 = vcmp.lt.s32.totalorder %v2524, 2
        %vm2545 = vcmp.lt.s32.totalorder %v2524, 3
        %vm2546 = vcmp.lt.s32.totalorder %v2524, 4
        %v2547 = vsel %vm2543, %v2527, %v2530
        %v2548 = vsel %vm2546, %v2536, 2102212464
        %v2549 = vsel %vm2545, %v2533, %v2548
        %v2550 = vsel %vm2544, %v2547, %v2549
        %v2551 = vsel %vm2543, %v2530, %v2533
        %v2552 = vsel %vm2546, %v2539, 920167782
        %v2553 = vsel %vm2545, %v2536, %v2552
        %v2554 = vsel %vm2544, %v2551, %v2553
        %v2555 = vsel %vm2543, %v2533, %v2536
        %v2556 = vsel %vm2546, %v2542, 1326507024
        %v2557 = vsel %vm2545, %v2539, %v2556
        %v2558 = vsel %vm2544, %v2555, %v2557
        %v2559 = vshll.u32 %v2519, 8
        %v2560 = vmul.u32.u64.compose %v2559, %v2558
        %v2561 = vextract.low.u32 %v2560
        %v2562 = vextract.high.u32 %v2560
        %v2563 = vmul.u32.u64.compose %v2559, %v2554
        %v2564 = vextract.low.u32 %v2563
        %v2565 = vextract.high.u32 %v2563
        %v2566 = vmul.u32 %v2559, %v2550
        %v2567 = vadd.s32 %v2562, %v2564
        %vm2568 = vc.u32 %v2562, %v2564
        %v2569 = vadd.s32 %v2565, 1
        %v2570 = vsel %vm2568, %v2569, %v2565
        %v2571 = vadd.s32 %v2566, %v2570
        %v2572 = vadd.s32 %v2571, 536870912
        %v2573 = vshrl.u32 %v2572, 30
        %v2574 = vshll.u32 %v2573, 30
        %v2575 = vsub.s32 %v2571, %v2574
        %vm2576 = vcmp.lt.s32.totalorder %v2575, 0
        %v2577 = vsub.s32 0, %v2575
        %v2578 = vsel %vm2576, %v2577, %v2575
        %v2579 = vclz %v2578
        %v2580 = vsub.s32 %v2579, 2
        %vm2581 = vcmp.gt.s32.totalorder 0, %v2580
        %v2582 = vsel %vm2581, 0, %v2580
        %v2583 = vsub.s32 32, %v2582
        %v2584 = vshll.u32 %v2575, %v2582
        %v2585 = vshrl.u32 %v2567, %v2583
        %v2586 = vor.u32 %v2584, %v2585
        %v2587 = vsub.s32 4294967266, %v2582
        %v2588 = vadd.s32 %v2587, 127
        %v2589 = vshll.u32 %v2588, 23
        %v2590 = vor.u32 4788187, %v2589
        %v2591 = vand.u32 2147483647, %v2590
        %v2593 = vcvt.s32.f32 %v2586
        %v2594 = vmul.f32 %v2593, %v2591
        %v2595 = vxor.u32 %v2594, 2147483648
        %v2596 = vsel %vm2513, %v2595, %v2594
        %v2597 = vsub.s32 4, %v2573
        %v2598 = vsel %vm2513, %v2597, %v2573
        %v2599 = vsel %vm2512, %v1148, %v2596
        %v2600 = vsel %vm2512, 0, %v2598
        %v2601 = vcosq.f32.pop %v2599
        %v2602 = vsinq.f32.pop %v2599
        %vm2603 = vweird.f32 %v1148
        %v2604 = vadd.s32 %v2600, 3
        %v2605 = vand.u32 %v2604, 3
        %vm2606 = vcmp.lt.s32.totalorder %v2605, 2
        %vm2607 = vcmp.eq.s32.totalorder %v2605, 0
        %v2608 = vxor.u32 %v2602, 2147483648
        %v2609 = vsel %vm2607, %v2601, %v2608
        %vm2610 = vcmp.eq.s32.totalorder %v2605, 2
        %v2611 = vxor.u32 %v2601, 2147483648
        %v2612 = vsel %vm2610, %v2611, %v2602
        %v2613 = vsel %vm2606, %v2609, %v2612
        %v2614 = vsel %vm2603, nan, %v2613
        %v2615 = vand.u32 2147483647, %v1149
        %vm2616 = vcmp.le.f32.partialorder %v2615, 0.7853982
        %vm2617 = vcmp.lt.s32.totalorder %v1149, 0
        %v2618 = vand.u32 %v1149, 2139095040
        %v2619 = vshrl.u32 %v2618, 23
        %v2620 = vsub.s32 %v2619, 127
        %v2621 = vand.u32 2147483647, %v1149
        %v2622 = vand.u32 %v2621, 8388607
        %v2623 = vor.u32 %v2622, 8388608
        %v2624 = vsub.s32 0, %v2623
        %v2625 = vadd.s32 %v2620, 1
        %vm2626 = vcmp.gt.s32.totalorder %v2625, 0
        %v2627 = vsel %vm2626, %v2625, 0
        %v2628 = vshrl.u32 %v2627, 5
        %v2629 = vand.u32 %v2627, 31
        %v2630 = vsub.s32 32, %v2629
        %v2631 = vshrl.u32 683565275, %v2630
        %v2632 = vshll.u32 683565275, %v2629
        %v2633 = vshrl.u32 2475754826, %v2630
        %v2634 = vor.u32 %v2632, %v2633
        %v2635 = vshll.u32 2475754826, %v2629
        %v2636 = vshrl.u32 2131351028, %v2630
        %v2637 = vor.u32 %v2635, %v2636
        %v2638 = vshll.u32 2131351028, %v2629
        %v2639 = vshrl.u32 2102212464, %v2630
        %v2640 = vor.u32 %v2638, %v2639
        %v2641 = vshll.u32 2102212464, %v2629
        %v2642 = vshrl.u32 920167782, %v2630
        %v2643 = vor.u32 %v2641, %v2642
        %v2644 = vshll.u32 920167782, %v2629
        %v2645 = vshrl.u32 1326507024, %v2630
        %v2646 = vor.u32 %v2644, %v2645
        %vm2647 = vcmp.lt.s32.totalorder %v2628, 1
        %vm2648 = vcmp.lt.s32.totalorder %v2628, 2
        %vm2649 = vcmp.lt.s32.totalorder %v2628, 3
        %vm2650 = vcmp.lt.s32.totalorder %v2628, 4
        %v2651 = vsel %vm2647, %v2631, %v2634
        %v2652 = vsel %vm2650, %v2640, 2102212464
        %v2653 = vsel %vm2649, %v2637, %v2652
        %v2654 = vsel %vm2648, %v2651, %v2653
        %v2655 = vsel %vm2647, %v2634, %v2637
        %v2656 = vsel %vm2650, %v2643, 920167782
        %v2657 = vsel %vm2649, %v2640, %v2656
        %v2658 = vsel %vm2648, %v2655, %v2657
        %v2659 = vsel %vm2647, %v2637, %v2640
        %v2660 = vsel %vm2650, %v2646, 1326507024
        %v2661 = vsel %vm2649, %v2643, %v2660
        %v2662 = vsel %vm2648, %v2659, %v2661
        %v2663 = vshll.u32 %v2623, 8
        %v2664 = vmul.u32.u64.compose %v2663, %v2662
        %v2665 = vextract.low.u32 %v2664
        %v2666 = vextract.high.u32 %v2664
        %v2667 = vmul.u32.u64.compose %v2663, %v2658
        %v2668 = vextract.low.u32 %v2667
        %v2669 = vextract.high.u32 %v2667
        %v2670 = vmul.u32 %v2663, %v2654
        %v2671 = vadd.s32 %v2666, %v2668
        %vm2672 = vc.u32 %v2666, %v2668
        %v2673 = vadd.s32 %v2669, 1
        %v2674 = vsel %vm2672, %v2673, %v2669
        %v2675 = vadd.s32 %v2670, %v2674
        %v2676 = vadd.s32 %v2675, 536870912
        %v2677 = vshrl.u32 %v2676, 30
        %v2678 = vshll.u32 %v2677, 30
        %v2679 = vsub.s32 %v2675, %v2678
        %vm2680 = vcmp.lt.s32.totalorder %v2679, 0
        %v2681 = vsub.s32 0, %v2679
        %v2682 = vsel %vm2680, %v2681, %v2679
        %v2683 = vclz %v2682
        %v2684 = vsub.s32 %v2683, 2
        %vm2685 = vcmp.gt.s32.totalorder 0, %v2684
        %v2686 = vsel %vm2685, 0, %v2684
        %v2687 = vsub.s32 32, %v2686
        %v2688 = vshll.u32 %v2679, %v2686
        %v2689 = vshrl.u32 %v2671, %v2687
        %v2690 = vor.u32 %v2688, %v2689
        %v2691 = vsub.s32 4294967266, %v2686
        %v2692 = vadd.s32 %v2691, 127
        %v2693 = vshll.u32 %v2692, 23
        %v2694 = vor.u32 4788187, %v2693
        %v2695 = vand.u32 2147483647, %v2694
        %v2697 = vcvt.s32.f32 %v2690
        %v2698 = vmul.f32 %v2697, %v2695
        %v2699 = vxor.u32 %v2698, 2147483648
        %v2700 = vsel %vm2617, %v2699, %v2698
        %v2701 = vsub.s32 4, %v2677
        %v2702 = vsel %vm2617, %v2701, %v2677
        %v2703 = vsel %vm2616, %v1149, %v2700
        %v2704 = vsel %vm2616, 0, %v2702
        %v2705 = vcosq.f32.pop %v2703
        %v2706 = vsinq.f32.pop %v2703
        %vm2707 = vweird.f32 %v1149
        %v2708 = vadd.s32 %v2704, 3
        %v2709 = vand.u32 %v2708, 3
        %vm2710 = vcmp.lt.s32.totalorder %v2709, 2
        %vm2711 = vcmp.eq.s32.totalorder %v2709, 0
        %v2712 = vxor.u32 %v2706, 2147483648
        %v2713 = vsel %vm2711, %v2705, %v2712
        %vm2714 = vcmp.eq.s32.totalorder %v2709, 2
        %v2715 = vxor.u32 %v2705, 2147483648
        %v2716 = vsel %vm2714, %v2715, %v2706
        %v2717 = vsel %vm2710, %v2713, %v2716
        %v2718 = vsel %vm2707, nan, %v2717
        %v2719 = vand.u32 2147483647, %v1150
        %vm2720 = vcmp.le.f32.partialorder %v2719, 0.7853982
        %vm2721 = vcmp.lt.s32.totalorder %v1150, 0
        %v2722 = vand.u32 %v1150, 2139095040
        %v2723 = vshrl.u32 %v2722, 23
        %v2724 = vsub.s32 %v2723, 127
        %v2725 = vand.u32 2147483647, %v1150
        %v2726 = vand.u32 %v2725, 8388607
        %v2727 = vor.u32 %v2726, 8388608
        %v2728 = vsub.s32 0, %v2727
        %v2729 = vadd.s32 %v2724, 1
        %vm2730 = vcmp.gt.s32.totalorder %v2729, 0
        %v2731 = vsel %vm2730, %v2729, 0
        %v2732 = vshrl.u32 %v2731, 5
        %v2733 = vand.u32 %v2731, 31
        %v2734 = vsub.s32 32, %v2733
        %v2735 = vshrl.u32 683565275, %v2734
        %v2736 = vshll.u32 683565275, %v2733
        %v2737 = vshrl.u32 2475754826, %v2734
        %v2738 = vor.u32 %v2736, %v2737
        %v2739 = vshll.u32 2475754826, %v2733
        %v2740 = vshrl.u32 2131351028, %v2734
        %v2741 = vor.u32 %v2739, %v2740
        %v2742 = vshll.u32 2131351028, %v2733
        %v2743 = vshrl.u32 2102212464, %v2734
        %v2744 = vor.u32 %v2742, %v2743
        %v2745 = vshll.u32 2102212464, %v2733
        %v2746 = vshrl.u32 920167782, %v2734
        %v2747 = vor.u32 %v2745, %v2746
        %v2748 = vshll.u32 920167782, %v2733
        %v2749 = vshrl.u32 1326507024, %v2734
        %v2750 = vor.u32 %v2748, %v2749
        %vm2751 = vcmp.lt.s32.totalorder %v2732, 1
        %vm2752 = vcmp.lt.s32.totalorder %v2732, 2
        %vm2753 = vcmp.lt.s32.totalorder %v2732, 3
        %vm2754 = vcmp.lt.s32.totalorder %v2732, 4
        %v2755 = vsel %vm2751, %v2735, %v2738
        %v2756 = vsel %vm2754, %v2744, 2102212464
        %v2757 = vsel %vm2753, %v2741, %v2756
        %v2758 = vsel %vm2752, %v2755, %v2757
        %v2759 = vsel %vm2751, %v2738, %v2741
        %v2760 = vsel %vm2754, %v2747, 920167782
        %v2761 = vsel %vm2753, %v2744, %v2760
        %v2762 = vsel %vm2752, %v2759, %v2761
        %v2763 = vsel %vm2751, %v2741, %v2744
        %v2764 = vsel %vm2754, %v2750, 1326507024
        %v2765 = vsel %vm2753, %v2747, %v2764
        %v2766 = vsel %vm2752, %v2763, %v2765
        %v2767 = vshll.u32 %v2727, 8
        %v2768 = vmul.u32.u64.compose %v2767, %v2766
        %v2769 = vextract.low.u32 %v2768
        %v2770 = vextract.high.u32 %v2768
        %v2771 = vmul.u32.u64.compose %v2767, %v2762
        %v2772 = vextract.low.u32 %v2771
        %v2773 = vextract.high.u32 %v2771
        %v2774 = vmul.u32 %v2767, %v2758
        %v2775 = vadd.s32 %v2770, %v2772
        %vm2776 = vc.u32 %v2770, %v2772
        %v2777 = vadd.s32 %v2773, 1
        %v2778 = vsel %vm2776, %v2777, %v2773
        %v2779 = vadd.s32 %v2774, %v2778
        %v2780 = vadd.s32 %v2779, 536870912
        %v2781 = vshrl.u32 %v2780, 30
        %v2782 = vshll.u32 %v2781, 30
        %v2783 = vsub.s32 %v2779, %v2782
        %vm2784 = vcmp.lt.s32.totalorder %v2783, 0
        %v2785 = vsub.s32 0, %v2783
        %v2786 = vsel %vm2784, %v2785, %v2783
        %v2787 = vclz %v2786
        %v2788 = vsub.s32 %v2787, 2
        %vm2789 = vcmp.gt.s32.totalorder 0, %v2788
        %v2790 = vsel %vm2789, 0, %v2788
        %v2791 = vsub.s32 32, %v2790
        %v2792 = vshll.u32 %v2783, %v2790
        %v2793 = vshrl.u32 %v2775, %v2791
        %v2794 = vor.u32 %v2792, %v2793
        %v2795 = vsub.s32 4294967266, %v2790
        %v2796 = vadd.s32 %v2795, 127
        %v2797 = vshll.u32 %v2796, 23
        %v2798 = vor.u32 4788187, %v2797
        %v2799 = vand.u32 2147483647, %v2798
        %v2801 = vcvt.s32.f32 %v2794
        %v2802 = vmul.f32 %v2801, %v2799
        %v2803 = vxor.u32 %v2802, 2147483648
        %v2804 = vsel %vm2721, %v2803, %v2802
        %v2805 = vsub.s32 4, %v2781
        %v2806 = vsel %vm2721, %v2805, %v2781
        %v2807 = vsel %vm2720, %v1150, %v2804
        %v2808 = vsel %vm2720, 0, %v2806
        %v2809 = vcosq.f32.pop %v2807
        %v2810 = vsinq.f32.pop %v2807
        %vm2811 = vweird.f32 %v1150
        %v2812 = vadd.s32 %v2808, 3
        %v2813 = vand.u32 %v2812, 3
        %vm2814 = vcmp.lt.s32.totalorder %v2813, 2
        %vm2815 = vcmp.eq.s32.totalorder %v2813, 0
        %v2816 = vxor.u32 %v2810, 2147483648
        %v2817 = vsel %vm2815, %v2809, %v2816
        %vm2818 = vcmp.eq.s32.totalorder %v2813, 2
        %v2819 = vxor.u32 %v2809, 2147483648
        %v2820 = vsel %vm2818, %v2819, %v2810
        %v2821 = vsel %vm2814, %v2817, %v2820
        %v2822 = vsel %vm2811, nan, %v2821
        %v2823 = vand.u32 2147483647, %v1151
        %vm2824 = vcmp.le.f32.partialorder %v2823, 0.7853982
        %vm2825 = vcmp.lt.s32.totalorder %v1151, 0
        %v2826 = vand.u32 %v1151, 2139095040
        %v2827 = vshrl.u32 %v2826, 23
        %v2828 = vsub.s32 %v2827, 127
        %v2829 = vand.u32 2147483647, %v1151
        %v2830 = vand.u32 %v2829, 8388607
        %v2831 = vor.u32 %v2830, 8388608
        %v2832 = vsub.s32 0, %v2831
        %v2833 = vadd.s32 %v2828, 1
        %vm2834 = vcmp.gt.s32.totalorder %v2833, 0
        %v2835 = vsel %vm2834, %v2833, 0
        %v2836 = vshrl.u32 %v2835, 5
        %v2837 = vand.u32 %v2835, 31
        %v2838 = vsub.s32 32, %v2837
        %v2839 = vshrl.u32 683565275, %v2838
        %v2840 = vshll.u32 683565275, %v2837
        %v2841 = vshrl.u32 2475754826, %v2838
        %v2842 = vor.u32 %v2840, %v2841
        %v2843 = vshll.u32 2475754826, %v2837
        %v2844 = vshrl.u32 2131351028, %v2838
        %v2845 = vor.u32 %v2843, %v2844
        %v2846 = vshll.u32 2131351028, %v2837
        %v2847 = vshrl.u32 2102212464, %v2838
        %v2848 = vor.u32 %v2846, %v2847
        %v2849 = vshll.u32 2102212464, %v2837
        %v2850 = vshrl.u32 920167782, %v2838
        %v2851 = vor.u32 %v2849, %v2850
        %v2852 = vshll.u32 920167782, %v2837
        %v2853 = vshrl.u32 1326507024, %v2838
        %v2854 = vor.u32 %v2852, %v2853
        %vm2855 = vcmp.lt.s32.totalorder %v2836, 1
        %vm2856 = vcmp.lt.s32.totalorder %v2836, 2
        %vm2857 = vcmp.lt.s32.totalorder %v2836, 3
        %vm2858 = vcmp.lt.s32.totalorder %v2836, 4
        %v2859 = vsel %vm2855, %v2839, %v2842
        %v2860 = vsel %vm2858, %v2848, 2102212464
        %v2861 = vsel %vm2857, %v2845, %v2860
        %v2862 = vsel %vm2856, %v2859, %v2861
        %v2863 = vsel %vm2855, %v2842, %v2845
        %v2864 = vsel %vm2858, %v2851, 920167782
        %v2865 = vsel %vm2857, %v2848, %v2864
        %v2866 = vsel %vm2856, %v2863, %v2865
        %v2867 = vsel %vm2855, %v2845, %v2848
        %v2868 = vsel %vm2858, %v2854, 1326507024
        %v2869 = vsel %vm2857, %v2851, %v2868
        %v2870 = vsel %vm2856, %v2867, %v2869
        %v2871 = vshll.u32 %v2831, 8
        %v2872 = vmul.u32.u64.compose %v2871, %v2870
        %v2873 = vextract.low.u32 %v2872
        %v2874 = vextract.high.u32 %v2872
        %v2875 = vmul.u32.u64.compose %v2871, %v2866
        %v2876 = vextract.low.u32 %v2875
        %v2877 = vextract.high.u32 %v2875
        %v2878 = vmul.u32 %v2871, %v2862
        %v2879 = vadd.s32 %v2874, %v2876
        %vm2880 = vc.u32 %v2874, %v2876
        %v2881 = vadd.s32 %v2877, 1
        %v2882 = vsel %vm2880, %v2881, %v2877
        %v2883 = vadd.s32 %v2878, %v2882
        %v2884 = vadd.s32 %v2883, 536870912
        %v2885 = vshrl.u32 %v2884, 30
        %v2886 = vshll.u32 %v2885, 30
        %v2887 = vsub.s32 %v2883, %v2886
        %vm2888 = vcmp.lt.s32.totalorder %v2887, 0
        %v2889 = vsub.s32 0, %v2887
        %v2890 = vsel %vm2888, %v2889, %v2887
        %v2891 = vclz %v2890
        %v2892 = vsub.s32 %v2891, 2
        %vm2893 = vcmp.gt.s32.totalorder 0, %v2892
        %v2894 = vsel %vm2893, 0, %v2892
        %v2895 = vsub.s32 32, %v2894
        %v2896 = vshll.u32 %v2887, %v2894
        %v2897 = vshrl.u32 %v2879, %v2895
        %v2898 = vor.u32 %v2896, %v2897
        %v2899 = vsub.s32 4294967266, %v2894
        %v2900 = vadd.s32 %v2899, 127
        %v2901 = vshll.u32 %v2900, 23
        %v2902 = vor.u32 4788187, %v2901
        %v2903 = vand.u32 2147483647, %v2902
        %v2905 = vcvt.s32.f32 %v2898
        %v2906 = vmul.f32 %v2905, %v2903
        %v2907 = vxor.u32 %v2906, 2147483648
        %v2908 = vsel %vm2825, %v2907, %v2906
        %v2909 = vsub.s32 4, %v2885
        %v2910 = vsel %vm2825, %v2909, %v2885
        %v2911 = vsel %vm2824, %v1151, %v2908
        %v2912 = vsel %vm2824, 0, %v2910
        %v2913 = vcosq.f32.pop %v2911
        %v2914 = vsinq.f32.pop %v2911
        %vm2915 = vweird.f32 %v1151
        %v2916 = vadd.s32 %v2912, 3
        %v2917 = vand.u32 %v2916, 3
        %vm2918 = vcmp.lt.s32.totalorder %v2917, 2
        %vm2919 = vcmp.eq.s32.totalorder %v2917, 0
        %v2920 = vxor.u32 %v2914, 2147483648
        %v2921 = vsel %vm2919, %v2913, %v2920
        %vm2922 = vcmp.eq.s32.totalorder %v2917, 2
        %v2923 = vxor.u32 %v2913, 2147483648
        %v2924 = vsel %vm2922, %v2923, %v2914
        %v2925 = vsel %vm2918, %v2921, %v2924
        %v2926 = vsel %vm2915, nan, %v2925
        %v2927 = vand.u32 2147483647, %v1152
        %vm2928 = vcmp.le.f32.partialorder %v2927, 0.7853982
        %vm2929 = vcmp.lt.s32.totalorder %v1152, 0
        %v2930 = vand.u32 %v1152, 2139095040
        %v2931 = vshrl.u32 %v2930, 23
        %v2932 = vsub.s32 %v2931, 127
        %v2933 = vand.u32 2147483647, %v1152
        %v2934 = vand.u32 %v2933, 8388607
        %v2935 = vor.u32 %v2934, 8388608
        %v2936 = vsub.s32 0, %v2935
        %v2937 = vadd.s32 %v2932, 1
        %vm2938 = vcmp.gt.s32.totalorder %v2937, 0
        %v2939 = vsel %vm2938, %v2937, 0
        %v2940 = vshrl.u32 %v2939, 5
        %v2941 = vand.u32 %v2939, 31
        %v2942 = vsub.s32 32, %v2941
        %v2943 = vshrl.u32 683565275, %v2942
        %v2944 = vshll.u32 683565275, %v2941
        %v2945 = vshrl.u32 2475754826, %v2942
        %v2946 = vor.u32 %v2944, %v2945
        %v2947 = vshll.u32 2475754826, %v2941
        %v2948 = vshrl.u32 2131351028, %v2942
        %v2949 = vor.u32 %v2947, %v2948
        %v2950 = vshll.u32 2131351028, %v2941
        %v2951 = vshrl.u32 2102212464, %v2942
        %v2952 = vor.u32 %v2950, %v2951
        %v2953 = vshll.u32 2102212464, %v2941
        %v2954 = vshrl.u32 920167782, %v2942
        %v2955 = vor.u32 %v2953, %v2954
        %v2956 = vshll.u32 920167782, %v2941
        %v2957 = vshrl.u32 1326507024, %v2942
        %v2958 = vor.u32 %v2956, %v2957
        %vm2959 = vcmp.lt.s32.totalorder %v2940, 1
        %vm2960 = vcmp.lt.s32.totalorder %v2940, 2
        %vm2961 = vcmp.lt.s32.totalorder %v2940, 3
        %vm2962 = vcmp.lt.s32.totalorder %v2940, 4
        %v2963 = vsel %vm2959, %v2943, %v2946
        %v2964 = vsel %vm2962, %v2952, 2102212464
        %v2965 = vsel %vm2961, %v2949, %v2964
        %v2966 = vsel %vm2960, %v2963, %v2965
        %v2967 = vsel %vm2959, %v2946, %v2949
        %v2968 = vsel %vm2962, %v2955, 920167782
        %v2969 = vsel %vm2961, %v2952, %v2968
        %v2970 = vsel %vm2960, %v2967, %v2969
        %v2971 = vsel %vm2959, %v2949, %v2952
        %v2972 = vsel %vm2962, %v2958, 1326507024
        %v2973 = vsel %vm2961, %v2955, %v2972
        %v2974 = vsel %vm2960, %v2971, %v2973
        %v2975 = vshll.u32 %v2935, 8
        %v2976 = vmul.u32.u64.compose %v2975, %v2974
        %v2977 = vextract.low.u32 %v2976
        %v2978 = vextract.high.u32 %v2976
        %v2979 = vmul.u32.u64.compose %v2975, %v2970
        %v2980 = vextract.low.u32 %v2979
        %v2981 = vextract.high.u32 %v2979
        %v2982 = vmul.u32 %v2975, %v2966
        %v2983 = vadd.s32 %v2978, %v2980
        %vm2984 = vc.u32 %v2978, %v2980
        %v2985 = vadd.s32 %v2981, 1
        %v2986 = vsel %vm2984, %v2985, %v2981
        %v2987 = vadd.s32 %v2982, %v2986
        %v2988 = vadd.s32 %v2987, 536870912
        %v2989 = vshrl.u32 %v2988, 30
        %v2990 = vshll.u32 %v2989, 30
        %v2991 = vsub.s32 %v2987, %v2990
        %vm2992 = vcmp.lt.s32.totalorder %v2991, 0
        %v2993 = vsub.s32 0, %v2991
        %v2994 = vsel %vm2992, %v2993, %v2991
        %v2995 = vclz %v2994
        %v2996 = vsub.s32 %v2995, 2
        %vm2997 = vcmp.gt.s32.totalorder 0, %v2996
        %v2998 = vsel %vm2997, 0, %v2996
        %v2999 = vsub.s32 32, %v2998
        %v3000 = vshll.u32 %v2991, %v2998
        %v3001 = vshrl.u32 %v2983, %v2999
        %v3002 = vor.u32 %v3000, %v3001
        %v3003 = vsub.s32 4294967266, %v2998
        %v3004 = vadd.s32 %v3003, 127
        %v3005 = vshll.u32 %v3004, 23
        %v3006 = vor.u32 4788187, %v3005
        %v3007 = vand.u32 2147483647, %v3006
        %v3009 = vcvt.s32.f32 %v3002
        %v3010 = vmul.f32 %v3009, %v3007
        %v3011 = vxor.u32 %v3010, 2147483648
        %v3012 = vsel %vm2929, %v3011, %v3010
        %v3013 = vsub.s32 4, %v2989
        %v3014 = vsel %vm2929, %v3013, %v2989
        %v3015 = vsel %vm2928, %v1152, %v3012
        %v3016 = vsel %vm2928, 0, %v3014
        %v3017 = vcosq.f32.pop %v3015
        %v3018 = vsinq.f32.pop %v3015
        %vm3019 = vweird.f32 %v1152
        %v3020 = vadd.s32 %v3016, 3
        %v3021 = vand.u32 %v3020, 3
        %vm3022 = vcmp.lt.s32.totalorder %v3021, 2
        %vm3023 = vcmp.eq.s32.totalorder %v3021, 0
        %v3024 = vxor.u32 %v3018, 2147483648
        %v3025 = vsel %vm3023, %v3017, %v3024
        %vm3026 = vcmp.eq.s32.totalorder %v3021, 2
        %v3027 = vxor.u32 %v3017, 2147483648
        %v3028 = vsel %vm3026, %v3027, %v3018
        %v3029 = vsel %vm3022, %v3025, %v3028
        %v3030 = vsel %vm3019, nan, %v3029
        %v3031 = vand.u32 2147483647, %v1153
        %vm3032 = vcmp.le.f32.partialorder %v3031, 0.7853982
        %vm3033 = vcmp.lt.s32.totalorder %v1153, 0
        %v3034 = vand.u32 %v1153, 2139095040
        %v3035 = vshrl.u32 %v3034, 23
        %v3036 = vsub.s32 %v3035, 127
        %v3037 = vand.u32 2147483647, %v1153
        %v3038 = vand.u32 %v3037, 8388607
        %v3039 = vor.u32 %v3038, 8388608
        %v3040 = vsub.s32 0, %v3039
        %v3041 = vadd.s32 %v3036, 1
        %vm3042 = vcmp.gt.s32.totalorder %v3041, 0
        %v3043 = vsel %vm3042, %v3041, 0
        %v3044 = vshrl.u32 %v3043, 5
        %v3045 = vand.u32 %v3043, 31
        %v3046 = vsub.s32 32, %v3045
        %v3047 = vshrl.u32 683565275, %v3046
        %v3048 = vshll.u32 683565275, %v3045
        %v3049 = vshrl.u32 2475754826, %v3046
        %v3050 = vor.u32 %v3048, %v3049
        %v3051 = vshll.u32 2475754826, %v3045
        %v3052 = vshrl.u32 2131351028, %v3046
        %v3053 = vor.u32 %v3051, %v3052
        %v3054 = vshll.u32 2131351028, %v3045
        %v3055 = vshrl.u32 2102212464, %v3046
        %v3056 = vor.u32 %v3054, %v3055
        %v3057 = vshll.u32 2102212464, %v3045
        %v3058 = vshrl.u32 920167782, %v3046
        %v3059 = vor.u32 %v3057, %v3058
        %v3060 = vshll.u32 920167782, %v3045
        %v3061 = vshrl.u32 1326507024, %v3046
        %v3062 = vor.u32 %v3060, %v3061
        %vm3063 = vcmp.lt.s32.totalorder %v3044, 1
        %vm3064 = vcmp.lt.s32.totalorder %v3044, 2
        %vm3065 = vcmp.lt.s32.totalorder %v3044, 3
        %vm3066 = vcmp.lt.s32.totalorder %v3044, 4
        %v3067 = vsel %vm3063, %v3047, %v3050
        %v3068 = vsel %vm3066, %v3056, 2102212464
        %v3069 = vsel %vm3065, %v3053, %v3068
        %v3070 = vsel %vm3064, %v3067, %v3069
        %v3071 = vsel %vm3063, %v3050, %v3053
        %v3072 = vsel %vm3066, %v3059, 920167782
        %v3073 = vsel %vm3065, %v3056, %v3072
        %v3074 = vsel %vm3064, %v3071, %v3073
        %v3075 = vsel %vm3063, %v3053, %v3056
        %v3076 = vsel %vm3066, %v3062, 1326507024
        %v3077 = vsel %vm3065, %v3059, %v3076
        %v3078 = vsel %vm3064, %v3075, %v3077
        %v3079 = vshll.u32 %v3039, 8
        %v3080 = vmul.u32.u64.compose %v3079, %v3078
        %v3081 = vextract.low.u32 %v3080
        %v3082 = vextract.high.u32 %v3080
        %v3083 = vmul.u32.u64.compose %v3079, %v3074
        %v3084 = vextract.low.u32 %v3083
        %v3085 = vextract.high.u32 %v3083
        %v3086 = vmul.u32 %v3079, %v3070
        %v3087 = vadd.s32 %v3082, %v3084
        %vm3088 = vc.u32 %v3082, %v3084
        %v3089 = vadd.s32 %v3085, 1
        %v3090 = vsel %vm3088, %v3089, %v3085
        %v3091 = vadd.s32 %v3086, %v3090
        %v3092 = vadd.s32 %v3091, 536870912
        %v3093 = vshrl.u32 %v3092, 30
        %v3094 = vshll.u32 %v3093, 30
        %v3095 = vsub.s32 %v3091, %v3094
        %vm3096 = vcmp.lt.s32.totalorder %v3095, 0
        %v3097 = vsub.s32 0, %v3095
        %v3098 = vsel %vm3096, %v3097, %v3095
        %v3099 = vclz %v3098
        %v3100 = vsub.s32 %v3099, 2
        %vm3101 = vcmp.gt.s32.totalorder 0, %v3100
        %v3102 = vsel %vm3101, 0, %v3100
        %v3103 = vsub.s32 32, %v3102
        %v3104 = vshll.u32 %v3095, %v3102
        %v3105 = vshrl.u32 %v3087, %v3103
        %v3106 = vor.u32 %v3104, %v3105
        %v3107 = vsub.s32 4294967266, %v3102
        %v3108 = vadd.s32 %v3107, 127
        %v3109 = vshll.u32 %v3108, 23
        %v3110 = vor.u32 4788187, %v3109
        %v3111 = vand.u32 2147483647, %v3110
        %v3113 = vcvt.s32.f32 %v3106
        %v3114 = vmul.f32 %v3113, %v3111
        %v3115 = vxor.u32 %v3114, 2147483648
        %v3116 = vsel %vm3033, %v3115, %v3114
        %v3117 = vsub.s32 4, %v3093
        %v3118 = vsel %vm3033, %v3117, %v3093
        %v3119 = vsel %vm3032, %v1153, %v3116
        %v3120 = vsel %vm3032, 0, %v3118
        %v3121 = vcosq.f32.pop %v3119
        %v3122 = vsinq.f32.pop %v3119
        %vm3123 = vweird.f32 %v1153
        %v3124 = vadd.s32 %v3120, 3
        %v3125 = vand.u32 %v3124, 3
        %vm3126 = vcmp.lt.s32.totalorder %v3125, 2
        %vm3127 = vcmp.eq.s32.totalorder %v3125, 0
        %v3128 = vxor.u32 %v3122, 2147483648
        %v3129 = vsel %vm3127, %v3121, %v3128
        %vm3130 = vcmp.eq.s32.totalorder %v3125, 2
        %v3131 = vxor.u32 %v3121, 2147483648
        %v3132 = vsel %vm3130, %v3131, %v3122
        %v3133 = vsel %vm3126, %v3129, %v3132
        %v3134 = vsel %vm3123, nan, %v3133
        %v3135 = vand.u32 2147483647, %v1154
        %vm3136 = vcmp.le.f32.partialorder %v3135, 0.7853982
        %vm3137 = vcmp.lt.s32.totalorder %v1154, 0
        %v3138 = vand.u32 %v1154, 2139095040
        %v3139 = vshrl.u32 %v3138, 23
        %v3140 = vsub.s32 %v3139, 127
        %v3141 = vand.u32 2147483647, %v1154
        %v3142 = vand.u32 %v3141, 8388607
        %v3143 = vor.u32 %v3142, 8388608
        %v3144 = vsub.s32 0, %v3143
        %v3145 = vadd.s32 %v3140, 1
        %vm3146 = vcmp.gt.s32.totalorder %v3145, 0
        %v3147 = vsel %vm3146, %v3145, 0
        %v3148 = vshrl.u32 %v3147, 5
        %v3149 = vand.u32 %v3147, 31
        %v3150 = vsub.s32 32, %v3149
        %v3151 = vshrl.u32 683565275, %v3150
        %v3152 = vshll.u32 683565275, %v3149
        %v3153 = vshrl.u32 2475754826, %v3150
        %v3154 = vor.u32 %v3152, %v3153
        %v3155 = vshll.u32 2475754826, %v3149
        %v3156 = vshrl.u32 2131351028, %v3150
        %v3157 = vor.u32 %v3155, %v3156
        %v3158 = vshll.u32 2131351028, %v3149
        %v3159 = vshrl.u32 2102212464, %v3150
        %v3160 = vor.u32 %v3158, %v3159
        %v3161 = vshll.u32 2102212464, %v3149
        %v3162 = vshrl.u32 920167782, %v3150
        %v3163 = vor.u32 %v3161, %v3162
        %v3164 = vshll.u32 920167782, %v3149
        %v3165 = vshrl.u32 1326507024, %v3150
        %v3166 = vor.u32 %v3164, %v3165
        %vm3167 = vcmp.lt.s32.totalorder %v3148, 1
        %vm3168 = vcmp.lt.s32.totalorder %v3148, 2
        %vm3169 = vcmp.lt.s32.totalorder %v3148, 3
        %vm3170 = vcmp.lt.s32.totalorder %v3148, 4
        %v3171 = vsel %vm3167, %v3151, %v3154
        %v3172 = vsel %vm3170, %v3160, 2102212464
        %v3173 = vsel %vm3169, %v3157, %v3172
        %v3174 = vsel %vm3168, %v3171, %v3173
        %v3175 = vsel %vm3167, %v3154, %v3157
        %v3176 = vsel %vm3170, %v3163, 920167782
        %v3177 = vsel %vm3169, %v3160, %v3176
        %v3178 = vsel %vm3168, %v3175, %v3177
        %v3179 = vsel %vm3167, %v3157, %v3160
        %v3180 = vsel %vm3170, %v3166, 1326507024
        %v3181 = vsel %vm3169, %v3163, %v3180
        %v3182 = vsel %vm3168, %v3179, %v3181
        %v3183 = vshll.u32 %v3143, 8
        %v3184 = vmul.u32.u64.compose %v3183, %v3182
        %v3185 = vextract.low.u32 %v3184
        %v3186 = vextract.high.u32 %v3184
        %v3187 = vmul.u32.u64.compose %v3183, %v3178
        %v3188 = vextract.low.u32 %v3187
        %v3189 = vextract.high.u32 %v3187
        %v3190 = vmul.u32 %v3183, %v3174
        %v3191 = vadd.s32 %v3186, %v3188
        %vm3192 = vc.u32 %v3186, %v3188
        %v3193 = vadd.s32 %v3189, 1
        %v3194 = vsel %vm3192, %v3193, %v3189
        %v3195 = vadd.s32 %v3190, %v3194
        %v3196 = vadd.s32 %v3195, 536870912
        %v3197 = vshrl.u32 %v3196, 30
        %v3198 = vshll.u32 %v3197, 30
        %v3199 = vsub.s32 %v3195, %v3198
        %vm3200 = vcmp.lt.s32.totalorder %v3199, 0
        %v3201 = vsub.s32 0, %v3199
        %v3202 = vsel %vm3200, %v3201, %v3199
        %v3203 = vclz %v3202
        %v3204 = vsub.s32 %v3203, 2
        %vm3205 = vcmp.gt.s32.totalorder 0, %v3204
        %v3206 = vsel %vm3205, 0, %v3204
        %v3207 = vsub.s32 32, %v3206
        %v3208 = vshll.u32 %v3199, %v3206
        %v3209 = vshrl.u32 %v3191, %v3207
        %v3210 = vor.u32 %v3208, %v3209
        %v3211 = vsub.s32 4294967266, %v3206
        %v3212 = vadd.s32 %v3211, 127
        %v3213 = vshll.u32 %v3212, 23
        %v3214 = vor.u32 4788187, %v3213
        %v3215 = vand.u32 2147483647, %v3214
        %v3217 = vcvt.s32.f32 %v3210
        %v3218 = vmul.f32 %v3217, %v3215
        %v3219 = vxor.u32 %v3218, 2147483648
        %v3220 = vsel %vm3137, %v3219, %v3218
        %v3221 = vsub.s32 4, %v3197
        %v3222 = vsel %vm3137, %v3221, %v3197
        %v3223 = vsel %vm3136, %v1154, %v3220
        %v3224 = vsel %vm3136, 0, %v3222
        %v3225 = vcosq.f32.pop %v3223
        %v3226 = vsinq.f32.pop %v3223
        %vm3227 = vweird.f32 %v1154
        %v3228 = vadd.s32 %v3224, 3
        %v3229 = vand.u32 %v3228, 3
        %vm3230 = vcmp.lt.s32.totalorder %v3229, 2
        %vm3231 = vcmp.eq.s32.totalorder %v3229, 0
        %v3232 = vxor.u32 %v3226, 2147483648
        %v3233 = vsel %vm3231, %v3225, %v3232
        %vm3234 = vcmp.eq.s32.totalorder %v3229, 2
        %v3235 = vxor.u32 %v3225, 2147483648
        %v3236 = vsel %vm3234, %v3235, %v3226
        %v3237 = vsel %vm3230, %v3233, %v3236
        %v3238 = vsel %vm3227, nan, %v3237
        %v3239 = vand.u32 2147483647, %v1155
        %vm3240 = vcmp.le.f32.partialorder %v3239, 0.7853982
        %vm3241 = vcmp.lt.s32.totalorder %v1155, 0
        %v3242 = vand.u32 %v1155, 2139095040
        %v3243 = vshrl.u32 %v3242, 23
        %v3244 = vsub.s32 %v3243, 127
        %v3245 = vand.u32 2147483647, %v1155
        %v3246 = vand.u32 %v3245, 8388607
        %v3247 = vor.u32 %v3246, 8388608
        %v3248 = vsub.s32 0, %v3247
        %v3249 = vadd.s32 %v3244, 1
        %vm3250 = vcmp.gt.s32.totalorder %v3249, 0
        %v3251 = vsel %vm3250, %v3249, 0
        %v3252 = vshrl.u32 %v3251, 5
        %v3253 = vand.u32 %v3251, 31
        %v3254 = vsub.s32 32, %v3253
        %v3255 = vshrl.u32 683565275, %v3254
        %v3256 = vshll.u32 683565275, %v3253
        %v3257 = vshrl.u32 2475754826, %v3254
        %v3258 = vor.u32 %v3256, %v3257
        %v3259 = vshll.u32 2475754826, %v3253
        %v3260 = vshrl.u32 2131351028, %v3254
        %v3261 = vor.u32 %v3259, %v3260
        %v3262 = vshll.u32 2131351028, %v3253
        %v3263 = vshrl.u32 2102212464, %v3254
        %v3264 = vor.u32 %v3262, %v3263
        %v3265 = vshll.u32 2102212464, %v3253
        %v3266 = vshrl.u32 920167782, %v3254
        %v3267 = vor.u32 %v3265, %v3266
        %v3268 = vshll.u32 920167782, %v3253
        %v3269 = vshrl.u32 1326507024, %v3254
        %v3270 = vor.u32 %v3268, %v3269
        %vm3271 = vcmp.lt.s32.totalorder %v3252, 1
        %vm3272 = vcmp.lt.s32.totalorder %v3252, 2
        %vm3273 = vcmp.lt.s32.totalorder %v3252, 3
        %vm3274 = vcmp.lt.s32.totalorder %v3252, 4
        %v3275 = vsel %vm3271, %v3255, %v3258
        %v3276 = vsel %vm3274, %v3264, 2102212464
        %v3277 = vsel %vm3273, %v3261, %v3276
        %v3278 = vsel %vm3272, %v3275, %v3277
        %v3279 = vsel %vm3271, %v3258, %v3261
        %v3280 = vsel %vm3274, %v3267, 920167782
        %v3281 = vsel %vm3273, %v3264, %v3280
        %v3282 = vsel %vm3272, %v3279, %v3281
        %v3283 = vsel %vm3271, %v3261, %v3264
        %v3284 = vsel %vm3274, %v3270, 1326507024
        %v3285 = vsel %vm3273, %v3267, %v3284
        %v3286 = vsel %vm3272, %v3283, %v3285
        %v3287 = vshll.u32 %v3247, 8
        %v3288 = vmul.u32.u64.compose %v3287, %v3286
        %v3289 = vextract.low.u32 %v3288
        %v3290 = vextract.high.u32 %v3288
        %v3291 = vmul.u32.u64.compose %v3287, %v3282
        %v3292 = vextract.low.u32 %v3291
        %v3293 = vextract.high.u32 %v3291
        %v3294 = vmul.u32 %v3287, %v3278
        %v3295 = vadd.s32 %v3290, %v3292
        %vm3296 = vc.u32 %v3290, %v3292
        %v3297 = vadd.s32 %v3293, 1
        %v3298 = vsel %vm3296, %v3297, %v3293
        %v3299 = vadd.s32 %v3294, %v3298
        %v3300 = vadd.s32 %v3299, 536870912
        %v3301 = vshrl.u32 %v3300, 30
        %v3302 = vshll.u32 %v3301, 30
        %v3303 = vsub.s32 %v3299, %v3302
        %vm3304 = vcmp.lt.s32.totalorder %v3303, 0
        %v3305 = vsub.s32 0, %v3303
        %v3306 = vsel %vm3304, %v3305, %v3303
        %v3307 = vclz %v3306
        %v3308 = vsub.s32 %v3307, 2
        %vm3309 = vcmp.gt.s32.totalorder 0, %v3308
        %v3310 = vsel %vm3309, 0, %v3308
        %v3311 = vsub.s32 32, %v3310
        %v3312 = vshll.u32 %v3303, %v3310
        %v3313 = vshrl.u32 %v3295, %v3311
        %v3314 = vor.u32 %v3312, %v3313
        %v3315 = vsub.s32 4294967266, %v3310
        %v3316 = vadd.s32 %v3315, 127
        %v3317 = vshll.u32 %v3316, 23
        %v3318 = vor.u32 4788187, %v3317
        %v3319 = vand.u32 2147483647, %v3318
        %v3321 = vcvt.s32.f32 %v3314
        %v3322 = vmul.f32 %v3321, %v3319
        %v3323 = vxor.u32 %v3322, 2147483648
        %v3324 = vsel %vm3241, %v3323, %v3322
        %v3325 = vsub.s32 4, %v3301
        %v3326 = vsel %vm3241, %v3325, %v3301
        %v3327 = vsel %vm3240, %v1155, %v3324
        %v3328 = vsel %vm3240, 0, %v3326
        %v3329 = vcosq.f32.pop %v3327
        %v3330 = vsinq.f32.pop %v3327
        %vm3331 = vweird.f32 %v1155
        %v3332 = vadd.s32 %v3328, 3
        %v3333 = vand.u32 %v3332, 3
        %vm3334 = vcmp.lt.s32.totalorder %v3333, 2
        %vm3335 = vcmp.eq.s32.totalorder %v3333, 0
        %v3336 = vxor.u32 %v3330, 2147483648
        %v3337 = vsel %vm3335, %v3329, %v3336
        %vm3338 = vcmp.eq.s32.totalorder %v3333, 2
        %v3339 = vxor.u32 %v3329, 2147483648
        %v3340 = vsel %vm3338, %v3339, %v3330
        %v3341 = vsel %vm3334, %v3337, %v3340
        %v3342 = vsel %vm3331, nan, %v3341
        %v3343 = vand.u32 2147483647, %v1156
        %vm3344 = vcmp.le.f32.partialorder %v3343, 0.7853982
        %vm3345 = vcmp.lt.s32.totalorder %v1156, 0
        %v3346 = vand.u32 %v1156, 2139095040
        %v3347 = vshrl.u32 %v3346, 23
        %v3348 = vsub.s32 %v3347, 127
        %v3349 = vand.u32 2147483647, %v1156
        %v3350 = vand.u32 %v3349, 8388607
        %v3351 = vor.u32 %v3350, 8388608
        %v3352 = vsub.s32 0, %v3351
        %v3353 = vadd.s32 %v3348, 1
        %vm3354 = vcmp.gt.s32.totalorder %v3353, 0
        %v3355 = vsel %vm3354, %v3353, 0
        %v3356 = vshrl.u32 %v3355, 5
        %v3357 = vand.u32 %v3355, 31
        %v3358 = vsub.s32 32, %v3357
        %v3359 = vshrl.u32 683565275, %v3358
        %v3360 = vshll.u32 683565275, %v3357
        %v3361 = vshrl.u32 2475754826, %v3358
        %v3362 = vor.u32 %v3360, %v3361
        %v3363 = vshll.u32 2475754826, %v3357
        %v3364 = vshrl.u32 2131351028, %v3358
        %v3365 = vor.u32 %v3363, %v3364
        %v3366 = vshll.u32 2131351028, %v3357
        %v3367 = vshrl.u32 2102212464, %v3358
        %v3368 = vor.u32 %v3366, %v3367
        %v3369 = vshll.u32 2102212464, %v3357
        %v3370 = vshrl.u32 920167782, %v3358
        %v3371 = vor.u32 %v3369, %v3370
        %v3372 = vshll.u32 920167782, %v3357
        %v3373 = vshrl.u32 1326507024, %v3358
        %v3374 = vor.u32 %v3372, %v3373
        %vm3375 = vcmp.lt.s32.totalorder %v3356, 1
        %vm3376 = vcmp.lt.s32.totalorder %v3356, 2
        %vm3377 = vcmp.lt.s32.totalorder %v3356, 3
        %vm3378 = vcmp.lt.s32.totalorder %v3356, 4
        %v3379 = vsel %vm3375, %v3359, %v3362
        %v3380 = vsel %vm3378, %v3368, 2102212464
        %v3381 = vsel %vm3377, %v3365, %v3380
        %v3382 = vsel %vm3376, %v3379, %v3381
        %v3383 = vsel %vm3375, %v3362, %v3365
        %v3384 = vsel %vm3378, %v3371, 920167782
        %v3385 = vsel %vm3377, %v3368, %v3384
        %v3386 = vsel %vm3376, %v3383, %v3385
        %v3387 = vsel %vm3375, %v3365, %v3368
        %v3388 = vsel %vm3378, %v3374, 1326507024
        %v3389 = vsel %vm3377, %v3371, %v3388
        %v3390 = vsel %vm3376, %v3387, %v3389
        %v3391 = vshll.u32 %v3351, 8
        %v3392 = vmul.u32.u64.compose %v3391, %v3390
        %v3393 = vextract.low.u32 %v3392
        %v3394 = vextract.high.u32 %v3392
        %v3395 = vmul.u32.u64.compose %v3391, %v3386
        %v3396 = vextract.low.u32 %v3395
        %v3397 = vextract.high.u32 %v3395
        %v3398 = vmul.u32 %v3391, %v3382
        %v3399 = vadd.s32 %v3394, %v3396
        %vm3400 = vc.u32 %v3394, %v3396
        %v3401 = vadd.s32 %v3397, 1
        %v3402 = vsel %vm3400, %v3401, %v3397
        %v3403 = vadd.s32 %v3398, %v3402
        %v3404 = vadd.s32 %v3403, 536870912
        %v3405 = vshrl.u32 %v3404, 30
        %v3406 = vshll.u32 %v3405, 30
        %v3407 = vsub.s32 %v3403, %v3406
        %vm3408 = vcmp.lt.s32.totalorder %v3407, 0
        %v3409 = vsub.s32 0, %v3407
        %v3410 = vsel %vm3408, %v3409, %v3407
        %v3411 = vclz %v3410
        %v3412 = vsub.s32 %v3411, 2
        %vm3413 = vcmp.gt.s32.totalorder 0, %v3412
        %v3414 = vsel %vm3413, 0, %v3412
        %v3415 = vsub.s32 32, %v3414
        %v3416 = vshll.u32 %v3407, %v3414
        %v3417 = vshrl.u32 %v3399, %v3415
        %v3418 = vor.u32 %v3416, %v3417
        %v3419 = vsub.s32 4294967266, %v3414
        %v3420 = vadd.s32 %v3419, 127
        %v3421 = vshll.u32 %v3420, 23
        %v3422 = vor.u32 4788187, %v3421
        %v3423 = vand.u32 2147483647, %v3422
        %v3425 = vcvt.s32.f32 %v3418
        %v3426 = vmul.f32 %v3425, %v3423
        %v3427 = vxor.u32 %v3426, 2147483648
        %v3428 = vsel %vm3345, %v3427, %v3426
        %v3429 = vsub.s32 4, %v3405
        %v3430 = vsel %vm3345, %v3429, %v3405
        %v3431 = vsel %vm3344, %v1156, %v3428
        %v3432 = vsel %vm3344, 0, %v3430
        %v3433 = vcosq.f32.pop %v3431
        %v3434 = vsinq.f32.pop %v3431
        %vm3435 = vweird.f32 %v1156
        %v3436 = vadd.s32 %v3432, 3
        %v3437 = vand.u32 %v3436, 3
        %vm3438 = vcmp.lt.s32.totalorder %v3437, 2
        %vm3439 = vcmp.eq.s32.totalorder %v3437, 0
        %v3440 = vxor.u32 %v3434, 2147483648
        %v3441 = vsel %vm3439, %v3433, %v3440
        %vm3442 = vcmp.eq.s32.totalorder %v3437, 2
        %v3443 = vxor.u32 %v3433, 2147483648
        %v3444 = vsel %vm3442, %v3443, %v3434
        %v3445 = vsel %vm3438, %v3441, %v3444
        %v3446 = vsel %vm3435, nan, %v3445
        %v3447 = vand.u32 2147483647, %v1157
        %vm3448 = vcmp.le.f32.partialorder %v3447, 0.7853982
        %vm3449 = vcmp.lt.s32.totalorder %v1157, 0
        %v3450 = vand.u32 %v1157, 2139095040
        %v3451 = vshrl.u32 %v3450, 23
        %v3452 = vsub.s32 %v3451, 127
        %v3453 = vand.u32 2147483647, %v1157
        %v3454 = vand.u32 %v3453, 8388607
        %v3455 = vor.u32 %v3454, 8388608
        %v3456 = vsub.s32 0, %v3455
        %v3457 = vadd.s32 %v3452, 1
        %vm3458 = vcmp.gt.s32.totalorder %v3457, 0
        %v3459 = vsel %vm3458, %v3457, 0
        %v3460 = vshrl.u32 %v3459, 5
        %v3461 = vand.u32 %v3459, 31
        %v3462 = vsub.s32 32, %v3461
        %v3463 = vshrl.u32 683565275, %v3462
        %v3464 = vshll.u32 683565275, %v3461
        %v3465 = vshrl.u32 2475754826, %v3462
        %v3466 = vor.u32 %v3464, %v3465
        %v3467 = vshll.u32 2475754826, %v3461
        %v3468 = vshrl.u32 2131351028, %v3462
        %v3469 = vor.u32 %v3467, %v3468
        %v3470 = vshll.u32 2131351028, %v3461
        %v3471 = vshrl.u32 2102212464, %v3462
        %v3472 = vor.u32 %v3470, %v3471
        %v3473 = vshll.u32 2102212464, %v3461
        %v3474 = vshrl.u32 920167782, %v3462
        %v3475 = vor.u32 %v3473, %v3474
        %v3476 = vshll.u32 920167782, %v3461
        %v3477 = vshrl.u32 1326507024, %v3462
        %v3478 = vor.u32 %v3476, %v3477
        %vm3479 = vcmp.lt.s32.totalorder %v3460, 1
        %vm3480 = vcmp.lt.s32.totalorder %v3460, 2
        %vm3481 = vcmp.lt.s32.totalorder %v3460, 3
        %vm3482 = vcmp.lt.s32.totalorder %v3460, 4
        %v3483 = vsel %vm3479, %v3463, %v3466
        %v3484 = vsel %vm3482, %v3472, 2102212464
        %v3485 = vsel %vm3481, %v3469, %v3484
        %v3486 = vsel %vm3480, %v3483, %v3485
        %v3487 = vsel %vm3479, %v3466, %v3469
        %v3488 = vsel %vm3482, %v3475, 920167782
        %v3489 = vsel %vm3481, %v3472, %v3488
        %v3490 = vsel %vm3480, %v3487, %v3489
        %v3491 = vsel %vm3479, %v3469, %v3472
        %v3492 = vsel %vm3482, %v3478, 1326507024
        %v3493 = vsel %vm3481, %v3475, %v3492
        %v3494 = vsel %vm3480, %v3491, %v3493
        %v3495 = vshll.u32 %v3455, 8
        %v3496 = vmul.u32.u64.compose %v3495, %v3494
        %v3497 = vextract.low.u32 %v3496
        %v3498 = vextract.high.u32 %v3496
        %v3499 = vmul.u32.u64.compose %v3495, %v3490
        %v3500 = vextract.low.u32 %v3499
        %v3501 = vextract.high.u32 %v3499
        %v3502 = vmul.u32 %v3495, %v3486
        %v3503 = vadd.s32 %v3498, %v3500
        %vm3504 = vc.u32 %v3498, %v3500
        %v3505 = vadd.s32 %v3501, 1
        %v3506 = vsel %vm3504, %v3505, %v3501
        %v3507 = vadd.s32 %v3502, %v3506
        %v3508 = vadd.s32 %v3507, 536870912
        %v3509 = vshrl.u32 %v3508, 30
        %v3510 = vshll.u32 %v3509, 30
        %v3511 = vsub.s32 %v3507, %v3510
        %vm3512 = vcmp.lt.s32.totalorder %v3511, 0
        %v3513 = vsub.s32 0, %v3511
        %v3514 = vsel %vm3512, %v3513, %v3511
        %v3515 = vclz %v3514
        %v3516 = vsub.s32 %v3515, 2
        %vm3517 = vcmp.gt.s32.totalorder 0, %v3516
        %v3518 = vsel %vm3517, 0, %v3516
        %v3519 = vsub.s32 32, %v3518
        %v3520 = vshll.u32 %v3511, %v3518
        %v3521 = vshrl.u32 %v3503, %v3519
        %v3522 = vor.u32 %v3520, %v3521
        %v3523 = vsub.s32 4294967266, %v3518
        %v3524 = vadd.s32 %v3523, 127
        %v3525 = vshll.u32 %v3524, 23
        %v3526 = vor.u32 4788187, %v3525
        %v3527 = vand.u32 2147483647, %v3526
        %v3529 = vcvt.s32.f32 %v3522
        %v3530 = vmul.f32 %v3529, %v3527
        %v3531 = vxor.u32 %v3530, 2147483648
        %v3532 = vsel %vm3449, %v3531, %v3530
        %v3533 = vsub.s32 4, %v3509
        %v3534 = vsel %vm3449, %v3533, %v3509
        %v3535 = vsel %vm3448, %v1157, %v3532
        %v3536 = vsel %vm3448, 0, %v3534
        %v3537 = vcosq.f32.pop %v3535
        %v3538 = vsinq.f32.pop %v3535
        %vm3539 = vweird.f32 %v1157
        %v3540 = vadd.s32 %v3536, 3
        %v3541 = vand.u32 %v3540, 3
        %vm3542 = vcmp.lt.s32.totalorder %v3541, 2
        %vm3543 = vcmp.eq.s32.totalorder %v3541, 0
        %v3544 = vxor.u32 %v3538, 2147483648
        %v3545 = vsel %vm3543, %v3537, %v3544
        %vm3546 = vcmp.eq.s32.totalorder %v3541, 2
        %v3547 = vxor.u32 %v3537, 2147483648
        %v3548 = vsel %vm3546, %v3547, %v3538
        %v3549 = vsel %vm3542, %v3545, %v3548
        %v3550 = vsel %vm3539, nan, %v3549
        %v3551 = vand.u32 2147483647, %v1158
        %vm3552 = vcmp.le.f32.partialorder %v3551, 0.7853982
        %vm3553 = vcmp.lt.s32.totalorder %v1158, 0
        %v3554 = vand.u32 %v1158, 2139095040
        %v3555 = vshrl.u32 %v3554, 23
        %v3556 = vsub.s32 %v3555, 127
        %v3557 = vand.u32 2147483647, %v1158
        %v3558 = vand.u32 %v3557, 8388607
        %v3559 = vor.u32 %v3558, 8388608
        %v3560 = vsub.s32 0, %v3559
        %v3561 = vadd.s32 %v3556, 1
        %vm3562 = vcmp.gt.s32.totalorder %v3561, 0
        %v3563 = vsel %vm3562, %v3561, 0
        %v3564 = vshrl.u32 %v3563, 5
        %v3565 = vand.u32 %v3563, 31
        %v3566 = vsub.s32 32, %v3565
        %v3567 = vshrl.u32 683565275, %v3566
        %v3568 = vshll.u32 683565275, %v3565
        %v3569 = vshrl.u32 2475754826, %v3566
        %v3570 = vor.u32 %v3568, %v3569
        %v3571 = vshll.u32 2475754826, %v3565
        %v3572 = vshrl.u32 2131351028, %v3566
        %v3573 = vor.u32 %v3571, %v3572
        %v3574 = vshll.u32 2131351028, %v3565
        %v3575 = vshrl.u32 2102212464, %v3566
        %v3576 = vor.u32 %v3574, %v3575
        %v3577 = vshll.u32 2102212464, %v3565
        %v3578 = vshrl.u32 920167782, %v3566
        %v3579 = vor.u32 %v3577, %v3578
        %v3580 = vshll.u32 920167782, %v3565
        %v3581 = vshrl.u32 1326507024, %v3566
        %v3582 = vor.u32 %v3580, %v3581
        %vm3583 = vcmp.lt.s32.totalorder %v3564, 1
        %vm3584 = vcmp.lt.s32.totalorder %v3564, 2
        %vm3585 = vcmp.lt.s32.totalorder %v3564, 3
        %vm3586 = vcmp.lt.s32.totalorder %v3564, 4
        %v3587 = vsel %vm3583, %v3567, %v3570
        %v3588 = vsel %vm3586, %v3576, 2102212464
        %v3589 = vsel %vm3585, %v3573, %v3588
        %v3590 = vsel %vm3584, %v3587, %v3589
        %v3591 = vsel %vm3583, %v3570, %v3573
        %v3592 = vsel %vm3586, %v3579, 920167782
        %v3593 = vsel %vm3585, %v3576, %v3592
        %v3594 = vsel %vm3584, %v3591, %v3593
        %v3595 = vsel %vm3583, %v3573, %v3576
        %v3596 = vsel %vm3586, %v3582, 1326507024
        %v3597 = vsel %vm3585, %v3579, %v3596
        %v3598 = vsel %vm3584, %v3595, %v3597
        %v3599 = vshll.u32 %v3559, 8
        %v3600 = vmul.u32.u64.compose %v3599, %v3598
        %v3601 = vextract.low.u32 %v3600
        %v3602 = vextract.high.u32 %v3600
        %v3603 = vmul.u32.u64.compose %v3599, %v3594
        %v3604 = vextract.low.u32 %v3603
        %v3605 = vextract.high.u32 %v3603
        %v3606 = vmul.u32 %v3599, %v3590
        %v3607 = vadd.s32 %v3602, %v3604
        %vm3608 = vc.u32 %v3602, %v3604
        %v3609 = vadd.s32 %v3605, 1
        %v3610 = vsel %vm3608, %v3609, %v3605
        %v3611 = vadd.s32 %v3606, %v3610
        %v3612 = vadd.s32 %v3611, 536870912
        %v3613 = vshrl.u32 %v3612, 30
        %v3614 = vshll.u32 %v3613, 30
        %v3615 = vsub.s32 %v3611, %v3614
        %vm3616 = vcmp.lt.s32.totalorder %v3615, 0
        %v3617 = vsub.s32 0, %v3615
        %v3618 = vsel %vm3616, %v3617, %v3615
        %v3619 = vclz %v3618
        %v3620 = vsub.s32 %v3619, 2
        %vm3621 = vcmp.gt.s32.totalorder 0, %v3620
        %v3622 = vsel %vm3621, 0, %v3620
        %v3623 = vsub.s32 32, %v3622
        %v3624 = vshll.u32 %v3615, %v3622
        %v3625 = vshrl.u32 %v3607, %v3623
        %v3626 = vor.u32 %v3624, %v3625
        %v3627 = vsub.s32 4294967266, %v3622
        %v3628 = vadd.s32 %v3627, 127
        %v3629 = vshll.u32 %v3628, 23
        %v3630 = vor.u32 4788187, %v3629
        %v3631 = vand.u32 2147483647, %v3630
        %v3633 = vcvt.s32.f32 %v3626
        %v3634 = vmul.f32 %v3633, %v3631
        %v3635 = vxor.u32 %v3634, 2147483648
        %v3636 = vsel %vm3553, %v3635, %v3634
        %v3637 = vsub.s32 4, %v3613
        %v3638 = vsel %vm3553, %v3637, %v3613
        %v3639 = vsel %vm3552, %v1158, %v3636
        %v3640 = vsel %vm3552, 0, %v3638
        %v3641 = vcosq.f32.pop %v3639
        %v3642 = vsinq.f32.pop %v3639
        %vm3643 = vweird.f32 %v1158
        %v3644 = vadd.s32 %v3640, 3
        %v3645 = vand.u32 %v3644, 3
        %vm3646 = vcmp.lt.s32.totalorder %v3645, 2
        %vm3647 = vcmp.eq.s32.totalorder %v3645, 0
        %v3648 = vxor.u32 %v3642, 2147483648
        %v3649 = vsel %vm3647, %v3641, %v3648
        %vm3650 = vcmp.eq.s32.totalorder %v3645, 2
        %v3651 = vxor.u32 %v3641, 2147483648
        %v3652 = vsel %vm3650, %v3651, %v3642
        %v3653 = vsel %vm3646, %v3649, %v3652
        %v3654 = vsel %vm3643, nan, %v3653
        %v3655 = vld [vmem:[%s4] sm:$0xff]
        %v3656 = vld [vmem:[%s4 + $0x8] sm:$0xff]
        %v3657 = vld [vmem:[%s4 + $0x10] sm:$0xff]
        %v3658 = vld [vmem:[%s4 + $0x18] sm:$0xff]
        %v3659 = vld [vmem:[%s4 + $0x20] sm:$0xff]
        %v3660 = vld [vmem:[%s4 + $0x28] sm:$0xff]
        %v3661 = vld [vmem:[%s4 + $0x30] sm:$0xff]
        %v3662 = vld [vmem:[%s4 + $0x38] sm:$0xf]
        %v3663 = vld [vmem:[%s5] sm:$0x1]
        %v3665 = vlaneseq
        %v3666 = vshrl.u32 %v3665, 7
        %v3667 = vsub.s32 0, %v3666
        %v3668 = vrot.slane %v3663, %v3667
        %vm3670 = vcmask 490496
        %v3672 = vsel %vm3670, %v1262, 0
        %v3675 = vsel %vm3670, %v1366, 0
        %v3678 = vsel %vm3670, %v1470, 0
        %v3681 = vsel %vm3670, %v1574, 0
        %v3684 = vsel %vm3670, %v1678, 0
        %v3687 = vsel %vm3670, %v1782, 0
        %v3690 = vsel %vm3670, %v1886, 0
        %v3693 = vsel %vm3670, %v1990, 0
        %v3696 = vsel %vm3670, %v2094, 0
        %v3699 = vsel %vm3670, %v2198, 0
        %v3702 = vsel %vm3670, %v2302, 0
        %v3705 = vsel %vm3670, %v2406, 0
        %v3708 = vsel %vm3670, %v2510, 0
        %v3711 = vsel %vm3670, %v2614, 0
        %v3714 = vsel %vm3670, %v2718, 0
        %v3717 = vsel %vm3670, %v2822, 0
        %v3720 = vsel %vm3670, %v2926, 0
        %v3723 = vsel %vm3670, %v3030, 0
        %v3726 = vsel %vm3670, %v3134, 0
        %v3729 = vsel %vm3670, %v3238, 0
        %v3732 = vsel %vm3670, %v3342, 0
        %v3735 = vsel %vm3670, %v3446, 0
        %v3738 = vsel %vm3670, %v3550, 0
        %v3741 = vsel %vm3670, %v3654, 0
        %vm3743 = vcmask 1043456
        %v3745 = vsel %vm3743, %v3662, 0
        %3747 = vmatprep.subr.mxu0 0.0
        %3748 = vmatpush1.msra.mxu0 %v3655
        %3749 = vmatprep.subr.mxu0 0.0
        %3750 = vmatpush1.msra.mxu0 %v3656
        %3751 = vmatprep.subr.mxu0 0.0
        %3752 = vmatpush1.msra.mxu0 %v3657
        %3753 = vmatprep.subr.mxu0 0.0
        %3754 = vmatpush1.msra.mxu0 %v3658
        %3755 = vmatprep.subr.mxu0 0.0
        %3756 = vmatpush1.msra.mxu0 %v3659
        %3757 = vmatprep.subr.mxu0 0.0
        %3758 = vmatpush1.msra.mxu0 %v3660
        %3759 = vmatprep.subr.mxu0 0.0
        %3760 = vmatpush1.msra.mxu0 %v3661
        %3761 = vmatprep.subr.mxu0 0.0
        %3762 = vmatpush1.msra.mxu0 %v3745
        %3763 = vmatprep.subr.mxu0 0.0
        %3764 = vmatpush1.msra.mxu0 0.0
        %3765 = vmatprep.subr.mxu0 0.0
        %3766 = vmatpush1.msra.mxu0 0.0
        %3767 = vmatprep.subr.mxu0 0.0
        %3768 = vmatpush1.msra.mxu0 0.0
        %3769 = vmatprep.subr.mxu0 0.0
        %3770 = vmatpush1.msra.mxu0 0.0
        %3771 = vmatprep.subr.mxu0 0.0
        %3772 = vmatpush1.msra.mxu0 0.0
        %3773 = vmatprep.subr.mxu0 0.0
        %3774 = vmatpush1.msra.mxu0 0.0
        %3775 = vmatprep.subr.mxu0 0.0
        %3776 = vmatpush1.msra.mxu0 0.0
        %3777 = vmatprep.subr.mxu0 0.0
        %3778 = vmatpush1.msra.mxu0 0.0
        %3779 = vmatprep.subr.mxu0 0.0
        %3780 = vmatpush1.msra.mxu0 0.0
        %3781 = vmatprep.subr.mxu0 0.0
        %3782 = vmatpush1.msra.mxu0 0.0
        %3783 = vmatprep.subr.mxu0 0.0
        %3784 = vmatpush1.msra.mxu0 0.0
        %3785 = vmatprep.subr.mxu0 0.0
        %3786 = vmatpush1.msra.mxu0 0.0
        %3787 = vmatprep.subr.mxu0 0.0
        %3788 = vmatpush1.msra.mxu0 0.0
        %3789 = vmatprep.subr.mxu0 0.0
        %3790 = vmatpush1.msra.mxu0 0.0
        %3791 = vmatprep.subr.mxu0 0.0
        %3792 = vmatpush1.msra.mxu0 0.0
        %3793 = vmatprep.subr.mxu0 0.0
        %3794 = vmatpush1.msra.mxu0 0.0
        %3795 = vmatprep.subr.mxu0 0.0
        %3796 = vmatpush1.msra.mxu0 0.0
        %3797 = vmatprep.subr.mxu0 0.0
        %3798 = vmatpush1.msra.mxu0 0.0
        %3799 = vmatprep.subr.mxu0 0.0
        %3800 = vmatpush1.msra.mxu0 0.0
        %3801 = vmatprep.subr.mxu0 0.0
        %3802 = vmatpush1.msra.mxu0 0.0
        %3803 = vmatprep.subr.mxu0 0.0
        %3804 = vmatpush1.msra.mxu0 0.0
        %3805 = vmatprep.subr.mxu0 0.0
        %3806 = vmatpush1.msra.mxu0 0.0
        %3807 = vmatprep.subr.mxu0 0.0
        %3808 = vmatpush1.msra.mxu0 0.0
        %3809 = vmatprep.subr.mxu0 0.0
        %3810 = vmatpush1.msra.mxu0 0.0
        %3811 = vmatprep.mubr.f32.mxu0 0.0
        %3812 = vmatmul.mubr.f32.gmra.mrb[0].mxu0 %v3672
        %v3813 = vpop.f32.mrb[0].mxu0
        %v3814 = vadd.f32 %v3668, %v3813
        %v3815 = vpop.f32.mrb[0].mxu0
        %3816 = vmatprep.mubr.f32.mxu0 0.0
        %3817 = vmatmul.mubr.f32.gmra.mrb[0].mxu0 %v3675
        %v3818 = vpop.f32.mrb[0].mxu0
        %v3819 = vadd.f32 %v3668, %v3818
        %v3820 = vpop.f32.mrb[0].mxu0
        %3821 = vmatprep.mubr.f32.mxu0 0.0
        %3822 = vmatmul.mubr.f32.gmra.mrb[0].mxu0 %v3678
        %v3823 = vpop.f32.mrb[0].mxu0
        %v3824 = vadd.f32 %v3668, %v3823
        %v3825 = vpop.f32.mrb[0].mxu0
        %3826 = vmatprep.mubr.f32.mxu0 0.0
        %3827 = vmatmul.mubr.f32.gmra.mrb[0].mxu0 %v3681
        %v3828 = vpop.f32.mrb[0].mxu0
        %v3829 = vadd.f32 %v3668, %v3828
        %v3830 = vpop.f32.mrb[0].mxu0
        %3831 = vmatprep.mubr.f32.mxu0 0.0
        %3832 = vmatmul.mubr.f32.gmra.mrb[0].mxu0 %v3684
        %v3833 = vpop.f32.mrb[0].mxu0
        %v3834 = vadd.f32 %v3668, %v3833
        %v3835 = vpop.f32.mrb[0].mxu0
        %3836 = vmatprep.mubr.f32.mxu0 0.0
        %3837 = vmatmul.mubr.f32.gmra.mrb[0].mxu0 %v3687
        %v3838 = vpop.f32.mrb[0].mxu0
        %v3839 = vadd.f32 %v3668, %v3838
        %v3840 = vpop.f32.mrb[0].mxu0
        %3841 = vmatprep.mubr.f32.mxu0 0.0
        %3842 = vmatmul.mubr.f32.gmra.mrb[0].mxu0 %v3690
        %v3843 = vpop.f32.mrb[0].mxu0
        %v3844 = vadd.f32 %v3668, %v3843
        %v3845 = vpop.f32.mrb[0].mxu0
        %3846 = vmatprep.mubr.f32.mxu0 0.0
        %3847 = vmatmul.mubr.f32.gmra.mrb[0].mxu0 %v3693
        %v3848 = vpop.f32.mrb[0].mxu0
        %v3849 = vadd.f32 %v3668, %v3848
        %v3850 = vpop.f32.mrb[0].mxu0
        %3851 = vmatprep.mubr.f32.mxu0 0.0
        %3852 = vmatmul.mubr.f32.gmra.mrb[0].mxu0 %v3696
        %v3853 = vpop.f32.mrb[0].mxu0
        %v3854 = vadd.f32 %v3668, %v3853
        %v3855 = vpop.f32.mrb[0].mxu0
        %3856 = vmatprep.mubr.f32.mxu0 0.0
        %3857 = vmatmul.mubr.f32.gmra.mrb[0].mxu0 %v3699
        %v3858 = vpop.f32.mrb[0].mxu0
        %v3859 = vadd.f32 %v3668, %v3858
        %v3860 = vpop.f32.mrb[0].mxu0
        %3861 = vmatprep.mubr.f32.mxu0 0.0
        %3862 = vmatmul.mubr.f32.gmra.mrb[0].mxu0 %v3702
        %v3863 = vpop.f32.mrb[0].mxu0
        %v3864 = vadd.f32 %v3668, %v3863
        %v3865 = vpop.f32.mrb[0].mxu0
        %3866 = vmatprep.mubr.f32.mxu0 0.0
        %3867 = vmatmul.mubr.f32.gmra.mrb[0].mxu0 %v3705
        %v3868 = vpop.f32.mrb[0].mxu0
        %v3869 = vadd.f32 %v3668, %v3868
        %v3870 = vpop.f32.mrb[0].mxu0
        %3871 = vmatprep.mubr.f32.mxu0 0.0
        %3872 = vmatmul.mubr.f32.gmra.mrb[0].mxu0 %v3708
        %v3873 = vpop.f32.mrb[0].mxu0
        %v3874 = vadd.f32 %v3668, %v3873
        %v3875 = vpop.f32.mrb[0].mxu0
        %3876 = vmatprep.mubr.f32.mxu0 0.0
        %3877 = vmatmul.mubr.f32.gmra.mrb[0].mxu0 %v3711
        %v3878 = vpop.f32.mrb[0].mxu0
        %v3879 = vadd.f32 %v3668, %v3878
        %v3880 = vpop.f32.mrb[0].mxu0
        %3881 = vmatprep.mubr.f32.mxu0 0.0
        %3882 = vmatmul.mubr.f32.gmra.mrb[0].mxu0 %v3714
        %v3883 = vpop.f32.mrb[0].mxu0
        %v3884 = vadd.f32 %v3668, %v3883
        %v3885 = vpop.f32.mrb[0].mxu0
        %3886 = vmatprep.mubr.f32.mxu0 0.0
        %3887 = vmatmul.mubr.f32.gmra.mrb[0].mxu0 %v3717
        %v3888 = vpop.f32.mrb[0].mxu0
        %v3889 = vadd.f32 %v3668, %v3888
        %v3890 = vpop.f32.mrb[0].mxu0
        %3891 = vmatprep.mubr.f32.mxu0 0.0
        %3892 = vmatmul.mubr.f32.gmra.mrb[0].mxu0 %v3720
        %v3893 = vpop.f32.mrb[0].mxu0
        %v3894 = vadd.f32 %v3668, %v3893
        %v3895 = vpop.f32.mrb[0].mxu0
        %3896 = vmatprep.mubr.f32.mxu0 0.0
        %3897 = vmatmul.mubr.f32.gmra.mrb[0].mxu0 %v3723
        %v3898 = vpop.f32.mrb[0].mxu0
        %v3899 = vadd.f32 %v3668, %v3898
        %v3900 = vpop.f32.mrb[0].mxu0
        %3901 = vmatprep.mubr.f32.mxu0 0.0
        %3902 = vmatmul.mubr.f32.gmra.mrb[0].mxu0 %v3726
        %v3903 = vpop.f32.mrb[0].mxu0
        %v3904 = vadd.f32 %v3668, %v3903
        %v3905 = vpop.f32.mrb[0].mxu0
        %3906 = vmatprep.mubr.f32.mxu0 0.0
        %3907 = vmatmul.mubr.f32.gmra.mrb[0].mxu0 %v3729
        %v3908 = vpop.f32.mrb[0].mxu0
        %v3909 = vadd.f32 %v3668, %v3908
        %v3910 = vpop.f32.mrb[0].mxu0
        %3911 = vmatprep.mubr.f32.mxu0 0.0
        %3912 = vmatmul.mubr.f32.gmra.mrb[0].mxu0 %v3732
        %v3913 = vpop.f32.mrb[0].mxu0
        %v3914 = vadd.f32 %v3668, %v3913
        %v3915 = vpop.f32.mrb[0].mxu0
        %3916 = vmatprep.mubr.f32.mxu0 0.0
        %3917 = vmatmul.mubr.f32.gmra.mrb[0].mxu0 %v3735
        %v3918 = vpop.f32.mrb[0].mxu0
        %v3919 = vadd.f32 %v3668, %v3918
        %v3920 = vpop.f32.mrb[0].mxu0
        %3921 = vmatprep.mubr.f32.mxu0 0.0
        %3922 = vmatmul.mubr.f32.gmra.mrb[0].mxu0 %v3738
        %v3923 = vpop.f32.mrb[0].mxu0
        %v3924 = vadd.f32 %v3668, %v3923
        %v3925 = vpop.f32.mrb[0].mxu0
        %3926 = vmatprep.mubr.f32.mxu0 0.0
        %3927 = vmatmul.mubr.f32.gmra.mrb[0].mxu0 %v3741
        %v3928 = vpop.f32.mrb[0].mxu0
        %v3929 = vadd.f32 %v3668, %v3928
        %v3930 = vpop.f32.mrb[0].mxu0
        %3931 = vdwg.mxu0
        %v3932 = vmax.f32 %v3814, 0.0
        %v3933 = vmax.f32 %v3819, 0.0
        %v3934 = vmax.f32 %v3824, 0.0
        %v3935 = vmax.f32 %v3829, 0.0
        %v3936 = vmax.f32 %v3834, 0.0
        %v3937 = vmax.f32 %v3839, 0.0
        %v3938 = vmax.f32 %v3844, 0.0
        %v3939 = vmax.f32 %v3849, 0.0
        %v3940 = vmax.f32 %v3854, 0.0
        %v3941 = vmax.f32 %v3859, 0.0
        %v3942 = vmax.f32 %v3864, 0.0
        %v3943 = vmax.f32 %v3869, 0.0
        %v3944 = vmax.f32 %v3874, 0.0
        %v3945 = vmax.f32 %v3879, 0.0
        %v3946 = vmax.f32 %v3884, 0.0
        %v3947 = vmax.f32 %v3889, 0.0
        %v3948 = vmax.f32 %v3894, 0.0
        %v3949 = vmax.f32 %v3899, 0.0
        %v3950 = vmax.f32 %v3904, 0.0
        %v3951 = vmax.f32 %v3909, 0.0
        %v3952 = vmax.f32 %v3914, 0.0
        %v3953 = vmax.f32 %v3919, 0.0
        %v3954 = vmax.f32 %v3924, 0.0
        %v3955 = vmax.f32 %v3929, 0.0
        %v3956 = vld [vmem:[%s6] sm:$0xff]
        %v3957 = vld [vmem:[%s6 + $0x8] sm:$0xff]
        %v3958 = vld [vmem:[%s6 + $0x10] sm:$0xff]
        %v3959 = vld [vmem:[%s6 + $0x18] sm:$0xff]
        %v3960 = vld [vmem:[%s7] sm:$0x1]
        %v3962 = vlaneseq
        %v3963 = vshrl.u32 %v3962, 7
        %v3964 = vsub.s32 0, %v3963
        %v3965 = vrot.slane %v3960, %v3964
        %vm3967 = vcmask 261120
        %v3969 = vsel %vm3967, %v3932, 0
        %v3972 = vsel %vm3967, %v3933, 0
        %v3975 = vsel %vm3967, %v3934, 0
        %v3978 = vsel %vm3967, %v3935, 0
        %v3981 = vsel %vm3967, %v3936, 0
        %v3984 = vsel %vm3967, %v3937, 0
        %v3987 = vsel %vm3967, %v3938, 0
        %v3990 = vsel %vm3967, %v3939, 0
        %v3993 = vsel %vm3967, %v3940, 0
        %v3996 = vsel %vm3967, %v3941, 0
        %v3999 = vsel %vm3967, %v3942, 0
        %v4002 = vsel %vm3967, %v3943, 0
        %v4005 = vsel %vm3967, %v3944, 0
        %v4008 = vsel %vm3967, %v3945, 0
        %v4011 = vsel %vm3967, %v3946, 0
        %v4014 = vsel %vm3967, %v3947, 0
        %v4017 = vsel %vm3967, %v3948, 0
        %v4020 = vsel %vm3967, %v3949, 0
        %v4023 = vsel %vm3967, %v3950, 0
        %v4026 = vsel %vm3967, %v3951, 0
        %v4029 = vsel %vm3967, %v3952, 0
        %v4032 = vsel %vm3967, %v3953, 0
        %v4035 = vsel %vm3967, %v3954, 0
        %v4038 = vsel %vm3967, %v3955, 0
        %4040 = vmatprep.subr.mxu0 0.0
        %4041 = vmatpush1.msra.mxu0 %v3956
        %4042 = vmatprep.subr.mxu0 0.0
        %4043 = vmatpush1.msra.mxu0 %v3957
        %4044 = vmatprep.subr.mxu0 0.0
        %4045 = vmatpush1.msra.mxu0 %v3958
        %4046 = vmatprep.subr.mxu0 0.0
        %4047 = vmatpush1.msra.mxu0 %v3959
        %4048 = vmatprep.subr.mxu0 0.0
        %4049 = vmatpush1.msra.mxu0 0.0
        %4050 = vmatprep.subr.mxu0 0.0
        %4051 = vmatpush1.msra.mxu0 0.0
        %4052 = vmatprep.subr.mxu0 0.0
        %4053 = vmatpush1.msra.mxu0 0.0
        %4054 = vmatprep.subr.mxu0 0.0
        %4055 = vmatpush1.msra.mxu0 0.0
        %4056 = vmatprep.subr.mxu0 0.0
        %4057 = vmatpush1.msra.mxu0 0.0
        %4058 = vmatprep.subr.mxu0 0.0
        %4059 = vmatpush1.msra.mxu0 0.0
        %4060 = vmatprep.subr.mxu0 0.0
        %4061 = vmatpush1.msra.mxu0 0.0
        %4062 = vmatprep.subr.mxu0 0.0
        %4063 = vmatpush1.msra.mxu0 0.0
        %4064 = vmatprep.subr.mxu0 0.0
        %4065 = vmatpush1.msra.mxu0 0.0
        %4066 = vmatprep.subr.mxu0 0.0
        %4067 = vmatpush1.msra.mxu0 0.0
        %4068 = vmatprep.subr.mxu0 0.0
        %4069 = vmatpush1.msra.mxu0 0.0
        %4070 = vmatprep.subr.mxu0 0.0
        %4071 = vmatpush1.msra.mxu0 0.0
        %4072 = vmatprep.subr.mxu0 0.0
        %4073 = vmatpush1.msra.mxu0 0.0
        %4074 = vmatprep.subr.mxu0 0.0
        %4075 = vmatpush1.msra.mxu0 0.0
        %4076 = vmatprep.subr.mxu0 0.0
        %4077 = vmatpush1.msra.mxu0 0.0
        %4078 = vmatprep.subr.mxu0 0.0
        %4079 = vmatpush1.msra.mxu0 0.0
        %4080 = vmatprep.subr.mxu0 0.0
        %4081 = vmatpush1.msra.mxu0 0.0
        %4082 = vmatprep.subr.mxu0 0.0
        %4083 = vmatpush1.msra.mxu0 0.0
        %4084 = vmatprep.subr.mxu0 0.0
        %4085 = vmatpush1.msra.mxu0 0.0
        %4086 = vmatprep.subr.mxu0 0.0
        %4087 = vmatpush1.msra.mxu0 0.0
        %4088 = vmatprep.subr.mxu0 0.0
        %4089 = vmatpush1.msra.mxu0 0.0
        %4090 = vmatprep.subr.mxu0 0.0
        %4091 = vmatpush1.msra.mxu0 0.0
        %4092 = vmatprep.subr.mxu0 0.0
        %4093 = vmatpush1.msra.mxu0 0.0
        %4094 = vmatprep.subr.mxu0 0.0
        %4095 = vmatpush1.msra.mxu0 0.0
        %4096 = vmatprep.subr.mxu0 0.0
        %4097 = vmatpush1.msra.mxu0 0.0
        %4098 = vmatprep.subr.mxu0 0.0
        %4099 = vmatpush1.msra.mxu0 0.0
        %4100 = vmatprep.subr.mxu0 0.0
        %4101 = vmatpush1.msra.mxu0 0.0
        %4102 = vmatprep.subr.mxu0 0.0
        %4103 = vmatpush1.msra.mxu0 0.0
        %4104 = vmatprep.mubr.f32.mxu0 0.0
        %4105 = vmatmul.mubr.f32.gmra.mrb[0].mxu0 %v3969
        %v4106 = vpop.f32.mrb[0].mxu0
        %v4107 = vadd.f32 %v3965, %v4106
        %v4108 = vpop.f32.mrb[0].mxu0
        %4109 = vmatprep.mubr.f32.mxu0 0.0
        %4110 = vmatmul.mubr.f32.gmra.mrb[0].mxu0 %v3972
        %v4111 = vpop.f32.mrb[0].mxu0
        %v4112 = vadd.f32 %v3965, %v4111
        %v4113 = vpop.f32.mrb[0].mxu0
        %4114 = vmatprep.mubr.f32.mxu0 0.0
        %4115 = vmatmul.mubr.f32.gmra.mrb[0].mxu0 %v3975
        %v4116 = vpop.f32.mrb[0].mxu0
        %v4117 = vadd.f32 %v3965, %v4116
        %v4118 = vpop.f32.mrb[0].mxu0
        %4119 = vmatprep.mubr.f32.mxu0 0.0
        %4120 = vmatmul.mubr.f32.gmra.mrb[0].mxu0 %v3978
        %v4121 = vpop.f32.mrb[0].mxu0
        %v4122 = vadd.f32 %v3965, %v4121
        %v4123 = vpop.f32.mrb[0].mxu0
        %4124 = vmatprep.mubr.f32.mxu0 0.0
        %4125 = vmatmul.mubr.f32.gmra.mrb[0].mxu0 %v3981
        %v4126 = vpop.f32.mrb[0].mxu0
        %v4127 = vadd.f32 %v3965, %v4126
        %v4128 = vpop.f32.mrb[0].mxu0
        %4129 = vmatprep.mubr.f32.mxu0 0.0
        %4130 = vmatmul.mubr.f32.gmra.mrb[0].mxu0 %v3984
        %v4131 = vpop.f32.mrb[0].mxu0
        %v4132 = vadd.f32 %v3965, %v4131
        %v4133 = vpop.f32.mrb[0].mxu0
        %4134 = vmatprep.mubr.f32.mxu0 0.0
        %4135 = vmatmul.mubr.f32.gmra.mrb[0].mxu0 %v3987
        %v4136 = vpop.f32.mrb[0].mxu0
        %v4137 = vadd.f32 %v3965, %v4136
        %v4138 = vpop.f32.mrb[0].mxu0
        %4139 = vmatprep.mubr.f32.mxu0 0.0
        %4140 = vmatmul.mubr.f32.gmra.mrb[0].mxu0 %v3990
        %v4141 = vpop.f32.mrb[0].mxu0
        %v4142 = vadd.f32 %v3965, %v4141
        %v4143 = vpop.f32.mrb[0].mxu0
        %4144 = vmatprep.mubr.f32.mxu0 0.0
        %4145 = vmatmul.mubr.f32.gmra.mrb[0].mxu0 %v3993
        %v4146 = vpop.f32.mrb[0].mxu0
        %v4147 = vadd.f32 %v3965, %v4146
        %v4148 = vpop.f32.mrb[0].mxu0
        %4149 = vmatprep.mubr.f32.mxu0 0.0
        %4150 = vmatmul.mubr.f32.gmra.mrb[0].mxu0 %v3996
        %v4151 = vpop.f32.mrb[0].mxu0
        %v4152 = vadd.f32 %v3965, %v4151
        %v4153 = vpop.f32.mrb[0].mxu0
        %4154 = vmatprep.mubr.f32.mxu0 0.0
        %4155 = vmatmul.mubr.f32.gmra.mrb[0].mxu0 %v3999
        %v4156 = vpop.f32.mrb[0].mxu0
        %v4157 = vadd.f32 %v3965, %v4156
        %v4158 = vpop.f32.mrb[0].mxu0
        %4159 = vmatprep.mubr.f32.mxu0 0.0
        %4160 = vmatmul.mubr.f32.gmra.mrb[0].mxu0 %v4002
        %v4161 = vpop.f32.mrb[0].mxu0
        %v4162 = vadd.f32 %v3965, %v4161
        %v4163 = vpop.f32.mrb[0].mxu0
        %4164 = vmatprep.mubr.f32.mxu0 0.0
        %4165 = vmatmul.mubr.f32.gmra.mrb[0].mxu0 %v4005
        %v4166 = vpop.f32.mrb[0].mxu0
        %v4167 = vadd.f32 %v3965, %v4166
        %v4168 = vpop.f32.mrb[0].mxu0
        %4169 = vmatprep.mubr.f32.mxu0 0.0
        %4170 = vmatmul.mubr.f32.gmra.mrb[0].mxu0 %v4008
        %v4171 = vpop.f32.mrb[0].mxu0
        %v4172 = vadd.f32 %v3965, %v4171
        %v4173 = vpop.f32.mrb[0].mxu0
        %4174 = vmatprep.mubr.f32.mxu0 0.0
        %4175 = vmatmul.mubr.f32.gmra.mrb[0].mxu0 %v4011
        %v4176 = vpop.f32.mrb[0].mxu0
        %v4177 = vadd.f32 %v3965, %v4176
        %v4178 = vpop.f32.mrb[0].mxu0
        %4179 = vmatprep.mubr.f32.mxu0 0.0
        %4180 = vmatmul.mubr.f32.gmra.mrb[0].mxu0 %v4014
        %v4181 = vpop.f32.mrb[0].mxu0
        %v4182 = vadd.f32 %v3965, %v4181
        %v4183 = vpop.f32.mrb[0].mxu0
        %4184 = vmatprep.mubr.f32.mxu0 0.0
        %4185 = vmatmul.mubr.f32.gmra.mrb[0].mxu0 %v4017
        %v4186 = vpop.f32.mrb[0].mxu0
        %v4187 = vadd.f32 %v3965, %v4186
        %v4188 = vpop.f32.mrb[0].mxu0
        %4189 = vmatprep.mubr.f32.mxu0 0.0
        %4190 = vmatmul.mubr.f32.gmra.mrb[0].mxu0 %v4020
        %v4191 = vpop.f32.mrb[0].mxu0
        %v4192 = vadd.f32 %v3965, %v4191
        %v4193 = vpop.f32.mrb[0].mxu0
        %4194 = vmatprep.mubr.f32.mxu0 0.0
        %4195 = vmatmul.mubr.f32.gmra.mrb[0].mxu0 %v4023
        %v4196 = vpop.f32.mrb[0].mxu0
        %v4197 = vadd.f32 %v3965, %v4196
        %v4198 = vpop.f32.mrb[0].mxu0
        %4199 = vmatprep.mubr.f32.mxu0 0.0
        %4200 = vmatmul.mubr.f32.gmra.mrb[0].mxu0 %v4026
        %v4201 = vpop.f32.mrb[0].mxu0
        %v4202 = vadd.f32 %v3965, %v4201
        %v4203 = vpop.f32.mrb[0].mxu0
        %4204 = vmatprep.mubr.f32.mxu0 0.0
        %4205 = vmatmul.mubr.f32.gmra.mrb[0].mxu0 %v4029
        %v4206 = vpop.f32.mrb[0].mxu0
        %v4207 = vadd.f32 %v3965, %v4206
        %v4208 = vpop.f32.mrb[0].mxu0
        %4209 = vmatprep.mubr.f32.mxu0 0.0
        %4210 = vmatmul.mubr.f32.gmra.mrb[0].mxu0 %v4032
        %v4211 = vpop.f32.mrb[0].mxu0
        %v4212 = vadd.f32 %v3965, %v4211
        %v4213 = vpop.f32.mrb[0].mxu0
        %4214 = vmatprep.mubr.f32.mxu0 0.0
        %4215 = vmatmul.mubr.f32.gmra.mrb[0].mxu0 %v4035
        %v4216 = vpop.f32.mrb[0].mxu0
        %v4217 = vadd.f32 %v3965, %v4216
        %v4218 = vpop.f32.mrb[0].mxu0
        %4219 = vmatprep.mubr.f32.mxu0 0.0
        %4220 = vmatmul.mubr.f32.gmra.mrb[0].mxu0 %v4038
        %v4221 = vpop.f32.mrb[0].mxu0
        %v4222 = vadd.f32 %v3965, %v4221
        %v4223 = vpop.f32.mrb[0].mxu0
        %4224 = vdwg.mxu0
        %v4225 = vadd.f32 %v650, %v4107
        %v4226 = vadd.f32 %v651, %v4112
        %v4227 = vadd.f32 %v653, %v4117
        %v4228 = vadd.f32 %v654, %v4122
        %v4229 = vadd.f32 %v656, %v4127
        %v4230 = vadd.f32 %v657, %v4132
        %v4231 = vadd.f32 %v659, %v4137
        %v4232 = vadd.f32 %v660, %v4142
        %v4233 = vadd.f32 %v662, %v4147
        %v4234 = vadd.f32 %v663, %v4152
        %v4235 = vadd.f32 %v665, %v4157
        %v4236 = vadd.f32 %v666, %v4162
        %v4237 = vadd.f32 %v668, %v4167
        %v4238 = vadd.f32 %v669, %v4172
        %v4239 = vadd.f32 %v671, %v4177
        %v4240 = vadd.f32 %v672, %v4182
        %v4241 = vadd.f32 %v674, %v4187
        %v4242 = vadd.f32 %v675, %v4192
        %v4243 = vadd.f32 %v677, %v4197
        %v4244 = vadd.f32 %v678, %v4202
        %v4245 = vadd.f32 %v680, %v4207
        %v4246 = vadd.f32 %v681, %v4212
        %v4247 = vadd.f32 %v683, %v4217
        %v4248 = vadd.f32 %v684, %v4222
        %v4249 = vlaneseq
        %v4250 = vand.u32 %v4249, 127
        %v4251 = vmul.f32 %v4225, %v4225
        %v4252 = vmul.f32 %v4226, %v4226
        %v4253 = vsel %vm3967, %v4251, 0.0
        %4254 = vadd.xlane.f32.xlu0 %v4253
        %v4255 = vpop.xlane.xlu0 %4254
        %v4256 = vsel %vm3967, %v4252, 0.0
        %4257 = vadd.xlane.f32.xlu0 %v4256
        %v4258 = vpop.xlane.xlu0 %4257
        %vm4259 = vcmp.eq.s32.totalorder %v4250, 0
        %v4260 = vsel %vm4259, %v4255, 0.0
        %v4261 = vsel %vm4259, %v4258, 0.0
        %v4262 = vmul.f32 %v4227, %v4225
        %v4263 = vmul.f32 %v4228, %v4226
        %v4264 = vsel %vm3967, %v4262, 0.0
        %4265 = vadd.xlane.f32.xlu0 %v4264
        %v4266 = vpop.xlane.xlu0 %4265
        %v4267 = vsel %vm3967, %v4263, 0.0
        %4268 = vadd.xlane.f32.xlu0 %v4267
        %v4269 = vpop.xlane.xlu0 %4268
        %vm4270 = vcmp.eq.s32.totalorder %v4250, 1
        %v4271 = vsel %vm4270, %v4266, %v4260
        %v4272 = vsel %vm4270, %v4269, %v4261
        %v4273 = vmul.f32 %v4229, %v4225
        %v4274 = vmul.f32 %v4230, %v4226
        %v4275 = vsel %vm3967, %v4273, 0.0
        %4276 = vadd.xlane.f32.xlu0 %v4275
        %v4277 = vpop.xlane.xlu0 %4276
        %v4278 = vsel %vm3967, %v4274, 0.0
        %4279 = vadd.xlane.f32.xlu0 %v4278
        %v4280 = vpop.xlane.xlu0 %4279
        %vm4281 = vcmp.eq.s32.totalorder %v4250, 2
        %v4282 = vsel %vm4281, %v4277, %v4271
        %v4283 = vsel %vm4281, %v4280, %v4272
        %v4284 = vmul.f32 %v4231, %v4225
        %v4285 = vmul.f32 %v4232, %v4226
        %v4286 = vsel %vm3967, %v4284, 0.0
        %4287 = vadd.xlane.f32.xlu0 %v4286
        %v4288 = vpop.xlane.xlu0 %4287
        %v4289 = vsel %vm3967, %v4285, 0.0
        %4290 = vadd.xlane.f32.xlu0 %v4289
        %v4291 = vpop.xlane.xlu0 %4290
        %vm4292 = vcmp.eq.s32.totalorder %v4250, 3
        %v4293 = vsel %vm4292, %v4288, %v4282
        %v4294 = vsel %vm4292, %v4291, %v4283
        %v4295 = vmul.f32 %v4233, %v4225
        %v4296 = vmul.f32 %v4234, %v4226
        %v4297 = vsel %vm3967, %v4295, 0.0
        %4298 = vadd.xlane.f32.xlu0 %v4297
        %v4299 = vpop.xlane.xlu0 %4298
        %v4300 = vsel %vm3967, %v4296, 0.0
        %4301 = vadd.xlane.f32.xlu0 %v4300
        %v4302 = vpop.xlane.xlu0 %4301
        %vm4303 = vcmp.eq.s32.totalorder %v4250, 4
        %v4304 = vsel %vm4303, %v4299, %v4293
        %v4305 = vsel %vm4303, %v4302, %v4294
        %v4306 = vmul.f32 %v4235, %v4225
        %v4307 = vmul.f32 %v4236, %v4226
        %v4308 = vsel %vm3967, %v4306, 0.0
        %4309 = vadd.xlane.f32.xlu0 %v4308
        %v4310 = vpop.xlane.xlu0 %4309
        %v4311 = vsel %vm3967, %v4307, 0.0
        %4312 = vadd.xlane.f32.xlu0 %v4311
        %v4313 = vpop.xlane.xlu0 %4312
        %vm4314 = vcmp.eq.s32.totalorder %v4250, 5
        %v4315 = vsel %vm4314, %v4310, %v4304
        %v4316 = vsel %vm4314, %v4313, %v4305
        %v4317 = vmul.f32 %v4237, %v4225
        %v4318 = vmul.f32 %v4238, %v4226
        %v4319 = vsel %vm3967, %v4317, 0.0
        %4320 = vadd.xlane.f32.xlu0 %v4319
        %v4321 = vpop.xlane.xlu0 %4320
        %v4322 = vsel %vm3967, %v4318, 0.0
        %4323 = vadd.xlane.f32.xlu0 %v4322
        %v4324 = vpop.xlane.xlu0 %4323
        %vm4325 = vcmp.eq.s32.totalorder %v4250, 6
        %v4326 = vsel %vm4325, %v4321, %v4315
        %v4327 = vsel %vm4325, %v4324, %v4316
        %v4328 = vmul.f32 %v4239, %v4225
        %v4329 = vmul.f32 %v4240, %v4226
        %v4330 = vsel %vm3967, %v4328, 0.0
        %4331 = vadd.xlane.f32.xlu0 %v4330
        %v4332 = vpop.xlane.xlu0 %4331
        %v4333 = vsel %vm3967, %v4329, 0.0
        %4334 = vadd.xlane.f32.xlu0 %v4333
        %v4335 = vpop.xlane.xlu0 %4334
        %vm4336 = vcmp.eq.s32.totalorder %v4250, 7
        %v4337 = vsel %vm4336, %v4332, %v4326
        %v4338 = vsel %vm4336, %v4335, %v4327
        %v4339 = vmul.f32 %v4241, %v4225
        %v4340 = vmul.f32 %v4242, %v4226
        %v4341 = vsel %vm3967, %v4339, 0.0
        %4342 = vadd.xlane.f32.xlu0 %v4341
        %v4343 = vpop.xlane.xlu0 %4342
        %v4344 = vsel %vm3967, %v4340, 0.0
        %4345 = vadd.xlane.f32.xlu0 %v4344
        %v4346 = vpop.xlane.xlu0 %4345
        %vm4347 = vcmp.eq.s32.totalorder %v4250, 8
        %v4348 = vsel %vm4347, %v4343, %v4337
        %v4349 = vsel %vm4347, %v4346, %v4338
        %v4350 = vmul.f32 %v4243, %v4225
        %v4351 = vmul.f32 %v4244, %v4226
        %v4352 = vsel %vm3967, %v4350, 0.0
        %4353 = vadd.xlane.f32.xlu0 %v4352
        %v4354 = vpop.xlane.xlu0 %4353
        %v4355 = vsel %vm3967, %v4351, 0.0
        %4356 = vadd.xlane.f32.xlu0 %v4355
        %v4357 = vpop.xlane.xlu0 %4356
        %vm4358 = vcmp.eq.s32.totalorder %v4250, 9
        %v4359 = vsel %vm4358, %v4354, %v4348
        %v4360 = vsel %vm4358, %v4357, %v4349
        %v4361 = vmul.f32 %v4245, %v4225
        %v4362 = vmul.f32 %v4246, %v4226
        %v4363 = vsel %vm3967, %v4361, 0.0
        %4364 = vadd.xlane.f32.xlu0 %v4363
        %v4365 = vpop.xlane.xlu0 %4364
        %v4366 = vsel %vm3967, %v4362, 0.0
        %4367 = vadd.xlane.f32.xlu0 %v4366
        %v4368 = vpop.xlane.xlu0 %4367
        %vm4369 = vcmp.eq.s32.totalorder %v4250, 10
        %v4370 = vsel %vm4369, %v4365, %v4359
        %v4371 = vsel %vm4369, %v4368, %v4360
        %v4372 = vmul.f32 %v4247, %v4225
        %v4373 = vmul.f32 %v4248, %v4226
        %v4374 = vsel %vm3967, %v4372, 0.0
        %4375 = vadd.xlane.f32.xlu0 %v4374
        %v4376 = vpop.xlane.xlu0 %4375
        %v4377 = vsel %vm3967, %v4373, 0.0
        %4378 = vadd.xlane.f32.xlu0 %v4377
        %v4379 = vpop.xlane.xlu0 %4378
        %vm4380 = vcmp.eq.s32.totalorder %v4250, 11
        %v4381 = vsel %vm4380, %v4376, %v4370
        %v4382 = vsel %vm4380, %v4379, %v4371
        %vm4383 = vcmask 97280
        %v4384 = vsel %vm4383, %v4381, -inf
        %4385 = vmax.xlane.f32.xlu0 %v4384
        %v4386 = vpop.xlane.xlu0 %4385
        %v4387 = vsel %vm4383, %v4382, -inf
        %4388 = vmax.xlane.f32.xlu0 %v4387
        %v4389 = vpop.xlane.xlu0 %4388
        %v4390 = vsub.f32 %v4381, %v4386
        %v4391 = vsub.f32 %v4382, %v4389
        %v4392 = vmul.f32 %v4390, 1.442695
        %v4393 = vpow.pop %v4392
        %v4394 = vmul.f32 %v4391, 1.442695
        %v4395 = vpow.pop %v4394
        %v4396 = vsel %vm4383, %v4393, 0.0
        %4397 = vadd.xlane.f32.xlu0 %v4396
        %v4398 = vpop.xlane.xlu0 %4397
        %v4399 = vsel %vm4383, %v4395, 0.0
        %4400 = vadd.xlane.f32.xlu0 %v4399
        %v4401 = vpop.xlane.xlu0 %4400
        %v4402 = vrcp.pop %v4398
        %v4403 = vrcp.pop %v4401
        %v4404 = vmul.f32 %v4393, %v4402
        %v4405 = vmul.f32 %v4395, %v4403
        %v4406 = vmul.f32 %v4404, 0.4
        %v4407 = vmul.f32 %v4405, 0.4
        %v4408 = vsel %vm4259, 0.6, 0.0
        %v4409 = vadd.f32 %v4406, %v4408
        %v4410 = vadd.f32 %v4407, %v4408
        %4411 = vst.msk [vmem:[%s611] sm:$0xff] %vm4383, %v4409
        %4412 = vst.msk [vmem:[%s611 + $0x8] sm:$0xff] %vm4383, %v4410
        %s4413 = smul.u32 2, %s24
        %p4414 = scmp.lt.s32.totalorder %s23, 1
        %s4415 = scalar_select %p4414, %s23, 1
        %p4416 = scmp.lt.s32.totalorder %s4413, 3
        %s4417 = scalar_select %p4416, %s4413, 3
        %s4418 = smul.addr %s4415, 4
        %s4419 = sadd.s32 %s4417, %s4418
        %s4420 = smul.addr %s4419, 8
        %s4421 = scalar_lea.vmem %s8, %s4420
        // Predicated region
        $region129: #{belong_weight_generator_forward.5} parent=119 // pred_check
          %p4422 = pneg %p233
        $region130: #{belong_weight_generator_forward.5} parent=119 // pred_check_branch
          %4424 = sbr.rel (%p4422) target = $region132
        $region131: #{belong_weight_generator_forward.5} parent=119 // pred_region
          %s4425 = smul.u32 2, %s24
        $region132: #{belong_weight_generator_forward.5} parent=119 // pred_fallthru
          _
      $region120: #{belong_weight_generator_forward.5} parent=5 // pred_fallthru
        _
      %p4426 = scmp.le.s32.totalorder 2, %s14
      // Predicated region
      $region133: #{belong_weight_generator_forward.5} parent=5 // pred_check
        %p4427 = pneg %p4426
      $region134: #{belong_weight_generator_forward.5} parent=5 // pred_check_branch
        %4429 = sbr.rel (%p4427) target = $region136
      $region135: #{belong_weight_generator_forward.5} parent=5 // pred_region
        %s4430 = ssub.s32 %s14, 2
        // Predicated region
        $region137: #{belong_weight_generator_forward.5} parent=135 // pred_check
          %p4431 = pneg %p239
        $region138: #{belong_weight_generator_forward.5} parent=135 // pred_check_branch
          %4433 = sbr.rel (%p4431) target = $region140
        $region139: #{belong_weight_generator_forward.5} parent=135 // pred_region
          %s4434 = smul.u32 2, %s26
          %p4435 = scmp.lt.s32.totalorder %s25, 1
          %s4436 = scalar_select %p4435, %s25, 1
          %p4437 = scmp.lt.s32.totalorder %s4434, 3
          %s4438 = scalar_select %p4437, %s4434, 3
          %s4439 = smul.addr %s4436, 4
          %s4440 = sadd.s32 %s4438, %s4439
          %s4441 = smul.addr %s4440, 8
          %s4442 = scalar_lea.vmem %s8, %s4441
        $region140: #{belong_weight_generator_forward.5} parent=135 // pred_fallthru
          _
      $region136: #{belong_weight_generator_forward.5} parent=5 // pred_fallthru
        _
    $region6: #{belong_weight_generator_forward.5} parent=1 // loop_footer
      %s18 = sadd.s32 1, %s14
    $region7: #{belong_weight_generator_forward.5} parent=1 // loop_footer_branch
      %13 = sbr.rel target = $region3
    $region8: #{belong_weight_generator_forward.5} parent=1 // loop_exit
      _

</llo_original>
